<compile_context>
chip_gen: v7x
topology: tpu7x:2x2x1
jax: 0.10.0
libtpu: 0.0.40
codegen_flags: <defaults>
</compile_context>

<pallas_src>
import functools

import jax
import jax.numpy as jnp
from jax import lax
from jax.experimental import pallas as pl
from jax.experimental.pallas import tpu as pltpu


C_MID = 128          # fused intermediate / output channel count (64 cor + 64 flo)
C_OUT_CONV = 126     # real output channels of the final conv (padded to 128)


def _vmem_limit_bytes():
    # Defaults (16 MiB v5e / 32 MiB v6e-v7x scoped) are too small beyond toy
    # sizes.  Target ~100 MiB on 128-MiB parts, capacity - 8 MiB on v7x.
    try:
        cap = pltpu.get_tpu_info().vmem_capacity_bytes
    except Exception:
        cap = 128 * 1024 * 1024
    return int(min(cap - 8 * 1024 * 1024, 100 * 1024 * 1024))


# -----------------------------------------------------------------------------
# Pallas kernel: one batch element per grid step (axis marked "parallel" so a
# multi-TensorCore chip can shard it).  Each 3x3 conv is 3 per-dy accumulated
# bf16 matmuls fed from a bf16 padded VMEM scratch whose interior is rewritten
# per stage (borders stay zero).
# -----------------------------------------------------------------------------
def _motion_encoder_kernel(in1_ref, w1_ref, wmid_ref, wlast_ref,
                           b1_ref, bmid_ref, blast_ref,
                           out_ref, pad_ref, *, H, W, Cc):
    HW = H * W
    C1p = in1_ref.shape[-1]            # Cc + 98, zero-padded to multiple of 128

    # ---- stage 1: fused [convc1 (1x1 on corr) | convf1 (7x7 on flow)] -------
    # in1 = concat([corr, im2col7x7(flow), zero-pad], lanes); w1 is
    # block-diagonal, so cols 0..63 = relu(convc1(corr)), 64..127 = relu(convf1(flow)).
    x1 = in1_ref[0].reshape(HW, C1p)                            # bf16, pure view
    mid = jnp.dot(x1, w1_ref[...], preferred_element_type=jnp.float32)
    mid = jnp.maximum(mid + b1_ref[...], 0.0)                   # (HW, 128) f32

    # ---- zero only the four border strips of the bf16 padded scratch --------
    # Per grid step (not pl.when(pid==0)): with a "parallel" batch axis each
    # TensorCore owns a private, *uninitialized* scratch and only one of them
    # ever executes program_id==0.  The strips are tiny vs. the interior fills.
    zrow = jnp.zeros((1, W + 2, C_MID), jnp.bfloat16)
    zcol = jnp.zeros((H + 2, 1, C_MID), jnp.bfloat16)
    pad_ref[0:1, :, :] = zrow
    pad_ref[H + 1:H + 2, :, :] = zrow
    pad_ref[:, 0:1, :] = zcol
    pad_ref[:, W + 1:W + 2, :] = zcol

    def conv3x3(feat_bf16_hwc, w_ref, b_row):
        # Write interior (borders remain zero), then accumulate per-dy bands:
        # 3 matmuls of (HW, 384) x (384, 128) instead of one (HW, 1152) patch.
        pad_ref[1:H + 1, 1:W + 1, :] = feat_bf16_hwc
        acc = jnp.zeros((HW, C_MID), jnp.float32)
        for dy in range(3):
            lhs = jnp.concatenate(
                [pad_ref[dy:dy + H, dx:dx + W, :].reshape(HW, C_MID)
                 for dx in range(3)],
                axis=-1)                                        # (HW, 384) bf16
            w_band = w_ref[dy * 3 * C_MID:(dy + 1) * 3 * C_MID, :]
            acc = acc + jnp.dot(lhs, w_band,
                                preferred_element_type=jnp.float32)
        return jnp.maximum(acc + b_row, 0.0)

    # ---- stage 2: convc2 & convf2 fused as one block-diagonal 3x3 conv ------
    cor_flo = conv3x3(mid.astype(jnp.bfloat16).reshape(H, W, C_MID),
                      wmid_ref, bmid_ref[...])                  # (HW, 128)

    # ---- stage 3: final 3x3 conv (128 -> 126, zero-padded to 128 cols) ------
    out = conv3x3(cor_flo.astype(jnp.bfloat16).reshape(H, W, C_MID),
                  wlast_ref, blast_ref[...])                    # (HW, 128)
    # cols 126..127 are exactly zero (zero weight cols, zero bias, relu(0)=0).

    # ---- append flow into lanes 126/127 via an iota-masked add --------------
    # Flow lives in in1 at the centre tap (dy=3, dx=3) of the 7x7 im2col:
    # lanes Cc + 48 and Cc + 49.
    flow2 = x1[:, Cc + 48:Cc + 50].astype(jnp.float32)          # (HW, 2)
    lane = lax.broadcasted_iota(jnp.int32, (HW, C_MID), 1)
    flow_lanes = jnp.where(lane == C_MID - 2, flow2[:, 0:1],
                           jnp.where(lane == C_MID - 1, flow2[:, 1:2], 0.0))
    out_ref[0] = (out + flow_lanes).reshape(H, W, C_MID).astype(out_ref.dtype)


def _motion_encoder_call(in1, w1, wmid, wlast, b1, bmid, blast, *, H, W, Cc):
    B = in1.shape[0]
    C1p = in1.shape[-1]

    per_b = lambda b: (b, 0, 0, 0)
    full2 = lambda b: (0, 0)
    kernel = functools.partial(_motion_encoder_kernel, H=H, W=W, Cc=Cc)

    return pl.pallas_call(
        kernel,
        out_shape=jax.ShapeDtypeStruct((B, H, W, C_MID), jnp.float32),
        grid_spec=pltpu.PrefetchScalarGridSpec(
            num_scalar_prefetch=0,
            grid=(B,),
            in_specs=[
                pl.BlockSpec((1, H, W, C1p), per_b),            # corr ++ im2col(flow), bf16
                pl.BlockSpec((C1p, C_MID), full2),              # fused stage-1 weight
                pl.BlockSpec((9 * C_MID, C_MID), full2),        # fused 3x3 weight (c2|f2)
                pl.BlockSpec((9 * C_MID, C_MID), full2),        # final 3x3 weight (padded)
                pl.BlockSpec((1, C_MID), full2),                # fused stage-1 bias
                pl.BlockSpec((1, C_MID), full2),                # fused stage-2 bias
                pl.BlockSpec((1, C_MID), full2),                # final bias (padded)
            ],
            out_specs=pl.BlockSpec((1, H, W, C_MID), per_b),
            scratch_shapes=[pltpu.VMEM((H + 2, W + 2, C_MID), jnp.bfloat16)],
        ),
        compiler_params=pltpu.CompilerParams(
            dimension_semantics=("parallel",),
            vmem_limit_bytes=_vmem_limit_bytes()),
    )(in1, w1, wmid, wlast, b1, bmid, blast)


# -----------------------------------------------------------------------------
# Public wrapper: PyTorch-style NCHW / OIHW in and out.  Weight packing and the
# flow im2col are pure layout plumbing; all conv math happens in the kernel.
# -----------------------------------------------------------------------------
def basic_motion_encoder_pallas(flow, corr, params):
    B, _, H, W = flow.shape
    Cc = corr.shape[1]

    nhwc = lambda t: jnp.transpose(t, (0, 2, 3, 1))
    hwio = lambda w: jnp.transpose(w, (2, 3, 1, 0))              # OIHW -> HWIO

    flow_n = nhwc(flow)                                          # (B, H, W, 2)
    corr_n = nhwc(corr)                                          # (B, H, W, Cc)

    # im2col of flow for the 7x7 conv (pad=3); tap order (dy, dx, cin).
    # TODO(synk): build this in-kernel from raw flow at real RAFT resolutions
    # to avoid the wrapper-side 49x HBM inflation of flow.
    fp = jnp.pad(flow_n, ((0, 0), (3, 3), (3, 3), (0, 0)))
    cols = [fp[:, dy:dy + H, dx:dx + W, :] for dy in range(7) for dx in range(7)]
    flow_pat = jnp.concatenate(cols, axis=-1)                    # (B, H, W, 98)

    # One bf16 kernel input, K zero-padded to a multiple of 128 lanes.
    C1 = Cc + 98
    C1p = ((C1 + 127) // 128) * 128
    in1 = jnp.concatenate([corr_n, flow_pat], axis=-1)           # (B, H, W, C1)
    if C1p != C1:
        in1 = jnp.pad(in1, ((0, 0), (0, 0), (0, 0), (0, C1p - C1)))
    in1 = in1.astype(jnp.bfloat16)

    # Stage-1 fused weight: block diagonal of convc1 (1x1) and convf1 (im2col),
    # zero rows for the K padding.
    w_c1 = params["wc1"][:, :, 0, 0].T                           # (Cc, 64)
    w_f1 = hwio(params["wf1"]).reshape(7 * 7 * 2, 64)            # (98, 64)
    w1 = jnp.zeros((C1p, C_MID), jnp.float32)
    w1 = w1.at[:Cc, :64].set(w_c1).at[Cc:C1, 64:].set(w_f1)
    b1 = jnp.concatenate([params["bc1"], params["bf1"]])         # (128,)

    # Stage-2 fused weight: block-diagonal convc2 / convf2 (3x3, 128 -> 128).
    w_c2 = hwio(params["wc2"])                                   # (3,3,64,64)
    w_f2 = hwio(params["wf2"])
    wmid = jnp.zeros((3, 3, C_MID, C_MID), jnp.float32)
    wmid = wmid.at[:, :, :64, :64].set(w_c2).at[:, :, 64:, 64:].set(w_f2)
    wmid = wmid.reshape(9 * C_MID, C_MID)                        # (1152, 128)
    bmid = jnp.concatenate([params["bc2"], params["bf2"]])       # (128,)

    # Final conv weight (3x3, 128 -> 126), zero-padded to 128 output columns
    # so the MXU result path and the output store stay lane-dense.
    wl = hwio(params["wl"]).reshape(9 * C_MID, C_OUT_CONV)       # (1152, 126)
    wlast = jnp.zeros((9 * C_MID, C_MID), jnp.float32).at[:, :C_OUT_CONV].set(wl)
    blast = jnp.zeros((C_MID,), jnp.float32).at[:C_OUT_CONV].set(params["bl"])

    out_nhwc = _motion_encoder_call(
        in1,
        w1.astype(jnp.bfloat16), wmid.astype(jnp.bfloat16),
        wlast.astype(jnp.bfloat16),
        b1[None, :], bmid[None, :], blast[None, :], H=H, W=W, Cc=Cc)
    return jnp.transpose(out_nhwc, (0, 3, 1, 2))                 # back to NCHW


# Pure-JAX f32 reference (NCHW, matches the PyTorch module semantics).
def basic_motion_encoder_reference(flow, corr, params):
    def conv(x, w, b, pad):
        out = lax.conv_general_dilated(
            x, w, window_strides=(1, 1), padding=((pad, pad), (pad, pad)),
            dimension_numbers=("NCHW", "OIHW", "NCHW"),
            precision=lax.Precision.HIGHEST)
        return out + b[None, :, None, None]

    cor = jax.nn.relu(conv(corr, params["wc1"], params["bc1"], 0))
    cor = jax.nn.relu(conv(cor, params["wc2"], params["bc2"], 1))
    flo = jax.nn.relu(conv(flow, params["wf1"], params["bf1"], 3))
    flo = jax.nn.relu(conv(flo, params["wf2"], params["bf2"], 1))
    cor_flo = jnp.concatenate([cor, flo], axis=1)
    out = jax.nn.relu(conv(cor_flo, params["wl"], params["bl"], 1))
    return jnp.concatenate([out, flow], axis=1)


if __name__ == "__main__":
    B, H, W = 2, 16, 16
    corr_levels, corr_radius = 2, 3
    Cc = corr_levels * (2 * corr_radius + 1)                     # 14

    key = jax.random.PRNGKey(0)
    ks = jax.random.split(key, 12)

    # Deterministic synthetic parameters (shapes match the nn.Conv2d layers).
    params = {
        "wc1": 0.1 * jax.random.normal(ks[0], (64, Cc, 1, 1), jnp.float32),
        "bc1": 0.1 * jax.random.normal(ks[1], (64,), jnp.float32),
        "wc2": 0.1 * jax.random.normal(ks[2], (64, 64, 3, 3), jnp.float32),
        "bc2": 0.1 * jax.random.normal(ks[3], (64,), jnp.float32),
        "wf1": 0.1 * jax.random.normal(ks[4], (64, 2, 7, 7), jnp.float32),
        "bf1": 0.1 * jax.random.normal(ks[5], (64,), jnp.float32),
        "wf2": 0.1 * jax.random.normal(ks[6], (64, 64, 3, 3), jnp.float32),
        "bf2": 0.1 * jax.random.normal(ks[7], (64,), jnp.float32),
        "wl":  0.1 * jax.random.normal(ks[8], (126, 128, 3, 3), jnp.float32),
        "bl":  0.1 * jax.random.normal(ks[9], (126,), jnp.float32),
    }

    flow = 0.5 * jax.random.normal(ks[10], (B, 2, H, W), jnp.float32)
    corr = 0.5 * jax.random.normal(ks[11], (B, Cc, H, W), jnp.float32)

    out = basic_motion_encoder_pallas(flow, corr, params)
    out = jax.block_until_ready(out)

    ref = basic_motion_encoder_reference(flow, corr, params)
    assert out.shape == ref.shape == (B, 128, H, W)
    max_err = float(jnp.max(jnp.abs(out - ref)))
    # bf16 MXU operands / bf16 intermediates vs f32 HIGHEST reference.
    assert jnp.allclose(out, ref, atol=5e-2, rtol=5e-2), max_err

    print("KERNEL_OK")
</pallas_src>

<mosaic_0001>
module attributes {stable_mosaic.version = 11 : i64} {
  func.func @_motion_encoder_kernel(%arg0: i32, %arg1: memref<1x16x16x128xbf16, #tpu.memory_space<vmem>>, %arg2: memref<128x128xbf16, #tpu.memory_space<vmem>>, %arg3: memref<1152x128xbf16, #tpu.memory_space<vmem>>, %arg4: memref<1152x128xbf16, #tpu.memory_space<vmem>>, %arg5: memref<1x128xf32, #tpu.memory_space<vmem>>, %arg6: memref<1x128xf32, #tpu.memory_space<vmem>>, %arg7: memref<1x128xf32, #tpu.memory_space<vmem>>, %arg8: memref<1x16x16x128xf32, #tpu.memory_space<vmem>>, %arg9: memref<18x18x128xbf16, #tpu.memory_space<vmem>>) attributes {dimension_semantics = [#tpu.dimension_semantics<parallel>], iteration_bounds = array<i64: 2>, scalar_prefetch = 0 : i64, scratch_operands = 1 : i64, tpu.core_type = #tpu.core_type<tc>, window_params = [{transform_indices = @transform_0, window_bounds = array<i64: 1, 16, 16, 128>}, {pipeline_mode = #tpu.pipeline_mode<synchronous>, transform_indices = @transform_1, window_bounds = array<i64: 128, 128>}, {pipeline_mode = #tpu.pipeline_mode<synchronous>, transform_indices = @transform_2, window_bounds = array<i64: 1152, 128>}, {pipeline_mode = #tpu.pipeline_mode<synchronous>, transform_indices = @transform_3, window_bounds = array<i64: 1152, 128>}, {pipeline_mode = #tpu.pipeline_mode<synchronous>, transform_indices = @transform_4, window_bounds = array<i64: 1, 128>}, {pipeline_mode = #tpu.pipeline_mode<synchronous>, transform_indices = @transform_5, window_bounds = array<i64: 1, 128>}, {pipeline_mode = #tpu.pipeline_mode<synchronous>, transform_indices = @transform_6, window_bounds = array<i64: 1, 128>}, {transform_indices = @transform_7, window_bounds = array<i64: 1, 16, 16, 128>}]} {
    %c0 = arith.constant 0 : index
    %c0_0 = arith.constant 0 : index
    %c0_1 = arith.constant 0 : index
    %c0_2 = arith.constant 0 : index
    %0 = vector.load %arg1[%c0, %c0_0, %c0_1, %c0_2] : memref<1x16x16x128xbf16, #tpu.memory_space<vmem>>, vector<1x16x16x128xbf16>
    %1 = vector.shape_cast %0 : vector<1x16x16x128xbf16> to vector<16x16x128xbf16>
    %2 = vector.shape_cast %1 : vector<16x16x128xbf16> to vector<256x128xbf16>
    %c0_3 = arith.constant 0 : index
    %c0_4 = arith.constant 0 : index
    %3 = vector.load %arg2[%c0_3, %c0_4] : memref<128x128xbf16, #tpu.memory_space<vmem>>, vector<128x128xbf16>
    %cst = arith.constant dense<0.000000e+00> : vector<256x128xf32>
    %4 = tpu.matmul %2, %3, %cst {dimension_numbers = #tpu.dot_dimension_numbers<[1], [0], [0], [1], [0, 0, 1, 1], [], []>} : vector<256x128xbf16>, vector<128x128xbf16>, vector<256x128xf32> -> vector<256x128xf32>
    %c0_5 = arith.constant 0 : index
    %c0_6 = arith.constant 0 : index
    %5 = vector.load %arg5[%c0_5, %c0_6] : memref<1x128xf32, #tpu.memory_space<vmem>>, vector<1x128xf32>
    %6 = vector.broadcast %5 : vector<1x128xf32> to vector<256x128xf32>
    %7 = arith.addf %4, %6 : vector<256x128xf32>
    %cst_7 = arith.constant 0.000000e+00 : f32
    %8 = vector.broadcast %cst_7 : f32 to vector<256x128xf32>
    %9 = arith.maximumf %7, %8 : vector<256x128xf32>
    %cst_8 = arith.constant 0.000000e+00 : bf16
    %10 = vector.broadcast %cst_8 : bf16 to vector<1x18x128xbf16>
    %cst_9 = arith.constant 0.000000e+00 : bf16
    %11 = vector.broadcast %cst_9 : bf16 to vector<18x1x128xbf16>
    %c0_10 = arith.constant 0 : index
    %c0_11 = arith.constant 0 : index
    %c0_12 = arith.constant 0 : index
    %12 = vector.load %arg9[%c0_10, %c0_11, %c0_12] : memref<18x18x128xbf16, #tpu.memory_space<vmem>>, vector<1x18x128xbf16>
    tpu.vector_store %arg9[%c0_10, %c0_11, %c0_12], %10 {strides = array<i32>} : memref<18x18x128xbf16, #tpu.memory_space<vmem>>, vector<1x18x128xbf16>,
    %c17 = arith.constant 17 : index
    %c0_13 = arith.constant 0 : index
    %c0_14 = arith.constant 0 : index
    %13 = vector.load %arg9[%c17, %c0_13, %c0_14] : memref<18x18x128xbf16, #tpu.memory_space<vmem>>, vector<1x18x128xbf16>
    tpu.vector_store %arg9[%c17, %c0_13, %c0_14], %10 {strides = array<i32>} : memref<18x18x128xbf16, #tpu.memory_space<vmem>>, vector<1x18x128xbf16>,
    %c0_15 = arith.constant 0 : index
    %c0_16 = arith.constant 0 : index
    %c0_17 = arith.constant 0 : index
    %14 = vector.load %arg9[%c0_15, %c0_16, %c0_17] : memref<18x18x128xbf16, #tpu.memory_space<vmem>>, vector<18x1x128xbf16>
    tpu.vector_store %arg9[%c0_15, %c0_16, %c0_17], %11 {strides = array<i32>} : memref<18x18x128xbf16, #tpu.memory_space<vmem>>, vector<18x1x128xbf16>,
    %c0_18 = arith.constant 0 : index
    %c17_19 = arith.constant 17 : index
    %c0_20 = arith.constant 0 : index
    %15 = vector.load %arg9[%c0_18, %c17_19, %c0_20] : memref<18x18x128xbf16, #tpu.memory_space<vmem>>, vector<18x1x128xbf16>
    tpu.vector_store %arg9[%c0_18, %c17_19, %c0_20], %11 {strides = array<i32>} : memref<18x18x128xbf16, #tpu.memory_space<vmem>>, vector<18x1x128xbf16>,
    %16 = arith.truncf %9 : vector<256x128xf32> to vector<256x128xbf16>
    %17 = vector.shape_cast %16 : vector<256x128xbf16> to vector<16x16x128xbf16>
    %c0_21 = arith.constant 0 : index
    %c0_22 = arith.constant 0 : index
    %18 = vector.load %arg6[%c0_21, %c0_22] : memref<1x128xf32, #tpu.memory_space<vmem>>, vector<1x128xf32>
    %c1 = arith.constant 1 : index
    %c1_23 = arith.constant 1 : index
    %c0_24 = arith.constant 0 : index
    %19 = vector.load %arg9[%c1, %c1_23, %c0_24] : memref<18x18x128xbf16, #tpu.memory_space<vmem>>, vector<16x16x128xbf16>
    tpu.vector_store %arg9[%c1, %c1_23, %c0_24], %17 {strides = array<i32>} : memref<18x18x128xbf16, #tpu.memory_space<vmem>>, vector<16x16x128xbf16>,
    %cst_25 = arith.constant 0.000000e+00 : f32
    %20 = vector.broadcast %cst_25 : f32 to vector<256x128xf32>
    %c0_26 = arith.constant 0 : index
    %c0_27 = arith.constant 0 : index
    %c0_28 = arith.constant 0 : index
    %21 = vector.load %arg9[%c0_26, %c0_27, %c0_28] : memref<18x18x128xbf16, #tpu.memory_space<vmem>>, vector<16x16x128xbf16>
    %22 = vector.shape_cast %21 : vector<16x16x128xbf16> to vector<256x128xbf16>
    %c0_29 = arith.constant 0 : index
    %c1_30 = arith.constant 1 : index
    %c0_31 = arith.constant 0 : index
    %23 = vector.load %arg9[%c0_29, %c1_30, %c0_31] : memref<18x18x128xbf16, #tpu.memory_space<vmem>>, vector<16x16x128xbf16>
    %24 = vector.shape_cast %23 : vector<16x16x128xbf16> to vector<256x128xbf16>
    %c0_32 = arith.constant 0 : index
    %c2 = arith.constant 2 : index
    %c0_33 = arith.constant 0 : index
    %25 = vector.load %arg9[%c0_32, %c2, %c0_33] : memref<18x18x128xbf16, #tpu.memory_space<vmem>>, vector<16x16x128xbf16>
    %26 = vector.shape_cast %25 : vector<16x16x128xbf16> to vector<256x128xbf16>
    %27 = tpu.concatenate %22, %24, %26 in 1 : vector<256x128xbf16>, vector<256x128xbf16>, vector<256x128xbf16> -> vector<256x384xbf16>
    %c0_34 = arith.constant 0 : index
    %c0_35 = arith.constant 0 : index
    %28 = vector.load %arg3[%c0_34, %c0_35] : memref<1152x128xbf16, #tpu.memory_space<vmem>>, vector<384x128xbf16>
    %cst_36 = arith.constant dense<0.000000e+00> : vector<256x128xf32>
    %29 = tpu.matmul %27, %28, %cst_36 {dimension_numbers = #tpu.dot_dimension_numbers<[1], [0], [0], [1], [0, 0, 1, 1], [], []>} : vector<256x384xbf16>, vector<384x128xbf16>, vector<256x128xf32> -> vector<256x128xf32>
    %30 = arith.addf %20, %29 : vector<256x128xf32>
    %c1_37 = arith.constant 1 : index
    %c0_38 = arith.constant 0 : index
    %c0_39 = arith.constant 0 : index
    %31 = vector.load %arg9[%c1_37, %c0_38, %c0_39] : memref<18x18x128xbf16, #tpu.memory_space<vmem>>, vector<16x16x128xbf16>
    %32 = vector.shape_cast %31 : vector<16x16x128xbf16> to vector<256x128xbf16>
    %c1_40 = arith.constant 1 : index
    %c1_41 = arith.constant 1 : index
    %c0_42 = arith.constant 0 : index
    %33 = vector.load %arg9[%c1_40, %c1_41, %c0_42] : memref<18x18x128xbf16, #tpu.memory_space<vmem>>, vector<16x16x128xbf16>
    %34 = vector.shape_cast %33 : vector<16x16x128xbf16> to vector<256x128xbf16>
    %c1_43 = arith.constant 1 : index
    %c2_44 = arith.constant 2 : index
    %c0_45 = arith.constant 0 : index
    %35 = vector.load %arg9[%c1_43, %c2_44, %c0_45] : memref<18x18x128xbf16, #tpu.memory_space<vmem>>, vector<16x16x128xbf16>
    %36 = vector.shape_cast %35 : vector<16x16x128xbf16> to vector<256x128xbf16>
    %37 = tpu.concatenate %32, %34, %36 in 1 : vector<256x128xbf16>, vector<256x128xbf16>, vector<256x128xbf16> -> vector<256x384xbf16>
    %c384 = arith.constant 384 : index
    %c0_46 = arith.constant 0 : index
    %38 = vector.load %arg3[%c384, %c0_46] : memref<1152x128xbf16, #tpu.memory_space<vmem>>, vector<384x128xbf16>
    %cst_47 = arith.constant dense<0.000000e+00> : vector<256x128xf32>
    %39 = tpu.matmul %37, %38, %cst_47 {dimension_numbers = #tpu.dot_dimension_numbers<[1], [0], [0], [1], [0, 0, 1, 1], [], []>} : vector<256x384xbf16>, vector<384x128xbf16>, vector<256x128xf32> -> vector<256x128xf32>
    %40 = arith.addf %30, %39 : vector<256x128xf32>
    %c2_48 = arith.constant 2 : index
    %c0_49 = arith.constant 0 : index
    %c0_50 = arith.constant 0 : index
    %41 = vector.load %arg9[%c2_48, %c0_49, %c0_50] : memref<18x18x128xbf16, #tpu.memory_space<vmem>>, vector<16x16x128xbf16>
    %42 = vector.shape_cast %41 : vector<16x16x128xbf16> to vector<256x128xbf16>
    %c2_51 = arith.constant 2 : index
    %c1_52 = arith.constant 1 : index
    %c0_53 = arith.constant 0 : index
    %43 = vector.load %arg9[%c2_51, %c1_52, %c0_53] : memref<18x18x128xbf16, #tpu.memory_space<vmem>>, vector<16x16x128xbf16>
    %44 = vector.shape_cast %43 : vector<16x16x128xbf16> to vector<256x128xbf16>
    %c2_54 = arith.constant 2 : index
    %c2_55 = arith.constant 2 : index
    %c0_56 = arith.constant 0 : index
    %45 = vector.load %arg9[%c2_54, %c2_55, %c0_56] : memref<18x18x128xbf16, #tpu.memory_space<vmem>>, vector<16x16x128xbf16>
    %46 = vector.shape_cast %45 : vector<16x16x128xbf16> to vector<256x128xbf16>
    %47 = tpu.concatenate %42, %44, %46 in 1 : vector<256x128xbf16>, vector<256x128xbf16>, vector<256x128xbf16> -> vector<256x384xbf16>
    %c768 = arith.constant 768 : index
    %c0_57 = arith.constant 0 : index
    %48 = vector.load %arg3[%c768, %c0_57] : memref<1152x128xbf16, #tpu.memory_space<vmem>>, vector<384x128xbf16>
    %cst_58 = arith.constant dense<0.000000e+00> : vector<256x128xf32>
    %49 = tpu.matmul %47, %48, %cst_58 {dimension_numbers = #tpu.dot_dimension_numbers<[1], [0], [0], [1], [0, 0, 1, 1], [], []>} : vector<256x384xbf16>, vector<384x128xbf16>, vector<256x128xf32> -> vector<256x128xf32>
    %50 = arith.addf %40, %49 : vector<256x128xf32>
    %51 = vector.broadcast %18 : vector<1x128xf32> to vector<256x128xf32>
    %52 = arith.addf %50, %51 : vector<256x128xf32>
    %cst_59 = arith.constant 0.000000e+00 : f32
    %53 = vector.broadcast %cst_59 : f32 to vector<256x128xf32>
    %54 = arith.maximumf %52, %53 : vector<256x128xf32>
    %55 = arith.truncf %54 : vector<256x128xf32> to vector<256x128xbf16>
    %56 = vector.shape_cast %55 : vector<256x128xbf16> to vector<16x16x128xbf16>
    %c0_60 = arith.constant 0 : index
    %c0_61 = arith.constant 0 : index
    %57 = vector.load %arg7[%c0_60, %c0_61] : memref<1x128xf32, #tpu.memory_space<vmem>>, vector<1x128xf32>
    %c1_62 = arith.constant 1 : index
    %c1_63 = arith.constant 1 : index
    %c0_64 = arith.constant 0 : index
    %58 = vector.load %arg9[%c1_62, %c1_63, %c0_64] : memref<18x18x128xbf16, #tpu.memory_space<vmem>>, vector<16x16x128xbf16>
    tpu.vector_store %arg9[%c1_62, %c1_63, %c0_64], %56 {strides = array<i32>} : memref<18x18x128xbf16, #tpu.memory_space<vmem>>, vector<16x16x128xbf16>,
    %cst_65 = arith.constant 0.000000e+00 : f32
    %59 = vector.broadcast %cst_65 : f32 to vector<256x128xf32>
    %c0_66 = arith.constant 0 : index
    %c0_67 = arith.constant 0 : index
    %c0_68 = arith.constant 0 : index
    %60 = vector.load %arg9[%c0_66, %c0_67, %c0_68] : memref<18x18x128xbf16, #tpu.memory_space<vmem>>, vector<16x16x128xbf16>
    %61 = vector.shape_cast %60 : vector<16x16x128xbf16> to vector<256x128xbf16>
    %c0_69 = arith.constant 0 : index
    %c1_70 = arith.constant 1 : index
    %c0_71 = arith.constant 0 : index
    %62 = vector.load %arg9[%c0_69, %c1_70, %c0_71] : memref<18x18x128xbf16, #tpu.memory_space<vmem>>, vector<16x16x128xbf16>
    %63 = vector.shape_cast %62 : vector<16x16x128xbf16> to vector<256x128xbf16>
    %c0_72 = arith.constant 0 : index
    %c2_73 = arith.constant 2 : index
    %c0_74 = arith.constant 0 : index
    %64 = vector.load %arg9[%c0_72, %c2_73, %c0_74] : memref<18x18x128xbf16, #tpu.memory_space<vmem>>, vector<16x16x128xbf16>
    %65 = vector.shape_cast %64 : vector<16x16x128xbf16> to vector<256x128xbf16>
    %66 = tpu.concatenate %61, %63, %65 in 1 : vector<256x128xbf16>, vector<256x128xbf16>, vector<256x128xbf16> -> vector<256x384xbf16>
    %c0_75 = arith.constant 0 : index
    %c0_76 = arith.constant 0 : index
    %67 = vector.load %arg4[%c0_75, %c0_76] : memref<1152x128xbf16, #tpu.memory_space<vmem>>, vector<384x128xbf16>
    %cst_77 = arith.constant dense<0.000000e+00> : vector<256x128xf32>
    %68 = tpu.matmul %66, %67, %cst_77 {dimension_numbers = #tpu.dot_dimension_numbers<[1], [0], [0], [1], [0, 0, 1, 1], [], []>} : vector<256x384xbf16>, vector<384x128xbf16>, vector<256x128xf32> -> vector<256x128xf32>
    %69 = arith.addf %59, %68 : vector<256x128xf32>
    %c1_78 = arith.constant 1 : index
    %c0_79 = arith.constant 0 : index
    %c0_80 = arith.constant 0 : index
    %70 = vector.load %arg9[%c1_78, %c0_79, %c0_80] : memref<18x18x128xbf16, #tpu.memory_space<vmem>>, vector<16x16x128xbf16>
    %71 = vector.shape_cast %70 : vector<16x16x128xbf16> to vector<256x128xbf16>
    %c1_81 = arith.constant 1 : index
    %c1_82 = arith.constant 1 : index
    %c0_83 = arith.constant 0 : index
    %72 = vector.load %arg9[%c1_81, %c1_82, %c0_83] : memref<18x18x128xbf16, #tpu.memory_space<vmem>>, vector<16x16x128xbf16>
    %73 = vector.shape_cast %72 : vector<16x16x128xbf16> to vector<256x128xbf16>
    %c1_84 = arith.constant 1 : index
    %c2_85 = arith.constant 2 : index
    %c0_86 = arith.constant 0 : index
    %74 = vector.load %arg9[%c1_84, %c2_85, %c0_86] : memref<18x18x128xbf16, #tpu.memory_space<vmem>>, vector<16x16x128xbf16>
    %75 = vector.shape_cast %74 : vector<16x16x128xbf16> to vector<256x128xbf16>
    %76 = tpu.concatenate %71, %73, %75 in 1 : vector<256x128xbf16>, vector<256x128xbf16>, vector<256x128xbf16> -> vector<256x384xbf16>
    %c384_87 = arith.constant 384 : index
    %c0_88 = arith.constant 0 : index
    %77 = vector.load %arg4[%c384_87, %c0_88] : memref<1152x128xbf16, #tpu.memory_space<vmem>>, vector<384x128xbf16>
    %cst_89 = arith.constant dense<0.000000e+00> : vector<256x128xf32>
    %78 = tpu.matmul %76, %77, %cst_89 {dimension_numbers = #tpu.dot_dimension_numbers<[1], [0], [0], [1], [0, 0, 1, 1], [], []>} : vector<256x384xbf16>, vector<384x128xbf16>, vector<256x128xf32> -> vector<256x128xf32>
    %79 = arith.addf %69, %78 : vector<256x128xf32>
    %c2_90 = arith.constant 2 : index
    %c0_91 = arith.constant 0 : index
    %c0_92 = arith.constant 0 : index
    %80 = vector.load %arg9[%c2_90, %c0_91, %c0_92] : memref<18x18x128xbf16, #tpu.memory_space<vmem>>, vector<16x16x128xbf16>
    %81 = vector.shape_cast %80 : vector<16x16x128xbf16> to vector<256x128xbf16>
    %c2_93 = arith.constant 2 : index
    %c1_94 = arith.constant 1 : index
    %c0_95 = arith.constant 0 : index
    %82 = vector.load %arg9[%c2_93, %c1_94, %c0_95] : memref<18x18x128xbf16, #tpu.memory_space<vmem>>, vector<16x16x128xbf16>
    %83 = vector.shape_cast %82 : vector<16x16x128xbf16> to vector<256x128xbf16>
    %c2_96 = arith.constant 2 : index
    %c2_97 = arith.constant 2 : index
    %c0_98 = arith.constant 0 : index
    %84 = vector.load %arg9[%c2_96, %c2_97, %c0_98] : memref<18x18x128xbf16, #tpu.memory_space<vmem>>, vector<16x16x128xbf16>
    %85 = vector.shape_cast %84 : vector<16x16x128xbf16> to vector<256x128xbf16>
    %86 = tpu.concatenate %81, %83, %85 in 1 : vector<256x128xbf16>, vector<256x128xbf16>, vector<256x128xbf16> -> vector<256x384xbf16>
    %c768_99 = arith.constant 768 : index
    %c0_100 = arith.constant 0 : index
    %87 = vector.load %arg4[%c768_99, %c0_100] : memref<1152x128xbf16, #tpu.memory_space<vmem>>, vector<384x128xbf16>
    %cst_101 = arith.constant dense<0.000000e+00> : vector<256x128xf32>
    %88 = tpu.matmul %86, %87, %cst_101 {dimension_numbers = #tpu.dot_dimension_numbers<[1], [0], [0], [1], [0, 0, 1, 1], [], []>} : vector<256x384xbf16>, vector<384x128xbf16>, vector<256x128xf32> -> vector<256x128xf32>
    %89 = arith.addf %79, %88 : vector<256x128xf32>
    %90 = vector.broadcast %57 : vector<1x128xf32> to vector<256x128xf32>
    %91 = arith.addf %89, %90 : vector<256x128xf32>
    %cst_102 = arith.constant 0.000000e+00 : f32
    %92 = vector.broadcast %cst_102 : f32 to vector<256x128xf32>
    %93 = arith.maximumf %91, %92 : vector<256x128xf32>
    %94 = vector.extract_strided_slice %2 {offsets = [0, 62], sizes = [256, 2], strides = [1, 1]} : vector<256x128xbf16> to vector<256x2xbf16>
    %95 = arith.extf %94 : vector<256x2xbf16> to vector<256x2xf32>
    %96 = tpu.iota {dimensions = array<i32: 1>} : vector<256x128xi32>
    %c126_i32 = arith.constant 126 : i32
    %97 = vector.broadcast %c126_i32 : i32 to vector<256x128xi32>
    %98 = arith.cmpi eq, %96, %97 : vector<256x128xi32>
    %99 = vector.extract_strided_slice %95 {offsets = [0, 0], sizes = [256, 1], strides = [1, 1]} : vector<256x2xf32> to vector<256x1xf32>
    %c127_i32 = arith.constant 127 : i32
    %100 = vector.broadcast %c127_i32 : i32 to vector<256x128xi32>
    %101 = arith.cmpi eq, %96, %100 : vector<256x128xi32>
    %102 = vector.extract_strided_slice %95 {offsets = [0, 1], sizes = [256, 1], strides = [1, 1]} : vector<256x2xf32> to vector<256x1xf32>
    %cst_103 = arith.constant 0.000000e+00 : f32
    %103 = vector.shape_cast %102 : vector<256x1xf32> to vector<256x1xf32>
    %104 = vector.broadcast %103 : vector<256x1xf32> to vector<256x128xf32>
    %105 = vector.broadcast %cst_103 : f32 to vector<256x128xf32>
    %106 = arith.select %101, %104, %105 : vector<256x128xi1>, vector<256x128xf32>
    %107 = vector.shape_cast %99 : vector<256x1xf32> to vector<256x1xf32>
    %108 = vector.broadcast %107 : vector<256x1xf32> to vector<256x128xf32>
    %109 = arith.select %98, %108, %106 : vector<256x128xi1>, vector<256x128xf32>
    %110 = arith.addf %93, %109 : vector<256x128xf32>
    %111 = vector.shape_cast %110 : vector<256x128xf32> to vector<16x16x128xf32>
    %c0_104 = arith.constant 0 : index
    %c0_105 = arith.constant 0 : index
    %c0_106 = arith.constant 0 : index
    %c0_107 = arith.constant 0 : index
    %112 = vector.load %arg8[%c0_104, %c0_105, %c0_106, %c0_107] : memref<1x16x16x128xf32, #tpu.memory_space<vmem>>, vector<1x16x16x128xf32>
    %113 = vector.shape_cast %112 : vector<1x16x16x128xf32> to vector<16x16x128xf32>
    %114 = vector.shape_cast %111 : vector<16x16x128xf32> to vector<1x16x16x128xf32>
    tpu.vector_store %arg8[%c0_104, %c0_105, %c0_106, %c0_107], %114 {strides = array<i32>} : memref<1x16x16x128xf32, #tpu.memory_space<vmem>>, vector<1x16x16x128xf32>,
    return
  }
  func.func @transform_0(%arg0: i32) -> (i32, i32, i32, i32) {
    %c0_i32 = arith.constant 0 : i32
    %c0_i32_0 = arith.constant 0 : i32
    %c0_i32_1 = arith.constant 0 : i32
    %c0_i32_2 = arith.constant 0 : i32
    return %arg0, %c0_i32, %c0_i32_0, %c0_i32_1 : i32, i32, i32, i32
  }
  func.func @transform_1(%arg0: i32) -> (i32, i32) {
    %c0_i32 = arith.constant 0 : i32
    %c0_i32_0 = arith.constant 0 : i32
    %c0_i32_1 = arith.constant 0 : i32
    return %c0_i32, %c0_i32_0 : i32, i32
  }
  func.func @transform_2(%arg0: i32) -> (i32, i32) {
    %c0_i32 = arith.constant 0 : i32
    %c0_i32_0 = arith.constant 0 : i32
    %c0_i32_1 = arith.constant 0 : i32
    return %c0_i32, %c0_i32_0 : i32, i32
  }
  func.func @transform_3(%arg0: i32) -> (i32, i32) {
    %c0_i32 = arith.constant 0 : i32
    %c0_i32_0 = arith.constant 0 : i32
    %c0_i32_1 = arith.constant 0 : i32
    return %c0_i32, %c0_i32_0 : i32, i32
  }
  func.func @transform_4(%arg0: i32) -> (i32, i32) {
    %c0_i32 = arith.constant 0 : i32
    %c0_i32_0 = arith.constant 0 : i32
    %c0_i32_1 = arith.constant 0 : i32
    return %c0_i32, %c0_i32_0 : i32, i32
  }
  func.func @transform_5(%arg0: i32) -> (i32, i32) {
    %c0_i32 = arith.constant 0 : i32
    %c0_i32_0 = arith.constant 0 : i32
    %c0_i32_1 = arith.constant 0 : i32
    return %c0_i32, %c0_i32_0 : i32, i32
  }
  func.func @transform_6(%arg0: i32) -> (i32, i32) {
    %c0_i32 = arith.constant 0 : i32
    %c0_i32_0 = arith.constant 0 : i32
    %c0_i32_1 = arith.constant 0 : i32
    return %c0_i32, %c0_i32_0 : i32, i32
  }
  func.func @transform_7(%arg0: i32) -> (i32, i32, i32, i32) {
    %c0_i32 = arith.constant 0 : i32
    %c0_i32_0 = arith.constant 0 : i32
    %c0_i32_1 = arith.constant 0 : i32
    %c0_i32_2 = arith.constant 0 : i32
    return %arg0, %c0_i32, %c0_i32_0, %c0_i32_1 : i32, i32, i32, i32
  }
}

</mosaic_0001>

<llo_original>
// kernel: tpu_custom_call.1
$region0: #{tpu_custom_call.1}
  #allocation0 [shape = 'u32[]', space=smem, size = 0x4, offset = 0x4, fixed_abs, tag = 'smem constant byte address 0x4 - core index']
  #allocation1 [shape = 'u32[144,128]{1,0:T(1,128)}', space=vmem, size = 0x12000, scoped, tag = 'internal scratch']
  #allocation2 [shape = 'bf16[18,18,128]{2,1,0:T(8,128)(2,1)}', space=vmem, size = 0x1b000, scoped, tag = 'scratch operand']
  %s0 = inlined_call_operand.hbm [shape: bf16[2,16,16,128], index: 0, kind: input, shape index: {}]
  %s1 = inlined_call_operand.hbm [shape: bf16[128,128], index: 1, kind: input, shape index: {}]
  %s2 = inlined_call_operand.hbm [shape: bf16[1152,128], index: 2, kind: input, shape index: {}]
  %s3 = inlined_call_operand.hbm [shape: bf16[1152,128], index: 3, kind: input, shape index: {}]
  %s4 = inlined_call_operand.hbm [shape: f32[1,128], index: 4, kind: input, shape index: {}]
  %s5 = inlined_call_operand.hbm [shape: f32[1,128], index: 5, kind: input, shape index: {}]
  %s6 = inlined_call_operand.hbm [shape: f32[1,128], index: 6, kind: input, shape index: {}]
  %s7 = inlined_call_operand.hbm [shape: f32[2,16,16,128], index: 7, kind: output, shape index: {}]
  %s8 = sld [smem:[#allocation0]]
  $region89: #{tpu_custom_call.1} parent=0
    _
  %s10 = ssub.s32 1, %s8
  %s11 = scalar_select 0, %s10, %s8
  $region1: #{tpu_custom_call.1} parent=0
    #allocation3 [shape = 'u8[131072]{0}', space=vmem, size = 0x20000, scoped, tag = 'input window, operand 0']
    #allocation4 [shape = 's32[2]{0}', space=sflag, size = 0x8, scoped, tag = 'scoped memory for tpu_custom_call.1']
    #allocation5 [shape = 's32[2]{0}', space=sflag, size = 0x8, scoped, tag = 'scoped memory for tpu_custom_call.1']
    #allocation6 [shape = 'u8[32768]{0}', space=vmem, size = 0x8000, scoped, tag = 'input window, operand 1, single buffered']
    #allocation7 [shape = 's32[1]{0}', space=sflag, size = 0x4, scoped, tag = 'scoped memory for tpu_custom_call.1']
    #allocation8 [shape = 'u8[294912]{0}', space=vmem, size = 0x48000, scoped, tag = 'input window, operand 2, single buffered']
    #allocation9 [shape = 'u8[294912]{0}', space=vmem, size = 0x48000, scoped, tag = 'input window, operand 3, single buffered']
    #allocation10 [shape = 's32[1]{0}', space=sflag, size = 0x4, scoped, tag = 'scoped memory for tpu_custom_call.1']
    #allocation11 [shape = 'u8[512]{0}', space=vmem, size = 0x400, scoped, tag = 'input window, operand 4, single buffered']
    #allocation12 [shape = 'u8[512]{0}', space=vmem, size = 0x400, scoped, tag = 'input window, operand 5, single buffered']
    #allocation13 [shape = 's32[1]{0}', space=sflag, size = 0x4, scoped, tag = 'scoped memory for tpu_custom_call.1']
    #allocation14 [shape = 'u8[512]{0}', space=vmem, size = 0x400, scoped, tag = 'input window, operand 6, single buffered']
    #allocation15 [shape = 'u8[262144]{0}', space=vmem, size = 0x40000, scoped, tag = 'output window, operand 0']
    %12 = vsyncpa [#allocation4], 0
    %s13 = scalar_lea.sflag [#allocation4], 1
    %14 = vsyncpa %s13, 0
    %15 = vsyncpa [#allocation7], 0
    %16 = vsyncpa [#allocation10], 0
    %17 = vsyncpa [#allocation13], 0
    %18 = vsyncpa [#allocation5], 0
    %s19 = scalar_lea.sflag [#allocation5], 1
    %20 = vsyncpa %s19, 0
    loop: start=0, step=1, limit=4
    $region2: #{tpu_custom_call.1} parent=1 // loop_pre_header
      _
    $region3: #{tpu_custom_call.1} parent=1 // loop_header
      %s22 = sphi 0, %s26
      %p23 = scmp.ge.s32.totalorder %s22, 4
      %s32 = sphi 0, %s34
      %s35 = sphi 0, %s32
      %s36 = sphi 0, %s35
      %s52 = sphi 0, %s36
      %s56 = sphi 0, %s56
      %s58 = sphi 0, %s56
      %s59 = sphi 0, %s58
      %s73 = sphi 0, %s59
      %s77 = sphi 0, %s77
      %s79 = sphi 0, %s77
      %s80 = sphi 0, %s79
      %s94 = sphi 0, %s80
      %s98 = sphi 0, %s98
      %s100 = sphi 0, %s98
      %s101 = sphi 0, %s100
      %s115 = sphi 0, %s101
      %s119 = sphi 0, %s119
      %s121 = sphi 0, %s119
      %s122 = sphi 0, %s121
      %s136 = sphi 0, %s122
      %s140 = sphi 0, %s140
      %s142 = sphi 0, %s140
      %s143 = sphi 0, %s142
      %s157 = sphi 0, %s143
      %s161 = sphi 0, %s161
      %s163 = sphi 0, %s161
      %s164 = sphi 0, %s163
      %s178 = sphi 0, %s164
      %s184 = sphi 0, %s186
      %s187 = sphi 0, %s184
      %s188 = sphi 0, %s187
      %s204 = sphi 0, %s188
    $region4: #{tpu_custom_call.1} parent=1 // loop_header_branch
      %25 = sbr.rel (%p23) target = $region8
    $region5: #{tpu_custom_call.1} parent=1 // loop_body
      %s27 = ssub.s32 %s22, 1
      %s28 = ssub.s32 %s22, 2
      %s29 = sadd.s32 %s22, 1
      %s30 = ssub.s32 %s22, %s29
      %p31 = scmp.eq.s32.totalorder %s30, 0
      %s33 = sadd.s32 %s32, 1
      %s34 = scalar_select %p31, %s32, %s33
      %p37 = pneg %p31
      %p38 = scmp.eq.s32.totalorder %s22, 1
      %p39 = por %p37, %p38
      %p40 = scmp.ne.s32.totalorder %s32, %s35
      %p41 = scmp.eq.s32.totalorder %s22, 0
      %p42 = por %p40, %p41
      %p43 = scmp.ne.s32.totalorder %s32, %s35
      %p44 = scmp.eq.s32.totalorder %s27, 1
      %p45 = por %p43, %p44
      %p46 = scmp.ne.s32.totalorder %s35, %s36
      %p47 = scmp.eq.s32.totalorder %s27, 0
      %p48 = por %p46, %p47
      %p49 = scmp.ne.s32.totalorder %s35, %s36
      %p50 = scmp.eq.s32.totalorder %s28, 1
      %p51 = por %p49, %p50
      %p53 = scmp.ne.s32.totalorder %s36, %s52
      %p54 = scmp.eq.s32.totalorder %s28, 0
      %p55 = por %p53, %p54
      %s57 = sadd.s32 %s56, 1
      %p60 = scmp.eq.s32.totalorder %s22, 1
      %p61 = scmp.ne.s32.totalorder %s56, %s58
      %p62 = scmp.eq.s32.totalorder %s22, 0
      %p63 = por %p61, %p62
      %p64 = scmp.ne.s32.totalorder %s56, %s58
      %p65 = scmp.eq.s32.totalorder %s27, 1
      %p66 = por %p64, %p65
      %p67 = scmp.ne.s32.totalorder %s58, %s59
      %p68 = scmp.eq.s32.totalorder %s27, 0
      %p69 = por %p67, %p68
      %p70 = scmp.ne.s32.totalorder %s58, %s59
      %p71 = scmp.eq.s32.totalorder %s28, 1
      %p72 = por %p70, %p71
      %p74 = scmp.ne.s32.totalorder %s59, %s73
      %p75 = scmp.eq.s32.totalorder %s28, 0
      %p76 = por %p74, %p75
      %s78 = sadd.s32 %s77, 1
      %p81 = scmp.eq.s32.totalorder %s22, 1
      %p82 = scmp.ne.s32.totalorder %s77, %s79
      %p83 = scmp.eq.s32.totalorder %s22, 0
      %p84 = por %p82, %p83
      %p85 = scmp.ne.s32.totalorder %s77, %s79
      %p86 = scmp.eq.s32.totalorder %s27, 1
      %p87 = por %p85, %p86
      %p88 = scmp.ne.s32.totalorder %s79, %s80
      %p89 = scmp.eq.s32.totalorder %s27, 0
      %p90 = por %p88, %p89
      %p91 = scmp.ne.s32.totalorder %s79, %s80
      %p92 = scmp.eq.s32.totalorder %s28, 1
      %p93 = por %p91, %p92
      %p95 = scmp.ne.s32.totalorder %s80, %s94
      %p96 = scmp.eq.s32.totalorder %s28, 0
      %p97 = por %p95, %p96
      %s99 = sadd.s32 %s98, 1
      %p102 = scmp.eq.s32.totalorder %s22, 1
      %p103 = scmp.ne.s32.totalorder %s98, %s100
      %p104 = scmp.eq.s32.totalorder %s22, 0
      %p105 = por %p103, %p104
      %p106 = scmp.ne.s32.totalorder %s98, %s100
      %p107 = scmp.eq.s32.totalorder %s27, 1
      %p108 = por %p106, %p107
      %p109 = scmp.ne.s32.totalorder %s100, %s101
      %p110 = scmp.eq.s32.totalorder %s27, 0
      %p111 = por %p109, %p110
      %p112 = scmp.ne.s32.totalorder %s100, %s101
      %p113 = scmp.eq.s32.totalorder %s28, 1
      %p114 = por %p112, %p113
      %p116 = scmp.ne.s32.totalorder %s101, %s115
      %p117 = scmp.eq.s32.totalorder %s28, 0
      %p118 = por %p116, %p117
      %s120 = sadd.s32 %s119, 1
      %p123 = scmp.eq.s32.totalorder %s22, 1
      %p124 = scmp.ne.s32.totalorder %s119, %s121
      %p125 = scmp.eq.s32.totalorder %s22, 0
      %p126 = por %p124, %p125
      %p127 = scmp.ne.s32.totalorder %s119, %s121
      %p128 = scmp.eq.s32.totalorder %s27, 1
      %p129 = por %p127, %p128
      %p130 = scmp.ne.s32.totalorder %s121, %s122
      %p131 = scmp.eq.s32.totalorder %s27, 0
      %p132 = por %p130, %p131
      %p133 = scmp.ne.s32.totalorder %s121, %s122
      %p134 = scmp.eq.s32.totalorder %s28, 1
      %p135 = por %p133, %p134
      %p137 = scmp.ne.s32.totalorder %s122, %s136
      %p138 = scmp.eq.s32.totalorder %s28, 0
      %p139 = por %p137, %p138
      %s141 = sadd.s32 %s140, 1
      %p144 = scmp.eq.s32.totalorder %s22, 1
      %p145 = scmp.ne.s32.totalorder %s140, %s142
      %p146 = scmp.eq.s32.totalorder %s22, 0
      %p147 = por %p145, %p146
      %p148 = scmp.ne.s32.totalorder %s140, %s142
      %p149 = scmp.eq.s32.totalorder %s27, 1
      %p150 = por %p148, %p149
      %p151 = scmp.ne.s32.totalorder %s142, %s143
      %p152 = scmp.eq.s32.totalorder %s27, 0
      %p153 = por %p151, %p152
      %p154 = scmp.ne.s32.totalorder %s142, %s143
      %p155 = scmp.eq.s32.totalorder %s28, 1
      %p156 = por %p154, %p155
      %p158 = scmp.ne.s32.totalorder %s143, %s157
      %p159 = scmp.eq.s32.totalorder %s28, 0
      %p160 = por %p158, %p159
      %s162 = sadd.s32 %s161, 1
      %p165 = scmp.eq.s32.totalorder %s22, 1
      %p166 = scmp.ne.s32.totalorder %s161, %s163
      %p167 = scmp.eq.s32.totalorder %s22, 0
      %p168 = por %p166, %p167
      %p169 = scmp.ne.s32.totalorder %s161, %s163
      %p170 = scmp.eq.s32.totalorder %s27, 1
      %p171 = por %p169, %p170
      %p172 = scmp.ne.s32.totalorder %s163, %s164
      %p173 = scmp.eq.s32.totalorder %s27, 0
      %p174 = por %p172, %p173
      %p175 = scmp.ne.s32.totalorder %s163, %s164
      %p176 = scmp.eq.s32.totalorder %s28, 1
      %p177 = por %p175, %p176
      %p179 = scmp.ne.s32.totalorder %s164, %s178
      %p180 = scmp.eq.s32.totalorder %s28, 0
      %p181 = por %p179, %p180
      %s182 = ssub.s32 %s22, %s29
      %p183 = scmp.eq.s32.totalorder %s182, 0
      %s185 = sadd.s32 %s184, 1
      %s186 = scalar_select %p183, %s184, %s185
      %p189 = pneg %p183
      %p190 = scmp.eq.s32.totalorder %s22, 1
      %p191 = por %p189, %p190
      %p192 = scmp.ne.s32.totalorder %s184, %s187
      %p193 = scmp.eq.s32.totalorder %s22, 0
      %p194 = por %p192, %p193
      %p195 = scmp.ne.s32.totalorder %s184, %s187
      %p196 = scmp.eq.s32.totalorder %s27, 1
      %p197 = por %p195, %p196
      %p198 = scmp.ne.s32.totalorder %s187, %s188
      %p199 = scmp.eq.s32.totalorder %s27, 0
      %p200 = por %p198, %p199
      %p201 = scmp.ne.s32.totalorder %s187, %s188
      %p202 = scmp.eq.s32.totalorder %s28, 1
      %p203 = por %p201, %p202
      %p205 = scmp.ne.s32.totalorder %s188, %s204
      %p206 = scmp.eq.s32.totalorder %s28, 0
      %p207 = por %p205, %p206
      %p208 = scmp.le.s32.totalorder 1, %s22
      %p209 = scmp.lt.s32.totalorder %s22, 3
      %p210 = pnand %p208, %p209
      %p211 = pneg %p210
      // Predicated region
      $region9: #{tpu_custom_call.1} parent=5 // pred_check
        _
      $region10: #{tpu_custom_call.1} parent=5 // pred_check_branch
        %213 = sbr.rel (%p210) target = $region12
      $region11: #{tpu_custom_call.1} parent=5 // pred_region
        %s214 = ssub.s32 %s22, 1
        // Predicated region
        $region13: #{tpu_custom_call.1} parent=11 // pred_check
          %p215 = pneg %p69
        $region14: #{tpu_custom_call.1} parent=11 // pred_check_branch
          %217 = sbr.rel (%p215) target = $region16
        $region15: #{tpu_custom_call.1} parent=11 // pred_region
          %s219 = ssub.s32 1024, 1024
          %220 = vsyncadd [#allocation7], %s219
          %s221 = sshll.u32 [#allocation6], 4
          %s222 = int_to_ptr.vmem [resolvable:$true] %s221
          %227 = dma.hbm_to_vmem [thread:$0]  %s1, 1024, %s222, [#allocation7], 64, 64, 4
        $region16: #{tpu_custom_call.1} parent=11 // pred_fallthru
          _
        // Predicated region
        $region17: #{tpu_custom_call.1} parent=11 // pred_check
          %p228 = pneg %p90
        $region18: #{tpu_custom_call.1} parent=11 // pred_check_branch
          %230 = sbr.rel (%p228) target = $region20
        $region19: #{tpu_custom_call.1} parent=11 // pred_region
          %s232 = ssub.s32 9216, 9216
          %233 = vsyncadd [#allocation7], %s232
          %s234 = sshll.u32 [#allocation8], 4
          %s235 = int_to_ptr.vmem [resolvable:$true] %s234
          %240 = dma.hbm_to_vmem [thread:$0]  %s2, 9216, %s235, [#allocation7], 64, 64, 4
        $region20: #{tpu_custom_call.1} parent=11 // pred_fallthru
          _
        // Predicated region
        $region21: #{tpu_custom_call.1} parent=11 // pred_check
          %p241 = pneg %p111
        $region22: #{tpu_custom_call.1} parent=11 // pred_check_branch
          %243 = sbr.rel (%p241) target = $region24
        $region23: #{tpu_custom_call.1} parent=11 // pred_region
          %s245 = ssub.s32 9216, 9216
          %246 = vsyncadd [#allocation10], %s245
          %s247 = sshll.u32 [#allocation9], 4
          %s248 = int_to_ptr.vmem [resolvable:$true] %s247
          %253 = dma.hbm_to_vmem [thread:$0]  %s3, 9216, %s248, [#allocation10], 64, 64, 4
        $region24: #{tpu_custom_call.1} parent=11 // pred_fallthru
          _
        // Predicated region
        $region25: #{tpu_custom_call.1} parent=11 // pred_check
          %p254 = pneg %p132
        $region26: #{tpu_custom_call.1} parent=11 // pred_check_branch
          %256 = sbr.rel (%p254) target = $region28
        $region27: #{tpu_custom_call.1} parent=11 // pred_region
          %s258 = ssub.s32 16, 16
          %259 = vsyncadd [#allocation10], %s258
          %s261 = sshll.u32 [#allocation11], 4
          %s262 = int_to_ptr.vmem [resolvable:$true] %s261
          %264 = dma.hbm_to_vmem [thread:$0]  %s4, 16, %s262, [#allocation10]
        $region28: #{tpu_custom_call.1} parent=11 // pred_fallthru
          _
        // Predicated region
        $region29: #{tpu_custom_call.1} parent=11 // pred_check
          %p265 = pneg %p153
        $region30: #{tpu_custom_call.1} parent=11 // pred_check_branch
          %267 = sbr.rel (%p265) target = $region32
        $region31: #{tpu_custom_call.1} parent=11 // pred_region
          %s269 = ssub.s32 16, 16
          %270 = vsyncadd [#allocation13], %s269
          %s272 = sshll.u32 [#allocation12], 4
          %s273 = int_to_ptr.vmem [resolvable:$true] %s272
          %275 = dma.hbm_to_vmem [thread:$0]  %s5, 16, %s273, [#allocation13]
        $region32: #{tpu_custom_call.1} parent=11 // pred_fallthru
          _
        // Predicated region
        $region33: #{tpu_custom_call.1} parent=11 // pred_check
          %p276 = pneg %p174
        $region34: #{tpu_custom_call.1} parent=11 // pred_check_branch
          %278 = sbr.rel (%p276) target = $region36
        $region35: #{tpu_custom_call.1} parent=11 // pred_region
          %s280 = ssub.s32 16, 16
          %281 = vsyncadd [#allocation13], %s280
          %s283 = sshll.u32 [#allocation14], 4
          %s284 = int_to_ptr.vmem [resolvable:$true] %s283
          %286 = dma.hbm_to_vmem [thread:$0]  %s6, 16, %s284, [#allocation13]
        $region36: #{tpu_custom_call.1} parent=11 // pred_fallthru
          _
      $region12: #{tpu_custom_call.1} parent=5 // pred_fallthru
        _
      %p287 = scmp.lt.s32.totalorder %s22, 2
      // Predicated region
      $region37: #{tpu_custom_call.1} parent=5 // pred_check
        %p288 = pneg %p287
      $region38: #{tpu_custom_call.1} parent=5 // pred_check_branch
        %290 = sbr.rel (%p288) target = $region40
      $region39: #{tpu_custom_call.1} parent=5 // pred_region
        // Predicated region
        $region41: #{tpu_custom_call.1} parent=39 // pred_check
          %p291 = pneg %p42
        $region42: #{tpu_custom_call.1} parent=39 // pred_check_branch
          %293 = sbr.rel (%p291) target = $region44
        $region43: #{tpu_custom_call.1} parent=39 // pred_region
          %s294 = sand.u32 %s32, 1
          %s295 = scalar_lea.sflag [#allocation4], %s294
          %s296 = sand.u32 %s32, 1
          %s297 = smul.addr %s296, 128
          %s298 = scalar_lea.vmem [#allocation3], %s297
          %s300 = ssub.s32 2048, 2048
          %301 = vsyncadd %s295, %s300
          %s302 = smul.addr %s22, 32
          %s303 = smul.addr %s302, 64
          %s304 = scalar_lea.hbm %s0, %s303
          %s305 = sshll.u32 %s298, 4
          %s306 = int_to_ptr.vmem [resolvable:$true] %s305
          %311 = dma.hbm_to_vmem [thread:$0]  %s304, 2048, %s306, %s295, 64, 64, 4
        $region44: #{tpu_custom_call.1} parent=39 // pred_fallthru
          _
      $region40: #{tpu_custom_call.1} parent=5 // pred_fallthru
        _
      %p312 = scmp.le.s32.totalorder 1, %s22
      %p313 = scmp.lt.s32.totalorder %s22, 3
      %p314 = pnand %p312, %p313
      %p315 = pneg %p314
      // Predicated region
      $region45: #{tpu_custom_call.1} parent=5 // pred_check
        _
      $region46: #{tpu_custom_call.1} parent=5 // pred_check_branch
        %317 = sbr.rel (%p314) target = $region48
      $region47: #{tpu_custom_call.1} parent=5 // pred_region
        %s318 = ssub.s32 %s22, 1
        %s319 = sand.u32 %s35, 1
        %s320 = scalar_lea.sflag [#allocation4], %s319
        %s321 = sand.u32 %s35, 1
        %s322 = smul.addr %s321, 128
        %s323 = scalar_lea.vmem [#allocation3], %s322
        // Predicated region
        $region49: #{tpu_custom_call.1} parent=47 // pred_check
          %p324 = pneg %p48
        $region50: #{tpu_custom_call.1} parent=47 // pred_check_branch
          %326 = sbr.rel (%p324) target = $region52
        $region51: #{tpu_custom_call.1} parent=47 // pred_region
          %327 = dma.done %s320, 2048
        $region52: #{tpu_custom_call.1} parent=47 // pred_fallthru
          _
        // Predicated region
        $region53: #{tpu_custom_call.1} parent=47 // pred_check
          %p328 = pneg %p69
        $region54: #{tpu_custom_call.1} parent=47 // pred_check_branch
          %330 = sbr.rel (%p328) target = $region56
        $region55: #{tpu_custom_call.1} parent=47 // pred_region
          %331 = dma.done [#allocation7], 1024
        $region56: #{tpu_custom_call.1} parent=47 // pred_fallthru
          _
        // Predicated region
        $region57: #{tpu_custom_call.1} parent=47 // pred_check
          %p332 = pneg %p90
        $region58: #{tpu_custom_call.1} parent=47 // pred_check_branch
          %334 = sbr.rel (%p332) target = $region60
        $region59: #{tpu_custom_call.1} parent=47 // pred_region
          %335 = dma.done [#allocation7], 9216
        $region60: #{tpu_custom_call.1} parent=47 // pred_fallthru
          _
        // Predicated region
        $region61: #{tpu_custom_call.1} parent=47 // pred_check
          %p336 = pneg %p111
        $region62: #{tpu_custom_call.1} parent=47 // pred_check_branch
          %338 = sbr.rel (%p336) target = $region64
        $region63: #{tpu_custom_call.1} parent=47 // pred_region
          %339 = dma.done [#allocation10], 9216
        $region64: #{tpu_custom_call.1} parent=47 // pred_fallthru
          _
        // Predicated region
        $region65: #{tpu_custom_call.1} parent=47 // pred_check
          %p340 = pneg %p132
        $region66: #{tpu_custom_call.1} parent=47 // pred_check_branch
          %342 = sbr.rel (%p340) target = $region68
        $region67: #{tpu_custom_call.1} parent=47 // pred_region
          %343 = dma.done [#allocation10], 16
        $region68: #{tpu_custom_call.1} parent=47 // pred_fallthru
          _
        // Predicated region
        $region69: #{tpu_custom_call.1} parent=47 // pred_check
          %p344 = pneg %p153
        $region70: #{tpu_custom_call.1} parent=47 // pred_check_branch
          %346 = sbr.rel (%p344) target = $region72
        $region71: #{tpu_custom_call.1} parent=47 // pred_region
          %347 = dma.done [#allocation13], 16
        $region72: #{tpu_custom_call.1} parent=47 // pred_fallthru
          _
        // Predicated region
        $region73: #{tpu_custom_call.1} parent=47 // pred_check
          %p348 = pneg %p174
        $region74: #{tpu_custom_call.1} parent=47 // pred_check_branch
          %350 = sbr.rel (%p348) target = $region76
        $region75: #{tpu_custom_call.1} parent=47 // pred_region
          %351 = dma.done [#allocation13], 16
        $region76: #{tpu_custom_call.1} parent=47 // pred_fallthru
          _
        %s352 = sand.u32 %s35, 1
        %s353 = scalar_lea.sflag [#allocation4], %s352
        %s354 = sand.u32 %s35, 1
        %s355 = smul.addr %s354, 128
        %s356 = scalar_lea.vmem [#allocation3], %s355
        %p357 = pneg %p48
        %p358 = pneg %p45
        %p359 = pneg %p69
        %p360 = pneg %p66
        %p361 = pneg %p90
        %p362 = pneg %p87
        %p363 = pneg %p111
        %p364 = pneg %p108
        %p365 = pneg %p132
        %p366 = pneg %p129
        %p367 = pneg %p153
        %p368 = pneg %p150
        %p369 = pneg %p174
        %p370 = pneg %p171
        %p371 = pneg %p200
        %p372 = pneg %p197
        %s373 = sand.u32 %s187, 1
        %s374 = scalar_lea.sflag [#allocation5], %s373
        %s375 = sand.u32 %s187, 1
        %s376 = smul.addr %s375, 256
        %s377 = scalar_lea.vmem [#allocation15], %s376
        %v379 = vld [vmem:[%s323] sm:$0xf]
        %v380 = vld [vmem:[%s323 + $0x4] sm:$0xf]
        %v381 = vld [vmem:[%s323 + $0x8] sm:$0xf]
        %v382 = vld [vmem:[%s323 + $0xc] sm:$0xf]
        %v383 = vld [vmem:[%s323 + $0x10] sm:$0xf]
        %v384 = vld [vmem:[%s323 + $0x14] sm:$0xf]
        %v385 = vld [vmem:[%s323 + $0x18] sm:$0xf]
        %v386 = vld [vmem:[%s323 + $0x1c] sm:$0xf]
        %v387 = vld [vmem:[%s323 + $0x20] sm:$0xf]
        %v388 = vld [vmem:[%s323 + $0x24] sm:$0xf]
        %v389 = vld [vmem:[%s323 + $0x28] sm:$0xf]
        %v390 = vld [vmem:[%s323 + $0x2c] sm:$0xf]
        %v391 = vld [vmem:[%s323 + $0x30] sm:$0xf]
        %v392 = vld [vmem:[%s323 + $0x34] sm:$0xf]
        %v393 = vld [vmem:[%s323 + $0x38] sm:$0xf]
        %v394 = vld [vmem:[%s323 + $0x3c] sm:$0xf]
        %v395 = vld [vmem:[%s323 + $0x40] sm:$0xf]
        %v396 = vld [vmem:[%s323 + $0x44] sm:$0xf]
        %v397 = vld [vmem:[%s323 + $0x48] sm:$0xf]
        %v398 = vld [vmem:[%s323 + $0x4c] sm:$0xf]
        %v399 = vld [vmem:[%s323 + $0x50] sm:$0xf]
        %v400 = vld [vmem:[%s323 + $0x54] sm:$0xf]
        %v401 = vld [vmem:[%s323 + $0x58] sm:$0xf]
        %v402 = vld [vmem:[%s323 + $0x5c] sm:$0xf]
        %v403 = vld [vmem:[%s323 + $0x60] sm:$0xf]
        %v404 = vld [vmem:[%s323 + $0x64] sm:$0xf]
        %v405 = vld [vmem:[%s323 + $0x68] sm:$0xf]
        %v406 = vld [vmem:[%s323 + $0x6c] sm:$0xf]
        %v407 = vld [vmem:[%s323 + $0x70] sm:$0xf]
        %v408 = vld [vmem:[%s323 + $0x74] sm:$0xf]
        %v409 = vld [vmem:[%s323 + $0x78] sm:$0xf]
        %v410 = vld [vmem:[%s323 + $0x7c] sm:$0xf]
        %v411 = vld [vmem:[#allocation6] sm:$0xf]
        %v412 = vld [vmem:[#allocation6 + $0x4] sm:$0xf]
        %v413 = vld [vmem:[#allocation6 + $0x8] sm:$0xf]
        %v414 = vld [vmem:[#allocation6 + $0xc] sm:$0xf]
        %v415 = vld [vmem:[#allocation6 + $0x10] sm:$0xf]
        %v416 = vld [vmem:[#allocation6 + $0x14] sm:$0xf]
        %v417 = vld [vmem:[#allocation6 + $0x18] sm:$0xf]
        %v418 = vld [vmem:[#allocation6 + $0x1c] sm:$0xf]
        %v419 = vld [vmem:[#allocation6 + $0x20] sm:$0xf]
        %v420 = vld [vmem:[#allocation6 + $0x24] sm:$0xf]
        %v421 = vld [vmem:[#allocation6 + $0x28] sm:$0xf]
        %v422 = vld [vmem:[#allocation6 + $0x2c] sm:$0xf]
        %v423 = vld [vmem:[#allocation6 + $0x30] sm:$0xf]
        %v424 = vld [vmem:[#allocation6 + $0x34] sm:$0xf]
        %v425 = vld [vmem:[#allocation6 + $0x38] sm:$0xf]
        %v426 = vld [vmem:[#allocation6 + $0x3c] sm:$0xf]
        %v427 = vld [vmem:[#allocation11] sm:$0x1]
        %v429 = vlaneseq
        %v430 = vshrl.u32 %v429, 7
        %v431 = vsub.s32 0, %v430
        %v432 = vrot.slane %v427, %v431
        %v466 = vunpack.c.l.b16 %v379
        %v467 = vunpack.c.l.b16 %v380
        %v468 = vunpack.c.l.b16 %v381
        %v469 = vunpack.c.l.b16 %v382
        %v470 = vunpack.c.l.b16 %v383
        %v471 = vunpack.c.l.b16 %v384
        %v472 = vunpack.c.l.b16 %v385
        %v473 = vunpack.c.l.b16 %v386
        %v474 = vunpack.c.l.b16 %v387
        %v475 = vunpack.c.l.b16 %v388
        %v476 = vunpack.c.l.b16 %v389
        %v477 = vunpack.c.l.b16 %v390
        %v478 = vunpack.c.l.b16 %v391
        %v479 = vunpack.c.l.b16 %v392
        %v480 = vunpack.c.l.b16 %v393
        %v481 = vunpack.c.l.b16 %v394
        %v482 = vunpack.c.l.b16 %v395
        %v483 = vunpack.c.l.b16 %v396
        %v484 = vunpack.c.l.b16 %v397
        %v485 = vunpack.c.l.b16 %v398
        %v486 = vunpack.c.l.b16 %v399
        %v487 = vunpack.c.l.b16 %v400
        %v488 = vunpack.c.l.b16 %v401
        %v489 = vunpack.c.l.b16 %v402
        %v490 = vunpack.c.l.b16 %v403
        %v491 = vunpack.c.l.b16 %v404
        %v492 = vunpack.c.l.b16 %v405
        %v493 = vunpack.c.l.b16 %v406
        %v494 = vunpack.c.l.b16 %v407
        %v495 = vunpack.c.l.b16 %v408
        %v496 = vunpack.c.l.b16 %v409
        %v497 = vunpack.c.l.b16 %v410
        %v498 = vpack.c.b16 %v467, %v466
        %v499 = vpack.c.b16 %v469, %v468
        %v500 = vpack.c.b16 %v471, %v470
        %v501 = vpack.c.b16 %v473, %v472
        %v502 = vpack.c.b16 %v475, %v474
        %v503 = vpack.c.b16 %v477, %v476
        %v504 = vpack.c.b16 %v479, %v478
        %v505 = vpack.c.b16 %v481, %v480
        %v506 = vpack.c.b16 %v483, %v482
        %v507 = vpack.c.b16 %v485, %v484
        %v508 = vpack.c.b16 %v487, %v486
        %v509 = vpack.c.b16 %v489, %v488
        %v510 = vpack.c.b16 %v491, %v490
        %v511 = vpack.c.b16 %v493, %v492
        %v512 = vpack.c.b16 %v495, %v494
        %v513 = vpack.c.b16 %v497, %v496
        %v546 = vunpack.c.l.b16 %v411
        %v547 = vunpack.c.l.b16 %v412
        %v548 = vunpack.c.l.b16 %v413
        %v549 = vunpack.c.l.b16 %v414
        %v550 = vunpack.c.l.b16 %v415
        %v551 = vunpack.c.l.b16 %v416
        %v552 = vunpack.c.l.b16 %v417
        %v553 = vunpack.c.l.b16 %v418
        %v554 = vunpack.c.l.b16 %v419
        %v555 = vunpack.c.l.b16 %v420
        %v556 = vunpack.c.l.b16 %v421
        %v557 = vunpack.c.l.b16 %v422
        %v558 = vunpack.c.l.b16 %v423
        %v559 = vunpack.c.l.b16 %v424
        %v560 = vunpack.c.l.b16 %v425
        %v561 = vunpack.c.l.b16 %v426
        %v562 = vpack.c.b16 %v547, %v546
        %v563 = vpack.c.b16 %v549, %v548
        %v564 = vpack.c.b16 %v551, %v550
        %v565 = vpack.c.b16 %v553, %v552
        %v566 = vpack.c.b16 %v555, %v554
        %v567 = vpack.c.b16 %v557, %v556
        %v568 = vpack.c.b16 %v559, %v558
        %v569 = vpack.c.b16 %v561, %v560
        %578 = vmatprep.subr.bf16.mxu0 0
        %579 = vmatpush1.bf16.msra.mxu0 %v562
        %580 = vmatprep.subr.bf16.mxu0 0
        %581 = vmatpush1.bf16.msra.mxu0 %v563
        %582 = vmatprep.subr.bf16.mxu0 0
        %583 = vmatpush1.bf16.msra.mxu0 %v564
        %584 = vmatprep.subr.bf16.mxu0 0
        %585 = vmatpush1.bf16.msra.mxu0 %v565
        %586 = vmatprep.subr.bf16.mxu0 0
        %587 = vmatpush1.bf16.msra.mxu0 %v566
        %588 = vmatprep.subr.bf16.mxu0 0
        %589 = vmatpush1.bf16.msra.mxu0 %v567
        %590 = vmatprep.subr.bf16.mxu0 0
        %591 = vmatpush1.bf16.msra.mxu0 %v568
        %592 = vmatprep.subr.bf16.mxu0 0
        %593 = vmatpush1.bf16.msra.mxu0 %v569
        %594 = vmatprep.subr.bf16.mxu0 0
        %595 = vmatpush1.bf16.msra.mxu0 0
        %596 = vmatprep.subr.bf16.mxu0 0
        %597 = vmatpush1.bf16.msra.mxu0 0
        %598 = vmatprep.subr.bf16.mxu0 0
        %599 = vmatpush1.bf16.msra.mxu0 0
        %600 = vmatprep.subr.bf16.mxu0 0
        %601 = vmatpush1.bf16.msra.mxu0 0
        %602 = vmatprep.subr.bf16.mxu0 0
        %603 = vmatpush1.bf16.msra.mxu0 0
        %604 = vmatprep.subr.bf16.mxu0 0
        %605 = vmatpush1.bf16.msra.mxu0 0
        %606 = vmatprep.subr.bf16.mxu0 0
        %607 = vmatpush1.bf16.msra.mxu0 0
        %608 = vmatprep.subr.bf16.mxu0 0
        %609 = vmatpush1.bf16.msra.mxu0 0
        %610 = vmatprep.mubr.bf16.mxu0 0
        %611 = vmatmul.mubr.bf16.gmra.mrb[0].mxu0 %v498
        %v612 = vpop.f32.mrb[0].mxu0
        %v613 = vadd.f32 %v432, %v612
        %v614 = vpop.f32.mrb[0].mxu0
        %v615 = vpop.f32.mrb[0].mxu0
        %v616 = vadd.f32 %v432, %v615
        %v617 = vpop.f32.mrb[0].mxu0
        %618 = vmatprep.mubr.bf16.mxu0 0
        %619 = vmatmul.mubr.bf16.gmra.mrb[0].mxu0 %v499
        %v620 = vpop.f32.mrb[0].mxu0
        %v621 = vadd.f32 %v432, %v620
        %v622 = vpop.f32.mrb[0].mxu0
        %v623 = vpop.f32.mrb[0].mxu0
        %v624 = vadd.f32 %v432, %v623
        %v625 = vpop.f32.mrb[0].mxu0
        %626 = vmatprep.mubr.bf16.mxu0 0
        %627 = vmatmul.mubr.bf16.gmra.mrb[0].mxu0 %v500
        %v628 = vpop.f32.mrb[0].mxu0
        %v629 = vadd.f32 %v432, %v628
        %v630 = vpop.f32.mrb[0].mxu0
        %v631 = vpop.f32.mrb[0].mxu0
        %v632 = vadd.f32 %v432, %v631
        %v633 = vpop.f32.mrb[0].mxu0
        %634 = vmatprep.mubr.bf16.mxu0 0
        %635 = vmatmul.mubr.bf16.gmra.mrb[0].mxu0 %v501
        %v636 = vpop.f32.mrb[0].mxu0
        %v637 = vadd.f32 %v432, %v636
        %v638 = vpop.f32.mrb[0].mxu0
        %v639 = vpop.f32.mrb[0].mxu0
        %v640 = vadd.f32 %v432, %v639
        %v641 = vpop.f32.mrb[0].mxu0
        %642 = vmatprep.mubr.bf16.mxu0 0
        %643 = vmatmul.mubr.bf16.gmra.mrb[0].mxu0 %v502
        %v644 = vpop.f32.mrb[0].mxu0
        %v645 = vadd.f32 %v432, %v644
        %v646 = vpop.f32.mrb[0].mxu0
        %v647 = vpop.f32.mrb[0].mxu0
        %v648 = vadd.f32 %v432, %v647
        %v649 = vpop.f32.mrb[0].mxu0
        %650 = vmatprep.mubr.bf16.mxu0 0
        %651 = vmatmul.mubr.bf16.gmra.mrb[0].mxu0 %v503
        %v652 = vpop.f32.mrb[0].mxu0
        %v653 = vadd.f32 %v432, %v652
        %v654 = vpop.f32.mrb[0].mxu0
        %v655 = vpop.f32.mrb[0].mxu0
        %v656 = vadd.f32 %v432, %v655
        %v657 = vpop.f32.mrb[0].mxu0
        %658 = vmatprep.mubr.bf16.mxu0 0
        %659 = vmatmul.mubr.bf16.gmra.mrb[0].mxu0 %v504
        %v660 = vpop.f32.mrb[0].mxu0
        %v661 = vadd.f32 %v432, %v660
        %v662 = vpop.f32.mrb[0].mxu0
        %v663 = vpop.f32.mrb[0].mxu0
        %v664 = vadd.f32 %v432, %v663
        %v665 = vpop.f32.mrb[0].mxu0
        %666 = vmatprep.mubr.bf16.mxu0 0
        %667 = vmatmul.mubr.bf16.gmra.mrb[0].mxu0 %v505
        %v668 = vpop.f32.mrb[0].mxu0
        %v669 = vadd.f32 %v432, %v668
        %v670 = vpop.f32.mrb[0].mxu0
        %v671 = vpop.f32.mrb[0].mxu0
        %v672 = vadd.f32 %v432, %v671
        %v673 = vpop.f32.mrb[0].mxu0
        %674 = vmatprep.mubr.bf16.mxu0 0
        %675 = vmatmul.mubr.bf16.gmra.mrb[0].mxu0 %v506
        %v676 = vpop.f32.mrb[0].mxu0
        %v677 = vadd.f32 %v432, %v676
        %v678 = vpop.f32.mrb[0].mxu0
        %v679 = vpop.f32.mrb[0].mxu0
        %v680 = vadd.f32 %v432, %v679
        %v681 = vpop.f32.mrb[0].mxu0
        %682 = vmatprep.mubr.bf16.mxu0 0
        %683 = vmatmul.mubr.bf16.gmra.mrb[0].mxu0 %v507
        %v684 = vpop.f32.mrb[0].mxu0
        %v685 = vadd.f32 %v432, %v684
        %v686 = vpop.f32.mrb[0].mxu0
        %v687 = vpop.f32.mrb[0].mxu0
        %v688 = vadd.f32 %v432, %v687
        %v689 = vpop.f32.mrb[0].mxu0
        %690 = vmatprep.mubr.bf16.mxu0 0
        %691 = vmatmul.mubr.bf16.gmra.mrb[0].mxu0 %v508
        %v692 = vpop.f32.mrb[0].mxu0
        %v693 = vadd.f32 %v432, %v692
        %v694 = vpop.f32.mrb[0].mxu0
        %v695 = vpop.f32.mrb[0].mxu0
        %v696 = vadd.f32 %v432, %v695
        %v697 = vpop.f32.mrb[0].mxu0
        %698 = vmatprep.mubr.bf16.mxu0 0
        %699 = vmatmul.mubr.bf16.gmra.mrb[0].mxu0 %v509
        %v700 = vpop.f32.mrb[0].mxu0
        %v701 = vadd.f32 %v432, %v700
        %v702 = vpop.f32.mrb[0].mxu0
        %v703 = vpop.f32.mrb[0].mxu0
        %v704 = vadd.f32 %v432, %v703
        %v705 = vpop.f32.mrb[0].mxu0
        %706 = vmatprep.mubr.bf16.mxu0 0
        %707 = vmatmul.mubr.bf16.gmra.mrb[0].mxu0 %v510
        %v708 = vpop.f32.mrb[0].mxu0
        %v709 = vadd.f32 %v432, %v708
        %v710 = vpop.f32.mrb[0].mxu0
        %v711 = vpop.f32.mrb[0].mxu0
        %v712 = vadd.f32 %v432, %v711
        %v713 = vpop.f32.mrb[0].mxu0
        %714 = vmatprep.mubr.bf16.mxu0 0
        %715 = vmatmul.mubr.bf16.gmra.mrb[0].mxu0 %v511
        %v716 = vpop.f32.mrb[0].mxu0
        %v717 = vadd.f32 %v432, %v716
        %v718 = vpop.f32.mrb[0].mxu0
        %v719 = vpop.f32.mrb[0].mxu0
        %v720 = vadd.f32 %v432, %v719
        %v721 = vpop.f32.mrb[0].mxu0
        %722 = vmatprep.mubr.bf16.mxu0 0
        %723 = vmatmul.mubr.bf16.gmra.mrb[0].mxu0 %v512
        %v724 = vpop.f32.mrb[0].mxu0
        %v725 = vadd.f32 %v432, %v724
        %v726 = vpop.f32.mrb[0].mxu0
        %v727 = vpop.f32.mrb[0].mxu0
        %v728 = vadd.f32 %v432, %v727
        %v729 = vpop.f32.mrb[0].mxu0
        %730 = vmatprep.mubr.bf16.mxu0 0
        %731 = vmatmul.mubr.bf16.gmra.mrb[0].mxu0 %v513
        %v732 = vpop.f32.mrb[0].mxu0
        %v733 = vadd.f32 %v432, %v732
        %v734 = vpop.f32.mrb[0].mxu0
        %v735 = vpop.f32.mrb[0].mxu0
        %v736 = vadd.f32 %v432, %v735
        %v737 = vpop.f32.mrb[0].mxu0
        %738 = vdwg.mxu0
        %v739 = vmax.f32 %v613, 0.0
        %v740 = vmax.f32 %v616, 0.0
        %v741 = vmax.f32 %v621, 0.0
        %v742 = vmax.f32 %v624, 0.0
        %v743 = vmax.f32 %v629, 0.0
        %v744 = vmax.f32 %v632, 0.0
        %v745 = vmax.f32 %v637, 0.0
        %v746 = vmax.f32 %v640, 0.0
        %v747 = vmax.f32 %v645, 0.0
        %v748 = vmax.f32 %v648, 0.0
        %v749 = vmax.f32 %v653, 0.0
        %v750 = vmax.f32 %v656, 0.0
        %v751 = vmax.f32 %v661, 0.0
        %v752 = vmax.f32 %v664, 0.0
        %v753 = vmax.f32 %v669, 0.0
        %v754 = vmax.f32 %v672, 0.0
        %v755 = vmax.f32 %v677, 0.0
        %v756 = vmax.f32 %v680, 0.0
        %v757 = vmax.f32 %v685, 0.0
        %v758 = vmax.f32 %v688, 0.0
        %v759 = vmax.f32 %v693, 0.0
        %v760 = vmax.f32 %v696, 0.0
        %v761 = vmax.f32 %v701, 0.0
        %v762 = vmax.f32 %v704, 0.0
        %v763 = vmax.f32 %v709, 0.0
        %v764 = vmax.f32 %v712, 0.0
        %v765 = vmax.f32 %v717, 0.0
        %v766 = vmax.f32 %v720, 0.0
        %v767 = vmax.f32 %v725, 0.0
        %v768 = vmax.f32 %v728, 0.0
        %v769 = vmax.f32 %v733, 0.0
        %v770 = vmax.f32 %v736, 0.0
        %771 = vst [vmem:[#allocation2] sm:$0xf] 0
        %772 = vst [vmem:[#allocation2 + $0x4] sm:$0xf] 0
        %773 = vst [vmem:[#allocation2 + $0x8] sm:$0x1] 0
        %s774 = scalar_lea.vmem [#allocation2], 204
        %775 = vst [vmem:[%s774] sm:$0xf] 0
        %776 = vst [vmem:[%s774 + $0x4] sm:$0xf] 0
        %777 = vst [vmem:[%s774 + $0x8] sm:$0x1] 0
        %vm778 = vcmask 1040384
        %vm779 = vsmask.f32 256
        %vm780 = vmand %vm778, %vm779
        %v781 = vld [vmem:[#allocation2] sm:$0x1]
        %v782 = vsel %vm780, 0, %v781
        %783 = vst [vmem:[#allocation2] sm:$0x1] %v782
        %v784 = vld [vmem:[#allocation2 + $0xc] sm:$0x1]
        %v785 = vsel %vm780, 0, %v784
        %786 = vst [vmem:[#allocation2 + $0xc] sm:$0x1] %v785
        %v787 = vld [vmem:[#allocation2 + $0x18] sm:$0x1]
        %v788 = vsel %vm780, 0, %v787
        %789 = vst [vmem:[#allocation2 + $0x18] sm:$0x1] %v788
        %v790 = vld [vmem:[#allocation2 + $0x24] sm:$0x1]
        %v791 = vsel %vm780, 0, %v790
        %792 = vst [vmem:[#allocation2 + $0x24] sm:$0x1] %v791
        %v793 = vld [vmem:[#allocation2 + $0x30] sm:$0x1]
        %v794 = vsel %vm780, 0, %v793
        %795 = vst [vmem:[#allocation2 + $0x30] sm:$0x1] %v794
        %v796 = vld [vmem:[#allocation2 + $0x3c] sm:$0x1]
        %v797 = vsel %vm780, 0, %v796
        %798 = vst [vmem:[#allocation2 + $0x3c] sm:$0x1] %v797
        %v799 = vld [vmem:[#allocation2 + $0x48] sm:$0x1]
        %v800 = vsel %vm780, 0, %v799
        %801 = vst [vmem:[#allocation2 + $0x48] sm:$0x1] %v800
        %v802 = vld [vmem:[#allocation2 + $0x54] sm:$0x1]
        %v803 = vsel %vm780, 0, %v802
        %804 = vst [vmem:[#allocation2 + $0x54] sm:$0x1] %v803
        %v805 = vld [vmem:[#allocation2 + $0x60] sm:$0x1]
        %v806 = vsel %vm780, 0, %v805
        %807 = vst [vmem:[#allocation2 + $0x60] sm:$0x1] %v806
        %v808 = vld [vmem:[#allocation2 + $0x6c] sm:$0x1]
        %v809 = vsel %vm780, 0, %v808
        %810 = vst [vmem:[#allocation2 + $0x6c] sm:$0x1] %v809
        %v811 = vld [vmem:[#allocation2 + $0x78] sm:$0x1]
        %v812 = vsel %vm780, 0, %v811
        %813 = vst [vmem:[#allocation2 + $0x78] sm:$0x1] %v812
        %v814 = vld [vmem:[#allocation2 + $0x84] sm:$0x1]
        %v815 = vsel %vm780, 0, %v814
        %816 = vst [vmem:[#allocation2 + $0x84] sm:$0x1] %v815
        %v817 = vld [vmem:[#allocation2 + $0x90] sm:$0x1]
        %v818 = vsel %vm780, 0, %v817
        %819 = vst [vmem:[#allocation2 + $0x90] sm:$0x1] %v818
        %v820 = vld [vmem:[#allocation2 + $0x9c] sm:$0x1]
        %v821 = vsel %vm780, 0, %v820
        %822 = vst [vmem:[#allocation2 + $0x9c] sm:$0x1] %v821
        %v823 = vld [vmem:[#allocation2 + $0xa8] sm:$0x1]
        %v824 = vsel %vm780, 0, %v823
        %825 = vst [vmem:[#allocation2 + $0xa8] sm:$0x1] %v824
        %v826 = vld [vmem:[#allocation2 + $0xb4] sm:$0x1]
        %v827 = vsel %vm780, 0, %v826
        %828 = vst [vmem:[#allocation2 + $0xb4] sm:$0x1] %v827
        %v829 = vld [vmem:[#allocation2 + $0xc0] sm:$0x1]
        %v830 = vsel %vm780, 0, %v829
        %831 = vst [vmem:[#allocation2 + $0xc0] sm:$0x1] %v830
        %v832 = vld [vmem:[#allocation2 + $0xcc] sm:$0x1]
        %v833 = vsel %vm780, 0, %v832
        %834 = vst [vmem:[#allocation2 + $0xcc] sm:$0x1] %v833
        %vm835 = vsmask.f32 7938
        %vm836 = vmand %vm778, %vm835
        %v837 = vld [vmem:[#allocation2 + $0x8] sm:$0x1]
        %v838 = vsel %vm836, 0, %v837
        %839 = vst [vmem:[#allocation2 + $0x8] sm:$0x1] %v838
        %v840 = vld [vmem:[#allocation2 + $0x14] sm:$0x1]
        %v841 = vsel %vm836, 0, %v840
        %842 = vst [vmem:[#allocation2 + $0x14] sm:$0x1] %v841
        %v843 = vld [vmem:[#allocation2 + $0x20] sm:$0x1]
        %v844 = vsel %vm836, 0, %v843
        %845 = vst [vmem:[#allocation2 + $0x20] sm:$0x1] %v844
        %v846 = vld [vmem:[#allocation2 + $0x2c] sm:$0x1]
        %v847 = vsel %vm836, 0, %v846
        %848 = vst [vmem:[#allocation2 + $0x2c] sm:$0x1] %v847
        %v849 = vld [vmem:[#allocation2 + $0x38] sm:$0x1]
        %v850 = vsel %vm836, 0, %v849
        %851 = vst [vmem:[#allocation2 + $0x38] sm:$0x1] %v850
        %v852 = vld [vmem:[#allocation2 + $0x44] sm:$0x1]
        %v853 = vsel %vm836, 0, %v852
        %854 = vst [vmem:[#allocation2 + $0x44] sm:$0x1] %v853
        %v855 = vld [vmem:[#allocation2 + $0x50] sm:$0x1]
        %v856 = vsel %vm836, 0, %v855
        %857 = vst [vmem:[#allocation2 + $0x50] sm:$0x1] %v856
        %v858 = vld [vmem:[#allocation2 + $0x5c] sm:$0x1]
        %v859 = vsel %vm836, 0, %v858
        %860 = vst [vmem:[#allocation2 + $0x5c] sm:$0x1] %v859
        %v861 = vld [vmem:[#allocation2 + $0x68] sm:$0x1]
        %v862 = vsel %vm836, 0, %v861
        %863 = vst [vmem:[#allocation2 + $0x68] sm:$0x1] %v862
        %v864 = vld [vmem:[#allocation2 + $0x74] sm:$0x1]
        %v865 = vsel %vm836, 0, %v864
        %866 = vst [vmem:[#allocation2 + $0x74] sm:$0x1] %v865
        %v867 = vld [vmem:[#allocation2 + $0x80] sm:$0x1]
        %v868 = vsel %vm836, 0, %v867
        %869 = vst [vmem:[#allocation2 + $0x80] sm:$0x1] %v868
        %v870 = vld [vmem:[#allocation2 + $0x8c] sm:$0x1]
        %v871 = vsel %vm836, 0, %v870
        %872 = vst [vmem:[#allocation2 + $0x8c] sm:$0x1] %v871
        %v873 = vld [vmem:[#allocation2 + $0x98] sm:$0x1]
        %v874 = vsel %vm836, 0, %v873
        %875 = vst [vmem:[#allocation2 + $0x98] sm:$0x1] %v874
        %v876 = vld [vmem:[#allocation2 + $0xa4] sm:$0x1]
        %v877 = vsel %vm836, 0, %v876
        %878 = vst [vmem:[#allocation2 + $0xa4] sm:$0x1] %v877
        %v879 = vld [vmem:[#allocation2 + $0xb0] sm:$0x1]
        %v880 = vsel %vm836, 0, %v879
        %881 = vst [vmem:[#allocation2 + $0xb0] sm:$0x1] %v880
        %v882 = vld [vmem:[#allocation2 + $0xbc] sm:$0x1]
        %v883 = vsel %vm836, 0, %v882
        %884 = vst [vmem:[#allocation2 + $0xbc] sm:$0x1] %v883
        %v885 = vld [vmem:[#allocation2 + $0xc8] sm:$0x1]
        %v886 = vsel %vm836, 0, %v885
        %887 = vst [vmem:[#allocation2 + $0xc8] sm:$0x1] %v886
        %v888 = vld [vmem:[#allocation2 + $0xd4] sm:$0x1]
        %v889 = vsel %vm836, 0, %v888
        %890 = vst [vmem:[#allocation2 + $0xd4] sm:$0x1] %v889
        %v891 = vpack.c.bf16 %v740, %v739
        %v892 = vpack.c.bf16 %v742, %v741
        %v893 = vpack.c.bf16 %v744, %v743
        %v894 = vpack.c.bf16 %v746, %v745
        %v895 = vpack.c.bf16 %v748, %v747
        %v896 = vpack.c.bf16 %v750, %v749
        %v897 = vpack.c.bf16 %v752, %v751
        %v898 = vpack.c.bf16 %v754, %v753
        %v899 = vpack.c.bf16 %v756, %v755
        %v900 = vpack.c.bf16 %v758, %v757
        %v901 = vpack.c.bf16 %v760, %v759
        %v902 = vpack.c.bf16 %v762, %v761
        %v903 = vpack.c.bf16 %v764, %v763
        %v904 = vpack.c.bf16 %v766, %v765
        %v905 = vpack.c.bf16 %v768, %v767
        %v906 = vpack.c.bf16 %v770, %v769
        %v907 = vld [vmem:[#allocation12] sm:$0x1]
        %v924 = vunpack.c.l.b16 %v891
        %v925 = vunpack.c.h.b16 %v891
        %v926 = vunpack.c.l.b16 %v892
        %v927 = vunpack.c.h.b16 %v892
        %v928 = vunpack.c.l.b16 %v893
        %v929 = vunpack.c.h.b16 %v893
        %v930 = vunpack.c.l.b16 %v894
        %v931 = vunpack.c.h.b16 %v894
        %v932 = vunpack.c.l.b16 %v895
        %v933 = vunpack.c.h.b16 %v895
        %v934 = vunpack.c.l.b16 %v896
        %v935 = vunpack.c.h.b16 %v896
        %v936 = vunpack.c.l.b16 %v897
        %v937 = vunpack.c.h.b16 %v897
        %v938 = vunpack.c.l.b16 %v898
        %v939 = vunpack.c.h.b16 %v898
        %v940 = vunpack.c.l.b16 %v899
        %v941 = vunpack.c.h.b16 %v899
        %v942 = vunpack.c.l.b16 %v900
        %v943 = vunpack.c.h.b16 %v900
        %v944 = vunpack.c.l.b16 %v901
        %v945 = vunpack.c.h.b16 %v901
        %v946 = vunpack.c.l.b16 %v902
        %v947 = vunpack.c.h.b16 %v902
        %v948 = vunpack.c.l.b16 %v903
        %v949 = vunpack.c.h.b16 %v903
        %v950 = vunpack.c.l.b16 %v904
        %v951 = vunpack.c.h.b16 %v904
        %v952 = vunpack.c.l.b16 %v905
        %v953 = vunpack.c.h.b16 %v905
        %v954 = vunpack.c.l.b16 %v906
        %v955 = vunpack.c.h.b16 %v906
        %v956 = vpack.c.b16 %v924, %v924
        %v957 = vpack.c.b16 %v925, %v925
        %v958 = vpack.c.b16 %v926, %v926
        %v959 = vpack.c.b16 %v927, %v927
        %v960 = vpack.c.b16 %v928, %v928
        %v961 = vpack.c.b16 %v929, %v929
        %v962 = vpack.c.b16 %v930, %v930
        %v963 = vpack.c.b16 %v931, %v931
        %v964 = vpack.c.b16 %v932, %v932
        %v965 = vpack.c.b16 %v933, %v933
        %v966 = vpack.c.b16 %v934, %v934
        %v967 = vpack.c.b16 %v935, %v935
        %v968 = vpack.c.b16 %v936, %v936
        %v969 = vpack.c.b16 %v937, %v937
        %v970 = vpack.c.b16 %v938, %v938
        %v971 = vpack.c.b16 %v939, %v939
        %v972 = vpack.c.b16 %v940, %v940
        %v973 = vpack.c.b16 %v941, %v941
        %v974 = vpack.c.b16 %v942, %v942
        %v975 = vpack.c.b16 %v943, %v943
        %v976 = vpack.c.b16 %v944, %v944
        %v977 = vpack.c.b16 %v945, %v945
        %v978 = vpack.c.b16 %v946, %v946
        %v979 = vpack.c.b16 %v947, %v947
        %v980 = vpack.c.b16 %v948, %v948
        %v981 = vpack.c.b16 %v949, %v949
        %v982 = vpack.c.b16 %v950, %v950
        %v983 = vpack.c.b16 %v951, %v951
        %v984 = vpack.c.b16 %v952, %v952
        %v985 = vpack.c.b16 %v953, %v953
        %v986 = vpack.c.b16 %v954, %v954
        %v987 = vpack.c.b16 %v955, %v955
        %vm988 = vsmask.f32 4368
        %vm989 = vmor %vm779, %vm988
        %v991 = vshrl.u32 %v956, 16
        %v993 = vrot.slane %v991, 7
        %v994 = vshll.u32 %v956, 16
        %v996 = vor.u32 %v993, %v994
        %v997 = vrot.slane %v993, 4
        %v999 = vshrl.u32 %v957, 16
        %v1001 = vrot.slane %v999, 7
        %v1002 = vshll.u32 %v957, 16
        %v1004 = vor.u32 %v1001, %v1002
        %v1005 = vsel %vm989, %v997, %v1004
        %v1006 = vrot.slane %v1001, 4
        %v1008 = vshrl.u32 %v958, 16
        %v1010 = vrot.slane %v1008, 7
        %v1011 = vshll.u32 %v958, 16
        %v1013 = vor.u32 %v1010, %v1011
        %v1014 = vrot.slane %v1010, 4
        %v1016 = vshrl.u32 %v959, 16
        %v1018 = vrot.slane %v1016, 7
        %v1019 = vshll.u32 %v959, 16
        %v1021 = vor.u32 %v1018, %v1019
        %v1022 = vsel %vm989, %v1014, %v1021
        %v1023 = vrot.slane %v1018, 4
        %v1025 = vshrl.u32 %v960, 16
        %v1027 = vrot.slane %v1025, 7
        %v1028 = vshll.u32 %v960, 16
        %v1030 = vor.u32 %v1027, %v1028
        %v1031 = vrot.slane %v1027, 4
        %v1033 = vshrl.u32 %v961, 16
        %v1035 = vrot.slane %v1033, 7
        %v1036 = vshll.u32 %v961, 16
        %v1038 = vor.u32 %v1035, %v1036
        %v1039 = vsel %vm989, %v1031, %v1038
        %v1040 = vrot.slane %v1035, 4
        %v1042 = vshrl.u32 %v962, 16
        %v1044 = vrot.slane %v1042, 7
        %v1045 = vshll.u32 %v962, 16
        %v1047 = vor.u32 %v1044, %v1045
        %v1048 = vrot.slane %v1044, 4
        %v1050 = vshrl.u32 %v963, 16
        %v1052 = vrot.slane %v1050, 7
        %v1053 = vshll.u32 %v963, 16
        %v1055 = vor.u32 %v1052, %v1053
        %v1056 = vsel %vm989, %v1048, %v1055
        %v1057 = vrot.slane %v1052, 4
        %v1059 = vshrl.u32 %v964, 16
        %v1061 = vrot.slane %v1059, 7
        %v1062 = vshll.u32 %v964, 16
        %v1064 = vor.u32 %v1061, %v1062
        %v1065 = vrot.slane %v1061, 4
        %v1067 = vshrl.u32 %v965, 16
        %v1069 = vrot.slane %v1067, 7
        %v1070 = vshll.u32 %v965, 16
        %v1072 = vor.u32 %v1069, %v1070
        %v1073 = vsel %vm989, %v1065, %v1072
        %v1074 = vrot.slane %v1069, 4
        %v1076 = vshrl.u32 %v966, 16
        %v1078 = vrot.slane %v1076, 7
        %v1079 = vshll.u32 %v966, 16
        %v1081 = vor.u32 %v1078, %v1079
        %v1082 = vrot.slane %v1078, 4
        %v1084 = vshrl.u32 %v967, 16
        %v1086 = vrot.slane %v1084, 7
        %v1087 = vshll.u32 %v967, 16
        %v1089 = vor.u32 %v1086, %v1087
        %v1090 = vsel %vm989, %v1082, %v1089
        %v1091 = vrot.slane %v1086, 4
        %v1093 = vshrl.u32 %v968, 16
        %v1095 = vrot.slane %v1093, 7
        %v1096 = vshll.u32 %v968, 16
        %v1098 = vor.u32 %v1095, %v1096
        %v1099 = vrot.slane %v1095, 4
        %v1101 = vshrl.u32 %v969, 16
        %v1103 = vrot.slane %v1101, 7
        %v1104 = vshll.u32 %v969, 16
        %v1106 = vor.u32 %v1103, %v1104
        %v1107 = vsel %vm989, %v1099, %v1106
        %v1108 = vrot.slane %v1103, 4
        %v1110 = vshrl.u32 %v970, 16
        %v1112 = vrot.slane %v1110, 7
        %v1113 = vshll.u32 %v970, 16
        %v1115 = vor.u32 %v1112, %v1113
        %v1116 = vrot.slane %v1112, 4
        %v1118 = vshrl.u32 %v971, 16
        %v1120 = vrot.slane %v1118, 7
        %v1121 = vshll.u32 %v971, 16
        %v1123 = vor.u32 %v1120, %v1121
        %v1124 = vsel %vm989, %v1116, %v1123
        %v1125 = vrot.slane %v1120, 4
        %v1127 = vshrl.u32 %v972, 16
        %v1129 = vrot.slane %v1127, 7
        %v1130 = vshll.u32 %v972, 16
        %v1132 = vor.u32 %v1129, %v1130
        %v1133 = vrot.slane %v1129, 4
        %v1135 = vshrl.u32 %v973, 16
        %v1137 = vrot.slane %v1135, 7
        %v1138 = vshll.u32 %v973, 16
        %v1140 = vor.u32 %v1137, %v1138
        %v1141 = vsel %vm989, %v1133, %v1140
        %v1142 = vrot.slane %v1137, 4
        %v1144 = vshrl.u32 %v974, 16
        %v1146 = vrot.slane %v1144, 7
        %v1147 = vshll.u32 %v974, 16
        %v1149 = vor.u32 %v1146, %v1147
        %v1150 = vrot.slane %v1146, 4
        %v1152 = vshrl.u32 %v975, 16
        %v1154 = vrot.slane %v1152, 7
        %v1155 = vshll.u32 %v975, 16
        %v1157 = vor.u32 %v1154, %v1155
        %v1158 = vsel %vm989, %v1150, %v1157
        %v1159 = vrot.slane %v1154, 4
        %v1161 = vshrl.u32 %v976, 16
        %v1163 = vrot.slane %v1161, 7
        %v1164 = vshll.u32 %v976, 16
        %v1166 = vor.u32 %v1163, %v1164
        %v1167 = vrot.slane %v1163, 4
        %v1169 = vshrl.u32 %v977, 16
        %v1171 = vrot.slane %v1169, 7
        %v1172 = vshll.u32 %v977, 16
        %v1174 = vor.u32 %v1171, %v1172
        %v1175 = vsel %vm989, %v1167, %v1174
        %v1176 = vrot.slane %v1171, 4
        %v1178 = vshrl.u32 %v978, 16
        %v1180 = vrot.slane %v1178, 7
        %v1181 = vshll.u32 %v978, 16
        %v1183 = vor.u32 %v1180, %v1181
        %v1184 = vrot.slane %v1180, 4
        %v1186 = vshrl.u32 %v979, 16
        %v1188 = vrot.slane %v1186, 7
        %v1189 = vshll.u32 %v979, 16
        %v1191 = vor.u32 %v1188, %v1189
        %v1192 = vsel %vm989, %v1184, %v1191
        %v1193 = vrot.slane %v1188, 4
        %v1195 = vshrl.u32 %v980, 16
        %v1197 = vrot.slane %v1195, 7
        %v1198 = vshll.u32 %v980, 16
        %v1200 = vor.u32 %v1197, %v1198
        %v1201 = vrot.slane %v1197, 4
        %v1203 = vshrl.u32 %v981, 16
        %v1205 = vrot.slane %v1203, 7
        %v1206 = vshll.u32 %v981, 16
        %v1208 = vor.u32 %v1205, %v1206
        %v1209 = vsel %vm989, %v1201, %v1208
        %v1210 = vrot.slane %v1205, 4
        %v1212 = vshrl.u32 %v982, 16
        %v1214 = vrot.slane %v1212, 7
        %v1215 = vshll.u32 %v982, 16
        %v1217 = vor.u32 %v1214, %v1215
        %v1218 = vrot.slane %v1214, 4
        %v1220 = vshrl.u32 %v983, 16
        %v1222 = vrot.slane %v1220, 7
        %v1223 = vshll.u32 %v983, 16
        %v1225 = vor.u32 %v1222, %v1223
        %v1226 = vsel %vm989, %v1218, %v1225
        %v1227 = vrot.slane %v1222, 4
        %v1229 = vshrl.u32 %v984, 16
        %v1231 = vrot.slane %v1229, 7
        %v1232 = vshll.u32 %v984, 16
        %v1234 = vor.u32 %v1231, %v1232
        %v1235 = vrot.slane %v1231, 4
        %v1237 = vshrl.u32 %v985, 16
        %v1239 = vrot.slane %v1237, 7
        %v1240 = vshll.u32 %v985, 16
        %v1242 = vor.u32 %v1239, %v1240
        %v1243 = vsel %vm989, %v1235, %v1242
        %v1244 = vrot.slane %v1239, 4
        %v1246 = vshrl.u32 %v986, 16
        %v1248 = vrot.slane %v1246, 7
        %v1249 = vshll.u32 %v986, 16
        %v1251 = vor.u32 %v1248, %v1249
        %v1252 = vrot.slane %v1248, 4
        %v1254 = vshrl.u32 %v987, 16
        %v1256 = vrot.slane %v1254, 7
        %v1257 = vshll.u32 %v987, 16
        %v1259 = vor.u32 %v1256, %v1257
        %v1260 = vsel %vm989, %v1252, %v1259
        %v1261 = vrot.slane %v1256, 4
        %s1310 = scalar_lea.vmem [#allocation2], 12
        %vm1311 = vcmask 1043456
        %vm1312 = vmand %vm1311, %vm835
        %v1313 = vld [vmem:[%s1310] sm:$0xf]
        %v1314 = vsel %vm1312, %v996, %v1313
        %1315 = vst [vmem:[%s1310] sm:$0xf] %v1314
        %1316 = vst [vmem:[%s1310 + $0x4] sm:$0xf] %v1005
        %v1317 = vld [vmem:[%s1310 + $0x8] sm:$0x1]
        %v1318 = vsel %vm780, %v1006, %v1317
        %1319 = vst [vmem:[%s1310 + $0x8] sm:$0x1] %v1318
        %v1320 = vld [vmem:[%s1310 + $0xc] sm:$0xf]
        %v1321 = vsel %vm1312, %v1013, %v1320
        %1322 = vst [vmem:[%s1310 + $0xc] sm:$0xf] %v1321
        %1323 = vst [vmem:[%s1310 + $0x10] sm:$0xf] %v1022
        %v1324 = vld [vmem:[%s1310 + $0x14] sm:$0x1]
        %v1325 = vsel %vm780, %v1023, %v1324
        %1326 = vst [vmem:[%s1310 + $0x14] sm:$0x1] %v1325
        %v1327 = vld [vmem:[%s1310 + $0x18] sm:$0xf]
        %v1328 = vsel %vm1312, %v1030, %v1327
        %1329 = vst [vmem:[%s1310 + $0x18] sm:$0xf] %v1328
        %1330 = vst [vmem:[%s1310 + $0x1c] sm:$0xf] %v1039
        %v1331 = vld [vmem:[%s1310 + $0x20] sm:$0x1]
        %v1332 = vsel %vm780, %v1040, %v1331
        %1333 = vst [vmem:[%s1310 + $0x20] sm:$0x1] %v1332
        %v1334 = vld [vmem:[%s1310 + $0x24] sm:$0xf]
        %v1335 = vsel %vm1312, %v1047, %v1334
        %1336 = vst [vmem:[%s1310 + $0x24] sm:$0xf] %v1335
        %1337 = vst [vmem:[%s1310 + $0x28] sm:$0xf] %v1056
        %v1338 = vld [vmem:[%s1310 + $0x2c] sm:$0x1]
        %v1339 = vsel %vm780, %v1057, %v1338
        %1340 = vst [vmem:[%s1310 + $0x2c] sm:$0x1] %v1339
        %v1341 = vld [vmem:[%s1310 + $0x30] sm:$0xf]
        %v1342 = vsel %vm1312, %v1064, %v1341
        %1343 = vst [vmem:[%s1310 + $0x30] sm:$0xf] %v1342
        %1344 = vst [vmem:[%s1310 + $0x34] sm:$0xf] %v1073
        %v1345 = vld [vmem:[%s1310 + $0x38] sm:$0x1]
        %v1346 = vsel %vm780, %v1074, %v1345
        %1347 = vst [vmem:[%s1310 + $0x38] sm:$0x1] %v1346
        %v1348 = vld [vmem:[%s1310 + $0x3c] sm:$0xf]
        %v1349 = vsel %vm1312, %v1081, %v1348
        %1350 = vst [vmem:[%s1310 + $0x3c] sm:$0xf] %v1349
        %1351 = vst [vmem:[%s1310 + $0x40] sm:$0xf] %v1090
        %v1352 = vld [vmem:[%s1310 + $0x44] sm:$0x1]
        %v1353 = vsel %vm780, %v1091, %v1352
        %1354 = vst [vmem:[%s1310 + $0x44] sm:$0x1] %v1353
        %v1355 = vld [vmem:[%s1310 + $0x48] sm:$0xf]
        %v1356 = vsel %vm1312, %v1098, %v1355
        %1357 = vst [vmem:[%s1310 + $0x48] sm:$0xf] %v1356
        %1358 = vst [vmem:[%s1310 + $0x4c] sm:$0xf] %v1107
        %v1359 = vld [vmem:[%s1310 + $0x50] sm:$0x1]
        %v1360 = vsel %vm780, %v1108, %v1359
        %1361 = vst [vmem:[%s1310 + $0x50] sm:$0x1] %v1360
        %v1362 = vld [vmem:[%s1310 + $0x54] sm:$0xf]
        %v1363 = vsel %vm1312, %v1115, %v1362
        %1364 = vst [vmem:[%s1310 + $0x54] sm:$0xf] %v1363
        %1365 = vst [vmem:[%s1310 + $0x58] sm:$0xf] %v1124
        %v1366 = vld [vmem:[%s1310 + $0x5c] sm:$0x1]
        %v1367 = vsel %vm780, %v1125, %v1366
        %1368 = vst [vmem:[%s1310 + $0x5c] sm:$0x1] %v1367
        %v1369 = vld [vmem:[%s1310 + $0x60] sm:$0xf]
        %v1370 = vsel %vm1312, %v1132, %v1369
        %1371 = vst [vmem:[%s1310 + $0x60] sm:$0xf] %v1370
        %1372 = vst [vmem:[%s1310 + $0x64] sm:$0xf] %v1141
        %v1373 = vld [vmem:[%s1310 + $0x68] sm:$0x1]
        %v1374 = vsel %vm780, %v1142, %v1373
        %1375 = vst [vmem:[%s1310 + $0x68] sm:$0x1] %v1374
        %v1376 = vld [vmem:[%s1310 + $0x6c] sm:$0xf]
        %v1377 = vsel %vm1312, %v1149, %v1376
        %1378 = vst [vmem:[%s1310 + $0x6c] sm:$0xf] %v1377
        %1379 = vst [vmem:[%s1310 + $0x70] sm:$0xf] %v1158
        %v1380 = vld [vmem:[%s1310 + $0x74] sm:$0x1]
        %v1381 = vsel %vm780, %v1159, %v1380
        %1382 = vst [vmem:[%s1310 + $0x74] sm:$0x1] %v1381
        %v1383 = vld [vmem:[%s1310 + $0x78] sm:$0xf]
        %v1384 = vsel %vm1312, %v1166, %v1383
        %1385 = vst [vmem:[%s1310 + $0x78] sm:$0xf] %v1384
        %1386 = vst [vmem:[%s1310 + $0x7c] sm:$0xf] %v1175
        %v1387 = vld [vmem:[%s1310 + $0x80] sm:$0x1]
        %v1388 = vsel %vm780, %v1176, %v1387
        %1389 = vst [vmem:[%s1310 + $0x80] sm:$0x1] %v1388
        %v1390 = vld [vmem:[%s1310 + $0x84] sm:$0xf]
        %v1391 = vsel %vm1312, %v1183, %v1390
        %1392 = vst [vmem:[%s1310 + $0x84] sm:$0xf] %v1391
        %1393 = vst [vmem:[%s1310 + $0x88] sm:$0xf] %v1192
        %v1394 = vld [vmem:[%s1310 + $0x8c] sm:$0x1]
        %v1395 = vsel %vm780, %v1193, %v1394
        %1396 = vst [vmem:[%s1310 + $0x8c] sm:$0x1] %v1395
        %v1397 = vld [vmem:[%s1310 + $0x90] sm:$0xf]
        %v1398 = vsel %vm1312, %v1200, %v1397
        %1399 = vst [vmem:[%s1310 + $0x90] sm:$0xf] %v1398
        %1400 = vst [vmem:[%s1310 + $0x94] sm:$0xf] %v1209
        %v1401 = vld [vmem:[%s1310 + $0x98] sm:$0x1]
        %v1402 = vsel %vm780, %v1210, %v1401
        %1403 = vst [vmem:[%s1310 + $0x98] sm:$0x1] %v1402
        %v1404 = vld [vmem:[%s1310 + $0x9c] sm:$0xf]
        %v1405 = vsel %vm1312, %v1217, %v1404
        %1406 = vst [vmem:[%s1310 + $0x9c] sm:$0xf] %v1405
        %1407 = vst [vmem:[%s1310 + $0xa0] sm:$0xf] %v1226
        %v1408 = vld [vmem:[%s1310 + $0xa4] sm:$0x1]
        %v1409 = vsel %vm780, %v1227, %v1408
        %1410 = vst [vmem:[%s1310 + $0xa4] sm:$0x1] %v1409
        %v1411 = vld [vmem:[%s1310 + $0xa8] sm:$0xf]
        %v1412 = vsel %vm1312, %v1234, %v1411
        %1413 = vst [vmem:[%s1310 + $0xa8] sm:$0xf] %v1412
        %1414 = vst [vmem:[%s1310 + $0xac] sm:$0xf] %v1243
        %v1415 = vld [vmem:[%s1310 + $0xb0] sm:$0x1]
        %v1416 = vsel %vm780, %v1244, %v1415
        %1417 = vst [vmem:[%s1310 + $0xb0] sm:$0x1] %v1416
        %v1418 = vld [vmem:[%s1310 + $0xb4] sm:$0xf]
        %v1419 = vsel %vm1312, %v1251, %v1418
        %1420 = vst [vmem:[%s1310 + $0xb4] sm:$0xf] %v1419
        %1421 = vst [vmem:[%s1310 + $0xb8] sm:$0xf] %v1260
        %v1422 = vld [vmem:[%s1310 + $0xbc] sm:$0x1]
        %v1423 = vsel %vm780, %v1261, %v1422
        %1424 = vst [vmem:[%s1310 + $0xbc] sm:$0x1] %v1423
        %v1425 = vld [vmem:[#allocation2] sm:$0xf]
        %v1426 = vld [vmem:[#allocation2 + $0x4] sm:$0xf]
        %v1427 = vld [vmem:[#allocation2 + $0xc] sm:$0xf]
        %v1428 = vld [vmem:[#allocation2 + $0x10] sm:$0xf]
        %v1429 = vld [vmem:[#allocation2 + $0x18] sm:$0xf]
        %v1430 = vld [vmem:[#allocation2 + $0x1c] sm:$0xf]
        %v1431 = vld [vmem:[#allocation2 + $0x24] sm:$0xf]
        %v1432 = vld [vmem:[#allocation2 + $0x28] sm:$0xf]
        %v1433 = vld [vmem:[#allocation2 + $0x30] sm:$0xf]
        %v1434 = vld [vmem:[#allocation2 + $0x34] sm:$0xf]
        %v1435 = vld [vmem:[#allocation2 + $0x3c] sm:$0xf]
        %v1436 = vld [vmem:[#allocation2 + $0x40] sm:$0xf]
        %v1437 = vld [vmem:[#allocation2 + $0x48] sm:$0xf]
        %v1438 = vld [vmem:[#allocation2 + $0x4c] sm:$0xf]
        %v1439 = vld [vmem:[#allocation2 + $0x54] sm:$0xf]
        %v1440 = vld [vmem:[#allocation2 + $0x58] sm:$0xf]
        %v1441 = vld [vmem:[#allocation2 + $0x60] sm:$0xf]
        %v1442 = vld [vmem:[#allocation2 + $0x64] sm:$0xf]
        %v1443 = vld [vmem:[#allocation2 + $0x6c] sm:$0xf]
        %v1444 = vld [vmem:[#allocation2 + $0x70] sm:$0xf]
        %v1445 = vld [vmem:[#allocation2 + $0x78] sm:$0xf]
        %v1446 = vld [vmem:[#allocation2 + $0x7c] sm:$0xf]
        %v1447 = vld [vmem:[#allocation2 + $0x84] sm:$0xf]
        %v1448 = vld [vmem:[#allocation2 + $0x88] sm:$0xf]
        %v1449 = vld [vmem:[#allocation2 + $0x90] sm:$0xf]
        %v1450 = vld [vmem:[#allocation2 + $0x94] sm:$0xf]
        %v1451 = vld [vmem:[#allocation2 + $0x9c] sm:$0xf]
        %v1452 = vld [vmem:[#allocation2 + $0xa0] sm:$0xf]
        %v1453 = vld [vmem:[#allocation2 + $0xa8] sm:$0xf]
        %v1454 = vld [vmem:[#allocation2 + $0xac] sm:$0xf]
        %v1455 = vld [vmem:[#allocation2 + $0xb4] sm:$0xf]
        %v1456 = vld [vmem:[#allocation2 + $0xb8] sm:$0xf]
        %v1457 = vld [vmem:[#allocation2 + $0x8] sm:$0x1]
        %v1458 = vld [vmem:[#allocation2 + $0x14] sm:$0x1]
        %v1459 = vld [vmem:[#allocation2 + $0x20] sm:$0x1]
        %v1460 = vld [vmem:[#allocation2 + $0x2c] sm:$0x1]
        %v1461 = vld [vmem:[#allocation2 + $0x38] sm:$0x1]
        %v1462 = vld [vmem:[#allocation2 + $0x44] sm:$0x1]
        %v1463 = vld [vmem:[#allocation2 + $0x50] sm:$0x1]
        %v1464 = vld [vmem:[#allocation2 + $0x5c] sm:$0x1]
        %v1465 = vld [vmem:[#allocation2 + $0x68] sm:$0x1]
        %v1466 = vld [vmem:[#allocation2 + $0x74] sm:$0x1]
        %v1467 = vld [vmem:[#allocation2 + $0x80] sm:$0x1]
        %v1468 = vld [vmem:[#allocation2 + $0x8c] sm:$0x1]
        %v1469 = vld [vmem:[#allocation2 + $0x98] sm:$0x1]
        %v1470 = vld [vmem:[#allocation2 + $0xa4] sm:$0x1]
        %v1471 = vld [vmem:[#allocation2 + $0xb0] sm:$0x1]
        %v1472 = vld [vmem:[#allocation2 + $0xbc] sm:$0x1]
        %vm1473 = vsmask.f32 3328
        %vm1474 = vsmask.f32 7440
        %vm1475 = vmor %vm1473, %vm1474
        %v1477 = vshrl.u32 %v1425, 16
        %v1479 = vrot.slane %v1477, 4
        %v1480 = vshll.u32 %v1425, 16
        %v1482 = vrot.slane %v1480, 5
        %v1483 = vor.u32 %v1479, %v1482
        %v1484 = vrot.slane %v1483, 4
        %v1486 = vshll.u32 %v1426, 16
        %v1488 = vrot.slane %v1486, 5
        %v1489 = vsel %vm1475, %v1484, %v1488
        %v1490 = vshrl.u32 %v1426, 16
        %v1492 = vrot.slane %v1490, 4
        %v1493 = vor.u32 %v1492, %v1488
        %v1494 = vrot.slane %v1493, 4
        %v1496 = vshll.u32 %v1457, 16
        %v1498 = vrot.slane %v1496, 5
        %v1499 = vsel %vm1475, %v1494, %v1498
        %v1501 = vshrl.u32 %v1427, 16
        %v1503 = vrot.slane %v1501, 4
        %v1504 = vshll.u32 %v1427, 16
        %v1506 = vrot.slane %v1504, 5
        %v1507 = vor.u32 %v1503, %v1506
        %v1508 = vrot.slane %v1507, 4
        %v1510 = vshll.u32 %v1428, 16
        %v1512 = vrot.slane %v1510, 5
        %v1513 = vsel %vm1475, %v1508, %v1512
        %v1514 = vshrl.u32 %v1428, 16
        %v1516 = vrot.slane %v1514, 4
        %v1517 = vor.u32 %v1516, %v1512
        %v1518 = vrot.slane %v1517, 4
        %v1520 = vshll.u32 %v1458, 16
        %v1522 = vrot.slane %v1520, 5
        %v1523 = vsel %vm1475, %v1518, %v1522
        %v1525 = vshrl.u32 %v1429, 16
        %v1527 = vrot.slane %v1525, 4
        %v1528 = vshll.u32 %v1429, 16
        %v1530 = vrot.slane %v1528, 5
        %v1531 = vor.u32 %v1527, %v1530
        %v1532 = vrot.slane %v1531, 4
        %v1534 = vshll.u32 %v1430, 16
        %v1536 = vrot.slane %v1534, 5
        %v1537 = vsel %vm1475, %v1532, %v1536
        %v1538 = vshrl.u32 %v1430, 16
        %v1540 = vrot.slane %v1538, 4
        %v1541 = vor.u32 %v1540, %v1536
        %v1542 = vrot.slane %v1541, 4
        %v1544 = vshll.u32 %v1459, 16
        %v1546 = vrot.slane %v1544, 5
        %v1547 = vsel %vm1475, %v1542, %v1546
        %v1549 = vshrl.u32 %v1431, 16
        %v1551 = vrot.slane %v1549, 4
        %v1552 = vshll.u32 %v1431, 16
        %v1554 = vrot.slane %v1552, 5
        %v1555 = vor.u32 %v1551, %v1554
        %v1556 = vrot.slane %v1555, 4
        %v1558 = vshll.u32 %v1432, 16
        %v1560 = vrot.slane %v1558, 5
        %v1561 = vsel %vm1475, %v1556, %v1560
        %v1562 = vshrl.u32 %v1432, 16
        %v1564 = vrot.slane %v1562, 4
        %v1565 = vor.u32 %v1564, %v1560
        %v1566 = vrot.slane %v1565, 4
        %v1568 = vshll.u32 %v1460, 16
        %v1570 = vrot.slane %v1568, 5
        %v1571 = vsel %vm1475, %v1566, %v1570
        %v1573 = vshrl.u32 %v1433, 16
        %v1575 = vrot.slane %v1573, 4
        %v1576 = vshll.u32 %v1433, 16
        %v1578 = vrot.slane %v1576, 5
        %v1579 = vor.u32 %v1575, %v1578
        %v1580 = vrot.slane %v1579, 4
        %v1582 = vshll.u32 %v1434, 16
        %v1584 = vrot.slane %v1582, 5
        %v1585 = vsel %vm1475, %v1580, %v1584
        %v1586 = vshrl.u32 %v1434, 16
        %v1588 = vrot.slane %v1586, 4
        %v1589 = vor.u32 %v1588, %v1584
        %v1590 = vrot.slane %v1589, 4
        %v1592 = vshll.u32 %v1461, 16
        %v1594 = vrot.slane %v1592, 5
        %v1595 = vsel %vm1475, %v1590, %v1594
        %v1597 = vshrl.u32 %v1435, 16
        %v1599 = vrot.slane %v1597, 4
        %v1600 = vshll.u32 %v1435, 16
        %v1602 = vrot.slane %v1600, 5
        %v1603 = vor.u32 %v1599, %v1602
        %v1604 = vrot.slane %v1603, 4
        %v1606 = vshll.u32 %v1436, 16
        %v1608 = vrot.slane %v1606, 5
        %v1609 = vsel %vm1475, %v1604, %v1608
        %v1610 = vshrl.u32 %v1436, 16
        %v1612 = vrot.slane %v1610, 4
        %v1613 = vor.u32 %v1612, %v1608
        %v1614 = vrot.slane %v1613, 4
        %v1616 = vshll.u32 %v1462, 16
        %v1618 = vrot.slane %v1616, 5
        %v1619 = vsel %vm1475, %v1614, %v1618
        %v1621 = vshrl.u32 %v1437, 16
        %v1623 = vrot.slane %v1621, 4
        %v1624 = vshll.u32 %v1437, 16
        %v1626 = vrot.slane %v1624, 5
        %v1627 = vor.u32 %v1623, %v1626
        %v1628 = vrot.slane %v1627, 4
        %v1630 = vshll.u32 %v1438, 16
        %v1632 = vrot.slane %v1630, 5
        %v1633 = vsel %vm1475, %v1628, %v1632
        %v1634 = vshrl.u32 %v1438, 16
        %v1636 = vrot.slane %v1634, 4
        %v1637 = vor.u32 %v1636, %v1632
        %v1638 = vrot.slane %v1637, 4
        %v1640 = vshll.u32 %v1463, 16
        %v1642 = vrot.slane %v1640, 5
        %v1643 = vsel %vm1475, %v1638, %v1642
        %v1645 = vshrl.u32 %v1439, 16
        %v1647 = vrot.slane %v1645, 4
        %v1648 = vshll.u32 %v1439, 16
        %v1650 = vrot.slane %v1648, 5
        %v1651 = vor.u32 %v1647, %v1650
        %v1652 = vrot.slane %v1651, 4
        %v1654 = vshll.u32 %v1440, 16
        %v1656 = vrot.slane %v1654, 5
        %v1657 = vsel %vm1475, %v1652, %v1656
        %v1658 = vshrl.u32 %v1440, 16
        %v1660 = vrot.slane %v1658, 4
        %v1661 = vor.u32 %v1660, %v1656
        %v1662 = vrot.slane %v1661, 4
        %v1664 = vshll.u32 %v1464, 16
        %v1666 = vrot.slane %v1664, 5
        %v1667 = vsel %vm1475, %v1662, %v1666
        %v1669 = vshrl.u32 %v1441, 16
        %v1671 = vrot.slane %v1669, 4
        %v1672 = vshll.u32 %v1441, 16
        %v1674 = vrot.slane %v1672, 5
        %v1675 = vor.u32 %v1671, %v1674
        %v1676 = vrot.slane %v1675, 4
        %v1678 = vshll.u32 %v1442, 16
        %v1680 = vrot.slane %v1678, 5
        %v1681 = vsel %vm1475, %v1676, %v1680
        %v1682 = vshrl.u32 %v1442, 16
        %v1684 = vrot.slane %v1682, 4
        %v1685 = vor.u32 %v1684, %v1680
        %v1686 = vrot.slane %v1685, 4
        %v1688 = vshll.u32 %v1465, 16
        %v1690 = vrot.slane %v1688, 5
        %v1691 = vsel %vm1475, %v1686, %v1690
        %v1693 = vshrl.u32 %v1443, 16
        %v1695 = vrot.slane %v1693, 4
        %v1696 = vshll.u32 %v1443, 16
        %v1698 = vrot.slane %v1696, 5
        %v1699 = vor.u32 %v1695, %v1698
        %v1700 = vrot.slane %v1699, 4
        %v1702 = vshll.u32 %v1444, 16
        %v1704 = vrot.slane %v1702, 5
        %v1705 = vsel %vm1475, %v1700, %v1704
        %v1706 = vshrl.u32 %v1444, 16
        %v1708 = vrot.slane %v1706, 4
        %v1709 = vor.u32 %v1708, %v1704
        %v1710 = vrot.slane %v1709, 4
        %v1712 = vshll.u32 %v1466, 16
        %v1714 = vrot.slane %v1712, 5
        %v1715 = vsel %vm1475, %v1710, %v1714
        %v1717 = vshrl.u32 %v1445, 16
        %v1719 = vrot.slane %v1717, 4
        %v1720 = vshll.u32 %v1445, 16
        %v1722 = vrot.slane %v1720, 5
        %v1723 = vor.u32 %v1719, %v1722
        %v1724 = vrot.slane %v1723, 4
        %v1726 = vshll.u32 %v1446, 16
        %v1728 = vrot.slane %v1726, 5
        %v1729 = vsel %vm1475, %v1724, %v1728
        %v1730 = vshrl.u32 %v1446, 16
        %v1732 = vrot.slane %v1730, 4
        %v1733 = vor.u32 %v1732, %v1728
        %v1734 = vrot.slane %v1733, 4
        %v1736 = vshll.u32 %v1467, 16
        %v1738 = vrot.slane %v1736, 5
        %v1739 = vsel %vm1475, %v1734, %v1738
        %v1741 = vshrl.u32 %v1447, 16
        %v1743 = vrot.slane %v1741, 4
        %v1744 = vshll.u32 %v1447, 16
        %v1746 = vrot.slane %v1744, 5
        %v1747 = vor.u32 %v1743, %v1746
        %v1748 = vrot.slane %v1747, 4
        %v1750 = vshll.u32 %v1448, 16
        %v1752 = vrot.slane %v1750, 5
        %v1753 = vsel %vm1475, %v1748, %v1752
        %v1754 = vshrl.u32 %v1448, 16
        %v1756 = vrot.slane %v1754, 4
        %v1757 = vor.u32 %v1756, %v1752
        %v1758 = vrot.slane %v1757, 4
        %v1760 = vshll.u32 %v1468, 16
        %v1762 = vrot.slane %v1760, 5
        %v1763 = vsel %vm1475, %v1758, %v1762
        %v1765 = vshrl.u32 %v1449, 16
        %v1767 = vrot.slane %v1765, 4
        %v1768 = vshll.u32 %v1449, 16
        %v1770 = vrot.slane %v1768, 5
        %v1771 = vor.u32 %v1767, %v1770
        %v1772 = vrot.slane %v1771, 4
        %v1774 = vshll.u32 %v1450, 16
        %v1776 = vrot.slane %v1774, 5
        %v1777 = vsel %vm1475, %v1772, %v1776
        %v1778 = vshrl.u32 %v1450, 16
        %v1780 = vrot.slane %v1778, 4
        %v1781 = vor.u32 %v1780, %v1776
        %v1782 = vrot.slane %v1781, 4
        %v1784 = vshll.u32 %v1469, 16
        %v1786 = vrot.slane %v1784, 5
        %v1787 = vsel %vm1475, %v1782, %v1786
        %v1789 = vshrl.u32 %v1451, 16
        %v1791 = vrot.slane %v1789, 4
        %v1792 = vshll.u32 %v1451, 16
        %v1794 = vrot.slane %v1792, 5
        %v1795 = vor.u32 %v1791, %v1794
        %v1796 = vrot.slane %v1795, 4
        %v1798 = vshll.u32 %v1452, 16
        %v1800 = vrot.slane %v1798, 5
        %v1801 = vsel %vm1475, %v1796, %v1800
        %v1802 = vshrl.u32 %v1452, 16
        %v1804 = vrot.slane %v1802, 4
        %v1805 = vor.u32 %v1804, %v1800
        %v1806 = vrot.slane %v1805, 4
        %v1808 = vshll.u32 %v1470, 16
        %v1810 = vrot.slane %v1808, 5
        %v1811 = vsel %vm1475, %v1806, %v1810
        %v1813 = vshrl.u32 %v1453, 16
        %v1815 = vrot.slane %v1813, 4
        %v1816 = vshll.u32 %v1453, 16
        %v1818 = vrot.slane %v1816, 5
        %v1819 = vor.u32 %v1815, %v1818
        %v1820 = vrot.slane %v1819, 4
        %v1822 = vshll.u32 %v1454, 16
        %v1824 = vrot.slane %v1822, 5
        %v1825 = vsel %vm1475, %v1820, %v1824
        %v1826 = vshrl.u32 %v1454, 16
        %v1828 = vrot.slane %v1826, 4
        %v1829 = vor.u32 %v1828, %v1824
        %v1830 = vrot.slane %v1829, 4
        %v1832 = vshll.u32 %v1471, 16
        %v1834 = vrot.slane %v1832, 5
        %v1835 = vsel %vm1475, %v1830, %v1834
        %v1837 = vshrl.u32 %v1455, 16
        %v1839 = vrot.slane %v1837, 4
        %v1840 = vshll.u32 %v1455, 16
        %v1842 = vrot.slane %v1840, 5
        %v1843 = vor.u32 %v1839, %v1842
        %v1844 = vrot.slane %v1843, 4
        %v1846 = vshll.u32 %v1456, 16
        %v1848 = vrot.slane %v1846, 5
        %v1849 = vsel %vm1475, %v1844, %v1848
        %v1850 = vshrl.u32 %v1456, 16
        %v1852 = vrot.slane %v1850, 4
        %v1853 = vor.u32 %v1852, %v1848
        %v1854 = vrot.slane %v1853, 4
        %v1856 = vshll.u32 %v1472, 16
        %v1858 = vrot.slane %v1856, 5
        %v1859 = vsel %vm1475, %v1854, %v1858
        %v1860 = vld [vmem:[#allocation2] sm:$0xe]
        %v1861 = vld [vmem:[#allocation2 + $0xc] sm:$0xe]
        %v1862 = vld [vmem:[#allocation2 + $0x18] sm:$0xe]
        %v1863 = vld [vmem:[#allocation2 + $0x24] sm:$0xe]
        %v1864 = vld [vmem:[#allocation2 + $0x30] sm:$0xe]
        %v1865 = vld [vmem:[#allocation2 + $0x3c] sm:$0xe]
        %v1866 = vld [vmem:[#allocation2 + $0x48] sm:$0xe]
        %v1867 = vld [vmem:[#allocation2 + $0x54] sm:$0xe]
        %v1868 = vld [vmem:[#allocation2 + $0x60] sm:$0xe]
        %v1869 = vld [vmem:[#allocation2 + $0x6c] sm:$0xe]
        %v1870 = vld [vmem:[#allocation2 + $0x78] sm:$0xe]
        %v1871 = vld [vmem:[#allocation2 + $0x84] sm:$0xe]
        %v1872 = vld [vmem:[#allocation2 + $0x90] sm:$0xe]
        %v1873 = vld [vmem:[#allocation2 + $0x9c] sm:$0xe]
        %v1874 = vld [vmem:[#allocation2 + $0xa8] sm:$0xe]
        %v1875 = vld [vmem:[#allocation2 + $0xb4] sm:$0xe]
        %vm1924 = vcmask 1042432
        %vm1925 = vcmask 1046532
        %vm1926 = vmor %vm1924, %vm1925
        %v1927 = vrot.slane %v1860, 5
        %v1928 = vrot.slane %v1927, 4
        %v1929 = vrot.slane %v1426, 5
        %v1930 = vsel %vm1926, %v1928, %v1929
        %v1931 = vrot.slane %v1929, 4
        %v1932 = vrot.slane %v1457, 5
        %v1933 = vsel %vm1926, %v1931, %v1932
        %v1934 = vrot.slane %v1861, 5
        %v1935 = vrot.slane %v1934, 4
        %v1936 = vrot.slane %v1428, 5
        %v1937 = vsel %vm1926, %v1935, %v1936
        %v1938 = vrot.slane %v1936, 4
        %v1939 = vrot.slane %v1458, 5
        %v1940 = vsel %vm1926, %v1938, %v1939
        %v1941 = vrot.slane %v1862, 5
        %v1942 = vrot.slane %v1941, 4
        %v1943 = vrot.slane %v1430, 5
        %v1944 = vsel %vm1926, %v1942, %v1943
        %v1945 = vrot.slane %v1943, 4
        %v1946 = vrot.slane %v1459, 5
        %v1947 = vsel %vm1926, %v1945, %v1946
        %v1948 = vrot.slane %v1863, 5
        %v1949 = vrot.slane %v1948, 4
        %v1950 = vrot.slane %v1432, 5
        %v1951 = vsel %vm1926, %v1949, %v1950
        %v1952 = vrot.slane %v1950, 4
        %v1953 = vrot.slane %v1460, 5
        %v1954 = vsel %vm1926, %v1952, %v1953
        %v1955 = vrot.slane %v1864, 5
        %v1956 = vrot.slane %v1955, 4
        %v1957 = vrot.slane %v1434, 5
        %v1958 = vsel %vm1926, %v1956, %v1957
        %v1959 = vrot.slane %v1957, 4
        %v1960 = vrot.slane %v1461, 5
        %v1961 = vsel %vm1926, %v1959, %v1960
        %v1962 = vrot.slane %v1865, 5
        %v1963 = vrot.slane %v1962, 4
        %v1964 = vrot.slane %v1436, 5
        %v1965 = vsel %vm1926, %v1963, %v1964
        %v1966 = vrot.slane %v1964, 4
        %v1967 = vrot.slane %v1462, 5
        %v1968 = vsel %vm1926, %v1966, %v1967
        %v1969 = vrot.slane %v1866, 5
        %v1970 = vrot.slane %v1969, 4
        %v1971 = vrot.slane %v1438, 5
        %v1972 = vsel %vm1926, %v1970, %v1971
        %v1973 = vrot.slane %v1971, 4
        %v1974 = vrot.slane %v1463, 5
        %v1975 = vsel %vm1926, %v1973, %v1974
        %v1976 = vrot.slane %v1867, 5
        %v1977 = vrot.slane %v1976, 4
        %v1978 = vrot.slane %v1440, 5
        %v1979 = vsel %vm1926, %v1977, %v1978
        %v1980 = vrot.slane %v1978, 4
        %v1981 = vrot.slane %v1464, 5
        %v1982 = vsel %vm1926, %v1980, %v1981
        %v1983 = vrot.slane %v1868, 5
        %v1984 = vrot.slane %v1983, 4
        %v1985 = vrot.slane %v1442, 5
        %v1986 = vsel %vm1926, %v1984, %v1985
        %v1987 = vrot.slane %v1985, 4
        %v1988 = vrot.slane %v1465, 5
        %v1989 = vsel %vm1926, %v1987, %v1988
        %v1990 = vrot.slane %v1869, 5
        %v1991 = vrot.slane %v1990, 4
        %v1992 = vrot.slane %v1444, 5
        %v1993 = vsel %vm1926, %v1991, %v1992
        %v1994 = vrot.slane %v1992, 4
        %v1995 = vrot.slane %v1466, 5
        %v1996 = vsel %vm1926, %v1994, %v1995
        %v1997 = vrot.slane %v1870, 5
        %v1998 = vrot.slane %v1997, 4
        %v1999 = vrot.slane %v1446, 5
        %v2000 = vsel %vm1926, %v1998, %v1999
        %v2001 = vrot.slane %v1999, 4
        %v2002 = vrot.slane %v1467, 5
        %v2003 = vsel %vm1926, %v2001, %v2002
        %v2004 = vrot.slane %v1871, 5
        %v2005 = vrot.slane %v2004, 4
        %v2006 = vrot.slane %v1448, 5
        %v2007 = vsel %vm1926, %v2005, %v2006
        %v2008 = vrot.slane %v2006, 4
        %v2009 = vrot.slane %v1468, 5
        %v2010 = vsel %vm1926, %v2008, %v2009
        %v2011 = vrot.slane %v1872, 5
        %v2012 = vrot.slane %v2011, 4
        %v2013 = vrot.slane %v1450, 5
        %v2014 = vsel %vm1926, %v2012, %v2013
        %v2015 = vrot.slane %v2013, 4
        %v2016 = vrot.slane %v1469, 5
        %v2017 = vsel %vm1926, %v2015, %v2016
        %v2018 = vrot.slane %v1873, 5
        %v2019 = vrot.slane %v2018, 4
        %v2020 = vrot.slane %v1452, 5
        %v2021 = vsel %vm1926, %v2019, %v2020
        %v2022 = vrot.slane %v2020, 4
        %v2023 = vrot.slane %v1470, 5
        %v2024 = vsel %vm1926, %v2022, %v2023
        %v2025 = vrot.slane %v1874, 5
        %v2026 = vrot.slane %v2025, 4
        %v2027 = vrot.slane %v1454, 5
        %v2028 = vsel %vm1926, %v2026, %v2027
        %v2029 = vrot.slane %v2027, 4
        %v2030 = vrot.slane %v1471, 5
        %v2031 = vsel %vm1926, %v2029, %v2030
        %v2032 = vrot.slane %v1875, 5
        %v2033 = vrot.slane %v2032, 4
        %v2034 = vrot.slane %v1456, 5
        %v2035 = vsel %vm1926, %v2033, %v2034
        %v2036 = vrot.slane %v2034, 4
        %v2037 = vrot.slane %v1472, 5
        %v2038 = vsel %vm1926, %v2036, %v2037
        %v2055 = vunpack.c.l.b16 %v1425
        %v2056 = vunpack.c.l.b16 %v1426
        %v2057 = vunpack.c.l.b16 %v1427
        %v2058 = vunpack.c.l.b16 %v1428
        %v2059 = vunpack.c.l.b16 %v1429
        %v2060 = vunpack.c.l.b16 %v1430
        %v2061 = vunpack.c.l.b16 %v1431
        %v2062 = vunpack.c.l.b16 %v1432
        %v2063 = vunpack.c.l.b16 %v1433
        %v2064 = vunpack.c.l.b16 %v1434
        %v2065 = vunpack.c.l.b16 %v1435
        %v2066 = vunpack.c.l.b16 %v1436
        %v2067 = vunpack.c.l.b16 %v1437
        %v2068 = vunpack.c.l.b16 %v1438
        %v2069 = vunpack.c.l.b16 %v1439
        %v2070 = vunpack.c.l.b16 %v1440
        %v2071 = vunpack.c.l.b16 %v1441
        %v2072 = vunpack.c.l.b16 %v1442
        %v2073 = vunpack.c.l.b16 %v1443
        %v2074 = vunpack.c.l.b16 %v1444
        %v2075 = vunpack.c.l.b16 %v1445
        %v2076 = vunpack.c.l.b16 %v1446
        %v2077 = vunpack.c.l.b16 %v1447
        %v2078 = vunpack.c.l.b16 %v1448
        %v2079 = vunpack.c.l.b16 %v1449
        %v2080 = vunpack.c.l.b16 %v1450
        %v2081 = vunpack.c.l.b16 %v1451
        %v2082 = vunpack.c.l.b16 %v1452
        %v2083 = vunpack.c.l.b16 %v1453
        %v2084 = vunpack.c.l.b16 %v1454
        %v2085 = vunpack.c.l.b16 %v1455
        %v2086 = vunpack.c.l.b16 %v1456
        %v2087 = vpack.c.b16 %v2056, %v2055
        %v2088 = vpack.c.b16 %v2058, %v2057
        %v2089 = vpack.c.b16 %v2060, %v2059
        %v2090 = vpack.c.b16 %v2062, %v2061
        %v2091 = vpack.c.b16 %v2064, %v2063
        %v2092 = vpack.c.b16 %v2066, %v2065
        %v2093 = vpack.c.b16 %v2068, %v2067
        %v2094 = vpack.c.b16 %v2070, %v2069
        %v2095 = vpack.c.b16 %v2072, %v2071
        %v2096 = vpack.c.b16 %v2074, %v2073
        %v2097 = vpack.c.b16 %v2076, %v2075
        %v2098 = vpack.c.b16 %v2078, %v2077
        %v2099 = vpack.c.b16 %v2080, %v2079
        %v2100 = vpack.c.b16 %v2082, %v2081
        %v2101 = vpack.c.b16 %v2084, %v2083
        %v2102 = vpack.c.b16 %v2086, %v2085
        %v2119 = vunpack.c.l.b16 %v1489
        %v2120 = vunpack.c.l.b16 %v1499
        %v2121 = vunpack.c.l.b16 %v1513
        %v2122 = vunpack.c.l.b16 %v1523
        %v2123 = vunpack.c.l.b16 %v1537
        %v2124 = vunpack.c.l.b16 %v1547
        %v2125 = vunpack.c.l.b16 %v1561
        %v2126 = vunpack.c.l.b16 %v1571
        %v2127 = vunpack.c.l.b16 %v1585
        %v2128 = vunpack.c.l.b16 %v1595
        %v2129 = vunpack.c.l.b16 %v1609
        %v2130 = vunpack.c.l.b16 %v1619
        %v2131 = vunpack.c.l.b16 %v1633
        %v2132 = vunpack.c.l.b16 %v1643
        %v2133 = vunpack.c.l.b16 %v1657
        %v2134 = vunpack.c.l.b16 %v1667
        %v2135 = vunpack.c.l.b16 %v1681
        %v2136 = vunpack.c.l.b16 %v1691
        %v2137 = vunpack.c.l.b16 %v1705
        %v2138 = vunpack.c.l.b16 %v1715
        %v2139 = vunpack.c.l.b16 %v1729
        %v2140 = vunpack.c.l.b16 %v1739
        %v2141 = vunpack.c.l.b16 %v1753
        %v2142 = vunpack.c.l.b16 %v1763
        %v2143 = vunpack.c.l.b16 %v1777
        %v2144 = vunpack.c.l.b16 %v1787
        %v2145 = vunpack.c.l.b16 %v1801
        %v2146 = vunpack.c.l.b16 %v1811
        %v2147 = vunpack.c.l.b16 %v1825
        %v2148 = vunpack.c.l.b16 %v1835
        %v2149 = vunpack.c.l.b16 %v1849
        %v2150 = vunpack.c.l.b16 %v1859
        %v2151 = vpack.c.b16 %v2120, %v2119
        %v2152 = vpack.c.b16 %v2122, %v2121
        %v2153 = vpack.c.b16 %v2124, %v2123
        %v2154 = vpack.c.b16 %v2126, %v2125
        %v2155 = vpack.c.b16 %v2128, %v2127
        %v2156 = vpack.c.b16 %v2130, %v2129
        %v2157 = vpack.c.b16 %v2132, %v2131
        %v2158 = vpack.c.b16 %v2134, %v2133
        %v2159 = vpack.c.b16 %v2136, %v2135
        %v2160 = vpack.c.b16 %v2138, %v2137
        %v2161 = vpack.c.b16 %v2140, %v2139
        %v2162 = vpack.c.b16 %v2142, %v2141
        %v2163 = vpack.c.b16 %v2144, %v2143
        %v2164 = vpack.c.b16 %v2146, %v2145
        %v2165 = vpack.c.b16 %v2148, %v2147
        %v2166 = vpack.c.b16 %v2150, %v2149
        %v2183 = vunpack.c.l.b16 %v1930
        %v2184 = vunpack.c.l.b16 %v1933
        %v2185 = vunpack.c.l.b16 %v1937
        %v2186 = vunpack.c.l.b16 %v1940
        %v2187 = vunpack.c.l.b16 %v1944
        %v2188 = vunpack.c.l.b16 %v1947
        %v2189 = vunpack.c.l.b16 %v1951
        %v2190 = vunpack.c.l.b16 %v1954
        %v2191 = vunpack.c.l.b16 %v1958
        %v2192 = vunpack.c.l.b16 %v1961
        %v2193 = vunpack.c.l.b16 %v1965
        %v2194 = vunpack.c.l.b16 %v1968
        %v2195 = vunpack.c.l.b16 %v1972
        %v2196 = vunpack.c.l.b16 %v1975
        %v2197 = vunpack.c.l.b16 %v1979
        %v2198 = vunpack.c.l.b16 %v1982
        %v2199 = vunpack.c.l.b16 %v1986
        %v2200 = vunpack.c.l.b16 %v1989
        %v2201 = vunpack.c.l.b16 %v1993
        %v2202 = vunpack.c.l.b16 %v1996
        %v2203 = vunpack.c.l.b16 %v2000
        %v2204 = vunpack.c.l.b16 %v2003
        %v2205 = vunpack.c.l.b16 %v2007
        %v2206 = vunpack.c.l.b16 %v2010
        %v2207 = vunpack.c.l.b16 %v2014
        %v2208 = vunpack.c.l.b16 %v2017
        %v2209 = vunpack.c.l.b16 %v2021
        %v2210 = vunpack.c.l.b16 %v2024
        %v2211 = vunpack.c.l.b16 %v2028
        %v2212 = vunpack.c.l.b16 %v2031
        %v2213 = vunpack.c.l.b16 %v2035
        %v2214 = vunpack.c.l.b16 %v2038
        %v2215 = vpack.c.b16 %v2184, %v2183
        %v2216 = vpack.c.b16 %v2186, %v2185
        %v2217 = vpack.c.b16 %v2188, %v2187
        %v2218 = vpack.c.b16 %v2190, %v2189
        %v2219 = vpack.c.b16 %v2192, %v2191
        %v2220 = vpack.c.b16 %v2194, %v2193
        %v2221 = vpack.c.b16 %v2196, %v2195
        %v2222 = vpack.c.b16 %v2198, %v2197
        %v2223 = vpack.c.b16 %v2200, %v2199
        %v2224 = vpack.c.b16 %v2202, %v2201
        %v2225 = vpack.c.b16 %v2204, %v2203
        %v2226 = vpack.c.b16 %v2206, %v2205
        %v2227 = vpack.c.b16 %v2208, %v2207
        %v2228 = vpack.c.b16 %v2210, %v2209
        %v2229 = vpack.c.b16 %v2212, %v2211
        %v2230 = vpack.c.b16 %v2214, %v2213
        %v2247 = vld [vmem:[#allocation8] sm:$0xf]
        %v2248 = vld [vmem:[#allocation8 + $0x4] sm:$0xf]
        %v2249 = vld [vmem:[#allocation8 + $0x8] sm:$0xf]
        %v2250 = vld [vmem:[#allocation8 + $0xc] sm:$0xf]
        %v2251 = vld [vmem:[#allocation8 + $0x10] sm:$0xf]
        %v2252 = vld [vmem:[#allocation8 + $0x14] sm:$0xf]
        %v2253 = vld [vmem:[#allocation8 + $0x18] sm:$0xf]
        %v2254 = vld [vmem:[#allocation8 + $0x1c] sm:$0xf]
        %v2255 = vld [vmem:[#allocation8 + $0x20] sm:$0xf]
        %v2256 = vld [vmem:[#allocation8 + $0x24] sm:$0xf]
        %v2257 = vld [vmem:[#allocation8 + $0x28] sm:$0xf]
        %v2258 = vld [vmem:[#allocation8 + $0x2c] sm:$0xf]
        %v2259 = vld [vmem:[#allocation8 + $0x30] sm:$0xf]
        %v2260 = vld [vmem:[#allocation8 + $0x34] sm:$0xf]
        %v2261 = vld [vmem:[#allocation8 + $0x38] sm:$0xf]
        %v2262 = vld [vmem:[#allocation8 + $0x3c] sm:$0xf]
        %v2263 = vld [vmem:[#allocation8 + $0x40] sm:$0xf]
        %v2264 = vld [vmem:[#allocation8 + $0x44] sm:$0xf]
        %v2265 = vld [vmem:[#allocation8 + $0x48] sm:$0xf]
        %v2266 = vld [vmem:[#allocation8 + $0x4c] sm:$0xf]
        %v2267 = vld [vmem:[#allocation8 + $0x50] sm:$0xf]
        %v2268 = vld [vmem:[#allocation8 + $0x54] sm:$0xf]
        %v2269 = vld [vmem:[#allocation8 + $0x58] sm:$0xf]
        %v2270 = vld [vmem:[#allocation8 + $0x5c] sm:$0xf]
        %v2271 = vld [vmem:[#allocation8 + $0x60] sm:$0xf]
        %v2272 = vld [vmem:[#allocation8 + $0x64] sm:$0xf]
        %v2273 = vld [vmem:[#allocation8 + $0x68] sm:$0xf]
        %v2274 = vld [vmem:[#allocation8 + $0x6c] sm:$0xf]
        %v2275 = vld [vmem:[#allocation8 + $0x70] sm:$0xf]
        %v2276 = vld [vmem:[#allocation8 + $0x74] sm:$0xf]
        %v2277 = vld [vmem:[#allocation8 + $0x78] sm:$0xf]
        %v2278 = vld [vmem:[#allocation8 + $0x7c] sm:$0xf]
        %v2279 = vld [vmem:[#allocation8 + $0x80] sm:$0xf]
        %v2280 = vld [vmem:[#allocation8 + $0x84] sm:$0xf]
        %v2281 = vld [vmem:[#allocation8 + $0x88] sm:$0xf]
        %v2282 = vld [vmem:[#allocation8 + $0x8c] sm:$0xf]
        %v2283 = vld [vmem:[#allocation8 + $0x90] sm:$0xf]
        %v2284 = vld [vmem:[#allocation8 + $0x94] sm:$0xf]
        %v2285 = vld [vmem:[#allocation8 + $0x98] sm:$0xf]
        %v2286 = vld [vmem:[#allocation8 + $0x9c] sm:$0xf]
        %v2287 = vld [vmem:[#allocation8 + $0xa0] sm:$0xf]
        %v2288 = vld [vmem:[#allocation8 + $0xa4] sm:$0xf]
        %v2289 = vld [vmem:[#allocation8 + $0xa8] sm:$0xf]
        %v2290 = vld [vmem:[#allocation8 + $0xac] sm:$0xf]
        %v2291 = vld [vmem:[#allocation8 + $0xb0] sm:$0xf]
        %v2292 = vld [vmem:[#allocation8 + $0xb4] sm:$0xf]
        %v2293 = vld [vmem:[#allocation8 + $0xb8] sm:$0xf]
        %v2294 = vld [vmem:[#allocation8 + $0xbc] sm:$0xf]
        %v2295 = vld [vmem:[%s1310] sm:$0xf]
        %v2296 = vld [vmem:[%s1310 + $0x4] sm:$0xf]
        %v2297 = vld [vmem:[%s1310 + $0xc] sm:$0xf]
        %v2298 = vld [vmem:[%s1310 + $0x10] sm:$0xf]
        %v2299 = vld [vmem:[%s1310 + $0x18] sm:$0xf]
        %v2300 = vld [vmem:[%s1310 + $0x1c] sm:$0xf]
        %v2301 = vld [vmem:[%s1310 + $0x24] sm:$0xf]
        %v2302 = vld [vmem:[%s1310 + $0x28] sm:$0xf]
        %v2303 = vld [vmem:[%s1310 + $0x30] sm:$0xf]
        %v2304 = vld [vmem:[%s1310 + $0x34] sm:$0xf]
        %v2305 = vld [vmem:[%s1310 + $0x3c] sm:$0xf]
        %v2306 = vld [vmem:[%s1310 + $0x40] sm:$0xf]
        %v2307 = vld [vmem:[%s1310 + $0x48] sm:$0xf]
        %v2308 = vld [vmem:[%s1310 + $0x4c] sm:$0xf]
        %v2309 = vld [vmem:[%s1310 + $0x54] sm:$0xf]
        %v2310 = vld [vmem:[%s1310 + $0x58] sm:$0xf]
        %v2311 = vld [vmem:[%s1310 + $0x60] sm:$0xf]
        %v2312 = vld [vmem:[%s1310 + $0x64] sm:$0xf]
        %v2313 = vld [vmem:[%s1310 + $0x6c] sm:$0xf]
        %v2314 = vld [vmem:[%s1310 + $0x70] sm:$0xf]
        %v2315 = vld [vmem:[%s1310 + $0x78] sm:$0xf]
        %v2316 = vld [vmem:[%s1310 + $0x7c] sm:$0xf]
        %v2317 = vld [vmem:[%s1310 + $0x84] sm:$0xf]
        %v2318 = vld [vmem:[%s1310 + $0x88] sm:$0xf]
        %v2319 = vld [vmem:[%s1310 + $0x90] sm:$0xf]
        %v2320 = vld [vmem:[%s1310 + $0x94] sm:$0xf]
        %v2321 = vld [vmem:[%s1310 + $0x9c] sm:$0xf]
        %v2322 = vld [vmem:[%s1310 + $0xa0] sm:$0xf]
        %v2323 = vld [vmem:[%s1310 + $0xa8] sm:$0xf]
        %v2324 = vld [vmem:[%s1310 + $0xac] sm:$0xf]
        %v2325 = vld [vmem:[%s1310 + $0xb4] sm:$0xf]
        %v2326 = vld [vmem:[%s1310 + $0xb8] sm:$0xf]
        %v2327 = vld [vmem:[%s1310 + $0x8] sm:$0x1]
        %v2328 = vld [vmem:[%s1310 + $0x14] sm:$0x1]
        %v2329 = vld [vmem:[%s1310 + $0x20] sm:$0x1]
        %v2330 = vld [vmem:[%s1310 + $0x2c] sm:$0x1]
        %v2331 = vld [vmem:[%s1310 + $0x38] sm:$0x1]
        %v2332 = vld [vmem:[%s1310 + $0x44] sm:$0x1]
        %v2333 = vld [vmem:[%s1310 + $0x50] sm:$0x1]
        %v2334 = vld [vmem:[%s1310 + $0x5c] sm:$0x1]
        %v2335 = vld [vmem:[%s1310 + $0x68] sm:$0x1]
        %v2336 = vld [vmem:[%s1310 + $0x74] sm:$0x1]
        %v2337 = vld [vmem:[%s1310 + $0x80] sm:$0x1]
        %v2338 = vld [vmem:[%s1310 + $0x8c] sm:$0x1]
        %v2339 = vld [vmem:[%s1310 + $0x98] sm:$0x1]
        %v2340 = vld [vmem:[%s1310 + $0xa4] sm:$0x1]
        %v2341 = vld [vmem:[%s1310 + $0xb0] sm:$0x1]
        %v2342 = vld [vmem:[%s1310 + $0xbc] sm:$0x1]
        %v2344 = vshrl.u32 %v2295, 16
        %v2346 = vrot.slane %v2344, 4
        %v2347 = vshll.u32 %v2295, 16
        %v2349 = vrot.slane %v2347, 5
        %v2350 = vor.u32 %v2346, %v2349
        %v2351 = vrot.slane %v2350, 4
        %v2353 = vshll.u32 %v2296, 16
        %v2355 = vrot.slane %v2353, 5
        %v2356 = vsel %vm1475, %v2351, %v2355
        %v2357 = vshrl.u32 %v2296, 16
        %v2359 = vrot.slane %v2357, 4
        %v2360 = vor.u32 %v2359, %v2355
        %v2361 = vrot.slane %v2360, 4
        %v2363 = vshll.u32 %v2327, 16
        %v2365 = vrot.slane %v2363, 5
        %v2366 = vsel %vm1475, %v2361, %v2365
        %v2368 = vshrl.u32 %v2297, 16
        %v2370 = vrot.slane %v2368, 4
        %v2371 = vshll.u32 %v2297, 16
        %v2373 = vrot.slane %v2371, 5
        %v2374 = vor.u32 %v2370, %v2373
        %v2375 = vrot.slane %v2374, 4
        %v2377 = vshll.u32 %v2298, 16
        %v2379 = vrot.slane %v2377, 5
        %v2380 = vsel %vm1475, %v2375, %v2379
        %v2381 = vshrl.u32 %v2298, 16
        %v2383 = vrot.slane %v2381, 4
        %v2384 = vor.u32 %v2383, %v2379
        %v2385 = vrot.slane %v2384, 4
        %v2387 = vshll.u32 %v2328, 16
        %v2389 = vrot.slane %v2387, 5
        %v2390 = vsel %vm1475, %v2385, %v2389
        %v2392 = vshrl.u32 %v2299, 16
        %v2394 = vrot.slane %v2392, 4
        %v2395 = vshll.u32 %v2299, 16
        %v2397 = vrot.slane %v2395, 5
        %v2398 = vor.u32 %v2394, %v2397
        %v2399 = vrot.slane %v2398, 4
        %v2401 = vshll.u32 %v2300, 16
        %v2403 = vrot.slane %v2401, 5
        %v2404 = vsel %vm1475, %v2399, %v2403
        %v2405 = vshrl.u32 %v2300, 16
        %v2407 = vrot.slane %v2405, 4
        %v2408 = vor.u32 %v2407, %v2403
        %v2409 = vrot.slane %v2408, 4
        %v2411 = vshll.u32 %v2329, 16
        %v2413 = vrot.slane %v2411, 5
        %v2414 = vsel %vm1475, %v2409, %v2413
        %v2416 = vshrl.u32 %v2301, 16
        %v2418 = vrot.slane %v2416, 4
        %v2419 = vshll.u32 %v2301, 16
        %v2421 = vrot.slane %v2419, 5
        %v2422 = vor.u32 %v2418, %v2421
        %v2423 = vrot.slane %v2422, 4
        %v2425 = vshll.u32 %v2302, 16
        %v2427 = vrot.slane %v2425, 5
        %v2428 = vsel %vm1475, %v2423, %v2427
        %v2429 = vshrl.u32 %v2302, 16
        %v2431 = vrot.slane %v2429, 4
        %v2432 = vor.u32 %v2431, %v2427
        %v2433 = vrot.slane %v2432, 4
        %v2435 = vshll.u32 %v2330, 16
        %v2437 = vrot.slane %v2435, 5
        %v2438 = vsel %vm1475, %v2433, %v2437
        %v2440 = vshrl.u32 %v2303, 16
        %v2442 = vrot.slane %v2440, 4
        %v2443 = vshll.u32 %v2303, 16
        %v2445 = vrot.slane %v2443, 5
        %v2446 = vor.u32 %v2442, %v2445
        %v2447 = vrot.slane %v2446, 4
        %v2449 = vshll.u32 %v2304, 16
        %v2451 = vrot.slane %v2449, 5
        %v2452 = vsel %vm1475, %v2447, %v2451
        %v2453 = vshrl.u32 %v2304, 16
        %v2455 = vrot.slane %v2453, 4
        %v2456 = vor.u32 %v2455, %v2451
        %v2457 = vrot.slane %v2456, 4
        %v2459 = vshll.u32 %v2331, 16
        %v2461 = vrot.slane %v2459, 5
        %v2462 = vsel %vm1475, %v2457, %v2461
        %v2464 = vshrl.u32 %v2305, 16
        %v2466 = vrot.slane %v2464, 4
        %v2467 = vshll.u32 %v2305, 16
        %v2469 = vrot.slane %v2467, 5
        %v2470 = vor.u32 %v2466, %v2469
        %v2471 = vrot.slane %v2470, 4
        %v2473 = vshll.u32 %v2306, 16
        %v2475 = vrot.slane %v2473, 5
        %v2476 = vsel %vm1475, %v2471, %v2475
        %v2477 = vshrl.u32 %v2306, 16
        %v2479 = vrot.slane %v2477, 4
        %v2480 = vor.u32 %v2479, %v2475
        %v2481 = vrot.slane %v2480, 4
        %v2483 = vshll.u32 %v2332, 16
        %v2485 = vrot.slane %v2483, 5
        %v2486 = vsel %vm1475, %v2481, %v2485
        %v2488 = vshrl.u32 %v2307, 16
        %v2490 = vrot.slane %v2488, 4
        %v2491 = vshll.u32 %v2307, 16
        %v2493 = vrot.slane %v2491, 5
        %v2494 = vor.u32 %v2490, %v2493
        %v2495 = vrot.slane %v2494, 4
        %v2497 = vshll.u32 %v2308, 16
        %v2499 = vrot.slane %v2497, 5
        %v2500 = vsel %vm1475, %v2495, %v2499
        %v2501 = vshrl.u32 %v2308, 16
        %v2503 = vrot.slane %v2501, 4
        %v2504 = vor.u32 %v2503, %v2499
        %v2505 = vrot.slane %v2504, 4
        %v2507 = vshll.u32 %v2333, 16
        %v2509 = vrot.slane %v2507, 5
        %v2510 = vsel %vm1475, %v2505, %v2509
        %v2512 = vshrl.u32 %v2309, 16
        %v2514 = vrot.slane %v2512, 4
        %v2515 = vshll.u32 %v2309, 16
        %v2517 = vrot.slane %v2515, 5
        %v2518 = vor.u32 %v2514, %v2517
        %v2519 = vrot.slane %v2518, 4
        %v2521 = vshll.u32 %v2310, 16
        %v2523 = vrot.slane %v2521, 5
        %v2524 = vsel %vm1475, %v2519, %v2523
        %v2525 = vshrl.u32 %v2310, 16
        %v2527 = vrot.slane %v2525, 4
        %v2528 = vor.u32 %v2527, %v2523
        %v2529 = vrot.slane %v2528, 4
        %v2531 = vshll.u32 %v2334, 16
        %v2533 = vrot.slane %v2531, 5
        %v2534 = vsel %vm1475, %v2529, %v2533
        %v2536 = vshrl.u32 %v2311, 16
        %v2538 = vrot.slane %v2536, 4
        %v2539 = vshll.u32 %v2311, 16
        %v2541 = vrot.slane %v2539, 5
        %v2542 = vor.u32 %v2538, %v2541
        %v2543 = vrot.slane %v2542, 4
        %v2545 = vshll.u32 %v2312, 16
        %v2547 = vrot.slane %v2545, 5
        %v2548 = vsel %vm1475, %v2543, %v2547
        %v2549 = vshrl.u32 %v2312, 16
        %v2551 = vrot.slane %v2549, 4
        %v2552 = vor.u32 %v2551, %v2547
        %v2553 = vrot.slane %v2552, 4
        %v2555 = vshll.u32 %v2335, 16
        %v2557 = vrot.slane %v2555, 5
        %v2558 = vsel %vm1475, %v2553, %v2557
        %v2560 = vshrl.u32 %v2313, 16
        %v2562 = vrot.slane %v2560, 4
        %v2563 = vshll.u32 %v2313, 16
        %v2565 = vrot.slane %v2563, 5
        %v2566 = vor.u32 %v2562, %v2565
        %v2567 = vrot.slane %v2566, 4
        %v2569 = vshll.u32 %v2314, 16
        %v2571 = vrot.slane %v2569, 5
        %v2572 = vsel %vm1475, %v2567, %v2571
        %v2573 = vshrl.u32 %v2314, 16
        %v2575 = vrot.slane %v2573, 4
        %v2576 = vor.u32 %v2575, %v2571
        %v2577 = vrot.slane %v2576, 4
        %v2579 = vshll.u32 %v2336, 16
        %v2581 = vrot.slane %v2579, 5
        %v2582 = vsel %vm1475, %v2577, %v2581
        %v2584 = vshrl.u32 %v2315, 16
        %v2586 = vrot.slane %v2584, 4
        %v2587 = vshll.u32 %v2315, 16
        %v2589 = vrot.slane %v2587, 5
        %v2590 = vor.u32 %v2586, %v2589
        %v2591 = vrot.slane %v2590, 4
        %v2593 = vshll.u32 %v2316, 16
        %v2595 = vrot.slane %v2593, 5
        %v2596 = vsel %vm1475, %v2591, %v2595
        %v2597 = vshrl.u32 %v2316, 16
        %v2599 = vrot.slane %v2597, 4
        %v2600 = vor.u32 %v2599, %v2595
        %v2601 = vrot.slane %v2600, 4
        %v2603 = vshll.u32 %v2337, 16
        %v2605 = vrot.slane %v2603, 5
        %v2606 = vsel %vm1475, %v2601, %v2605
        %v2608 = vshrl.u32 %v2317, 16
        %v2610 = vrot.slane %v2608, 4
        %v2611 = vshll.u32 %v2317, 16
        %v2613 = vrot.slane %v2611, 5
        %v2614 = vor.u32 %v2610, %v2613
        %v2615 = vrot.slane %v2614, 4
        %v2617 = vshll.u32 %v2318, 16
        %v2619 = vrot.slane %v2617, 5
        %v2620 = vsel %vm1475, %v2615, %v2619
        %v2621 = vshrl.u32 %v2318, 16
        %v2623 = vrot.slane %v2621, 4
        %v2624 = vor.u32 %v2623, %v2619
        %v2625 = vrot.slane %v2624, 4
        %v2627 = vshll.u32 %v2338, 16
        %v2629 = vrot.slane %v2627, 5
        %v2630 = vsel %vm1475, %v2625, %v2629
        %v2632 = vshrl.u32 %v2319, 16
        %v2634 = vrot.slane %v2632, 4
        %v2635 = vshll.u32 %v2319, 16
        %v2637 = vrot.slane %v2635, 5
        %v2638 = vor.u32 %v2634, %v2637
        %v2639 = vrot.slane %v2638, 4
        %v2641 = vshll.u32 %v2320, 16
        %v2643 = vrot.slane %v2641, 5
        %v2644 = vsel %vm1475, %v2639, %v2643
        %v2645 = vshrl.u32 %v2320, 16
        %v2647 = vrot.slane %v2645, 4
        %v2648 = vor.u32 %v2647, %v2643
        %v2649 = vrot.slane %v2648, 4
        %v2651 = vshll.u32 %v2339, 16
        %v2653 = vrot.slane %v2651, 5
        %v2654 = vsel %vm1475, %v2649, %v2653
        %v2656 = vshrl.u32 %v2321, 16
        %v2658 = vrot.slane %v2656, 4
        %v2659 = vshll.u32 %v2321, 16
        %v2661 = vrot.slane %v2659, 5
        %v2662 = vor.u32 %v2658, %v2661
        %v2663 = vrot.slane %v2662, 4
        %v2665 = vshll.u32 %v2322, 16
        %v2667 = vrot.slane %v2665, 5
        %v2668 = vsel %vm1475, %v2663, %v2667
        %v2669 = vshrl.u32 %v2322, 16
        %v2671 = vrot.slane %v2669, 4
        %v2672 = vor.u32 %v2671, %v2667
        %v2673 = vrot.slane %v2672, 4
        %v2675 = vshll.u32 %v2340, 16
        %v2677 = vrot.slane %v2675, 5
        %v2678 = vsel %vm1475, %v2673, %v2677
        %v2680 = vshrl.u32 %v2323, 16
        %v2682 = vrot.slane %v2680, 4
        %v2683 = vshll.u32 %v2323, 16
        %v2685 = vrot.slane %v2683, 5
        %v2686 = vor.u32 %v2682, %v2685
        %v2687 = vrot.slane %v2686, 4
        %v2689 = vshll.u32 %v2324, 16
        %v2691 = vrot.slane %v2689, 5
        %v2692 = vsel %vm1475, %v2687, %v2691
        %v2693 = vshrl.u32 %v2324, 16
        %v2695 = vrot.slane %v2693, 4
        %v2696 = vor.u32 %v2695, %v2691
        %v2697 = vrot.slane %v2696, 4
        %v2699 = vshll.u32 %v2341, 16
        %v2701 = vrot.slane %v2699, 5
        %v2702 = vsel %vm1475, %v2697, %v2701
        %v2704 = vshrl.u32 %v2325, 16
        %v2706 = vrot.slane %v2704, 4
        %v2707 = vshll.u32 %v2325, 16
        %v2709 = vrot.slane %v2707, 5
        %v2710 = vor.u32 %v2706, %v2709
        %v2711 = vrot.slane %v2710, 4
        %v2713 = vshll.u32 %v2326, 16
        %v2715 = vrot.slane %v2713, 5
        %v2716 = vsel %vm1475, %v2711, %v2715
        %v2717 = vshrl.u32 %v2326, 16
        %v2719 = vrot.slane %v2717, 4
        %v2720 = vor.u32 %v2719, %v2715
        %v2721 = vrot.slane %v2720, 4
        %v2723 = vshll.u32 %v2342, 16
        %v2725 = vrot.slane %v2723, 5
        %v2726 = vsel %vm1475, %v2721, %v2725
        %v2727 = vld [vmem:[%s1310] sm:$0xe]
        %v2728 = vld [vmem:[%s1310 + $0xc] sm:$0xe]
        %v2729 = vld [vmem:[%s1310 + $0x18] sm:$0xe]
        %v2730 = vld [vmem:[%s1310 + $0x24] sm:$0xe]
        %v2731 = vld [vmem:[%s1310 + $0x30] sm:$0xe]
        %v2732 = vld [vmem:[%s1310 + $0x3c] sm:$0xe]
        %v2733 = vld [vmem:[%s1310 + $0x48] sm:$0xe]
        %v2734 = vld [vmem:[%s1310 + $0x54] sm:$0xe]
        %v2735 = vld [vmem:[%s1310 + $0x60] sm:$0xe]
        %v2736 = vld [vmem:[%s1310 + $0x6c] sm:$0xe]
        %v2737 = vld [vmem:[%s1310 + $0x78] sm:$0xe]
        %v2738 = vld [vmem:[%s1310 + $0x84] sm:$0xe]
        %v2739 = vld [vmem:[%s1310 + $0x90] sm:$0xe]
        %v2740 = vld [vmem:[%s1310 + $0x9c] sm:$0xe]
        %v2741 = vld [vmem:[%s1310 + $0xa8] sm:$0xe]
        %v2742 = vld [vmem:[%s1310 + $0xb4] sm:$0xe]
        %v2791 = vrot.slane %v2727, 5
        %v2792 = vrot.slane %v2791, 4
        %v2793 = vrot.slane %v2296, 5
        %v2794 = vsel %vm1926, %v2792, %v2793
        %v2795 = vrot.slane %v2793, 4
        %v2796 = vrot.slane %v2327, 5
        %v2797 = vsel %vm1926, %v2795, %v2796
        %v2798 = vrot.slane %v2728, 5
        %v2799 = vrot.slane %v2798, 4
        %v2800 = vrot.slane %v2298, 5
        %v2801 = vsel %vm1926, %v2799, %v2800
        %v2802 = vrot.slane %v2800, 4
        %v2803 = vrot.slane %v2328, 5
        %v2804 = vsel %vm1926, %v2802, %v2803
        %v2805 = vrot.slane %v2729, 5
        %v2806 = vrot.slane %v2805, 4
        %v2807 = vrot.slane %v2300, 5
        %v2808 = vsel %vm1926, %v2806, %v2807
        %v2809 = vrot.slane %v2807, 4
        %v2810 = vrot.slane %v2329, 5
        %v2811 = vsel %vm1926, %v2809, %v2810
        %v2812 = vrot.slane %v2730, 5
        %v2813 = vrot.slane %v2812, 4
        %v2814 = vrot.slane %v2302, 5
        %v2815 = vsel %vm1926, %v2813, %v2814
        %v2816 = vrot.slane %v2814, 4
        %v2817 = vrot.slane %v2330, 5
        %v2818 = vsel %vm1926, %v2816, %v2817
        %v2819 = vrot.slane %v2731, 5
        %v2820 = vrot.slane %v2819, 4
        %v2821 = vrot.slane %v2304, 5
        %v2822 = vsel %vm1926, %v2820, %v2821
        %v2823 = vrot.slane %v2821, 4
        %v2824 = vrot.slane %v2331, 5
        %v2825 = vsel %vm1926, %v2823, %v2824
        %v2826 = vrot.slane %v2732, 5
        %v2827 = vrot.slane %v2826, 4
        %v2828 = vrot.slane %v2306, 5
        %v2829 = vsel %vm1926, %v2827, %v2828
        %v2830 = vrot.slane %v2828, 4
        %v2831 = vrot.slane %v2332, 5
        %v2832 = vsel %vm1926, %v2830, %v2831
        %v2833 = vrot.slane %v2733, 5
        %v2834 = vrot.slane %v2833, 4
        %v2835 = vrot.slane %v2308, 5
        %v2836 = vsel %vm1926, %v2834, %v2835
        %v2837 = vrot.slane %v2835, 4
        %v2838 = vrot.slane %v2333, 5
        %v2839 = vsel %vm1926, %v2837, %v2838
        %v2840 = vrot.slane %v2734, 5
        %v2841 = vrot.slane %v2840, 4
        %v2842 = vrot.slane %v2310, 5
        %v2843 = vsel %vm1926, %v2841, %v2842
        %v2844 = vrot.slane %v2842, 4
        %v2845 = vrot.slane %v2334, 5
        %v2846 = vsel %vm1926, %v2844, %v2845
        %v2847 = vrot.slane %v2735, 5
        %v2848 = vrot.slane %v2847, 4
        %v2849 = vrot.slane %v2312, 5
        %v2850 = vsel %vm1926, %v2848, %v2849
        %v2851 = vrot.slane %v2849, 4
        %v2852 = vrot.slane %v2335, 5
        %v2853 = vsel %vm1926, %v2851, %v2852
        %v2854 = vrot.slane %v2736, 5
        %v2855 = vrot.slane %v2854, 4
        %v2856 = vrot.slane %v2314, 5
        %v2857 = vsel %vm1926, %v2855, %v2856
        %v2858 = vrot.slane %v2856, 4
        %v2859 = vrot.slane %v2336, 5
        %v2860 = vsel %vm1926, %v2858, %v2859
        %v2861 = vrot.slane %v2737, 5
        %v2862 = vrot.slane %v2861, 4
        %v2863 = vrot.slane %v2316, 5
        %v2864 = vsel %vm1926, %v2862, %v2863
        %v2865 = vrot.slane %v2863, 4
        %v2866 = vrot.slane %v2337, 5
        %v2867 = vsel %vm1926, %v2865, %v2866
        %v2868 = vrot.slane %v2738, 5
        %v2869 = vrot.slane %v2868, 4
        %v2870 = vrot.slane %v2318, 5
        %v2871 = vsel %vm1926, %v2869, %v2870
        %v2872 = vrot.slane %v2870, 4
        %v2873 = vrot.slane %v2338, 5
        %v2874 = vsel %vm1926, %v2872, %v2873
        %v2875 = vrot.slane %v2739, 5
        %v2876 = vrot.slane %v2875, 4
        %v2877 = vrot.slane %v2320, 5
        %v2878 = vsel %vm1926, %v2876, %v2877
        %v2879 = vrot.slane %v2877, 4
        %v2880 = vrot.slane %v2339, 5
        %v2881 = vsel %vm1926, %v2879, %v2880
        %v2882 = vrot.slane %v2740, 5
        %v2883 = vrot.slane %v2882, 4
        %v2884 = vrot.slane %v2322, 5
        %v2885 = vsel %vm1926, %v2883, %v2884
        %v2886 = vrot.slane %v2884, 4
        %v2887 = vrot.slane %v2340, 5
        %v2888 = vsel %vm1926, %v2886, %v2887
        %v2889 = vrot.slane %v2741, 5
        %v2890 = vrot.slane %v2889, 4
        %v2891 = vrot.slane %v2324, 5
        %v2892 = vsel %vm1926, %v2890, %v2891
        %v2893 = vrot.slane %v2891, 4
        %v2894 = vrot.slane %v2341, 5
        %v2895 = vsel %vm1926, %v2893, %v2894
        %v2896 = vrot.slane %v2742, 5
        %v2897 = vrot.slane %v2896, 4
        %v2898 = vrot.slane %v2326, 5
        %v2899 = vsel %vm1926, %v2897, %v2898
        %v2900 = vrot.slane %v2898, 4
        %v2901 = vrot.slane %v2342, 5
        %v2902 = vsel %vm1926, %v2900, %v2901
        %v2919 = vunpack.c.l.b16 %v2295
        %v2920 = vunpack.c.l.b16 %v2296
        %v2921 = vunpack.c.l.b16 %v2297
        %v2922 = vunpack.c.l.b16 %v2298
        %v2923 = vunpack.c.l.b16 %v2299
        %v2924 = vunpack.c.l.b16 %v2300
        %v2925 = vunpack.c.l.b16 %v2301
        %v2926 = vunpack.c.l.b16 %v2302
        %v2927 = vunpack.c.l.b16 %v2303
        %v2928 = vunpack.c.l.b16 %v2304
        %v2929 = vunpack.c.l.b16 %v2305
        %v2930 = vunpack.c.l.b16 %v2306
        %v2931 = vunpack.c.l.b16 %v2307
        %v2932 = vunpack.c.l.b16 %v2308
        %v2933 = vunpack.c.l.b16 %v2309
        %v2934 = vunpack.c.l.b16 %v2310
        %v2935 = vunpack.c.l.b16 %v2311
        %v2936 = vunpack.c.l.b16 %v2312
        %v2937 = vunpack.c.l.b16 %v2313
        %v2938 = vunpack.c.l.b16 %v2314
        %v2939 = vunpack.c.l.b16 %v2315
        %v2940 = vunpack.c.l.b16 %v2316
        %v2941 = vunpack.c.l.b16 %v2317
        %v2942 = vunpack.c.l.b16 %v2318
        %v2943 = vunpack.c.l.b16 %v2319
        %v2944 = vunpack.c.l.b16 %v2320
        %v2945 = vunpack.c.l.b16 %v2321
        %v2946 = vunpack.c.l.b16 %v2322
        %v2947 = vunpack.c.l.b16 %v2323
        %v2948 = vunpack.c.l.b16 %v2324
        %v2949 = vunpack.c.l.b16 %v2325
        %v2950 = vunpack.c.l.b16 %v2326
        %v2951 = vpack.c.b16 %v2920, %v2919
        %v2952 = vpack.c.b16 %v2922, %v2921
        %v2953 = vpack.c.b16 %v2924, %v2923
        %v2954 = vpack.c.b16 %v2926, %v2925
        %v2955 = vpack.c.b16 %v2928, %v2927
        %v2956 = vpack.c.b16 %v2930, %v2929
        %v2957 = vpack.c.b16 %v2932, %v2931
        %v2958 = vpack.c.b16 %v2934, %v2933
        %v2959 = vpack.c.b16 %v2936, %v2935
        %v2960 = vpack.c.b16 %v2938, %v2937
        %v2961 = vpack.c.b16 %v2940, %v2939
        %v2962 = vpack.c.b16 %v2942, %v2941
        %v2963 = vpack.c.b16 %v2944, %v2943
        %v2964 = vpack.c.b16 %v2946, %v2945
        %v2965 = vpack.c.b16 %v2948, %v2947
        %v2966 = vpack.c.b16 %v2950, %v2949
        %v2983 = vunpack.c.l.b16 %v2356
        %v2984 = vunpack.c.l.b16 %v2366
        %v2985 = vunpack.c.l.b16 %v2380
        %v2986 = vunpack.c.l.b16 %v2390
        %v2987 = vunpack.c.l.b16 %v2404
        %v2988 = vunpack.c.l.b16 %v2414
        %v2989 = vunpack.c.l.b16 %v2428
        %v2990 = vunpack.c.l.b16 %v2438
        %v2991 = vunpack.c.l.b16 %v2452
        %v2992 = vunpack.c.l.b16 %v2462
        %v2993 = vunpack.c.l.b16 %v2476
        %v2994 = vunpack.c.l.b16 %v2486
        %v2995 = vunpack.c.l.b16 %v2500
        %v2996 = vunpack.c.l.b16 %v2510
        %v2997 = vunpack.c.l.b16 %v2524
        %v2998 = vunpack.c.l.b16 %v2534
        %v2999 = vunpack.c.l.b16 %v2548
        %v3000 = vunpack.c.l.b16 %v2558
        %v3001 = vunpack.c.l.b16 %v2572
        %v3002 = vunpack.c.l.b16 %v2582
        %v3003 = vunpack.c.l.b16 %v2596
        %v3004 = vunpack.c.l.b16 %v2606
        %v3005 = vunpack.c.l.b16 %v2620
        %v3006 = vunpack.c.l.b16 %v2630
        %v3007 = vunpack.c.l.b16 %v2644
        %v3008 = vunpack.c.l.b16 %v2654
        %v3009 = vunpack.c.l.b16 %v2668
        %v3010 = vunpack.c.l.b16 %v2678
        %v3011 = vunpack.c.l.b16 %v2692
        %v3012 = vunpack.c.l.b16 %v2702
        %v3013 = vunpack.c.l.b16 %v2716
        %v3014 = vunpack.c.l.b16 %v2726
        %v3015 = vpack.c.b16 %v2984, %v2983
        %v3016 = vpack.c.b16 %v2986, %v2985
        %v3017 = vpack.c.b16 %v2988, %v2987
        %v3018 = vpack.c.b16 %v2990, %v2989
        %v3019 = vpack.c.b16 %v2992, %v2991
        %v3020 = vpack.c.b16 %v2994, %v2993
        %v3021 = vpack.c.b16 %v2996, %v2995
        %v3022 = vpack.c.b16 %v2998, %v2997
        %v3023 = vpack.c.b16 %v3000, %v2999
        %v3024 = vpack.c.b16 %v3002, %v3001
        %v3025 = vpack.c.b16 %v3004, %v3003
        %v3026 = vpack.c.b16 %v3006, %v3005
        %v3027 = vpack.c.b16 %v3008, %v3007
        %v3028 = vpack.c.b16 %v3010, %v3009
        %v3029 = vpack.c.b16 %v3012, %v3011
        %v3030 = vpack.c.b16 %v3014, %v3013
        %v3047 = vunpack.c.l.b16 %v2794
        %v3048 = vunpack.c.l.b16 %v2797
        %v3049 = vunpack.c.l.b16 %v2801
        %v3050 = vunpack.c.l.b16 %v2804
        %v3051 = vunpack.c.l.b16 %v2808
        %v3052 = vunpack.c.l.b16 %v2811
        %v3053 = vunpack.c.l.b16 %v2815
        %v3054 = vunpack.c.l.b16 %v2818
        %v3055 = vunpack.c.l.b16 %v2822
        %v3056 = vunpack.c.l.b16 %v2825
        %v3057 = vunpack.c.l.b16 %v2829
        %v3058 = vunpack.c.l.b16 %v2832
        %v3059 = vunpack.c.l.b16 %v2836
        %v3060 = vunpack.c.l.b16 %v2839
        %v3061 = vunpack.c.l.b16 %v2843
        %v3062 = vunpack.c.l.b16 %v2846
        %v3063 = vunpack.c.l.b16 %v2850
        %v3064 = vunpack.c.l.b16 %v2853
        %v3065 = vunpack.c.l.b16 %v2857
        %v3066 = vunpack.c.l.b16 %v2860
        %v3067 = vunpack.c.l.b16 %v2864
        %v3068 = vunpack.c.l.b16 %v2867
        %v3069 = vunpack.c.l.b16 %v2871
        %v3070 = vunpack.c.l.b16 %v2874
        %v3071 = vunpack.c.l.b16 %v2878
        %v3072 = vunpack.c.l.b16 %v2881
        %v3073 = vunpack.c.l.b16 %v2885
        %v3074 = vunpack.c.l.b16 %v2888
        %v3075 = vunpack.c.l.b16 %v2892
        %v3076 = vunpack.c.l.b16 %v2895
        %v3077 = vunpack.c.l.b16 %v2899
        %v3078 = vunpack.c.l.b16 %v2902
        %v3079 = vpack.c.b16 %v3048, %v3047
        %v3080 = vpack.c.b16 %v3050, %v3049
        %v3081 = vpack.c.b16 %v3052, %v3051
        %v3082 = vpack.c.b16 %v3054, %v3053
        %v3083 = vpack.c.b16 %v3056, %v3055
        %v3084 = vpack.c.b16 %v3058, %v3057
        %v3085 = vpack.c.b16 %v3060, %v3059
        %v3086 = vpack.c.b16 %v3062, %v3061
        %v3087 = vpack.c.b16 %v3064, %v3063
        %v3088 = vpack.c.b16 %v3066, %v3065
        %v3089 = vpack.c.b16 %v3068, %v3067
        %v3090 = vpack.c.b16 %v3070, %v3069
        %v3091 = vpack.c.b16 %v3072, %v3071
        %v3092 = vpack.c.b16 %v3074, %v3073
        %v3093 = vpack.c.b16 %v3076, %v3075
        %v3094 = vpack.c.b16 %v3078, %v3077
        %v3111 = vld [vmem:[#allocation8 + $0xc0] sm:$0xf]
        %v3112 = vld [vmem:[#allocation8 + $0xc4] sm:$0xf]
        %v3113 = vld [vmem:[#allocation8 + $0xc8] sm:$0xf]
        %v3114 = vld [vmem:[#allocation8 + $0xcc] sm:$0xf]
        %v3115 = vld [vmem:[#allocation8 + $0xd0] sm:$0xf]
        %v3116 = vld [vmem:[#allocation8 + $0xd4] sm:$0xf]
        %v3117 = vld [vmem:[#allocation8 + $0xd8] sm:$0xf]
        %v3118 = vld [vmem:[#allocation8 + $0xdc] sm:$0xf]
        %v3119 = vld [vmem:[#allocation8 + $0xe0] sm:$0xf]
        %v3120 = vld [vmem:[#allocation8 + $0xe4] sm:$0xf]
        %v3121 = vld [vmem:[#allocation8 + $0xe8] sm:$0xf]
        %v3122 = vld [vmem:[#allocation8 + $0xec] sm:$0xf]
        %v3123 = vld [vmem:[#allocation8 + $0xf0] sm:$0xf]
        %v3124 = vld [vmem:[#allocation8 + $0xf4] sm:$0xf]
        %v3125 = vld [vmem:[#allocation8 + $0xf8] sm:$0xf]
        %v3126 = vld [vmem:[#allocation8 + $0xfc] sm:$0xf]
        %v3127 = vld [vmem:[#allocation8 + $0x100] sm:$0xf]
        %v3128 = vld [vmem:[#allocation8 + $0x104] sm:$0xf]
        %v3129 = vld [vmem:[#allocation8 + $0x108] sm:$0xf]
        %v3130 = vld [vmem:[#allocation8 + $0x10c] sm:$0xf]
        %v3131 = vld [vmem:[#allocation8 + $0x110] sm:$0xf]
        %v3132 = vld [vmem:[#allocation8 + $0x114] sm:$0xf]
        %v3133 = vld [vmem:[#allocation8 + $0x118] sm:$0xf]
        %v3134 = vld [vmem:[#allocation8 + $0x11c] sm:$0xf]
        %v3135 = vld [vmem:[#allocation8 + $0x120] sm:$0xf]
        %v3136 = vld [vmem:[#allocation8 + $0x124] sm:$0xf]
        %v3137 = vld [vmem:[#allocation8 + $0x128] sm:$0xf]
        %v3138 = vld [vmem:[#allocation8 + $0x12c] sm:$0xf]
        %v3139 = vld [vmem:[#allocation8 + $0x130] sm:$0xf]
        %v3140 = vld [vmem:[#allocation8 + $0x134] sm:$0xf]
        %v3141 = vld [vmem:[#allocation8 + $0x138] sm:$0xf]
        %v3142 = vld [vmem:[#allocation8 + $0x13c] sm:$0xf]
        %v3143 = vld [vmem:[#allocation8 + $0x140] sm:$0xf]
        %v3144 = vld [vmem:[#allocation8 + $0x144] sm:$0xf]
        %v3145 = vld [vmem:[#allocation8 + $0x148] sm:$0xf]
        %v3146 = vld [vmem:[#allocation8 + $0x14c] sm:$0xf]
        %v3147 = vld [vmem:[#allocation8 + $0x150] sm:$0xf]
        %v3148 = vld [vmem:[#allocation8 + $0x154] sm:$0xf]
        %v3149 = vld [vmem:[#allocation8 + $0x158] sm:$0xf]
        %v3150 = vld [vmem:[#allocation8 + $0x15c] sm:$0xf]
        %v3151 = vld [vmem:[#allocation8 + $0x160] sm:$0xf]
        %v3152 = vld [vmem:[#allocation8 + $0x164] sm:$0xf]
        %v3153 = vld [vmem:[#allocation8 + $0x168] sm:$0xf]
        %v3154 = vld [vmem:[#allocation8 + $0x16c] sm:$0xf]
        %v3155 = vld [vmem:[#allocation8 + $0x170] sm:$0xf]
        %v3156 = vld [vmem:[#allocation8 + $0x174] sm:$0xf]
        %v3157 = vld [vmem:[#allocation8 + $0x178] sm:$0xf]
        %v3158 = vld [vmem:[#allocation8 + $0x17c] sm:$0xf]
        %v3207 = vunpack.c.l.b16 %v3111
        %v3208 = vunpack.c.l.b16 %v3112
        %v3209 = vunpack.c.l.b16 %v3113
        %v3210 = vunpack.c.l.b16 %v3114
        %v3211 = vunpack.c.l.b16 %v3115
        %v3212 = vunpack.c.l.b16 %v3116
        %v3213 = vunpack.c.l.b16 %v3117
        %v3214 = vunpack.c.l.b16 %v3118
        %v3215 = vunpack.c.l.b16 %v3119
        %v3216 = vunpack.c.l.b16 %v3120
        %v3217 = vunpack.c.l.b16 %v3121
        %v3218 = vunpack.c.l.b16 %v3122
        %v3219 = vunpack.c.l.b16 %v3123
        %v3220 = vunpack.c.l.b16 %v3124
        %v3221 = vunpack.c.l.b16 %v3125
        %v3222 = vunpack.c.l.b16 %v3126
        %v3223 = vunpack.c.l.b16 %v3127
        %v3224 = vunpack.c.l.b16 %v3128
        %v3225 = vunpack.c.l.b16 %v3129
        %v3226 = vunpack.c.l.b16 %v3130
        %v3227 = vunpack.c.l.b16 %v3131
        %v3228 = vunpack.c.l.b16 %v3132
        %v3229 = vunpack.c.l.b16 %v3133
        %v3230 = vunpack.c.l.b16 %v3134
        %v3231 = vunpack.c.l.b16 %v3135
        %v3232 = vunpack.c.l.b16 %v3136
        %v3233 = vunpack.c.l.b16 %v3137
        %v3234 = vunpack.c.l.b16 %v3138
        %v3235 = vunpack.c.l.b16 %v3139
        %v3236 = vunpack.c.l.b16 %v3140
        %v3237 = vunpack.c.l.b16 %v3141
        %v3238 = vunpack.c.l.b16 %v3142
        %v3239 = vunpack.c.l.b16 %v3143
        %v3240 = vunpack.c.l.b16 %v3144
        %v3241 = vunpack.c.l.b16 %v3145
        %v3242 = vunpack.c.l.b16 %v3146
        %v3243 = vunpack.c.l.b16 %v3147
        %v3244 = vunpack.c.l.b16 %v3148
        %v3245 = vunpack.c.l.b16 %v3149
        %v3246 = vunpack.c.l.b16 %v3150
        %v3247 = vunpack.c.l.b16 %v3151
        %v3248 = vunpack.c.l.b16 %v3152
        %v3249 = vunpack.c.l.b16 %v3153
        %v3250 = vunpack.c.l.b16 %v3154
        %v3251 = vunpack.c.l.b16 %v3155
        %v3252 = vunpack.c.l.b16 %v3156
        %v3253 = vunpack.c.l.b16 %v3157
        %v3254 = vunpack.c.l.b16 %v3158
        %v3255 = vpack.c.b16 %v3208, %v3207
        %v3256 = vpack.c.b16 %v3210, %v3209
        %v3257 = vpack.c.b16 %v3212, %v3211
        %v3258 = vpack.c.b16 %v3214, %v3213
        %v3259 = vpack.c.b16 %v3216, %v3215
        %v3260 = vpack.c.b16 %v3218, %v3217
        %v3261 = vpack.c.b16 %v3220, %v3219
        %v3262 = vpack.c.b16 %v3222, %v3221
        %v3263 = vpack.c.b16 %v3224, %v3223
        %v3264 = vpack.c.b16 %v3226, %v3225
        %v3265 = vpack.c.b16 %v3228, %v3227
        %v3266 = vpack.c.b16 %v3230, %v3229
        %v3267 = vpack.c.b16 %v3232, %v3231
        %v3268 = vpack.c.b16 %v3234, %v3233
        %v3269 = vpack.c.b16 %v3236, %v3235
        %v3270 = vpack.c.b16 %v3238, %v3237
        %v3271 = vpack.c.b16 %v3240, %v3239
        %v3272 = vpack.c.b16 %v3242, %v3241
        %v3273 = vpack.c.b16 %v3244, %v3243
        %v3274 = vpack.c.b16 %v3246, %v3245
        %v3275 = vpack.c.b16 %v3248, %v3247
        %v3276 = vpack.c.b16 %v3250, %v3249
        %v3277 = vpack.c.b16 %v3252, %v3251
        %v3278 = vpack.c.b16 %v3254, %v3253
        %3303 = vmatprep.subr.bf16.mxu0 0
        %3304 = vmatpush1.bf16.msra.mxu0 %v3255
        %3305 = vmatprep.subr.bf16.mxu0 0
        %3306 = vmatpush1.bf16.msra.mxu0 %v3256
        %3307 = vmatprep.subr.bf16.mxu0 0
        %3308 = vmatpush1.bf16.msra.mxu0 %v3257
        %3309 = vmatprep.subr.bf16.mxu0 0
        %3310 = vmatpush1.bf16.msra.mxu0 %v3258
        %3311 = vmatprep.subr.bf16.mxu0 0
        %3312 = vmatpush1.bf16.msra.mxu0 %v3259
        %3313 = vmatprep.subr.bf16.mxu0 0
        %3314 = vmatpush1.bf16.msra.mxu0 %v3260
        %3315 = vmatprep.subr.bf16.mxu0 0
        %3316 = vmatpush1.bf16.msra.mxu0 %v3261
        %3317 = vmatprep.subr.bf16.mxu0 0
        %3318 = vmatpush1.bf16.msra.mxu0 %v3262
        %3319 = vmatprep.subr.bf16.mxu0 0
        %3320 = vmatpush1.bf16.msra.mxu0 %v3263
        %3321 = vmatprep.subr.bf16.mxu0 0
        %3322 = vmatpush1.bf16.msra.mxu0 %v3264
        %3323 = vmatprep.subr.bf16.mxu0 0
        %3324 = vmatpush1.bf16.msra.mxu0 %v3265
        %3325 = vmatprep.subr.bf16.mxu0 0
        %3326 = vmatpush1.bf16.msra.mxu0 %v3266
        %3327 = vmatprep.subr.bf16.mxu0 0
        %3328 = vmatpush1.bf16.msra.mxu0 %v3267
        %3329 = vmatprep.subr.bf16.mxu0 0
        %3330 = vmatpush1.bf16.msra.mxu0 %v3268
        %3331 = vmatprep.subr.bf16.mxu0 0
        %3332 = vmatpush1.bf16.msra.mxu0 %v3269
        %3333 = vmatprep.subr.bf16.mxu0 0
        %3334 = vmatpush1.bf16.msra.mxu0 %v3270
        %3335 = vmatprep.mubr.bf16.mxu0 %v3015
        %3336 = vmatmul.mubr.bf16.gmra.mrb[0].mxu0 %v2951
        %v3337 = vpop.f32.mrb[0].mxu0
        %v3338 = vadd.f32 0.0, %v3337
        %v3339 = vpop.f32.mrb[0].mxu0
        %v3340 = vpop.f32.mrb[0].mxu0
        %v3341 = vadd.f32 0.0, %v3340
        %v3342 = vpop.f32.mrb[0].mxu0
        %3343 = vmatprep.mubr.bf16.mxu0 %v3016
        %3344 = vmatmul.mubr.bf16.gmra.mrb[0].mxu0 %v2952
        %v3345 = vpop.f32.mrb[0].mxu0
        %v3346 = vadd.f32 0.0, %v3345
        %v3347 = vpop.f32.mrb[0].mxu0
        %v3348 = vpop.f32.mrb[0].mxu0
        %v3349 = vadd.f32 0.0, %v3348
        %v3350 = vpop.f32.mrb[0].mxu0
        %3351 = vmatprep.mubr.bf16.mxu0 %v3017
        %3352 = vmatmul.mubr.bf16.gmra.mrb[0].mxu0 %v2953
        %v3353 = vpop.f32.mrb[0].mxu0
        %v3354 = vadd.f32 0.0, %v3353
        %v3355 = vpop.f32.mrb[0].mxu0
        %v3356 = vpop.f32.mrb[0].mxu0
        %v3357 = vadd.f32 0.0, %v3356
        %v3358 = vpop.f32.mrb[0].mxu0
        %3359 = vmatprep.mubr.bf16.mxu0 %v3018
        %3360 = vmatmul.mubr.bf16.gmra.mrb[0].mxu0 %v2954
        %v3361 = vpop.f32.mrb[0].mxu0
        %v3362 = vadd.f32 0.0, %v3361
        %v3363 = vpop.f32.mrb[0].mxu0
        %v3364 = vpop.f32.mrb[0].mxu0
        %v3365 = vadd.f32 0.0, %v3364
        %v3366 = vpop.f32.mrb[0].mxu0
        %3367 = vmatprep.mubr.bf16.mxu0 %v3019
        %3368 = vmatmul.mubr.bf16.gmra.mrb[0].mxu0 %v2955
        %v3369 = vpop.f32.mrb[0].mxu0
        %v3370 = vadd.f32 0.0, %v3369
        %v3371 = vpop.f32.mrb[0].mxu0
        %v3372 = vpop.f32.mrb[0].mxu0
        %v3373 = vadd.f32 0.0, %v3372
        %v3374 = vpop.f32.mrb[0].mxu0
        %3375 = vmatprep.mubr.bf16.mxu0 %v3020
        %3376 = vmatmul.mubr.bf16.gmra.mrb[0].mxu0 %v2956
        %v3377 = vpop.f32.mrb[0].mxu0
        %v3378 = vadd.f32 0.0, %v3377
        %v3379 = vpop.f32.mrb[0].mxu0
        %v3380 = vpop.f32.mrb[0].mxu0
        %v3381 = vadd.f32 0.0, %v3380
        %v3382 = vpop.f32.mrb[0].mxu0
        %3383 = vmatprep.mubr.bf16.mxu0 %v3021
        %3384 = vmatmul.mubr.bf16.gmra.mrb[0].mxu0 %v2957
        %v3385 = vpop.f32.mrb[0].mxu0
        %v3386 = vadd.f32 0.0, %v3385
        %v3387 = vpop.f32.mrb[0].mxu0
        %v3388 = vpop.f32.mrb[0].mxu0
        %v3389 = vadd.f32 0.0, %v3388
        %v3390 = vpop.f32.mrb[0].mxu0
        %3391 = vmatprep.mubr.bf16.mxu0 %v3022
        %3392 = vmatmul.mubr.bf16.gmra.mrb[0].mxu0 %v2958
        %v3393 = vpop.f32.mrb[0].mxu0
        %v3394 = vadd.f32 0.0, %v3393
        %v3395 = vpop.f32.mrb[0].mxu0
        %v3396 = vpop.f32.mrb[0].mxu0
        %v3397 = vadd.f32 0.0, %v3396
        %v3398 = vpop.f32.mrb[0].mxu0
        %3399 = vmatprep.mubr.bf16.mxu0 %v3023
        %3400 = vmatmul.mubr.bf16.gmra.mrb[0].mxu0 %v2959
        %v3401 = vpop.f32.mrb[0].mxu0
        %v3402 = vadd.f32 0.0, %v3401
        %v3403 = vpop.f32.mrb[0].mxu0
        %v3404 = vpop.f32.mrb[0].mxu0
        %v3405 = vadd.f32 0.0, %v3404
        %v3406 = vpop.f32.mrb[0].mxu0
        %3407 = vmatprep.mubr.bf16.mxu0 %v3024
        %3408 = vmatmul.mubr.bf16.gmra.mrb[0].mxu0 %v2960
        %v3409 = vpop.f32.mrb[0].mxu0
        %v3410 = vadd.f32 0.0, %v3409
        %v3411 = vpop.f32.mrb[0].mxu0
        %v3412 = vpop.f32.mrb[0].mxu0
        %v3413 = vadd.f32 0.0, %v3412
        %v3414 = vpop.f32.mrb[0].mxu0
        %3415 = vmatprep.mubr.bf16.mxu0 %v3025
        %3416 = vmatmul.mubr.bf16.gmra.mrb[0].mxu0 %v2961
        %v3417 = vpop.f32.mrb[0].mxu0
        %v3418 = vadd.f32 0.0, %v3417
        %v3419 = vpop.f32.mrb[0].mxu0
        %v3420 = vpop.f32.mrb[0].mxu0
        %v3421 = vadd.f32 0.0, %v3420
        %v3422 = vpop.f32.mrb[0].mxu0
        %3423 = vmatprep.mubr.bf16.mxu0 %v3026
        %3424 = vmatmul.mubr.bf16.gmra.mrb[0].mxu0 %v2962
        %v3425 = vpop.f32.mrb[0].mxu0
        %v3426 = vadd.f32 0.0, %v3425
        %v3427 = vpop.f32.mrb[0].mxu0
        %v3428 = vpop.f32.mrb[0].mxu0
        %v3429 = vadd.f32 0.0, %v3428
        %v3430 = vpop.f32.mrb[0].mxu0
        %3431 = vmatprep.mubr.bf16.mxu0 %v3027
        %3432 = vmatmul.mubr.bf16.gmra.mrb[0].mxu0 %v2963
        %v3433 = vpop.f32.mrb[0].mxu0
        %v3434 = vadd.f32 0.0, %v3433
        %v3435 = vpop.f32.mrb[0].mxu0
        %v3436 = vpop.f32.mrb[0].mxu0
        %v3437 = vadd.f32 0.0, %v3436
        %v3438 = vpop.f32.mrb[0].mxu0
        %3439 = vmatprep.mubr.bf16.mxu0 %v3028
        %3440 = vmatmul.mubr.bf16.gmra.mrb[0].mxu0 %v2964
        %v3441 = vpop.f32.mrb[0].mxu0
        %v3442 = vadd.f32 0.0, %v3441
        %v3443 = vpop.f32.mrb[0].mxu0
        %v3444 = vpop.f32.mrb[0].mxu0
        %v3445 = vadd.f32 0.0, %v3444
        %v3446 = vpop.f32.mrb[0].mxu0
        %3447 = vmatprep.mubr.bf16.mxu0 %v3029
        %3448 = vmatmul.mubr.bf16.gmra.mrb[0].mxu0 %v2965
        %v3449 = vpop.f32.mrb[0].mxu0
        %v3450 = vadd.f32 0.0, %v3449
        %v3451 = vpop.f32.mrb[0].mxu0
        %v3452 = vpop.f32.mrb[0].mxu0
        %v3453 = vadd.f32 0.0, %v3452
        %v3454 = vpop.f32.mrb[0].mxu0
        %3455 = vmatprep.mubr.bf16.mxu0 %v3030
        %3456 = vmatmul.mubr.bf16.gmra.mrb[0].mxu0 %v2966
        %v3457 = vpop.f32.mrb[0].mxu0
        %v3458 = vadd.f32 0.0, %v3457
        %v3459 = vpop.f32.mrb[0].mxu0
        %v3460 = vpop.f32.mrb[0].mxu0
        %v3461 = vadd.f32 0.0, %v3460
        %v3462 = vpop.f32.mrb[0].mxu0
        %3463 = vdwg.mxu0
        %3464 = vmatprep.subr.bf16.mxu0 0
        %3465 = vmatpush1.bf16.msra.mxu0 %v3271
        %3466 = vmatprep.subr.bf16.mxu0 0
        %3467 = vmatpush1.bf16.msra.mxu0 %v3272
        %3468 = vmatprep.subr.bf16.mxu0 0
        %3469 = vmatpush1.bf16.msra.mxu0 %v3273
        %3470 = vmatprep.subr.bf16.mxu0 0
        %3471 = vmatpush1.bf16.msra.mxu0 %v3274
        %3472 = vmatprep.subr.bf16.mxu0 0
        %3473 = vmatpush1.bf16.msra.mxu0 %v3275
        %3474 = vmatprep.subr.bf16.mxu0 0
        %3475 = vmatpush1.bf16.msra.mxu0 %v3276
        %3476 = vmatprep.subr.bf16.mxu0 0
        %3477 = vmatpush1.bf16.msra.mxu0 %v3277
        %3478 = vmatprep.subr.bf16.mxu0 0
        %3479 = vmatpush1.bf16.msra.mxu0 %v3278
        %3480 = vmatprep.subr.bf16.mxu0 0
        %3481 = vmatpush1.bf16.msra.mxu0 0
        %3482 = vmatprep.subr.bf16.mxu0 0
        %3483 = vmatpush1.bf16.msra.mxu0 0
        %3484 = vmatprep.subr.bf16.mxu0 0
        %3485 = vmatpush1.bf16.msra.mxu0 0
        %3486 = vmatprep.subr.bf16.mxu0 0
        %3487 = vmatpush1.bf16.msra.mxu0 0
        %3488 = vmatprep.subr.bf16.mxu0 0
        %3489 = vmatpush1.bf16.msra.mxu0 0
        %3490 = vmatprep.subr.bf16.mxu0 0
        %3491 = vmatpush1.bf16.msra.mxu0 0
        %3492 = vmatprep.subr.bf16.mxu0 0
        %3493 = vmatpush1.bf16.msra.mxu0 0
        %3494 = vmatprep.subr.bf16.mxu0 0
        %3495 = vmatpush1.bf16.msra.mxu0 0
        %3496 = vmatprep.mubr.bf16.mxu0 0
        %3497 = vmatmul.mubr.bf16.gmra.mrb[0].mxu0 %v3079
        %v3498 = vpop.f32.mrb[0].mxu0
        %v3499 = vadd.f32 %v3338, %v3498
        %v3500 = vpop.f32.mrb[0].mxu0
        %v3501 = vpop.f32.mrb[0].mxu0
        %v3502 = vadd.f32 %v3341, %v3501
        %v3503 = vpop.f32.mrb[0].mxu0
        %3504 = vmatprep.mubr.bf16.mxu0 0
        %3505 = vmatmul.mubr.bf16.gmra.mrb[0].mxu0 %v3080
        %v3506 = vpop.f32.mrb[0].mxu0
        %v3507 = vadd.f32 %v3346, %v3506
        %v3508 = vpop.f32.mrb[0].mxu0
        %v3509 = vpop.f32.mrb[0].mxu0
        %v3510 = vadd.f32 %v3349, %v3509
        %v3511 = vpop.f32.mrb[0].mxu0
        %3512 = vmatprep.mubr.bf16.mxu0 0
        %3513 = vmatmul.mubr.bf16.gmra.mrb[0].mxu0 %v3081
        %v3514 = vpop.f32.mrb[0].mxu0
        %v3515 = vadd.f32 %v3354, %v3514
        %v3516 = vpop.f32.mrb[0].mxu0
        %v3517 = vpop.f32.mrb[0].mxu0
        %v3518 = vadd.f32 %v3357, %v3517
        %v3519 = vpop.f32.mrb[0].mxu0
        %3520 = vmatprep.mubr.bf16.mxu0 0
        %3521 = vmatmul.mubr.bf16.gmra.mrb[0].mxu0 %v3082
        %v3522 = vpop.f32.mrb[0].mxu0
        %v3523 = vadd.f32 %v3362, %v3522
        %v3524 = vpop.f32.mrb[0].mxu0
        %v3525 = vpop.f32.mrb[0].mxu0
        %v3526 = vadd.f32 %v3365, %v3525
        %v3527 = vpop.f32.mrb[0].mxu0
        %3528 = vmatprep.mubr.bf16.mxu0 0
        %3529 = vmatmul.mubr.bf16.gmra.mrb[0].mxu0 %v3083
        %v3530 = vpop.f32.mrb[0].mxu0
        %v3531 = vadd.f32 %v3370, %v3530
        %v3532 = vpop.f32.mrb[0].mxu0
        %v3533 = vpop.f32.mrb[0].mxu0
        %v3534 = vadd.f32 %v3373, %v3533
        %v3535 = vpop.f32.mrb[0].mxu0
        %3536 = vmatprep.mubr.bf16.mxu0 0
        %3537 = vmatmul.mubr.bf16.gmra.mrb[0].mxu0 %v3084
        %v3538 = vpop.f32.mrb[0].mxu0
        %v3539 = vadd.f32 %v3378, %v3538
        %v3540 = vpop.f32.mrb[0].mxu0
        %v3541 = vpop.f32.mrb[0].mxu0
        %v3542 = vadd.f32 %v3381, %v3541
        %v3543 = vpop.f32.mrb[0].mxu0
        %3544 = vmatprep.mubr.bf16.mxu0 0
        %3545 = vmatmul.mubr.bf16.gmra.mrb[0].mxu0 %v3085
        %v3546 = vpop.f32.mrb[0].mxu0
        %v3547 = vadd.f32 %v3386, %v3546
        %v3548 = vpop.f32.mrb[0].mxu0
        %v3549 = vpop.f32.mrb[0].mxu0
        %v3550 = vadd.f32 %v3389, %v3549
        %v3551 = vpop.f32.mrb[0].mxu0
        %3552 = vmatprep.mubr.bf16.mxu0 0
        %3553 = vmatmul.mubr.bf16.gmra.mrb[0].mxu0 %v3086
        %v3554 = vpop.f32.mrb[0].mxu0
        %v3555 = vadd.f32 %v3394, %v3554
        %v3556 = vpop.f32.mrb[0].mxu0
        %v3557 = vpop.f32.mrb[0].mxu0
        %v3558 = vadd.f32 %v3397, %v3557
        %v3559 = vpop.f32.mrb[0].mxu0
        %3560 = vmatprep.mubr.bf16.mxu0 0
        %3561 = vmatmul.mubr.bf16.gmra.mrb[0].mxu0 %v3087
        %v3562 = vpop.f32.mrb[0].mxu0
        %v3563 = vadd.f32 %v3402, %v3562
        %v3564 = vpop.f32.mrb[0].mxu0
        %v3565 = vpop.f32.mrb[0].mxu0
        %v3566 = vadd.f32 %v3405, %v3565
        %v3567 = vpop.f32.mrb[0].mxu0
        %3568 = vmatprep.mubr.bf16.mxu0 0
        %3569 = vmatmul.mubr.bf16.gmra.mrb[0].mxu0 %v3088
        %v3570 = vpop.f32.mrb[0].mxu0
        %v3571 = vadd.f32 %v3410, %v3570
        %v3572 = vpop.f32.mrb[0].mxu0
        %v3573 = vpop.f32.mrb[0].mxu0
        %v3574 = vadd.f32 %v3413, %v3573
        %v3575 = vpop.f32.mrb[0].mxu0
        %3576 = vmatprep.mubr.bf16.mxu0 0
        %3577 = vmatmul.mubr.bf16.gmra.mrb[0].mxu0 %v3089
        %v3578 = vpop.f32.mrb[0].mxu0
        %v3579 = vadd.f32 %v3418, %v3578
        %v3580 = vpop.f32.mrb[0].mxu0
        %v3581 = vpop.f32.mrb[0].mxu0
        %v3582 = vadd.f32 %v3421, %v3581
        %v3583 = vpop.f32.mrb[0].mxu0
        %3584 = vmatprep.mubr.bf16.mxu0 0
        %3585 = vmatmul.mubr.bf16.gmra.mrb[0].mxu0 %v3090
        %v3586 = vpop.f32.mrb[0].mxu0
        %v3587 = vadd.f32 %v3426, %v3586
        %v3588 = vpop.f32.mrb[0].mxu0
        %v3589 = vpop.f32.mrb[0].mxu0
        %v3590 = vadd.f32 %v3429, %v3589
        %v3591 = vpop.f32.mrb[0].mxu0
        %3592 = vmatprep.mubr.bf16.mxu0 0
        %3593 = vmatmul.mubr.bf16.gmra.mrb[0].mxu0 %v3091
        %v3594 = vpop.f32.mrb[0].mxu0
        %v3595 = vadd.f32 %v3434, %v3594
        %v3596 = vpop.f32.mrb[0].mxu0
        %v3597 = vpop.f32.mrb[0].mxu0
        %v3598 = vadd.f32 %v3437, %v3597
        %v3599 = vpop.f32.mrb[0].mxu0
        %3600 = vmatprep.mubr.bf16.mxu0 0
        %3601 = vmatmul.mubr.bf16.gmra.mrb[0].mxu0 %v3092
        %v3602 = vpop.f32.mrb[0].mxu0
        %v3603 = vadd.f32 %v3442, %v3602
        %v3604 = vpop.f32.mrb[0].mxu0
        %v3605 = vpop.f32.mrb[0].mxu0
        %v3606 = vadd.f32 %v3445, %v3605
        %v3607 = vpop.f32.mrb[0].mxu0
        %3608 = vmatprep.mubr.bf16.mxu0 0
        %3609 = vmatmul.mubr.bf16.gmra.mrb[0].mxu0 %v3093
        %v3610 = vpop.f32.mrb[0].mxu0
        %v3611 = vadd.f32 %v3450, %v3610
        %v3612 = vpop.f32.mrb[0].mxu0
        %v3613 = vpop.f32.mrb[0].mxu0
        %v3614 = vadd.f32 %v3453, %v3613
        %v3615 = vpop.f32.mrb[0].mxu0
        %3616 = vmatprep.mubr.bf16.mxu0 0
        %3617 = vmatmul.mubr.bf16.gmra.mrb[0].mxu0 %v3094
        %v3618 = vpop.f32.mrb[0].mxu0
        %v3619 = vadd.f32 %v3458, %v3618
        %v3620 = vpop.f32.mrb[0].mxu0
        %v3621 = vpop.f32.mrb[0].mxu0
        %v3622 = vadd.f32 %v3461, %v3621
        %v3623 = vpop.f32.mrb[0].mxu0
        %3624 = vdwg.mxu0
        %v3673 = vunpack.c.l.b16 %v2247
        %v3674 = vunpack.c.l.b16 %v2248
        %v3675 = vunpack.c.l.b16 %v2249
        %v3676 = vunpack.c.l.b16 %v2250
        %v3677 = vunpack.c.l.b16 %v2251
        %v3678 = vunpack.c.l.b16 %v2252
        %v3679 = vunpack.c.l.b16 %v2253
        %v3680 = vunpack.c.l.b16 %v2254
        %v3681 = vunpack.c.l.b16 %v2255
        %v3682 = vunpack.c.l.b16 %v2256
        %v3683 = vunpack.c.l.b16 %v2257
        %v3684 = vunpack.c.l.b16 %v2258
        %v3685 = vunpack.c.l.b16 %v2259
        %v3686 = vunpack.c.l.b16 %v2260
        %v3687 = vunpack.c.l.b16 %v2261
        %v3688 = vunpack.c.l.b16 %v2262
        %v3689 = vunpack.c.l.b16 %v2263
        %v3690 = vunpack.c.l.b16 %v2264
        %v3691 = vunpack.c.l.b16 %v2265
        %v3692 = vunpack.c.l.b16 %v2266
        %v3693 = vunpack.c.l.b16 %v2267
        %v3694 = vunpack.c.l.b16 %v2268
        %v3695 = vunpack.c.l.b16 %v2269
        %v3696 = vunpack.c.l.b16 %v2270
        %v3697 = vunpack.c.l.b16 %v2271
        %v3698 = vunpack.c.l.b16 %v2272
        %v3699 = vunpack.c.l.b16 %v2273
        %v3700 = vunpack.c.l.b16 %v2274
        %v3701 = vunpack.c.l.b16 %v2275
        %v3702 = vunpack.c.l.b16 %v2276
        %v3703 = vunpack.c.l.b16 %v2277
        %v3704 = vunpack.c.l.b16 %v2278
        %v3705 = vunpack.c.l.b16 %v2279
        %v3706 = vunpack.c.l.b16 %v2280
        %v3707 = vunpack.c.l.b16 %v2281
        %v3708 = vunpack.c.l.b16 %v2282
        %v3709 = vunpack.c.l.b16 %v2283
        %v3710 = vunpack.c.l.b16 %v2284
        %v3711 = vunpack.c.l.b16 %v2285
        %v3712 = vunpack.c.l.b16 %v2286
        %v3713 = vunpack.c.l.b16 %v2287
        %v3714 = vunpack.c.l.b16 %v2288
        %v3715 = vunpack.c.l.b16 %v2289
        %v3716 = vunpack.c.l.b16 %v2290
        %v3717 = vunpack.c.l.b16 %v2291
        %v3718 = vunpack.c.l.b16 %v2292
        %v3719 = vunpack.c.l.b16 %v2293
        %v3720 = vunpack.c.l.b16 %v2294
        %v3721 = vpack.c.b16 %v3674, %v3673
        %v3722 = vpack.c.b16 %v3676, %v3675
        %v3723 = vpack.c.b16 %v3678, %v3677
        %v3724 = vpack.c.b16 %v3680, %v3679
        %v3725 = vpack.c.b16 %v3682, %v3681
        %v3726 = vpack.c.b16 %v3684, %v3683
        %v3727 = vpack.c.b16 %v3686, %v3685
        %v3728 = vpack.c.b16 %v3688, %v3687
        %v3729 = vpack.c.b16 %v3690, %v3689
        %v3730 = vpack.c.b16 %v3692, %v3691
        %v3731 = vpack.c.b16 %v3694, %v3693
        %v3732 = vpack.c.b16 %v3696, %v3695
        %v3733 = vpack.c.b16 %v3698, %v3697
        %v3734 = vpack.c.b16 %v3700, %v3699
        %v3735 = vpack.c.b16 %v3702, %v3701
        %v3736 = vpack.c.b16 %v3704, %v3703
        %v3737 = vpack.c.b16 %v3706, %v3705
        %v3738 = vpack.c.b16 %v3708, %v3707
        %v3739 = vpack.c.b16 %v3710, %v3709
        %v3740 = vpack.c.b16 %v3712, %v3711
        %v3741 = vpack.c.b16 %v3714, %v3713
        %v3742 = vpack.c.b16 %v3716, %v3715
        %v3743 = vpack.c.b16 %v3718, %v3717
        %v3744 = vpack.c.b16 %v3720, %v3719
        %3769 = vmatprep.subr.bf16.mxu0 0
        %3770 = vmatpush1.bf16.msra.mxu0 %v3721
        %3771 = vmatprep.subr.bf16.mxu0 0
        %3772 = vmatpush1.bf16.msra.mxu0 %v3722
        %3773 = vmatprep.subr.bf16.mxu0 0
        %3774 = vmatpush1.bf16.msra.mxu0 %v3723
        %3775 = vmatprep.subr.bf16.mxu0 0
        %3776 = vmatpush1.bf16.msra.mxu0 %v3724
        %3777 = vmatprep.subr.bf16.mxu0 0
        %3778 = vmatpush1.bf16.msra.mxu0 %v3725
        %3779 = vmatprep.subr.bf16.mxu0 0
        %3780 = vmatpush1.bf16.msra.mxu0 %v3726
        %3781 = vmatprep.subr.bf16.mxu0 0
        %3782 = vmatpush1.bf16.msra.mxu0 %v3727
        %3783 = vmatprep.subr.bf16.mxu0 0
        %3784 = vmatpush1.bf16.msra.mxu0 %v3728
        %3785 = vmatprep.subr.bf16.mxu0 0
        %3786 = vmatpush1.bf16.msra.mxu0 %v3729
        %3787 = vmatprep.subr.bf16.mxu0 0
        %3788 = vmatpush1.bf16.msra.mxu0 %v3730
        %3789 = vmatprep.subr.bf16.mxu0 0
        %3790 = vmatpush1.bf16.msra.mxu0 %v3731
        %3791 = vmatprep.subr.bf16.mxu0 0
        %3792 = vmatpush1.bf16.msra.mxu0 %v3732
        %3793 = vmatprep.subr.bf16.mxu0 0
        %3794 = vmatpush1.bf16.msra.mxu0 %v3733
        %3795 = vmatprep.subr.bf16.mxu0 0
        %3796 = vmatpush1.bf16.msra.mxu0 %v3734
        %3797 = vmatprep.subr.bf16.mxu0 0
        %3798 = vmatpush1.bf16.msra.mxu0 %v3735
        %3799 = vmatprep.subr.bf16.mxu0 0
        %3800 = vmatpush1.bf16.msra.mxu0 %v3736
        %3801 = vmatprep.mubr.bf16.mxu0 %v2151
        %3802 = vmatmul.mubr.bf16.gmra.mrb[0].mxu0 %v2087
        %v3803 = vpop.f32.mrb[0].mxu0
        %v3804 = vadd.f32 %v3499, %v3803
        %v3805 = vpop.f32.mrb[0].mxu0
        %v3806 = vpop.f32.mrb[0].mxu0
        %v3807 = vadd.f32 %v3502, %v3806
        %v3808 = vpop.f32.mrb[0].mxu0
        %3809 = vmatprep.mubr.bf16.mxu0 %v2152
        %3810 = vmatmul.mubr.bf16.gmra.mrb[0].mxu0 %v2088
        %v3811 = vpop.f32.mrb[0].mxu0
        %v3812 = vadd.f32 %v3507, %v3811
        %v3813 = vpop.f32.mrb[0].mxu0
        %v3814 = vpop.f32.mrb[0].mxu0
        %v3815 = vadd.f32 %v3510, %v3814
        %v3816 = vpop.f32.mrb[0].mxu0
        %3817 = vmatprep.mubr.bf16.mxu0 %v2153
        %3818 = vmatmul.mubr.bf16.gmra.mrb[0].mxu0 %v2089
        %v3819 = vpop.f32.mrb[0].mxu0
        %v3820 = vadd.f32 %v3515, %v3819
        %v3821 = vpop.f32.mrb[0].mxu0
        %v3822 = vpop.f32.mrb[0].mxu0
        %v3823 = vadd.f32 %v3518, %v3822
        %v3824 = vpop.f32.mrb[0].mxu0
        %3825 = vmatprep.mubr.bf16.mxu0 %v2154
        %3826 = vmatmul.mubr.bf16.gmra.mrb[0].mxu0 %v2090
        %v3827 = vpop.f32.mrb[0].mxu0
        %v3828 = vadd.f32 %v3523, %v3827
        %v3829 = vpop.f32.mrb[0].mxu0
        %v3830 = vpop.f32.mrb[0].mxu0
        %v3831 = vadd.f32 %v3526, %v3830
        %v3832 = vpop.f32.mrb[0].mxu0
        %3833 = vmatprep.mubr.bf16.mxu0 %v2155
        %3834 = vmatmul.mubr.bf16.gmra.mrb[0].mxu0 %v2091
        %v3835 = vpop.f32.mrb[0].mxu0
        %v3836 = vadd.f32 %v3531, %v3835
        %v3837 = vpop.f32.mrb[0].mxu0
        %v3838 = vpop.f32.mrb[0].mxu0
        %v3839 = vadd.f32 %v3534, %v3838
        %v3840 = vpop.f32.mrb[0].mxu0
        %3841 = vmatprep.mubr.bf16.mxu0 %v2156
        %3842 = vmatmul.mubr.bf16.gmra.mrb[0].mxu0 %v2092
        %v3843 = vpop.f32.mrb[0].mxu0
        %v3844 = vadd.f32 %v3539, %v3843
        %v3845 = vpop.f32.mrb[0].mxu0
        %v3846 = vpop.f32.mrb[0].mxu0
        %v3847 = vadd.f32 %v3542, %v3846
        %v3848 = vpop.f32.mrb[0].mxu0
        %3849 = vmatprep.mubr.bf16.mxu0 %v2157
        %3850 = vmatmul.mubr.bf16.gmra.mrb[0].mxu0 %v2093
        %v3851 = vpop.f32.mrb[0].mxu0
        %v3852 = vadd.f32 %v3547, %v3851
        %v3853 = vpop.f32.mrb[0].mxu0
        %v3854 = vpop.f32.mrb[0].mxu0
        %v3855 = vadd.f32 %v3550, %v3854
        %v3856 = vpop.f32.mrb[0].mxu0
        %3857 = vmatprep.mubr.bf16.mxu0 %v2158
        %3858 = vmatmul.mubr.bf16.gmra.mrb[0].mxu0 %v2094
        %v3859 = vpop.f32.mrb[0].mxu0
        %v3860 = vadd.f32 %v3555, %v3859
        %v3861 = vpop.f32.mrb[0].mxu0
        %v3862 = vpop.f32.mrb[0].mxu0
        %v3863 = vadd.f32 %v3558, %v3862
        %v3864 = vpop.f32.mrb[0].mxu0
        %3865 = vmatprep.mubr.bf16.mxu0 %v2159
        %3866 = vmatmul.mubr.bf16.gmra.mrb[0].mxu0 %v2095
        %v3867 = vpop.f32.mrb[0].mxu0
        %v3868 = vadd.f32 %v3563, %v3867
        %v3869 = vpop.f32.mrb[0].mxu0
        %v3870 = vpop.f32.mrb[0].mxu0
        %v3871 = vadd.f32 %v3566, %v3870
        %v3872 = vpop.f32.mrb[0].mxu0
        %3873 = vmatprep.mubr.bf16.mxu0 %v2160
        %3874 = vmatmul.mubr.bf16.gmra.mrb[0].mxu0 %v2096
        %v3875 = vpop.f32.mrb[0].mxu0
        %v3876 = vadd.f32 %v3571, %v3875
        %v3877 = vpop.f32.mrb[0].mxu0
        %v3878 = vpop.f32.mrb[0].mxu0
        %v3879 = vadd.f32 %v3574, %v3878
        %v3880 = vpop.f32.mrb[0].mxu0
        %3881 = vmatprep.mubr.bf16.mxu0 %v2161
        %3882 = vmatmul.mubr.bf16.gmra.mrb[0].mxu0 %v2097
        %v3883 = vpop.f32.mrb[0].mxu0
        %v3884 = vadd.f32 %v3579, %v3883
        %v3885 = vpop.f32.mrb[0].mxu0
        %v3886 = vpop.f32.mrb[0].mxu0
        %v3887 = vadd.f32 %v3582, %v3886
        %v3888 = vpop.f32.mrb[0].mxu0
        %3889 = vmatprep.mubr.bf16.mxu0 %v2162
        %3890 = vmatmul.mubr.bf16.gmra.mrb[0].mxu0 %v2098
        %v3891 = vpop.f32.mrb[0].mxu0
        %v3892 = vadd.f32 %v3587, %v3891
        %v3893 = vpop.f32.mrb[0].mxu0
        %v3894 = vpop.f32.mrb[0].mxu0
        %v3895 = vadd.f32 %v3590, %v3894
        %v3896 = vpop.f32.mrb[0].mxu0
        %3897 = vmatprep.mubr.bf16.mxu0 %v2163
        %3898 = vmatmul.mubr.bf16.gmra.mrb[0].mxu0 %v2099
        %v3899 = vpop.f32.mrb[0].mxu0
        %v3900 = vadd.f32 %v3595, %v3899
        %v3901 = vpop.f32.mrb[0].mxu0
        %v3902 = vpop.f32.mrb[0].mxu0
        %v3903 = vadd.f32 %v3598, %v3902
        %v3904 = vpop.f32.mrb[0].mxu0
        %3905 = vmatprep.mubr.bf16.mxu0 %v2164
        %3906 = vmatmul.mubr.bf16.gmra.mrb[0].mxu0 %v2100
        %v3907 = vpop.f32.mrb[0].mxu0
        %v3908 = vadd.f32 %v3603, %v3907
        %v3909 = vpop.f32.mrb[0].mxu0
        %v3910 = vpop.f32.mrb[0].mxu0
        %v3911 = vadd.f32 %v3606, %v3910
        %v3912 = vpop.f32.mrb[0].mxu0
        %3913 = vmatprep.mubr.bf16.mxu0 %v2165
        %3914 = vmatmul.mubr.bf16.gmra.mrb[0].mxu0 %v2101
        %v3915 = vpop.f32.mrb[0].mxu0
        %v3916 = vadd.f32 %v3611, %v3915
        %v3917 = vpop.f32.mrb[0].mxu0
        %v3918 = vpop.f32.mrb[0].mxu0
        %v3919 = vadd.f32 %v3614, %v3918
        %v3920 = vpop.f32.mrb[0].mxu0
        %3921 = vmatprep.mubr.bf16.mxu0 %v2166
        %3922 = vmatmul.mubr.bf16.gmra.mrb[0].mxu0 %v2102
        %v3923 = vpop.f32.mrb[0].mxu0
        %v3924 = vadd.f32 %v3619, %v3923
        %v3925 = vpop.f32.mrb[0].mxu0
        %v3926 = vpop.f32.mrb[0].mxu0
        %v3927 = vadd.f32 %v3622, %v3926
        %v3928 = vpop.f32.mrb[0].mxu0
        %3929 = vdwg.mxu0
        %3930 = vmatprep.subr.bf16.mxu0 0
        %3931 = vmatpush1.bf16.msra.mxu0 %v3737
        %3932 = vmatprep.subr.bf16.mxu0 0
        %3933 = vmatpush1.bf16.msra.mxu0 %v3738
        %3934 = vmatprep.subr.bf16.mxu0 0
        %3935 = vmatpush1.bf16.msra.mxu0 %v3739
        %3936 = vmatprep.subr.bf16.mxu0 0
        %3937 = vmatpush1.bf16.msra.mxu0 %v3740
        %3938 = vmatprep.subr.bf16.mxu0 0
        %3939 = vmatpush1.bf16.msra.mxu0 %v3741
        %3940 = vmatprep.subr.bf16.mxu0 0
        %3941 = vmatpush1.bf16.msra.mxu0 %v3742
        %3942 = vmatprep.subr.bf16.mxu0 0
        %3943 = vmatpush1.bf16.msra.mxu0 %v3743
        %3944 = vmatprep.subr.bf16.mxu0 0
        %3945 = vmatpush1.bf16.msra.mxu0 %v3744
        %3946 = vmatprep.subr.bf16.mxu0 0
        %3947 = vmatpush1.bf16.msra.mxu0 0
        %3948 = vmatprep.subr.bf16.mxu0 0
        %3949 = vmatpush1.bf16.msra.mxu0 0
        %3950 = vmatprep.subr.bf16.mxu0 0
        %3951 = vmatpush1.bf16.msra.mxu0 0
        %3952 = vmatprep.subr.bf16.mxu0 0
        %3953 = vmatpush1.bf16.msra.mxu0 0
        %3954 = vmatprep.subr.bf16.mxu0 0
        %3955 = vmatpush1.bf16.msra.mxu0 0
        %3956 = vmatprep.subr.bf16.mxu0 0
        %3957 = vmatpush1.bf16.msra.mxu0 0
        %3958 = vmatprep.subr.bf16.mxu0 0
        %3959 = vmatpush1.bf16.msra.mxu0 0
        %3960 = vmatprep.subr.bf16.mxu0 0
        %3961 = vmatpush1.bf16.msra.mxu0 0
        %3962 = vmatprep.mubr.bf16.mxu0 0
        %3963 = vmatmul.mubr.bf16.gmra.mrb[0].mxu0 %v2215
        %v3964 = vpop.f32.mrb[0].mxu0
        %v3965 = vadd.f32 %v3804, %v3964
        %v3966 = vpop.f32.mrb[0].mxu0
        %v3967 = vpop.f32.mrb[0].mxu0
        %v3968 = vadd.f32 %v3807, %v3967
        %v3969 = vpop.f32.mrb[0].mxu0
        %3970 = vmatprep.mubr.bf16.mxu0 0
        %3971 = vmatmul.mubr.bf16.gmra.mrb[0].mxu0 %v2216
        %v3972 = vpop.f32.mrb[0].mxu0
        %v3973 = vadd.f32 %v3812, %v3972
        %v3974 = vpop.f32.mrb[0].mxu0
        %v3975 = vpop.f32.mrb[0].mxu0
        %v3976 = vadd.f32 %v3815, %v3975
        %v3977 = vpop.f32.mrb[0].mxu0
        %3978 = vmatprep.mubr.bf16.mxu0 0
        %3979 = vmatmul.mubr.bf16.gmra.mrb[0].mxu0 %v2217
        %v3980 = vpop.f32.mrb[0].mxu0
        %v3981 = vadd.f32 %v3820, %v3980
        %v3982 = vpop.f32.mrb[0].mxu0
        %v3983 = vpop.f32.mrb[0].mxu0
        %v3984 = vadd.f32 %v3823, %v3983
        %v3985 = vpop.f32.mrb[0].mxu0
        %3986 = vmatprep.mubr.bf16.mxu0 0
        %3987 = vmatmul.mubr.bf16.gmra.mrb[0].mxu0 %v2218
        %v3988 = vpop.f32.mrb[0].mxu0
        %v3989 = vadd.f32 %v3828, %v3988
        %v3990 = vpop.f32.mrb[0].mxu0
        %v3991 = vpop.f32.mrb[0].mxu0
        %v3992 = vadd.f32 %v3831, %v3991
        %v3993 = vpop.f32.mrb[0].mxu0
        %3994 = vmatprep.mubr.bf16.mxu0 0
        %3995 = vmatmul.mubr.bf16.gmra.mrb[0].mxu0 %v2219
        %v3996 = vpop.f32.mrb[0].mxu0
        %v3997 = vadd.f32 %v3836, %v3996
        %v3998 = vpop.f32.mrb[0].mxu0
        %v3999 = vpop.f32.mrb[0].mxu0
        %v4000 = vadd.f32 %v3839, %v3999
        %v4001 = vpop.f32.mrb[0].mxu0
        %4002 = vmatprep.mubr.bf16.mxu0 0
        %4003 = vmatmul.mubr.bf16.gmra.mrb[0].mxu0 %v2220
        %v4004 = vpop.f32.mrb[0].mxu0
        %v4005 = vadd.f32 %v3844, %v4004
        %v4006 = vpop.f32.mrb[0].mxu0
        %v4007 = vpop.f32.mrb[0].mxu0
        %v4008 = vadd.f32 %v3847, %v4007
        %v4009 = vpop.f32.mrb[0].mxu0
        %4010 = vmatprep.mubr.bf16.mxu0 0
        %4011 = vmatmul.mubr.bf16.gmra.mrb[0].mxu0 %v2221
        %v4012 = vpop.f32.mrb[0].mxu0
        %v4013 = vadd.f32 %v3852, %v4012
        %v4014 = vpop.f32.mrb[0].mxu0
        %v4015 = vpop.f32.mrb[0].mxu0
        %v4016 = vadd.f32 %v3855, %v4015
        %v4017 = vpop.f32.mrb[0].mxu0
        %4018 = vmatprep.mubr.bf16.mxu0 0
        %4019 = vmatmul.mubr.bf16.gmra.mrb[0].mxu0 %v2222
        %v4020 = vpop.f32.mrb[0].mxu0
        %v4021 = vadd.f32 %v3860, %v4020
        %v4022 = vpop.f32.mrb[0].mxu0
        %v4023 = vpop.f32.mrb[0].mxu0
        %v4024 = vadd.f32 %v3863, %v4023
        %v4025 = vpop.f32.mrb[0].mxu0
        %4026 = vmatprep.mubr.bf16.mxu0 0
        %4027 = vmatmul.mubr.bf16.gmra.mrb[0].mxu0 %v2223
        %v4028 = vpop.f32.mrb[0].mxu0
        %v4029 = vadd.f32 %v3868, %v4028
        %v4030 = vpop.f32.mrb[0].mxu0
        %v4031 = vpop.f32.mrb[0].mxu0
        %v4032 = vadd.f32 %v3871, %v4031
        %v4033 = vpop.f32.mrb[0].mxu0
        %4034 = vmatprep.mubr.bf16.mxu0 0
        %4035 = vmatmul.mubr.bf16.gmra.mrb[0].mxu0 %v2224
        %v4036 = vpop.f32.mrb[0].mxu0
        %v4037 = vadd.f32 %v3876, %v4036
        %v4038 = vpop.f32.mrb[0].mxu0
        %v4039 = vpop.f32.mrb[0].mxu0
        %v4040 = vadd.f32 %v3879, %v4039
        %v4041 = vpop.f32.mrb[0].mxu0
        %4042 = vmatprep.mubr.bf16.mxu0 0
        %4043 = vmatmul.mubr.bf16.gmra.mrb[0].mxu0 %v2225
        %v4044 = vpop.f32.mrb[0].mxu0
        %v4045 = vadd.f32 %v3884, %v4044
        %v4046 = vpop.f32.mrb[0].mxu0
        %v4047 = vpop.f32.mrb[0].mxu0
        %v4048 = vadd.f32 %v3887, %v4047
        %v4049 = vpop.f32.mrb[0].mxu0
        %4050 = vmatprep.mubr.bf16.mxu0 0
        %4051 = vmatmul.mubr.bf16.gmra.mrb[0].mxu0 %v2226
        %v4052 = vpop.f32.mrb[0].mxu0
        %v4053 = vadd.f32 %v3892, %v4052
        %v4054 = vpop.f32.mrb[0].mxu0
        %v4055 = vpop.f32.mrb[0].mxu0
        %v4056 = vadd.f32 %v3895, %v4055
        %v4057 = vpop.f32.mrb[0].mxu0
        %4058 = vmatprep.mubr.bf16.mxu0 0
        %4059 = vmatmul.mubr.bf16.gmra.mrb[0].mxu0 %v2227
        %v4060 = vpop.f32.mrb[0].mxu0
        %v4061 = vadd.f32 %v3900, %v4060
        %v4062 = vpop.f32.mrb[0].mxu0
        %v4063 = vpop.f32.mrb[0].mxu0
        %v4064 = vadd.f32 %v3903, %v4063
        %v4065 = vpop.f32.mrb[0].mxu0
        %4066 = vmatprep.mubr.bf16.mxu0 0
        %4067 = vmatmul.mubr.bf16.gmra.mrb[0].mxu0 %v2228
        %v4068 = vpop.f32.mrb[0].mxu0
        %v4069 = vadd.f32 %v3908, %v4068
        %v4070 = vpop.f32.mrb[0].mxu0
        %v4071 = vpop.f32.mrb[0].mxu0
        %v4072 = vadd.f32 %v3911, %v4071
        %v4073 = vpop.f32.mrb[0].mxu0
        %4074 = vmatprep.mubr.bf16.mxu0 0
        %4075 = vmatmul.mubr.bf16.gmra.mrb[0].mxu0 %v2229
        %v4076 = vpop.f32.mrb[0].mxu0
        %v4077 = vadd.f32 %v3916, %v4076
        %v4078 = vpop.f32.mrb[0].mxu0
        %v4079 = vpop.f32.mrb[0].mxu0
        %v4080 = vadd.f32 %v3919, %v4079
        %v4081 = vpop.f32.mrb[0].mxu0
        %4082 = vmatprep.mubr.bf16.mxu0 0
        %4083 = vmatmul.mubr.bf16.gmra.mrb[0].mxu0 %v2230
        %v4084 = vpop.f32.mrb[0].mxu0
        %v4085 = vadd.f32 %v3924, %v4084
        %v4086 = vpop.f32.mrb[0].mxu0
        %v4087 = vpop.f32.mrb[0].mxu0
        %v4088 = vadd.f32 %v3927, %v4087
        %v4089 = vpop.f32.mrb[0].mxu0
        %4090 = vdwg.mxu0
        %s4091 = scalar_lea.vmem [#allocation2], 24
        %v4092 = vld [vmem:[%s4091] sm:$0xf]
        %v4093 = vld [vmem:[%s4091 + $0x4] sm:$0xf]
        %v4094 = vld [vmem:[%s4091 + $0xc] sm:$0xf]
        %v4095 = vld [vmem:[%s4091 + $0x10] sm:$0xf]
        %v4096 = vld [vmem:[%s4091 + $0x18] sm:$0xf]
        %v4097 = vld [vmem:[%s4091 + $0x1c] sm:$0xf]
        %v4098 = vld [vmem:[%s4091 + $0x24] sm:$0xf]
        %v4099 = vld [vmem:[%s4091 + $0x28] sm:$0xf]
        %v4100 = vld [vmem:[%s4091 + $0x30] sm:$0xf]
        %v4101 = vld [vmem:[%s4091 + $0x34] sm:$0xf]
        %v4102 = vld [vmem:[%s4091 + $0x3c] sm:$0xf]
        %v4103 = vld [vmem:[%s4091 + $0x40] sm:$0xf]
        %v4104 = vld [vmem:[%s4091 + $0x48] sm:$0xf]
        %v4105 = vld [vmem:[%s4091 + $0x4c] sm:$0xf]
        %v4106 = vld [vmem:[%s4091 + $0x54] sm:$0xf]
        %v4107 = vld [vmem:[%s4091 + $0x58] sm:$0xf]
        %v4108 = vld [vmem:[%s4091 + $0x60] sm:$0xf]
        %v4109 = vld [vmem:[%s4091 + $0x64] sm:$0xf]
        %v4110 = vld [vmem:[%s4091 + $0x6c] sm:$0xf]
        %v4111 = vld [vmem:[%s4091 + $0x70] sm:$0xf]
        %v4112 = vld [vmem:[%s4091 + $0x78] sm:$0xf]
        %v4113 = vld [vmem:[%s4091 + $0x7c] sm:$0xf]
        %v4114 = vld [vmem:[%s4091 + $0x84] sm:$0xf]
        %v4115 = vld [vmem:[%s4091 + $0x88] sm:$0xf]
        %v4116 = vld [vmem:[%s4091 + $0x90] sm:$0xf]
        %v4117 = vld [vmem:[%s4091 + $0x94] sm:$0xf]
        %v4118 = vld [vmem:[%s4091 + $0x9c] sm:$0xf]
        %v4119 = vld [vmem:[%s4091 + $0xa0] sm:$0xf]
        %v4120 = vld [vmem:[%s4091 + $0xa8] sm:$0xf]
        %v4121 = vld [vmem:[%s4091 + $0xac] sm:$0xf]
        %v4122 = vld [vmem:[%s4091 + $0xb4] sm:$0xf]
        %v4123 = vld [vmem:[%s4091 + $0xb8] sm:$0xf]
        %v4124 = vld [vmem:[%s4091 + $0x8] sm:$0x1]
        %v4125 = vld [vmem:[%s4091 + $0x14] sm:$0x1]
        %v4126 = vld [vmem:[%s4091 + $0x20] sm:$0x1]
        %v4127 = vld [vmem:[%s4091 + $0x2c] sm:$0x1]
        %v4128 = vld [vmem:[%s4091 + $0x38] sm:$0x1]
        %v4129 = vld [vmem:[%s4091 + $0x44] sm:$0x1]
        %v4130 = vld [vmem:[%s4091 + $0x50] sm:$0x1]
        %v4131 = vld [vmem:[%s4091 + $0x5c] sm:$0x1]
        %v4132 = vld [vmem:[%s4091 + $0x68] sm:$0x1]
        %v4133 = vld [vmem:[%s4091 + $0x74] sm:$0x1]
        %v4134 = vld [vmem:[%s4091 + $0x80] sm:$0x1]
        %v4135 = vld [vmem:[%s4091 + $0x8c] sm:$0x1]
        %v4136 = vld [vmem:[%s4091 + $0x98] sm:$0x1]
        %v4137 = vld [vmem:[%s4091 + $0xa4] sm:$0x1]
        %v4138 = vld [vmem:[%s4091 + $0xb0] sm:$0x1]
        %v4139 = vld [vmem:[%s4091 + $0xbc] sm:$0x1]
        %v4141 = vshrl.u32 %v4092, 16
        %v4143 = vrot.slane %v4141, 4
        %v4144 = vshll.u32 %v4092, 16
        %v4146 = vrot.slane %v4144, 5
        %v4147 = vor.u32 %v4143, %v4146
        %v4148 = vrot.slane %v4147, 4
        %v4150 = vshll.u32 %v4093, 16
        %v4152 = vrot.slane %v4150, 5
        %v4153 = vsel %vm1475, %v4148, %v4152
        %v4154 = vshrl.u32 %v4093, 16
        %v4156 = vrot.slane %v4154, 4
        %v4157 = vor.u32 %v4156, %v4152
        %v4158 = vrot.slane %v4157, 4
        %v4160 = vshll.u32 %v4124, 16
        %v4162 = vrot.slane %v4160, 5
        %v4163 = vsel %vm1475, %v4158, %v4162
        %v4165 = vshrl.u32 %v4094, 16
        %v4167 = vrot.slane %v4165, 4
        %v4168 = vshll.u32 %v4094, 16
        %v4170 = vrot.slane %v4168, 5
        %v4171 = vor.u32 %v4167, %v4170
        %v4172 = vrot.slane %v4171, 4
        %v4174 = vshll.u32 %v4095, 16
        %v4176 = vrot.slane %v4174, 5
        %v4177 = vsel %vm1475, %v4172, %v4176
        %v4178 = vshrl.u32 %v4095, 16
        %v4180 = vrot.slane %v4178, 4
        %v4181 = vor.u32 %v4180, %v4176
        %v4182 = vrot.slane %v4181, 4
        %v4184 = vshll.u32 %v4125, 16
        %v4186 = vrot.slane %v4184, 5
        %v4187 = vsel %vm1475, %v4182, %v4186
        %v4189 = vshrl.u32 %v4096, 16
        %v4191 = vrot.slane %v4189, 4
        %v4192 = vshll.u32 %v4096, 16
        %v4194 = vrot.slane %v4192, 5
        %v4195 = vor.u32 %v4191, %v4194
        %v4196 = vrot.slane %v4195, 4
        %v4198 = vshll.u32 %v4097, 16
        %v4200 = vrot.slane %v4198, 5
        %v4201 = vsel %vm1475, %v4196, %v4200
        %v4202 = vshrl.u32 %v4097, 16
        %v4204 = vrot.slane %v4202, 4
        %v4205 = vor.u32 %v4204, %v4200
        %v4206 = vrot.slane %v4205, 4
        %v4208 = vshll.u32 %v4126, 16
        %v4210 = vrot.slane %v4208, 5
        %v4211 = vsel %vm1475, %v4206, %v4210
        %v4213 = vshrl.u32 %v4098, 16
        %v4215 = vrot.slane %v4213, 4
        %v4216 = vshll.u32 %v4098, 16
        %v4218 = vrot.slane %v4216, 5
        %v4219 = vor.u32 %v4215, %v4218
        %v4220 = vrot.slane %v4219, 4
        %v4222 = vshll.u32 %v4099, 16
        %v4224 = vrot.slane %v4222, 5
        %v4225 = vsel %vm1475, %v4220, %v4224
        %v4226 = vshrl.u32 %v4099, 16
        %v4228 = vrot.slane %v4226, 4
        %v4229 = vor.u32 %v4228, %v4224
        %v4230 = vrot.slane %v4229, 4
        %v4232 = vshll.u32 %v4127, 16
        %v4234 = vrot.slane %v4232, 5
        %v4235 = vsel %vm1475, %v4230, %v4234
        %v4237 = vshrl.u32 %v4100, 16
        %v4239 = vrot.slane %v4237, 4
        %v4240 = vshll.u32 %v4100, 16
        %v4242 = vrot.slane %v4240, 5
        %v4243 = vor.u32 %v4239, %v4242
        %v4244 = vrot.slane %v4243, 4
        %v4246 = vshll.u32 %v4101, 16
        %v4248 = vrot.slane %v4246, 5
        %v4249 = vsel %vm1475, %v4244, %v4248
        %v4250 = vshrl.u32 %v4101, 16
        %v4252 = vrot.slane %v4250, 4
        %v4253 = vor.u32 %v4252, %v4248
        %v4254 = vrot.slane %v4253, 4
        %v4256 = vshll.u32 %v4128, 16
        %v4258 = vrot.slane %v4256, 5
        %v4259 = vsel %vm1475, %v4254, %v4258
        %v4261 = vshrl.u32 %v4102, 16
        %v4263 = vrot.slane %v4261, 4
        %v4264 = vshll.u32 %v4102, 16
        %v4266 = vrot.slane %v4264, 5
        %v4267 = vor.u32 %v4263, %v4266
        %v4268 = vrot.slane %v4267, 4
        %v4270 = vshll.u32 %v4103, 16
        %v4272 = vrot.slane %v4270, 5
        %v4273 = vsel %vm1475, %v4268, %v4272
        %v4274 = vshrl.u32 %v4103, 16
        %v4276 = vrot.slane %v4274, 4
        %v4277 = vor.u32 %v4276, %v4272
        %v4278 = vrot.slane %v4277, 4
        %v4280 = vshll.u32 %v4129, 16
        %v4282 = vrot.slane %v4280, 5
        %v4283 = vsel %vm1475, %v4278, %v4282
        %v4285 = vshrl.u32 %v4104, 16
        %v4287 = vrot.slane %v4285, 4
        %v4288 = vshll.u32 %v4104, 16
        %v4290 = vrot.slane %v4288, 5
        %v4291 = vor.u32 %v4287, %v4290
        %v4292 = vrot.slane %v4291, 4
        %v4294 = vshll.u32 %v4105, 16
        %v4296 = vrot.slane %v4294, 5
        %v4297 = vsel %vm1475, %v4292, %v4296
        %v4298 = vshrl.u32 %v4105, 16
        %v4300 = vrot.slane %v4298, 4
        %v4301 = vor.u32 %v4300, %v4296
        %v4302 = vrot.slane %v4301, 4
        %v4304 = vshll.u32 %v4130, 16
        %v4306 = vrot.slane %v4304, 5
        %v4307 = vsel %vm1475, %v4302, %v4306
        %v4309 = vshrl.u32 %v4106, 16
        %v4311 = vrot.slane %v4309, 4
        %v4312 = vshll.u32 %v4106, 16
        %v4314 = vrot.slane %v4312, 5
        %v4315 = vor.u32 %v4311, %v4314
        %v4316 = vrot.slane %v4315, 4
        %v4318 = vshll.u32 %v4107, 16
        %v4320 = vrot.slane %v4318, 5
        %v4321 = vsel %vm1475, %v4316, %v4320
        %v4322 = vshrl.u32 %v4107, 16
        %v4324 = vrot.slane %v4322, 4
        %v4325 = vor.u32 %v4324, %v4320
        %v4326 = vrot.slane %v4325, 4
        %v4328 = vshll.u32 %v4131, 16
        %v4330 = vrot.slane %v4328, 5
        %v4331 = vsel %vm1475, %v4326, %v4330
        %v4333 = vshrl.u32 %v4108, 16
        %v4335 = vrot.slane %v4333, 4
        %v4336 = vshll.u32 %v4108, 16
        %v4338 = vrot.slane %v4336, 5
        %v4339 = vor.u32 %v4335, %v4338
        %v4340 = vrot.slane %v4339, 4
        %v4342 = vshll.u32 %v4109, 16
        %v4344 = vrot.slane %v4342, 5
        %v4345 = vsel %vm1475, %v4340, %v4344
        %v4346 = vshrl.u32 %v4109, 16
        %v4348 = vrot.slane %v4346, 4
        %v4349 = vor.u32 %v4348, %v4344
        %v4350 = vrot.slane %v4349, 4
        %v4352 = vshll.u32 %v4132, 16
        %v4354 = vrot.slane %v4352, 5
        %v4355 = vsel %vm1475, %v4350, %v4354
        %v4357 = vshrl.u32 %v4110, 16
        %v4359 = vrot.slane %v4357, 4
        %v4360 = vshll.u32 %v4110, 16
        %v4362 = vrot.slane %v4360, 5
        %v4363 = vor.u32 %v4359, %v4362
        %v4364 = vrot.slane %v4363, 4
        %v4366 = vshll.u32 %v4111, 16
        %v4368 = vrot.slane %v4366, 5
        %v4369 = vsel %vm1475, %v4364, %v4368
        %v4370 = vshrl.u32 %v4111, 16
        %v4372 = vrot.slane %v4370, 4
        %v4373 = vor.u32 %v4372, %v4368
        %v4374 = vrot.slane %v4373, 4
        %v4376 = vshll.u32 %v4133, 16
        %v4378 = vrot.slane %v4376, 5
        %v4379 = vsel %vm1475, %v4374, %v4378
        %v4381 = vshrl.u32 %v4112, 16
        %v4383 = vrot.slane %v4381, 4
        %v4384 = vshll.u32 %v4112, 16
        %v4386 = vrot.slane %v4384, 5
        %v4387 = vor.u32 %v4383, %v4386
        %v4388 = vrot.slane %v4387, 4
        %v4390 = vshll.u32 %v4113, 16
        %v4392 = vrot.slane %v4390, 5
        %v4393 = vsel %vm1475, %v4388, %v4392
        %v4394 = vshrl.u32 %v4113, 16
        %v4396 = vrot.slane %v4394, 4
        %v4397 = vor.u32 %v4396, %v4392
        %v4398 = vrot.slane %v4397, 4
        %v4400 = vshll.u32 %v4134, 16
        %v4402 = vrot.slane %v4400, 5
        %v4403 = vsel %vm1475, %v4398, %v4402
        %v4405 = vshrl.u32 %v4114, 16
        %v4407 = vrot.slane %v4405, 4
        %v4408 = vshll.u32 %v4114, 16
        %v4410 = vrot.slane %v4408, 5
        %v4411 = vor.u32 %v4407, %v4410
        %v4412 = vrot.slane %v4411, 4
        %v4414 = vshll.u32 %v4115, 16
        %v4416 = vrot.slane %v4414, 5
        %v4417 = vsel %vm1475, %v4412, %v4416
        %v4418 = vshrl.u32 %v4115, 16
        %v4420 = vrot.slane %v4418, 4
        %v4421 = vor.u32 %v4420, %v4416
        %v4422 = vrot.slane %v4421, 4
        %v4424 = vshll.u32 %v4135, 16
        %v4426 = vrot.slane %v4424, 5
        %v4427 = vsel %vm1475, %v4422, %v4426
        %v4429 = vshrl.u32 %v4116, 16
        %v4431 = vrot.slane %v4429, 4
        %v4432 = vshll.u32 %v4116, 16
        %v4434 = vrot.slane %v4432, 5
        %v4435 = vor.u32 %v4431, %v4434
        %v4436 = vrot.slane %v4435, 4
        %v4438 = vshll.u32 %v4117, 16
        %v4440 = vrot.slane %v4438, 5
        %v4441 = vsel %vm1475, %v4436, %v4440
        %v4442 = vshrl.u32 %v4117, 16
        %v4444 = vrot.slane %v4442, 4
        %v4445 = vor.u32 %v4444, %v4440
        %v4446 = vrot.slane %v4445, 4
        %v4448 = vshll.u32 %v4136, 16
        %v4450 = vrot.slane %v4448, 5
        %v4451 = vsel %vm1475, %v4446, %v4450
        %v4453 = vshrl.u32 %v4118, 16
        %v4455 = vrot.slane %v4453, 4
        %v4456 = vshll.u32 %v4118, 16
        %v4458 = vrot.slane %v4456, 5
        %v4459 = vor.u32 %v4455, %v4458
        %v4460 = vrot.slane %v4459, 4
        %v4462 = vshll.u32 %v4119, 16
        %v4464 = vrot.slane %v4462, 5
        %v4465 = vsel %vm1475, %v4460, %v4464
        %v4466 = vshrl.u32 %v4119, 16
        %v4468 = vrot.slane %v4466, 4
        %v4469 = vor.u32 %v4468, %v4464
        %v4470 = vrot.slane %v4469, 4
        %v4472 = vshll.u32 %v4137, 16
        %v4474 = vrot.slane %v4472, 5
        %v4475 = vsel %vm1475, %v4470, %v4474
        %v4477 = vshrl.u32 %v4120, 16
        %v4479 = vrot.slane %v4477, 4
        %v4480 = vshll.u32 %v4120, 16
        %v4482 = vrot.slane %v4480, 5
        %v4483 = vor.u32 %v4479, %v4482
        %v4484 = vrot.slane %v4483, 4
        %v4486 = vshll.u32 %v4121, 16
        %v4488 = vrot.slane %v4486, 5
        %v4489 = vsel %vm1475, %v4484, %v4488
        %v4490 = vshrl.u32 %v4121, 16
        %v4492 = vrot.slane %v4490, 4
        %v4493 = vor.u32 %v4492, %v4488
        %v4494 = vrot.slane %v4493, 4
        %v4496 = vshll.u32 %v4138, 16
        %v4498 = vrot.slane %v4496, 5
        %v4499 = vsel %vm1475, %v4494, %v4498
        %v4501 = vshrl.u32 %v4122, 16
        %v4503 = vrot.slane %v4501, 4
        %v4504 = vshll.u32 %v4122, 16
        %v4506 = vrot.slane %v4504, 5
        %v4507 = vor.u32 %v4503, %v4506
        %v4508 = vrot.slane %v4507, 4
        %v4510 = vshll.u32 %v4123, 16
        %v4512 = vrot.slane %v4510, 5
        %v4513 = vsel %vm1475, %v4508, %v4512
        %v4514 = vshrl.u32 %v4123, 16
        %v4516 = vrot.slane %v4514, 4
        %v4517 = vor.u32 %v4516, %v4512
        %v4518 = vrot.slane %v4517, 4
        %v4520 = vshll.u32 %v4139, 16
        %v4522 = vrot.slane %v4520, 5
        %v4523 = vsel %vm1475, %v4518, %v4522
        %v4524 = vld [vmem:[%s4091] sm:$0xe]
        %v4525 = vld [vmem:[%s4091 + $0xc] sm:$0xe]
        %v4526 = vld [vmem:[%s4091 + $0x18] sm:$0xe]
        %v4527 = vld [vmem:[%s4091 + $0x24] sm:$0xe]
        %v4528 = vld [vmem:[%s4091 + $0x30] sm:$0xe]
        %v4529 = vld [vmem:[%s4091 + $0x3c] sm:$0xe]
        %v4530 = vld [vmem:[%s4091 + $0x48] sm:$0xe]
        %v4531 = vld [vmem:[%s4091 + $0x54] sm:$0xe]
        %v4532 = vld [vmem:[%s4091 + $0x60] sm:$0xe]
        %v4533 = vld [vmem:[%s4091 + $0x6c] sm:$0xe]
        %v4534 = vld [vmem:[%s4091 + $0x78] sm:$0xe]
        %v4535 = vld [vmem:[%s4091 + $0x84] sm:$0xe]
        %v4536 = vld [vmem:[%s4091 + $0x90] sm:$0xe]
        %v4537 = vld [vmem:[%s4091 + $0x9c] sm:$0xe]
        %v4538 = vld [vmem:[%s4091 + $0xa8] sm:$0xe]
        %v4539 = vld [vmem:[%s4091 + $0xb4] sm:$0xe]
        %v4588 = vrot.slane %v4524, 5
        %v4589 = vrot.slane %v4588, 4
        %v4590 = vrot.slane %v4093, 5
        %v4591 = vsel %vm1926, %v4589, %v4590
        %v4592 = vrot.slane %v4590, 4
        %v4593 = vrot.slane %v4124, 5
        %v4594 = vsel %vm1926, %v4592, %v4593
        %v4595 = vrot.slane %v4525, 5
        %v4596 = vrot.slane %v4595, 4
        %v4597 = vrot.slane %v4095, 5
        %v4598 = vsel %vm1926, %v4596, %v4597
        %v4599 = vrot.slane %v4597, 4
        %v4600 = vrot.slane %v4125, 5
        %v4601 = vsel %vm1926, %v4599, %v4600
        %v4602 = vrot.slane %v4526, 5
        %v4603 = vrot.slane %v4602, 4
        %v4604 = vrot.slane %v4097, 5
        %v4605 = vsel %vm1926, %v4603, %v4604
        %v4606 = vrot.slane %v4604, 4
        %v4607 = vrot.slane %v4126, 5
        %v4608 = vsel %vm1926, %v4606, %v4607
        %v4609 = vrot.slane %v4527, 5
        %v4610 = vrot.slane %v4609, 4
        %v4611 = vrot.slane %v4099, 5
        %v4612 = vsel %vm1926, %v4610, %v4611
        %v4613 = vrot.slane %v4611, 4
        %v4614 = vrot.slane %v4127, 5
        %v4615 = vsel %vm1926, %v4613, %v4614
        %v4616 = vrot.slane %v4528, 5
        %v4617 = vrot.slane %v4616, 4
        %v4618 = vrot.slane %v4101, 5
        %v4619 = vsel %vm1926, %v4617, %v4618
        %v4620 = vrot.slane %v4618, 4
        %v4621 = vrot.slane %v4128, 5
        %v4622 = vsel %vm1926, %v4620, %v4621
        %v4623 = vrot.slane %v4529, 5
        %v4624 = vrot.slane %v4623, 4
        %v4625 = vrot.slane %v4103, 5
        %v4626 = vsel %vm1926, %v4624, %v4625
        %v4627 = vrot.slane %v4625, 4
        %v4628 = vrot.slane %v4129, 5
        %v4629 = vsel %vm1926, %v4627, %v4628
        %v4630 = vrot.slane %v4530, 5
        %v4631 = vrot.slane %v4630, 4
        %v4632 = vrot.slane %v4105, 5
        %v4633 = vsel %vm1926, %v4631, %v4632
        %v4634 = vrot.slane %v4632, 4
        %v4635 = vrot.slane %v4130, 5
        %v4636 = vsel %vm1926, %v4634, %v4635
        %v4637 = vrot.slane %v4531, 5
        %v4638 = vrot.slane %v4637, 4
        %v4639 = vrot.slane %v4107, 5
        %v4640 = vsel %vm1926, %v4638, %v4639
        %v4641 = vrot.slane %v4639, 4
        %v4642 = vrot.slane %v4131, 5
        %v4643 = vsel %vm1926, %v4641, %v4642
        %v4644 = vrot.slane %v4532, 5
        %v4645 = vrot.slane %v4644, 4
        %v4646 = vrot.slane %v4109, 5
        %v4647 = vsel %vm1926, %v4645, %v4646
        %v4648 = vrot.slane %v4646, 4
        %v4649 = vrot.slane %v4132, 5
        %v4650 = vsel %vm1926, %v4648, %v4649
        %v4651 = vrot.slane %v4533, 5
        %v4652 = vrot.slane %v4651, 4
        %v4653 = vrot.slane %v4111, 5
        %v4654 = vsel %vm1926, %v4652, %v4653
        %v4655 = vrot.slane %v4653, 4
        %v4656 = vrot.slane %v4133, 5
        %v4657 = vsel %vm1926, %v4655, %v4656
        %v4658 = vrot.slane %v4534, 5
        %v4659 = vrot.slane %v4658, 4
        %v4660 = vrot.slane %v4113, 5
        %v4661 = vsel %vm1926, %v4659, %v4660
        %v4662 = vrot.slane %v4660, 4
        %v4663 = vrot.slane %v4134, 5
        %v4664 = vsel %vm1926, %v4662, %v4663
        %v4665 = vrot.slane %v4535, 5
        %v4666 = vrot.slane %v4665, 4
        %v4667 = vrot.slane %v4115, 5
        %v4668 = vsel %vm1926, %v4666, %v4667
        %v4669 = vrot.slane %v4667, 4
        %v4670 = vrot.slane %v4135, 5
        %v4671 = vsel %vm1926, %v4669, %v4670
        %v4672 = vrot.slane %v4536, 5
        %v4673 = vrot.slane %v4672, 4
        %v4674 = vrot.slane %v4117, 5
        %v4675 = vsel %vm1926, %v4673, %v4674
        %v4676 = vrot.slane %v4674, 4
        %v4677 = vrot.slane %v4136, 5
        %v4678 = vsel %vm1926, %v4676, %v4677
        %v4679 = vrot.slane %v4537, 5
        %v4680 = vrot.slane %v4679, 4
        %v4681 = vrot.slane %v4119, 5
        %v4682 = vsel %vm1926, %v4680, %v4681
        %v4683 = vrot.slane %v4681, 4
        %v4684 = vrot.slane %v4137, 5
        %v4685 = vsel %vm1926, %v4683, %v4684
        %v4686 = vrot.slane %v4538, 5
        %v4687 = vrot.slane %v4686, 4
        %v4688 = vrot.slane %v4121, 5
        %v4689 = vsel %vm1926, %v4687, %v4688
        %v4690 = vrot.slane %v4688, 4
        %v4691 = vrot.slane %v4138, 5
        %v4692 = vsel %vm1926, %v4690, %v4691
        %v4693 = vrot.slane %v4539, 5
        %v4694 = vrot.slane %v4693, 4
        %v4695 = vrot.slane %v4123, 5
        %v4696 = vsel %vm1926, %v4694, %v4695
        %v4697 = vrot.slane %v4695, 4
        %v4698 = vrot.slane %v4139, 5
        %v4699 = vsel %vm1926, %v4697, %v4698
        %v4716 = vunpack.c.l.b16 %v4092
        %v4717 = vunpack.c.l.b16 %v4093
        %v4718 = vunpack.c.l.b16 %v4094
        %v4719 = vunpack.c.l.b16 %v4095
        %v4720 = vunpack.c.l.b16 %v4096
        %v4721 = vunpack.c.l.b16 %v4097
        %v4722 = vunpack.c.l.b16 %v4098
        %v4723 = vunpack.c.l.b16 %v4099
        %v4724 = vunpack.c.l.b16 %v4100
        %v4725 = vunpack.c.l.b16 %v4101
        %v4726 = vunpack.c.l.b16 %v4102
        %v4727 = vunpack.c.l.b16 %v4103
        %v4728 = vunpack.c.l.b16 %v4104
        %v4729 = vunpack.c.l.b16 %v4105
        %v4730 = vunpack.c.l.b16 %v4106
        %v4731 = vunpack.c.l.b16 %v4107
        %v4732 = vunpack.c.l.b16 %v4108
        %v4733 = vunpack.c.l.b16 %v4109
        %v4734 = vunpack.c.l.b16 %v4110
        %v4735 = vunpack.c.l.b16 %v4111
        %v4736 = vunpack.c.l.b16 %v4112
        %v4737 = vunpack.c.l.b16 %v4113
        %v4738 = vunpack.c.l.b16 %v4114
        %v4739 = vunpack.c.l.b16 %v4115
        %v4740 = vunpack.c.l.b16 %v4116
        %v4741 = vunpack.c.l.b16 %v4117
        %v4742 = vunpack.c.l.b16 %v4118
        %v4743 = vunpack.c.l.b16 %v4119
        %v4744 = vunpack.c.l.b16 %v4120
        %v4745 = vunpack.c.l.b16 %v4121
        %v4746 = vunpack.c.l.b16 %v4122
        %v4747 = vunpack.c.l.b16 %v4123
        %v4748 = vpack.c.b16 %v4717, %v4716
        %v4749 = vpack.c.b16 %v4719, %v4718
        %v4750 = vpack.c.b16 %v4721, %v4720
        %v4751 = vpack.c.b16 %v4723, %v4722
        %v4752 = vpack.c.b16 %v4725, %v4724
        %v4753 = vpack.c.b16 %v4727, %v4726
        %v4754 = vpack.c.b16 %v4729, %v4728
        %v4755 = vpack.c.b16 %v4731, %v4730
        %v4756 = vpack.c.b16 %v4733, %v4732
        %v4757 = vpack.c.b16 %v4735, %v4734
        %v4758 = vpack.c.b16 %v4737, %v4736
        %v4759 = vpack.c.b16 %v4739, %v4738
        %v4760 = vpack.c.b16 %v4741, %v4740
        %v4761 = vpack.c.b16 %v4743, %v4742
        %v4762 = vpack.c.b16 %v4745, %v4744
        %v4763 = vpack.c.b16 %v4747, %v4746
        %v4780 = vunpack.c.l.b16 %v4153
        %v4781 = vunpack.c.l.b16 %v4163
        %v4782 = vunpack.c.l.b16 %v4177
        %v4783 = vunpack.c.l.b16 %v4187
        %v4784 = vunpack.c.l.b16 %v4201
        %v4785 = vunpack.c.l.b16 %v4211
        %v4786 = vunpack.c.l.b16 %v4225
        %v4787 = vunpack.c.l.b16 %v4235
        %v4788 = vunpack.c.l.b16 %v4249
        %v4789 = vunpack.c.l.b16 %v4259
        %v4790 = vunpack.c.l.b16 %v4273
        %v4791 = vunpack.c.l.b16 %v4283
        %v4792 = vunpack.c.l.b16 %v4297
        %v4793 = vunpack.c.l.b16 %v4307
        %v4794 = vunpack.c.l.b16 %v4321
        %v4795 = vunpack.c.l.b16 %v4331
        %v4796 = vunpack.c.l.b16 %v4345
        %v4797 = vunpack.c.l.b16 %v4355
        %v4798 = vunpack.c.l.b16 %v4369
        %v4799 = vunpack.c.l.b16 %v4379
        %v4800 = vunpack.c.l.b16 %v4393
        %v4801 = vunpack.c.l.b16 %v4403
        %v4802 = vunpack.c.l.b16 %v4417
        %v4803 = vunpack.c.l.b16 %v4427
        %v4804 = vunpack.c.l.b16 %v4441
        %v4805 = vunpack.c.l.b16 %v4451
        %v4806 = vunpack.c.l.b16 %v4465
        %v4807 = vunpack.c.l.b16 %v4475
        %v4808 = vunpack.c.l.b16 %v4489
        %v4809 = vunpack.c.l.b16 %v4499
        %v4810 = vunpack.c.l.b16 %v4513
        %v4811 = vunpack.c.l.b16 %v4523
        %v4812 = vpack.c.b16 %v4781, %v4780
        %v4813 = vpack.c.b16 %v4783, %v4782
        %v4814 = vpack.c.b16 %v4785, %v4784
        %v4815 = vpack.c.b16 %v4787, %v4786
        %v4816 = vpack.c.b16 %v4789, %v4788
        %v4817 = vpack.c.b16 %v4791, %v4790
        %v4818 = vpack.c.b16 %v4793, %v4792
        %v4819 = vpack.c.b16 %v4795, %v4794
        %v4820 = vpack.c.b16 %v4797, %v4796
        %v4821 = vpack.c.b16 %v4799, %v4798
        %v4822 = vpack.c.b16 %v4801, %v4800
        %v4823 = vpack.c.b16 %v4803, %v4802
        %v4824 = vpack.c.b16 %v4805, %v4804
        %v4825 = vpack.c.b16 %v4807, %v4806
        %v4826 = vpack.c.b16 %v4809, %v4808
        %v4827 = vpack.c.b16 %v4811, %v4810
        %v4844 = vunpack.c.l.b16 %v4591
        %v4845 = vunpack.c.l.b16 %v4594
        %v4846 = vunpack.c.l.b16 %v4598
        %v4847 = vunpack.c.l.b16 %v4601
        %v4848 = vunpack.c.l.b16 %v4605
        %v4849 = vunpack.c.l.b16 %v4608
        %v4850 = vunpack.c.l.b16 %v4612
        %v4851 = vunpack.c.l.b16 %v4615
        %v4852 = vunpack.c.l.b16 %v4619
        %v4853 = vunpack.c.l.b16 %v4622
        %v4854 = vunpack.c.l.b16 %v4626
        %v4855 = vunpack.c.l.b16 %v4629
        %v4856 = vunpack.c.l.b16 %v4633
        %v4857 = vunpack.c.l.b16 %v4636
        %v4858 = vunpack.c.l.b16 %v4640
        %v4859 = vunpack.c.l.b16 %v4643
        %v4860 = vunpack.c.l.b16 %v4647
        %v4861 = vunpack.c.l.b16 %v4650
        %v4862 = vunpack.c.l.b16 %v4654
        %v4863 = vunpack.c.l.b16 %v4657
        %v4864 = vunpack.c.l.b16 %v4661
        %v4865 = vunpack.c.l.b16 %v4664
        %v4866 = vunpack.c.l.b16 %v4668
        %v4867 = vunpack.c.l.b16 %v4671
        %v4868 = vunpack.c.l.b16 %v4675
        %v4869 = vunpack.c.l.b16 %v4678
        %v4870 = vunpack.c.l.b16 %v4682
        %v4871 = vunpack.c.l.b16 %v4685
        %v4872 = vunpack.c.l.b16 %v4689
        %v4873 = vunpack.c.l.b16 %v4692
        %v4874 = vunpack.c.l.b16 %v4696
        %v4875 = vunpack.c.l.b16 %v4699
        %v4876 = vpack.c.b16 %v4845, %v4844
        %v4877 = vpack.c.b16 %v4847, %v4846
        %v4878 = vpack.c.b16 %v4849, %v4848
        %v4879 = vpack.c.b16 %v4851, %v4850
        %v4880 = vpack.c.b16 %v4853, %v4852
        %v4881 = vpack.c.b16 %v4855, %v4854
        %v4882 = vpack.c.b16 %v4857, %v4856
        %v4883 = vpack.c.b16 %v4859, %v4858
        %v4884 = vpack.c.b16 %v4861, %v4860
        %v4885 = vpack.c.b16 %v4863, %v4862
        %v4886 = vpack.c.b16 %v4865, %v4864
        %v4887 = vpack.c.b16 %v4867, %v4866
        %v4888 = vpack.c.b16 %v4869, %v4868
        %v4889 = vpack.c.b16 %v4871, %v4870
        %v4890 = vpack.c.b16 %v4873, %v4872
        %v4891 = vpack.c.b16 %v4875, %v4874
        %v4908 = vld [vmem:[#allocation8 + $0x180] sm:$0xf]
        %v4909 = vld [vmem:[#allocation8 + $0x184] sm:$0xf]
        %v4910 = vld [vmem:[#allocation8 + $0x188] sm:$0xf]
        %v4911 = vld [vmem:[#allocation8 + $0x18c] sm:$0xf]
        %v4912 = vld [vmem:[#allocation8 + $0x190] sm:$0xf]
        %v4913 = vld [vmem:[#allocation8 + $0x194] sm:$0xf]
        %v4914 = vld [vmem:[#allocation8 + $0x198] sm:$0xf]
        %v4915 = vld [vmem:[#allocation8 + $0x19c] sm:$0xf]
        %v4916 = vld [vmem:[#allocation8 + $0x1a0] sm:$0xf]
        %v4917 = vld [vmem:[#allocation8 + $0x1a4] sm:$0xf]
        %v4918 = vld [vmem:[#allocation8 + $0x1a8] sm:$0xf]
        %v4919 = vld [vmem:[#allocation8 + $0x1ac] sm:$0xf]
        %v4920 = vld [vmem:[#allocation8 + $0x1b0] sm:$0xf]
        %v4921 = vld [vmem:[#allocation8 + $0x1b4] sm:$0xf]
        %v4922 = vld [vmem:[#allocation8 + $0x1b8] sm:$0xf]
        %v4923 = vld [vmem:[#allocation8 + $0x1bc] sm:$0xf]
        %v4924 = vld [vmem:[#allocation8 + $0x1c0] sm:$0xf]
        %v4925 = vld [vmem:[#allocation8 + $0x1c4] sm:$0xf]
        %v4926 = vld [vmem:[#allocation8 + $0x1c8] sm:$0xf]
        %v4927 = vld [vmem:[#allocation8 + $0x1cc] sm:$0xf]
        %v4928 = vld [vmem:[#allocation8 + $0x1d0] sm:$0xf]
        %v4929 = vld [vmem:[#allocation8 + $0x1d4] sm:$0xf]
        %v4930 = vld [vmem:[#allocation8 + $0x1d8] sm:$0xf]
        %v4931 = vld [vmem:[#allocation8 + $0x1dc] sm:$0xf]
        %v4932 = vld [vmem:[#allocation8 + $0x1e0] sm:$0xf]
        %v4933 = vld [vmem:[#allocation8 + $0x1e4] sm:$0xf]
        %v4934 = vld [vmem:[#allocation8 + $0x1e8] sm:$0xf]
        %v4935 = vld [vmem:[#allocation8 + $0x1ec] sm:$0xf]
        %v4936 = vld [vmem:[#allocation8 + $0x1f0] sm:$0xf]
        %v4937 = vld [vmem:[#allocation8 + $0x1f4] sm:$0xf]
        %v4938 = vld [vmem:[#allocation8 + $0x1f8] sm:$0xf]
        %v4939 = vld [vmem:[#allocation8 + $0x1fc] sm:$0xf]
        %v4940 = vld [vmem:[#allocation8 + $0x200] sm:$0xf]
        %v4941 = vld [vmem:[#allocation8 + $0x204] sm:$0xf]
        %v4942 = vld [vmem:[#allocation8 + $0x208] sm:$0xf]
        %v4943 = vld [vmem:[#allocation8 + $0x20c] sm:$0xf]
        %v4944 = vld [vmem:[#allocation8 + $0x210] sm:$0xf]
        %v4945 = vld [vmem:[#allocation8 + $0x214] sm:$0xf]
        %v4946 = vld [vmem:[#allocation8 + $0x218] sm:$0xf]
        %v4947 = vld [vmem:[#allocation8 + $0x21c] sm:$0xf]
        %v4948 = vld [vmem:[#allocation8 + $0x220] sm:$0xf]
        %v4949 = vld [vmem:[#allocation8 + $0x224] sm:$0xf]
        %v4950 = vld [vmem:[#allocation8 + $0x228] sm:$0xf]
        %v4951 = vld [vmem:[#allocation8 + $0x22c] sm:$0xf]
        %v4952 = vld [vmem:[#allocation8 + $0x230] sm:$0xf]
        %v4953 = vld [vmem:[#allocation8 + $0x234] sm:$0xf]
        %v4954 = vld [vmem:[#allocation8 + $0x238] sm:$0xf]
        %v4955 = vld [vmem:[#allocation8 + $0x23c] sm:$0xf]
        %v5004 = vunpack.c.l.b16 %v4908
        %v5005 = vunpack.c.l.b16 %v4909
        %v5006 = vunpack.c.l.b16 %v4910
        %v5007 = vunpack.c.l.b16 %v4911
        %v5008 = vunpack.c.l.b16 %v4912
        %v5009 = vunpack.c.l.b16 %v4913
        %v5010 = vunpack.c.l.b16 %v4914
        %v5011 = vunpack.c.l.b16 %v4915
        %v5012 = vunpack.c.l.b16 %v4916
        %v5013 = vunpack.c.l.b16 %v4917
        %v5014 = vunpack.c.l.b16 %v4918
        %v5015 = vunpack.c.l.b16 %v4919
        %v5016 = vunpack.c.l.b16 %v4920
        %v5017 = vunpack.c.l.b16 %v4921
        %v5018 = vunpack.c.l.b16 %v4922
        %v5019 = vunpack.c.l.b16 %v4923
        %v5020 = vunpack.c.l.b16 %v4924
        %v5021 = vunpack.c.l.b16 %v4925
        %v5022 = vunpack.c.l.b16 %v4926
        %v5023 = vunpack.c.l.b16 %v4927
        %v5024 = vunpack.c.l.b16 %v4928
        %v5025 = vunpack.c.l.b16 %v4929
        %v5026 = vunpack.c.l.b16 %v4930
        %v5027 = vunpack.c.l.b16 %v4931
        %v5028 = vunpack.c.l.b16 %v4932
        %v5029 = vunpack.c.l.b16 %v4933
        %v5030 = vunpack.c.l.b16 %v4934
        %v5031 = vunpack.c.l.b16 %v4935
        %v5032 = vunpack.c.l.b16 %v4936
        %v5033 = vunpack.c.l.b16 %v4937
        %v5034 = vunpack.c.l.b16 %v4938
        %v5035 = vunpack.c.l.b16 %v4939
        %v5036 = vunpack.c.l.b16 %v4940
        %v5037 = vunpack.c.l.b16 %v4941
        %v5038 = vunpack.c.l.b16 %v4942
        %v5039 = vunpack.c.l.b16 %v4943
        %v5040 = vunpack.c.l.b16 %v4944
        %v5041 = vunpack.c.l.b16 %v4945
        %v5042 = vunpack.c.l.b16 %v4946
        %v5043 = vunpack.c.l.b16 %v4947
        %v5044 = vunpack.c.l.b16 %v4948
        %v5045 = vunpack.c.l.b16 %v4949
        %v5046 = vunpack.c.l.b16 %v4950
        %v5047 = vunpack.c.l.b16 %v4951
        %v5048 = vunpack.c.l.b16 %v4952
        %v5049 = vunpack.c.l.b16 %v4953
        %v5050 = vunpack.c.l.b16 %v4954
        %v5051 = vunpack.c.l.b16 %v4955
        %v5052 = vpack.c.b16 %v5005, %v5004
        %v5053 = vpack.c.b16 %v5007, %v5006
        %v5054 = vpack.c.b16 %v5009, %v5008
        %v5055 = vpack.c.b16 %v5011, %v5010
        %v5056 = vpack.c.b16 %v5013, %v5012
        %v5057 = vpack.c.b16 %v5015, %v5014
        %v5058 = vpack.c.b16 %v5017, %v5016
        %v5059 = vpack.c.b16 %v5019, %v5018
        %v5060 = vpack.c.b16 %v5021, %v5020
        %v5061 = vpack.c.b16 %v5023, %v5022
        %v5062 = vpack.c.b16 %v5025, %v5024
        %v5063 = vpack.c.b16 %v5027, %v5026
        %v5064 = vpack.c.b16 %v5029, %v5028
        %v5065 = vpack.c.b16 %v5031, %v5030
        %v5066 = vpack.c.b16 %v5033, %v5032
        %v5067 = vpack.c.b16 %v5035, %v5034
        %v5068 = vpack.c.b16 %v5037, %v5036
        %v5069 = vpack.c.b16 %v5039, %v5038
        %v5070 = vpack.c.b16 %v5041, %v5040
        %v5071 = vpack.c.b16 %v5043, %v5042
        %v5072 = vpack.c.b16 %v5045, %v5044
        %v5073 = vpack.c.b16 %v5047, %v5046
        %v5074 = vpack.c.b16 %v5049, %v5048
        %v5075 = vpack.c.b16 %v5051, %v5050
        %5100 = vmatprep.subr.bf16.mxu0 0
        %5101 = vmatpush1.bf16.msra.mxu0 %v5052
        %5102 = vmatprep.subr.bf16.mxu0 0
        %5103 = vmatpush1.bf16.msra.mxu0 %v5053
        %5104 = vmatprep.subr.bf16.mxu0 0
        %5105 = vmatpush1.bf16.msra.mxu0 %v5054
        %5106 = vmatprep.subr.bf16.mxu0 0
        %5107 = vmatpush1.bf16.msra.mxu0 %v5055
        %5108 = vmatprep.subr.bf16.mxu0 0
        %5109 = vmatpush1.bf16.msra.mxu0 %v5056
        %5110 = vmatprep.subr.bf16.mxu0 0
        %5111 = vmatpush1.bf16.msra.mxu0 %v5057
        %5112 = vmatprep.subr.bf16.mxu0 0
        %5113 = vmatpush1.bf16.msra.mxu0 %v5058
        %5114 = vmatprep.subr.bf16.mxu0 0
        %5115 = vmatpush1.bf16.msra.mxu0 %v5059
        %5116 = vmatprep.subr.bf16.mxu0 0
        %5117 = vmatpush1.bf16.msra.mxu0 %v5060
        %5118 = vmatprep.subr.bf16.mxu0 0
        %5119 = vmatpush1.bf16.msra.mxu0 %v5061
        %5120 = vmatprep.subr.bf16.mxu0 0
        %5121 = vmatpush1.bf16.msra.mxu0 %v5062
        %5122 = vmatprep.subr.bf16.mxu0 0
        %5123 = vmatpush1.bf16.msra.mxu0 %v5063
        %5124 = vmatprep.subr.bf16.mxu0 0
        %5125 = vmatpush1.bf16.msra.mxu0 %v5064
        %5126 = vmatprep.subr.bf16.mxu0 0
        %5127 = vmatpush1.bf16.msra.mxu0 %v5065
        %5128 = vmatprep.subr.bf16.mxu0 0
        %5129 = vmatpush1.bf16.msra.mxu0 %v5066
        %5130 = vmatprep.subr.bf16.mxu0 0
        %5131 = vmatpush1.bf16.msra.mxu0 %v5067
        %5132 = vmatprep.mubr.bf16.mxu0 %v4812
        %5133 = vmatmul.mubr.bf16.gmra.mrb[0].mxu0 %v4748
        %v5134 = vpop.f32.mrb[0].mxu0
        %v5135 = vadd.f32 0.0, %v5134
        %v5136 = vpop.f32.mrb[0].mxu0
        %v5137 = vpop.f32.mrb[0].mxu0
        %v5138 = vadd.f32 0.0, %v5137
        %v5139 = vpop.f32.mrb[0].mxu0
        %5140 = vmatprep.mubr.bf16.mxu0 %v4813
        %5141 = vmatmul.mubr.bf16.gmra.mrb[0].mxu0 %v4749
        %v5142 = vpop.f32.mrb[0].mxu0
        %v5143 = vadd.f32 0.0, %v5142
        %v5144 = vpop.f32.mrb[0].mxu0
        %v5145 = vpop.f32.mrb[0].mxu0
        %v5146 = vadd.f32 0.0, %v5145
        %v5147 = vpop.f32.mrb[0].mxu0
        %5148 = vmatprep.mubr.bf16.mxu0 %v4814
        %5149 = vmatmul.mubr.bf16.gmra.mrb[0].mxu0 %v4750
        %v5150 = vpop.f32.mrb[0].mxu0
        %v5151 = vadd.f32 0.0, %v5150
        %v5152 = vpop.f32.mrb[0].mxu0
        %v5153 = vpop.f32.mrb[0].mxu0
        %v5154 = vadd.f32 0.0, %v5153
        %v5155 = vpop.f32.mrb[0].mxu0
        %5156 = vmatprep.mubr.bf16.mxu0 %v4815
        %5157 = vmatmul.mubr.bf16.gmra.mrb[0].mxu0 %v4751
        %v5158 = vpop.f32.mrb[0].mxu0
        %v5159 = vadd.f32 0.0, %v5158
        %v5160 = vpop.f32.mrb[0].mxu0
        %v5161 = vpop.f32.mrb[0].mxu0
        %v5162 = vadd.f32 0.0, %v5161
        %v5163 = vpop.f32.mrb[0].mxu0
        %5164 = vmatprep.mubr.bf16.mxu0 %v4816
        %5165 = vmatmul.mubr.bf16.gmra.mrb[0].mxu0 %v4752
        %v5166 = vpop.f32.mrb[0].mxu0
        %v5167 = vadd.f32 0.0, %v5166
        %v5168 = vpop.f32.mrb[0].mxu0
        %v5169 = vpop.f32.mrb[0].mxu0
        %v5170 = vadd.f32 0.0, %v5169
        %v5171 = vpop.f32.mrb[0].mxu0
        %5172 = vmatprep.mubr.bf16.mxu0 %v4817
        %5173 = vmatmul.mubr.bf16.gmra.mrb[0].mxu0 %v4753
        %v5174 = vpop.f32.mrb[0].mxu0
        %v5175 = vadd.f32 0.0, %v5174
        %v5176 = vpop.f32.mrb[0].mxu0
        %v5177 = vpop.f32.mrb[0].mxu0
        %v5178 = vadd.f32 0.0, %v5177
        %v5179 = vpop.f32.mrb[0].mxu0
        %5180 = vmatprep.mubr.bf16.mxu0 %v4818
        %5181 = vmatmul.mubr.bf16.gmra.mrb[0].mxu0 %v4754
        %v5182 = vpop.f32.mrb[0].mxu0
        %v5183 = vadd.f32 0.0, %v5182
        %v5184 = vpop.f32.mrb[0].mxu0
        %v5185 = vpop.f32.mrb[0].mxu0
        %v5186 = vadd.f32 0.0, %v5185
        %v5187 = vpop.f32.mrb[0].mxu0
        %5188 = vmatprep.mubr.bf16.mxu0 %v4819
        %5189 = vmatmul.mubr.bf16.gmra.mrb[0].mxu0 %v4755
        %v5190 = vpop.f32.mrb[0].mxu0
        %v5191 = vadd.f32 0.0, %v5190
        %v5192 = vpop.f32.mrb[0].mxu0
        %v5193 = vpop.f32.mrb[0].mxu0
        %v5194 = vadd.f32 0.0, %v5193
        %v5195 = vpop.f32.mrb[0].mxu0
        %5196 = vmatprep.mubr.bf16.mxu0 %v4820
        %5197 = vmatmul.mubr.bf16.gmra.mrb[0].mxu0 %v4756
        %v5198 = vpop.f32.mrb[0].mxu0
        %v5199 = vadd.f32 0.0, %v5198
        %v5200 = vpop.f32.mrb[0].mxu0
        %v5201 = vpop.f32.mrb[0].mxu0
        %v5202 = vadd.f32 0.0, %v5201
        %v5203 = vpop.f32.mrb[0].mxu0
        %5204 = vmatprep.mubr.bf16.mxu0 %v4821
        %5205 = vmatmul.mubr.bf16.gmra.mrb[0].mxu0 %v4757
        %v5206 = vpop.f32.mrb[0].mxu0
        %v5207 = vadd.f32 0.0, %v5206
        %v5208 = vpop.f32.mrb[0].mxu0
        %v5209 = vpop.f32.mrb[0].mxu0
        %v5210 = vadd.f32 0.0, %v5209
        %v5211 = vpop.f32.mrb[0].mxu0
        %5212 = vmatprep.mubr.bf16.mxu0 %v4822
        %5213 = vmatmul.mubr.bf16.gmra.mrb[0].mxu0 %v4758
        %v5214 = vpop.f32.mrb[0].mxu0
        %v5215 = vadd.f32 0.0, %v5214
        %v5216 = vpop.f32.mrb[0].mxu0
        %v5217 = vpop.f32.mrb[0].mxu0
        %v5218 = vadd.f32 0.0, %v5217
        %v5219 = vpop.f32.mrb[0].mxu0
        %5220 = vmatprep.mubr.bf16.mxu0 %v4823
        %5221 = vmatmul.mubr.bf16.gmra.mrb[0].mxu0 %v4759
        %v5222 = vpop.f32.mrb[0].mxu0
        %v5223 = vadd.f32 0.0, %v5222
        %v5224 = vpop.f32.mrb[0].mxu0
        %v5225 = vpop.f32.mrb[0].mxu0
        %v5226 = vadd.f32 0.0, %v5225
        %v5227 = vpop.f32.mrb[0].mxu0
        %5228 = vmatprep.mubr.bf16.mxu0 %v4824
        %5229 = vmatmul.mubr.bf16.gmra.mrb[0].mxu0 %v4760
        %v5230 = vpop.f32.mrb[0].mxu0
        %v5231 = vadd.f32 0.0, %v5230
        %v5232 = vpop.f32.mrb[0].mxu0
        %v5233 = vpop.f32.mrb[0].mxu0
        %v5234 = vadd.f32 0.0, %v5233
        %v5235 = vpop.f32.mrb[0].mxu0
        %5236 = vmatprep.mubr.bf16.mxu0 %v4825
        %5237 = vmatmul.mubr.bf16.gmra.mrb[0].mxu0 %v4761
        %v5238 = vpop.f32.mrb[0].mxu0
        %v5239 = vadd.f32 0.0, %v5238
        %v5240 = vpop.f32.mrb[0].mxu0
        %v5241 = vpop.f32.mrb[0].mxu0
        %v5242 = vadd.f32 0.0, %v5241
        %v5243 = vpop.f32.mrb[0].mxu0
        %5244 = vmatprep.mubr.bf16.mxu0 %v4826
        %5245 = vmatmul.mubr.bf16.gmra.mrb[0].mxu0 %v4762
        %v5246 = vpop.f32.mrb[0].mxu0
        %v5247 = vadd.f32 0.0, %v5246
        %v5248 = vpop.f32.mrb[0].mxu0
        %v5249 = vpop.f32.mrb[0].mxu0
        %v5250 = vadd.f32 0.0, %v5249
        %v5251 = vpop.f32.mrb[0].mxu0
        %5252 = vmatprep.mubr.bf16.mxu0 %v4827
        %5253 = vmatmul.mubr.bf16.gmra.mrb[0].mxu0 %v4763
        %v5254 = vpop.f32.mrb[0].mxu0
        %v5255 = vadd.f32 0.0, %v5254
        %v5256 = vpop.f32.mrb[0].mxu0
        %v5257 = vpop.f32.mrb[0].mxu0
        %v5258 = vadd.f32 0.0, %v5257
        %v5259 = vpop.f32.mrb[0].mxu0
        %5260 = vdwg.mxu0
        %5261 = vmatprep.subr.bf16.mxu0 0
        %5262 = vmatpush1.bf16.msra.mxu0 %v5068
        %5263 = vmatprep.subr.bf16.mxu0 0
        %5264 = vmatpush1.bf16.msra.mxu0 %v5069
        %5265 = vmatprep.subr.bf16.mxu0 0
        %5266 = vmatpush1.bf16.msra.mxu0 %v5070
        %5267 = vmatprep.subr.bf16.mxu0 0
        %5268 = vmatpush1.bf16.msra.mxu0 %v5071
        %5269 = vmatprep.subr.bf16.mxu0 0
        %5270 = vmatpush1.bf16.msra.mxu0 %v5072
        %5271 = vmatprep.subr.bf16.mxu0 0
        %5272 = vmatpush1.bf16.msra.mxu0 %v5073
        %5273 = vmatprep.subr.bf16.mxu0 0
        %5274 = vmatpush1.bf16.msra.mxu0 %v5074
        %5275 = vmatprep.subr.bf16.mxu0 0
        %5276 = vmatpush1.bf16.msra.mxu0 %v5075
        %5277 = vmatprep.subr.bf16.mxu0 0
        %5278 = vmatpush1.bf16.msra.mxu0 0
        %5279 = vmatprep.subr.bf16.mxu0 0
        %5280 = vmatpush1.bf16.msra.mxu0 0
        %5281 = vmatprep.subr.bf16.mxu0 0
        %5282 = vmatpush1.bf16.msra.mxu0 0
        %5283 = vmatprep.subr.bf16.mxu0 0
        %5284 = vmatpush1.bf16.msra.mxu0 0
        %5285 = vmatprep.subr.bf16.mxu0 0
        %5286 = vmatpush1.bf16.msra.mxu0 0
        %5287 = vmatprep.subr.bf16.mxu0 0
        %5288 = vmatpush1.bf16.msra.mxu0 0
        %5289 = vmatprep.subr.bf16.mxu0 0
        %5290 = vmatpush1.bf16.msra.mxu0 0
        %5291 = vmatprep.subr.bf16.mxu0 0
        %5292 = vmatpush1.bf16.msra.mxu0 0
        %5293 = vmatprep.mubr.bf16.mxu0 0
        %5294 = vmatmul.mubr.bf16.gmra.mrb[0].mxu0 %v4876
        %v5295 = vpop.f32.mrb[0].mxu0
        %v5296 = vadd.f32 %v5135, %v5295
        %v5297 = vpop.f32.mrb[0].mxu0
        %v5298 = vpop.f32.mrb[0].mxu0
        %v5299 = vadd.f32 %v5138, %v5298
        %v5300 = vpop.f32.mrb[0].mxu0
        %5301 = vmatprep.mubr.bf16.mxu0 0
        %5302 = vmatmul.mubr.bf16.gmra.mrb[0].mxu0 %v4877
        %v5303 = vpop.f32.mrb[0].mxu0
        %v5304 = vadd.f32 %v5143, %v5303
        %v5305 = vpop.f32.mrb[0].mxu0
        %v5306 = vpop.f32.mrb[0].mxu0
        %v5307 = vadd.f32 %v5146, %v5306
        %v5308 = vpop.f32.mrb[0].mxu0
        %5309 = vmatprep.mubr.bf16.mxu0 0
        %5310 = vmatmul.mubr.bf16.gmra.mrb[0].mxu0 %v4878
        %v5311 = vpop.f32.mrb[0].mxu0
        %v5312 = vadd.f32 %v5151, %v5311
        %v5313 = vpop.f32.mrb[0].mxu0
        %v5314 = vpop.f32.mrb[0].mxu0
        %v5315 = vadd.f32 %v5154, %v5314
        %v5316 = vpop.f32.mrb[0].mxu0
        %5317 = vmatprep.mubr.bf16.mxu0 0
        %5318 = vmatmul.mubr.bf16.gmra.mrb[0].mxu0 %v4879
        %v5319 = vpop.f32.mrb[0].mxu0
        %v5320 = vadd.f32 %v5159, %v5319
        %v5321 = vpop.f32.mrb[0].mxu0
        %v5322 = vpop.f32.mrb[0].mxu0
        %v5323 = vadd.f32 %v5162, %v5322
        %v5324 = vpop.f32.mrb[0].mxu0
        %5325 = vmatprep.mubr.bf16.mxu0 0
        %5326 = vmatmul.mubr.bf16.gmra.mrb[0].mxu0 %v4880
        %v5327 = vpop.f32.mrb[0].mxu0
        %v5328 = vadd.f32 %v5167, %v5327
        %v5329 = vpop.f32.mrb[0].mxu0
        %v5330 = vpop.f32.mrb[0].mxu0
        %v5331 = vadd.f32 %v5170, %v5330
        %v5332 = vpop.f32.mrb[0].mxu0
        %5333 = vmatprep.mubr.bf16.mxu0 0
        %5334 = vmatmul.mubr.bf16.gmra.mrb[0].mxu0 %v4881
        %v5335 = vpop.f32.mrb[0].mxu0
        %v5336 = vadd.f32 %v5175, %v5335
        %v5337 = vpop.f32.mrb[0].mxu0
        %v5338 = vpop.f32.mrb[0].mxu0
        %v5339 = vadd.f32 %v5178, %v5338
        %v5340 = vpop.f32.mrb[0].mxu0
        %5341 = vmatprep.mubr.bf16.mxu0 0
        %5342 = vmatmul.mubr.bf16.gmra.mrb[0].mxu0 %v4882
        %v5343 = vpop.f32.mrb[0].mxu0
        %v5344 = vadd.f32 %v5183, %v5343
        %v5345 = vpop.f32.mrb[0].mxu0
        %v5346 = vpop.f32.mrb[0].mxu0
        %v5347 = vadd.f32 %v5186, %v5346
        %v5348 = vpop.f32.mrb[0].mxu0
        %5349 = vmatprep.mubr.bf16.mxu0 0
        %5350 = vmatmul.mubr.bf16.gmra.mrb[0].mxu0 %v4883
        %v5351 = vpop.f32.mrb[0].mxu0
        %v5352 = vadd.f32 %v5191, %v5351
        %v5353 = vpop.f32.mrb[0].mxu0
        %v5354 = vpop.f32.mrb[0].mxu0
        %v5355 = vadd.f32 %v5194, %v5354
        %v5356 = vpop.f32.mrb[0].mxu0
        %5357 = vmatprep.mubr.bf16.mxu0 0
        %5358 = vmatmul.mubr.bf16.gmra.mrb[0].mxu0 %v4884
        %v5359 = vpop.f32.mrb[0].mxu0
        %v5360 = vadd.f32 %v5199, %v5359
        %v5361 = vpop.f32.mrb[0].mxu0
        %v5362 = vpop.f32.mrb[0].mxu0
        %v5363 = vadd.f32 %v5202, %v5362
        %v5364 = vpop.f32.mrb[0].mxu0
        %5365 = vmatprep.mubr.bf16.mxu0 0
        %5366 = vmatmul.mubr.bf16.gmra.mrb[0].mxu0 %v4885
        %v5367 = vpop.f32.mrb[0].mxu0
        %v5368 = vadd.f32 %v5207, %v5367
        %v5369 = vpop.f32.mrb[0].mxu0
        %v5370 = vpop.f32.mrb[0].mxu0
        %v5371 = vadd.f32 %v5210, %v5370
        %v5372 = vpop.f32.mrb[0].mxu0
        %5373 = vmatprep.mubr.bf16.mxu0 0
        %5374 = vmatmul.mubr.bf16.gmra.mrb[0].mxu0 %v4886
        %v5375 = vpop.f32.mrb[0].mxu0
        %v5376 = vadd.f32 %v5215, %v5375
        %v5377 = vpop.f32.mrb[0].mxu0
        %v5378 = vpop.f32.mrb[0].mxu0
        %v5379 = vadd.f32 %v5218, %v5378
        %v5380 = vpop.f32.mrb[0].mxu0
        %5381 = vmatprep.mubr.bf16.mxu0 0
        %5382 = vmatmul.mubr.bf16.gmra.mrb[0].mxu0 %v4887
        %v5383 = vpop.f32.mrb[0].mxu0
        %v5384 = vadd.f32 %v5223, %v5383
        %v5385 = vpop.f32.mrb[0].mxu0
        %v5386 = vpop.f32.mrb[0].mxu0
        %v5387 = vadd.f32 %v5226, %v5386
        %v5388 = vpop.f32.mrb[0].mxu0
        %5389 = vmatprep.mubr.bf16.mxu0 0
        %5390 = vmatmul.mubr.bf16.gmra.mrb[0].mxu0 %v4888
        %v5391 = vpop.f32.mrb[0].mxu0
        %v5392 = vadd.f32 %v5231, %v5391
        %v5393 = vpop.f32.mrb[0].mxu0
        %v5394 = vpop.f32.mrb[0].mxu0
        %v5395 = vadd.f32 %v5234, %v5394
        %v5396 = vpop.f32.mrb[0].mxu0
        %5397 = vmatprep.mubr.bf16.mxu0 0
        %5398 = vmatmul.mubr.bf16.gmra.mrb[0].mxu0 %v4889
        %v5399 = vpop.f32.mrb[0].mxu0
        %v5400 = vadd.f32 %v5239, %v5399
        %v5401 = vpop.f32.mrb[0].mxu0
        %v5402 = vpop.f32.mrb[0].mxu0
        %v5403 = vadd.f32 %v5242, %v5402
        %v5404 = vpop.f32.mrb[0].mxu0
        %5405 = vmatprep.mubr.bf16.mxu0 0
        %5406 = vmatmul.mubr.bf16.gmra.mrb[0].mxu0 %v4890
        %v5407 = vpop.f32.mrb[0].mxu0
        %v5408 = vadd.f32 %v5247, %v5407
        %v5409 = vpop.f32.mrb[0].mxu0
        %v5410 = vpop.f32.mrb[0].mxu0
        %v5411 = vadd.f32 %v5250, %v5410
        %v5412 = vpop.f32.mrb[0].mxu0
        %5413 = vmatprep.mubr.bf16.mxu0 0
        %5414 = vmatmul.mubr.bf16.gmra.mrb[0].mxu0 %v4891
        %v5415 = vpop.f32.mrb[0].mxu0
        %v5416 = vadd.f32 %v5255, %v5415
        %v5417 = vpop.f32.mrb[0].mxu0
        %v5418 = vpop.f32.mrb[0].mxu0
        %v5419 = vadd.f32 %v5258, %v5418
        %v5420 = vpop.f32.mrb[0].mxu0
        %5421 = vdwg.mxu0
        %v5422 = vadd.f32 %v3965, %v5296
        %v5423 = vadd.f32 %v3968, %v5299
        %v5424 = vadd.f32 %v3973, %v5304
        %v5425 = vadd.f32 %v3976, %v5307
        %v5426 = vadd.f32 %v3981, %v5312
        %v5427 = vadd.f32 %v3984, %v5315
        %v5428 = vadd.f32 %v3989, %v5320
        %v5429 = vadd.f32 %v3992, %v5323
        %v5430 = vadd.f32 %v3997, %v5328
        %v5431 = vadd.f32 %v4000, %v5331
        %v5432 = vadd.f32 %v4005, %v5336
        %v5433 = vadd.f32 %v4008, %v5339
        %v5434 = vadd.f32 %v4013, %v5344
        %v5435 = vadd.f32 %v4016, %v5347
        %v5436 = vadd.f32 %v4021, %v5352
        %v5437 = vadd.f32 %v4024, %v5355
        %v5438 = vadd.f32 %v4029, %v5360
        %v5439 = vadd.f32 %v4032, %v5363
        %v5440 = vadd.f32 %v4037, %v5368
        %v5441 = vadd.f32 %v4040, %v5371
        %v5442 = vadd.f32 %v4045, %v5376
        %v5443 = vadd.f32 %v4048, %v5379
        %v5444 = vadd.f32 %v4053, %v5384
        %v5445 = vadd.f32 %v4056, %v5387
        %v5446 = vadd.f32 %v4061, %v5392
        %v5447 = vadd.f32 %v4064, %v5395
        %v5448 = vadd.f32 %v4069, %v5400
        %v5449 = vadd.f32 %v4072, %v5403
        %v5450 = vadd.f32 %v4077, %v5408
        %v5451 = vadd.f32 %v4080, %v5411
        %v5452 = vadd.f32 %v4085, %v5416
        %v5453 = vadd.f32 %v4088, %v5419
        %v5455 = vlaneseq
        %v5456 = vshrl.u32 %v5455, 7
        %v5457 = vsub.s32 0, %v5456
        %v5458 = vrot.slane %v907, %v5457
        %v5460 = vadd.f32 %v5422, %v5458
        %v5461 = vadd.f32 %v5423, %v5458
        %v5462 = vadd.f32 %v5424, %v5458
        %v5463 = vadd.f32 %v5425, %v5458
        %v5464 = vadd.f32 %v5426, %v5458
        %v5465 = vadd.f32 %v5427, %v5458
        %v5466 = vadd.f32 %v5428, %v5458
        %v5467 = vadd.f32 %v5429, %v5458
        %v5468 = vadd.f32 %v5430, %v5458
        %v5469 = vadd.f32 %v5431, %v5458
        %v5470 = vadd.f32 %v5432, %v5458
        %v5471 = vadd.f32 %v5433, %v5458
        %v5472 = vadd.f32 %v5434, %v5458
        %v5473 = vadd.f32 %v5435, %v5458
        %v5474 = vadd.f32 %v5436, %v5458
        %v5475 = vadd.f32 %v5437, %v5458
        %v5476 = vadd.f32 %v5438, %v5458
        %v5477 = vadd.f32 %v5439, %v5458
        %v5478 = vadd.f32 %v5440, %v5458
        %v5479 = vadd.f32 %v5441, %v5458
        %v5480 = vadd.f32 %v5442, %v5458
        %v5481 = vadd.f32 %v5443, %v5458
        %v5482 = vadd.f32 %v5444, %v5458
        %v5483 = vadd.f32 %v5445, %v5458
        %v5484 = vadd.f32 %v5446, %v5458
        %v5485 = vadd.f32 %v5447, %v5458
        %v5486 = vadd.f32 %v5448, %v5458
        %v5487 = vadd.f32 %v5449, %v5458
        %v5488 = vadd.f32 %v5450, %v5458
        %v5489 = vadd.f32 %v5451, %v5458
        %v5490 = vadd.f32 %v5452, %v5458
        %v5491 = vadd.f32 %v5453, %v5458
        %v5492 = vmax.f32 %v5460, 0.0
        %v5493 = vmax.f32 %v5461, 0.0
        %v5494 = vmax.f32 %v5462, 0.0
        %v5495 = vmax.f32 %v5463, 0.0
        %v5496 = vmax.f32 %v5464, 0.0
        %v5497 = vmax.f32 %v5465, 0.0
        %v5498 = vmax.f32 %v5466, 0.0
        %v5499 = vmax.f32 %v5467, 0.0
        %v5500 = vmax.f32 %v5468, 0.0
        %v5501 = vmax.f32 %v5469, 0.0
        %v5502 = vmax.f32 %v5470, 0.0
        %v5503 = vmax.f32 %v5471, 0.0
        %v5504 = vmax.f32 %v5472, 0.0
        %v5505 = vmax.f32 %v5473, 0.0
        %v5506 = vmax.f32 %v5474, 0.0
        %v5507 = vmax.f32 %v5475, 0.0
        %v5508 = vmax.f32 %v5476, 0.0
        %v5509 = vmax.f32 %v5477, 0.0
        %v5510 = vmax.f32 %v5478, 0.0
        %v5511 = vmax.f32 %v5479, 0.0
        %v5512 = vmax.f32 %v5480, 0.0
        %v5513 = vmax.f32 %v5481, 0.0
        %v5514 = vmax.f32 %v5482, 0.0
        %v5515 = vmax.f32 %v5483, 0.0
        %v5516 = vmax.f32 %v5484, 0.0
        %v5517 = vmax.f32 %v5485, 0.0
        %v5518 = vmax.f32 %v5486, 0.0
        %v5519 = vmax.f32 %v5487, 0.0
        %v5520 = vmax.f32 %v5488, 0.0
        %v5521 = vmax.f32 %v5489, 0.0
        %v5522 = vmax.f32 %v5490, 0.0
        %v5523 = vmax.f32 %v5491, 0.0
        %v5524 = vpack.c.bf16 %v5493, %v5492
        %v5525 = vpack.c.bf16 %v5495, %v5494
        %v5526 = vpack.c.bf16 %v5497, %v5496
        %v5527 = vpack.c.bf16 %v5499, %v5498
        %v5528 = vpack.c.bf16 %v5501, %v5500
        %v5529 = vpack.c.bf16 %v5503, %v5502
        %v5530 = vpack.c.bf16 %v5505, %v5504
        %v5531 = vpack.c.bf16 %v5507, %v5506
        %v5532 = vpack.c.bf16 %v5509, %v5508
        %v5533 = vpack.c.bf16 %v5511, %v5510
        %v5534 = vpack.c.bf16 %v5513, %v5512
        %v5535 = vpack.c.bf16 %v5515, %v5514
        %v5536 = vpack.c.bf16 %v5517, %v5516
        %v5537 = vpack.c.bf16 %v5519, %v5518
        %v5538 = vpack.c.bf16 %v5521, %v5520
        %v5539 = vpack.c.bf16 %v5523, %v5522
        %v5540 = vld [vmem:[#allocation14] sm:$0x1]
        %v5557 = vunpack.c.l.b16 %v5524
        %v5558 = vunpack.c.h.b16 %v5524
        %v5559 = vunpack.c.l.b16 %v5525
        %v5560 = vunpack.c.h.b16 %v5525
        %v5561 = vunpack.c.l.b16 %v5526
        %v5562 = vunpack.c.h.b16 %v5526
        %v5563 = vunpack.c.l.b16 %v5527
        %v5564 = vunpack.c.h.b16 %v5527
        %v5565 = vunpack.c.l.b16 %v5528
        %v5566 = vunpack.c.h.b16 %v5528
        %v5567 = vunpack.c.l.b16 %v5529
        %v5568 = vunpack.c.h.b16 %v5529
        %v5569 = vunpack.c.l.b16 %v5530
        %v5570 = vunpack.c.h.b16 %v5530
        %v5571 = vunpack.c.l.b16 %v5531
        %v5572 = vunpack.c.h.b16 %v5531
        %v5573 = vunpack.c.l.b16 %v5532
        %v5574 = vunpack.c.h.b16 %v5532
        %v5575 = vunpack.c.l.b16 %v5533
        %v5576 = vunpack.c.h.b16 %v5533
        %v5577 = vunpack.c.l.b16 %v5534
        %v5578 = vunpack.c.h.b16 %v5534
        %v5579 = vunpack.c.l.b16 %v5535
        %v5580 = vunpack.c.h.b16 %v5535
        %v5581 = vunpack.c.l.b16 %v5536
        %v5582 = vunpack.c.h.b16 %v5536
        %v5583 = vunpack.c.l.b16 %v5537
        %v5584 = vunpack.c.h.b16 %v5537
        %v5585 = vunpack.c.l.b16 %v5538
        %v5586 = vunpack.c.h.b16 %v5538
        %v5587 = vunpack.c.l.b16 %v5539
        %v5588 = vunpack.c.h.b16 %v5539
        %v5589 = vpack.c.b16 %v5557, %v5557
        %v5590 = vpack.c.b16 %v5558, %v5558
        %v5591 = vpack.c.b16 %v5559, %v5559
        %v5592 = vpack.c.b16 %v5560, %v5560
        %v5593 = vpack.c.b16 %v5561, %v5561
        %v5594 = vpack.c.b16 %v5562, %v5562
        %v5595 = vpack.c.b16 %v5563, %v5563
        %v5596 = vpack.c.b16 %v5564, %v5564
        %v5597 = vpack.c.b16 %v5565, %v5565
        %v5598 = vpack.c.b16 %v5566, %v5566
        %v5599 = vpack.c.b16 %v5567, %v5567
        %v5600 = vpack.c.b16 %v5568, %v5568
        %v5601 = vpack.c.b16 %v5569, %v5569
        %v5602 = vpack.c.b16 %v5570, %v5570
        %v5603 = vpack.c.b16 %v5571, %v5571
        %v5604 = vpack.c.b16 %v5572, %v5572
        %v5605 = vpack.c.b16 %v5573, %v5573
        %v5606 = vpack.c.b16 %v5574, %v5574
        %v5607 = vpack.c.b16 %v5575, %v5575
        %v5608 = vpack.c.b16 %v5576, %v5576
        %v5609 = vpack.c.b16 %v5577, %v5577
        %v5610 = vpack.c.b16 %v5578, %v5578
        %v5611 = vpack.c.b16 %v5579, %v5579
        %v5612 = vpack.c.b16 %v5580, %v5580
        %v5613 = vpack.c.b16 %v5581, %v5581
        %v5614 = vpack.c.b16 %v5582, %v5582
        %v5615 = vpack.c.b16 %v5583, %v5583
        %v5616 = vpack.c.b16 %v5584, %v5584
        %v5617 = vpack.c.b16 %v5585, %v5585
        %v5618 = vpack.c.b16 %v5586, %v5586
        %v5619 = vpack.c.b16 %v5587, %v5587
        %v5620 = vpack.c.b16 %v5588, %v5588
        %v5622 = vshrl.u32 %v5589, 16
        %v5624 = vrot.slane %v5622, 7
        %v5625 = vshll.u32 %v5589, 16
        %v5627 = vor.u32 %v5624, %v5625
        %v5628 = vrot.slane %v5624, 4
        %v5630 = vshrl.u32 %v5590, 16
        %v5632 = vrot.slane %v5630, 7
        %v5633 = vshll.u32 %v5590, 16
        %v5635 = vor.u32 %v5632, %v5633
        %v5636 = vsel %vm989, %v5628, %v5635
        %v5637 = vrot.slane %v5632, 4
        %v5639 = vshrl.u32 %v5591, 16
        %v5641 = vrot.slane %v5639, 7
        %v5642 = vshll.u32 %v5591, 16
        %v5644 = vor.u32 %v5641, %v5642
        %v5645 = vrot.slane %v5641, 4
        %v5647 = vshrl.u32 %v5592, 16
        %v5649 = vrot.slane %v5647, 7
        %v5650 = vshll.u32 %v5592, 16
        %v5652 = vor.u32 %v5649, %v5650
        %v5653 = vsel %vm989, %v5645, %v5652
        %v5654 = vrot.slane %v5649, 4
        %v5656 = vshrl.u32 %v5593, 16
        %v5658 = vrot.slane %v5656, 7
        %v5659 = vshll.u32 %v5593, 16
        %v5661 = vor.u32 %v5658, %v5659
        %v5662 = vrot.slane %v5658, 4
        %v5664 = vshrl.u32 %v5594, 16
        %v5666 = vrot.slane %v5664, 7
        %v5667 = vshll.u32 %v5594, 16
        %v5669 = vor.u32 %v5666, %v5667
        %v5670 = vsel %vm989, %v5662, %v5669
        %v5671 = vrot.slane %v5666, 4
        %v5673 = vshrl.u32 %v5595, 16
        %v5675 = vrot.slane %v5673, 7
        %v5676 = vshll.u32 %v5595, 16
        %v5678 = vor.u32 %v5675, %v5676
        %v5679 = vrot.slane %v5675, 4
        %v5681 = vshrl.u32 %v5596, 16
        %v5683 = vrot.slane %v5681, 7
        %v5684 = vshll.u32 %v5596, 16
        %v5686 = vor.u32 %v5683, %v5684
        %v5687 = vsel %vm989, %v5679, %v5686
        %v5688 = vrot.slane %v5683, 4
        %v5690 = vshrl.u32 %v5597, 16
        %v5692 = vrot.slane %v5690, 7
        %v5693 = vshll.u32 %v5597, 16
        %v5695 = vor.u32 %v5692, %v5693
        %v5696 = vrot.slane %v5692, 4
        %v5698 = vshrl.u32 %v5598, 16
        %v5700 = vrot.slane %v5698, 7
        %v5701 = vshll.u32 %v5598, 16
        %v5703 = vor.u32 %v5700, %v5701
        %v5704 = vsel %vm989, %v5696, %v5703
        %v5705 = vrot.slane %v5700, 4
        %v5707 = vshrl.u32 %v5599, 16
        %v5709 = vrot.slane %v5707, 7
        %v5710 = vshll.u32 %v5599, 16
        %v5712 = vor.u32 %v5709, %v5710
        %v5713 = vrot.slane %v5709, 4
        %v5715 = vshrl.u32 %v5600, 16
        %v5717 = vrot.slane %v5715, 7
        %v5718 = vshll.u32 %v5600, 16
        %v5720 = vor.u32 %v5717, %v5718
        %v5721 = vsel %vm989, %v5713, %v5720
        %v5722 = vrot.slane %v5717, 4
        %v5724 = vshrl.u32 %v5601, 16
        %v5726 = vrot.slane %v5724, 7
        %v5727 = vshll.u32 %v5601, 16
        %v5729 = vor.u32 %v5726, %v5727
        %v5730 = vrot.slane %v5726, 4
        %v5732 = vshrl.u32 %v5602, 16
        %v5734 = vrot.slane %v5732, 7
        %v5735 = vshll.u32 %v5602, 16
        %v5737 = vor.u32 %v5734, %v5735
        %v5738 = vsel %vm989, %v5730, %v5737
        %v5739 = vrot.slane %v5734, 4
        %v5741 = vshrl.u32 %v5603, 16
        %v5743 = vrot.slane %v5741, 7
        %v5744 = vshll.u32 %v5603, 16
        %v5746 = vor.u32 %v5743, %v5744
        %v5747 = vrot.slane %v5743, 4
        %v5749 = vshrl.u32 %v5604, 16
        %v5751 = vrot.slane %v5749, 7
        %v5752 = vshll.u32 %v5604, 16
        %v5754 = vor.u32 %v5751, %v5752
        %v5755 = vsel %vm989, %v5747, %v5754
        %v5756 = vrot.slane %v5751, 4
        %v5758 = vshrl.u32 %v5605, 16
        %v5760 = vrot.slane %v5758, 7
        %v5761 = vshll.u32 %v5605, 16
        %v5763 = vor.u32 %v5760, %v5761
        %v5764 = vrot.slane %v5760, 4
        %v5766 = vshrl.u32 %v5606, 16
        %v5768 = vrot.slane %v5766, 7
        %v5769 = vshll.u32 %v5606, 16
        %v5771 = vor.u32 %v5768, %v5769
        %v5772 = vsel %vm989, %v5764, %v5771
        %v5773 = vrot.slane %v5768, 4
        %v5775 = vshrl.u32 %v5607, 16
        %v5777 = vrot.slane %v5775, 7
        %v5778 = vshll.u32 %v5607, 16
        %v5780 = vor.u32 %v5777, %v5778
        %v5781 = vrot.slane %v5777, 4
        %v5783 = vshrl.u32 %v5608, 16
        %v5785 = vrot.slane %v5783, 7
        %v5786 = vshll.u32 %v5608, 16
        %v5788 = vor.u32 %v5785, %v5786
        %v5789 = vsel %vm989, %v5781, %v5788
        %v5790 = vrot.slane %v5785, 4
        %v5792 = vshrl.u32 %v5609, 16
        %v5794 = vrot.slane %v5792, 7
        %v5795 = vshll.u32 %v5609, 16
        %v5797 = vor.u32 %v5794, %v5795
        %v5798 = vrot.slane %v5794, 4
        %v5800 = vshrl.u32 %v5610, 16
        %v5802 = vrot.slane %v5800, 7
        %v5803 = vshll.u32 %v5610, 16
        %v5805 = vor.u32 %v5802, %v5803
        %v5806 = vsel %vm989, %v5798, %v5805
        %v5807 = vrot.slane %v5802, 4
        %v5809 = vshrl.u32 %v5611, 16
        %v5811 = vrot.slane %v5809, 7
        %v5812 = vshll.u32 %v5611, 16
        %v5814 = vor.u32 %v5811, %v5812
        %v5815 = vrot.slane %v5811, 4
        %v5817 = vshrl.u32 %v5612, 16
        %v5819 = vrot.slane %v5817, 7
        %v5820 = vshll.u32 %v5612, 16
        %v5822 = vor.u32 %v5819, %v5820
        %v5823 = vsel %vm989, %v5815, %v5822
        %v5824 = vrot.slane %v5819, 4
        %v5826 = vshrl.u32 %v5613, 16
        %v5828 = vrot.slane %v5826, 7
        %v5829 = vshll.u32 %v5613, 16
        %v5831 = vor.u32 %v5828, %v5829
        %v5832 = vrot.slane %v5828, 4
        %v5834 = vshrl.u32 %v5614, 16
        %v5836 = vrot.slane %v5834, 7
        %v5837 = vshll.u32 %v5614, 16
        %v5839 = vor.u32 %v5836, %v5837
        %v5840 = vsel %vm989, %v5832, %v5839
        %v5841 = vrot.slane %v5836, 4
        %v5843 = vshrl.u32 %v5615, 16
        %v5845 = vrot.slane %v5843, 7
        %v5846 = vshll.u32 %v5615, 16
        %v5848 = vor.u32 %v5845, %v5846
        %v5849 = vrot.slane %v5845, 4
        %v5851 = vshrl.u32 %v5616, 16
        %v5853 = vrot.slane %v5851, 7
        %v5854 = vshll.u32 %v5616, 16
        %v5856 = vor.u32 %v5853, %v5854
        %v5857 = vsel %vm989, %v5849, %v5856
        %v5858 = vrot.slane %v5853, 4
        %v5860 = vshrl.u32 %v5617, 16
        %v5862 = vrot.slane %v5860, 7
        %v5863 = vshll.u32 %v5617, 16
        %v5865 = vor.u32 %v5862, %v5863
        %v5866 = vrot.slane %v5862, 4
        %v5868 = vshrl.u32 %v5618, 16
        %v5870 = vrot.slane %v5868, 7
        %v5871 = vshll.u32 %v5618, 16
        %v5873 = vor.u32 %v5870, %v5871
        %v5874 = vsel %vm989, %v5866, %v5873
        %v5875 = vrot.slane %v5870, 4
        %v5877 = vshrl.u32 %v5619, 16
        %v5879 = vrot.slane %v5877, 7
        %v5880 = vshll.u32 %v5619, 16
        %v5882 = vor.u32 %v5879, %v5880
        %v5883 = vrot.slane %v5879, 4
        %v5885 = vshrl.u32 %v5620, 16
        %v5887 = vrot.slane %v5885, 7
        %v5888 = vshll.u32 %v5620, 16
        %v5890 = vor.u32 %v5887, %v5888
        %v5891 = vsel %vm989, %v5883, %v5890
        %v5892 = vrot.slane %v5887, 4
        %v5941 = vsel %vm1312, %v5627, %v2295
        %5942 = vst [vmem:[%s1310] sm:$0xf] %v5941
        %5943 = vst [vmem:[%s1310 + $0x4] sm:$0xf] %v5636
        %v5944 = vld [vmem:[%s1310 + $0x8] sm:$0x1]
        %v5945 = vsel %vm780, %v5637, %v5944
        %5946 = vst [vmem:[%s1310 + $0x8] sm:$0x1] %v5945
        %v5947 = vld [vmem:[%s1310 + $0xc] sm:$0xf]
        %v5948 = vsel %vm1312, %v5644, %v5947
        %5949 = vst [vmem:[%s1310 + $0xc] sm:$0xf] %v5948
        %5950 = vst [vmem:[%s1310 + $0x10] sm:$0xf] %v5653
        %v5951 = vld [vmem:[%s1310 + $0x14] sm:$0x1]
        %v5952 = vsel %vm780, %v5654, %v5951
        %5953 = vst [vmem:[%s1310 + $0x14] sm:$0x1] %v5952
        %v5954 = vld [vmem:[%s1310 + $0x18] sm:$0xf]
        %v5955 = vsel %vm1312, %v5661, %v5954
        %5956 = vst [vmem:[%s1310 + $0x18] sm:$0xf] %v5955
        %5957 = vst [vmem:[%s1310 + $0x1c] sm:$0xf] %v5670
        %v5958 = vld [vmem:[%s1310 + $0x20] sm:$0x1]
        %v5959 = vsel %vm780, %v5671, %v5958
        %5960 = vst [vmem:[%s1310 + $0x20] sm:$0x1] %v5959
        %v5961 = vld [vmem:[%s1310 + $0x24] sm:$0xf]
        %v5962 = vsel %vm1312, %v5678, %v5961
        %5963 = vst [vmem:[%s1310 + $0x24] sm:$0xf] %v5962
        %5964 = vst [vmem:[%s1310 + $0x28] sm:$0xf] %v5687
        %v5965 = vld [vmem:[%s1310 + $0x2c] sm:$0x1]
        %v5966 = vsel %vm780, %v5688, %v5965
        %5967 = vst [vmem:[%s1310 + $0x2c] sm:$0x1] %v5966
        %v5968 = vld [vmem:[%s1310 + $0x30] sm:$0xf]
        %v5969 = vsel %vm1312, %v5695, %v5968
        %5970 = vst [vmem:[%s1310 + $0x30] sm:$0xf] %v5969
        %5971 = vst [vmem:[%s1310 + $0x34] sm:$0xf] %v5704
        %v5972 = vld [vmem:[%s1310 + $0x38] sm:$0x1]
        %v5973 = vsel %vm780, %v5705, %v5972
        %5974 = vst [vmem:[%s1310 + $0x38] sm:$0x1] %v5973
        %v5975 = vld [vmem:[%s1310 + $0x3c] sm:$0xf]
        %v5976 = vsel %vm1312, %v5712, %v5975
        %5977 = vst [vmem:[%s1310 + $0x3c] sm:$0xf] %v5976
        %5978 = vst [vmem:[%s1310 + $0x40] sm:$0xf] %v5721
        %v5979 = vld [vmem:[%s1310 + $0x44] sm:$0x1]
        %v5980 = vsel %vm780, %v5722, %v5979
        %5981 = vst [vmem:[%s1310 + $0x44] sm:$0x1] %v5980
        %v5982 = vld [vmem:[%s1310 + $0x48] sm:$0xf]
        %v5983 = vsel %vm1312, %v5729, %v5982
        %5984 = vst [vmem:[%s1310 + $0x48] sm:$0xf] %v5983
        %5985 = vst [vmem:[%s1310 + $0x4c] sm:$0xf] %v5738
        %v5986 = vld [vmem:[%s1310 + $0x50] sm:$0x1]
        %v5987 = vsel %vm780, %v5739, %v5986
        %5988 = vst [vmem:[%s1310 + $0x50] sm:$0x1] %v5987
        %v5989 = vld [vmem:[%s1310 + $0x54] sm:$0xf]
        %v5990 = vsel %vm1312, %v5746, %v5989
        %5991 = vst [vmem:[%s1310 + $0x54] sm:$0xf] %v5990
        %5992 = vst [vmem:[%s1310 + $0x58] sm:$0xf] %v5755
        %v5993 = vld [vmem:[%s1310 + $0x5c] sm:$0x1]
        %v5994 = vsel %vm780, %v5756, %v5993
        %5995 = vst [vmem:[%s1310 + $0x5c] sm:$0x1] %v5994
        %v5996 = vld [vmem:[%s1310 + $0x60] sm:$0xf]
        %v5997 = vsel %vm1312, %v5763, %v5996
        %5998 = vst [vmem:[%s1310 + $0x60] sm:$0xf] %v5997
        %5999 = vst [vmem:[%s1310 + $0x64] sm:$0xf] %v5772
        %v6000 = vld [vmem:[%s1310 + $0x68] sm:$0x1]
        %v6001 = vsel %vm780, %v5773, %v6000
        %6002 = vst [vmem:[%s1310 + $0x68] sm:$0x1] %v6001
        %v6003 = vld [vmem:[%s1310 + $0x6c] sm:$0xf]
        %v6004 = vsel %vm1312, %v5780, %v6003
        %6005 = vst [vmem:[%s1310 + $0x6c] sm:$0xf] %v6004
        %6006 = vst [vmem:[%s1310 + $0x70] sm:$0xf] %v5789
        %v6007 = vld [vmem:[%s1310 + $0x74] sm:$0x1]
        %v6008 = vsel %vm780, %v5790, %v6007
        %6009 = vst [vmem:[%s1310 + $0x74] sm:$0x1] %v6008
        %v6010 = vld [vmem:[%s1310 + $0x78] sm:$0xf]
        %v6011 = vsel %vm1312, %v5797, %v6010
        %6012 = vst [vmem:[%s1310 + $0x78] sm:$0xf] %v6011
        %6013 = vst [vmem:[%s1310 + $0x7c] sm:$0xf] %v5806
        %v6014 = vld [vmem:[%s1310 + $0x80] sm:$0x1]
        %v6015 = vsel %vm780, %v5807, %v6014
        %6016 = vst [vmem:[%s1310 + $0x80] sm:$0x1] %v6015
        %v6017 = vld [vmem:[%s1310 + $0x84] sm:$0xf]
        %v6018 = vsel %vm1312, %v5814, %v6017
        %6019 = vst [vmem:[%s1310 + $0x84] sm:$0xf] %v6018
        %6020 = vst [vmem:[%s1310 + $0x88] sm:$0xf] %v5823
        %v6021 = vld [vmem:[%s1310 + $0x8c] sm:$0x1]
        %v6022 = vsel %vm780, %v5824, %v6021
        %6023 = vst [vmem:[%s1310 + $0x8c] sm:$0x1] %v6022
        %v6024 = vld [vmem:[%s1310 + $0x90] sm:$0xf]
        %v6025 = vsel %vm1312, %v5831, %v6024
        %6026 = vst [vmem:[%s1310 + $0x90] sm:$0xf] %v6025
        %6027 = vst [vmem:[%s1310 + $0x94] sm:$0xf] %v5840
        %v6028 = vld [vmem:[%s1310 + $0x98] sm:$0x1]
        %v6029 = vsel %vm780, %v5841, %v6028
        %6030 = vst [vmem:[%s1310 + $0x98] sm:$0x1] %v6029
        %v6031 = vld [vmem:[%s1310 + $0x9c] sm:$0xf]
        %v6032 = vsel %vm1312, %v5848, %v6031
        %6033 = vst [vmem:[%s1310 + $0x9c] sm:$0xf] %v6032
        %6034 = vst [vmem:[%s1310 + $0xa0] sm:$0xf] %v5857
        %v6035 = vld [vmem:[%s1310 + $0xa4] sm:$0x1]
        %v6036 = vsel %vm780, %v5858, %v6035
        %6037 = vst [vmem:[%s1310 + $0xa4] sm:$0x1] %v6036
        %v6038 = vld [vmem:[%s1310 + $0xa8] sm:$0xf]
        %v6039 = vsel %vm1312, %v5865, %v6038
        %6040 = vst [vmem:[%s1310 + $0xa8] sm:$0xf] %v6039
        %6041 = vst [vmem:[%s1310 + $0xac] sm:$0xf] %v5874
        %v6042 = vld [vmem:[%s1310 + $0xb0] sm:$0x1]
        %v6043 = vsel %vm780, %v5875, %v6042
        %6044 = vst [vmem:[%s1310 + $0xb0] sm:$0x1] %v6043
        %v6045 = vld [vmem:[%s1310 + $0xb4] sm:$0xf]
        %v6046 = vsel %vm1312, %v5882, %v6045
        %6047 = vst [vmem:[%s1310 + $0xb4] sm:$0xf] %v6046
        %6048 = vst [vmem:[%s1310 + $0xb8] sm:$0xf] %v5891
        %v6049 = vld [vmem:[%s1310 + $0xbc] sm:$0x1]
        %v6050 = vsel %vm780, %v5892, %v6049
        %6051 = vst [vmem:[%s1310 + $0xbc] sm:$0x1] %v6050
        %v6052 = vld [vmem:[#allocation2] sm:$0xf]
        %v6053 = vld [vmem:[#allocation2 + $0x4] sm:$0xf]
        %v6054 = vld [vmem:[#allocation2 + $0xc] sm:$0xf]
        %v6055 = vld [vmem:[#allocation2 + $0x10] sm:$0xf]
        %v6056 = vld [vmem:[#allocation2 + $0x18] sm:$0xf]
        %v6057 = vld [vmem:[#allocation2 + $0x1c] sm:$0xf]
        %v6058 = vld [vmem:[#allocation2 + $0x24] sm:$0xf]
        %v6059 = vld [vmem:[#allocation2 + $0x28] sm:$0xf]
        %v6060 = vld [vmem:[#allocation2 + $0x30] sm:$0xf]
        %v6061 = vld [vmem:[#allocation2 + $0x34] sm:$0xf]
        %v6062 = vld [vmem:[#allocation2 + $0x3c] sm:$0xf]
        %v6063 = vld [vmem:[#allocation2 + $0x40] sm:$0xf]
        %v6064 = vld [vmem:[#allocation2 + $0x48] sm:$0xf]
        %v6065 = vld [vmem:[#allocation2 + $0x4c] sm:$0xf]
        %v6066 = vld [vmem:[#allocation2 + $0x54] sm:$0xf]
        %v6067 = vld [vmem:[#allocation2 + $0x58] sm:$0xf]
        %v6068 = vld [vmem:[#allocation2 + $0x60] sm:$0xf]
        %v6069 = vld [vmem:[#allocation2 + $0x64] sm:$0xf]
        %v6070 = vld [vmem:[#allocation2 + $0x6c] sm:$0xf]
        %v6071 = vld [vmem:[#allocation2 + $0x70] sm:$0xf]
        %v6072 = vld [vmem:[#allocation2 + $0x78] sm:$0xf]
        %v6073 = vld [vmem:[#allocation2 + $0x7c] sm:$0xf]
        %v6074 = vld [vmem:[#allocation2 + $0x84] sm:$0xf]
        %v6075 = vld [vmem:[#allocation2 + $0x88] sm:$0xf]
        %v6076 = vld [vmem:[#allocation2 + $0x90] sm:$0xf]
        %v6077 = vld [vmem:[#allocation2 + $0x94] sm:$0xf]
        %v6078 = vld [vmem:[#allocation2 + $0x9c] sm:$0xf]
        %v6079 = vld [vmem:[#allocation2 + $0xa0] sm:$0xf]
        %v6080 = vld [vmem:[#allocation2 + $0xa8] sm:$0xf]
        %v6081 = vld [vmem:[#allocation2 + $0xac] sm:$0xf]
        %v6082 = vld [vmem:[#allocation2 + $0xb4] sm:$0xf]
        %v6083 = vld [vmem:[#allocation2 + $0xb8] sm:$0xf]
        %v6084 = vld [vmem:[#allocation2 + $0x8] sm:$0x1]
        %v6085 = vld [vmem:[#allocation2 + $0x14] sm:$0x1]
        %v6086 = vld [vmem:[#allocation2 + $0x20] sm:$0x1]
        %v6087 = vld [vmem:[#allocation2 + $0x2c] sm:$0x1]
        %v6088 = vld [vmem:[#allocation2 + $0x38] sm:$0x1]
        %v6089 = vld [vmem:[#allocation2 + $0x44] sm:$0x1]
        %v6090 = vld [vmem:[#allocation2 + $0x50] sm:$0x1]
        %v6091 = vld [vmem:[#allocation2 + $0x5c] sm:$0x1]
        %v6092 = vld [vmem:[#allocation2 + $0x68] sm:$0x1]
        %v6093 = vld [vmem:[#allocation2 + $0x74] sm:$0x1]
        %v6094 = vld [vmem:[#allocation2 + $0x80] sm:$0x1]
        %v6095 = vld [vmem:[#allocation2 + $0x8c] sm:$0x1]
        %v6096 = vld [vmem:[#allocation2 + $0x98] sm:$0x1]
        %v6097 = vld [vmem:[#allocation2 + $0xa4] sm:$0x1]
        %v6098 = vld [vmem:[#allocation2 + $0xb0] sm:$0x1]
        %v6099 = vld [vmem:[#allocation2 + $0xbc] sm:$0x1]
        %v6101 = vshrl.u32 %v6052, 16
        %v6103 = vrot.slane %v6101, 4
        %v6104 = vshll.u32 %v6052, 16
        %v6106 = vrot.slane %v6104, 5
        %v6107 = vor.u32 %v6103, %v6106
        %v6108 = vrot.slane %v6107, 4
        %v6110 = vshll.u32 %v6053, 16
        %v6112 = vrot.slane %v6110, 5
        %v6113 = vsel %vm1475, %v6108, %v6112
        %v6114 = vshrl.u32 %v6053, 16
        %v6116 = vrot.slane %v6114, 4
        %v6117 = vor.u32 %v6116, %v6112
        %v6118 = vrot.slane %v6117, 4
        %v6120 = vshll.u32 %v6084, 16
        %v6122 = vrot.slane %v6120, 5
        %v6123 = vsel %vm1475, %v6118, %v6122
        %v6125 = vshrl.u32 %v6054, 16
        %v6127 = vrot.slane %v6125, 4
        %v6128 = vshll.u32 %v6054, 16
        %v6130 = vrot.slane %v6128, 5
        %v6131 = vor.u32 %v6127, %v6130
        %v6132 = vrot.slane %v6131, 4
        %v6134 = vshll.u32 %v6055, 16
        %v6136 = vrot.slane %v6134, 5
        %v6137 = vsel %vm1475, %v6132, %v6136
        %v6138 = vshrl.u32 %v6055, 16
        %v6140 = vrot.slane %v6138, 4
        %v6141 = vor.u32 %v6140, %v6136
        %v6142 = vrot.slane %v6141, 4
        %v6144 = vshll.u32 %v6085, 16
        %v6146 = vrot.slane %v6144, 5
        %v6147 = vsel %vm1475, %v6142, %v6146
        %v6149 = vshrl.u32 %v6056, 16
        %v6151 = vrot.slane %v6149, 4
        %v6152 = vshll.u32 %v6056, 16
        %v6154 = vrot.slane %v6152, 5
        %v6155 = vor.u32 %v6151, %v6154
        %v6156 = vrot.slane %v6155, 4
        %v6158 = vshll.u32 %v6057, 16
        %v6160 = vrot.slane %v6158, 5
        %v6161 = vsel %vm1475, %v6156, %v6160
        %v6162 = vshrl.u32 %v6057, 16
        %v6164 = vrot.slane %v6162, 4
        %v6165 = vor.u32 %v6164, %v6160
        %v6166 = vrot.slane %v6165, 4
        %v6168 = vshll.u32 %v6086, 16
        %v6170 = vrot.slane %v6168, 5
        %v6171 = vsel %vm1475, %v6166, %v6170
        %v6173 = vshrl.u32 %v6058, 16
        %v6175 = vrot.slane %v6173, 4
        %v6176 = vshll.u32 %v6058, 16
        %v6178 = vrot.slane %v6176, 5
        %v6179 = vor.u32 %v6175, %v6178
        %v6180 = vrot.slane %v6179, 4
        %v6182 = vshll.u32 %v6059, 16
        %v6184 = vrot.slane %v6182, 5
        %v6185 = vsel %vm1475, %v6180, %v6184
        %v6186 = vshrl.u32 %v6059, 16
        %v6188 = vrot.slane %v6186, 4
        %v6189 = vor.u32 %v6188, %v6184
        %v6190 = vrot.slane %v6189, 4
        %v6192 = vshll.u32 %v6087, 16
        %v6194 = vrot.slane %v6192, 5
        %v6195 = vsel %vm1475, %v6190, %v6194
        %v6197 = vshrl.u32 %v6060, 16
        %v6199 = vrot.slane %v6197, 4
        %v6200 = vshll.u32 %v6060, 16
        %v6202 = vrot.slane %v6200, 5
        %v6203 = vor.u32 %v6199, %v6202
        %v6204 = vrot.slane %v6203, 4
        %v6206 = vshll.u32 %v6061, 16
        %v6208 = vrot.slane %v6206, 5
        %v6209 = vsel %vm1475, %v6204, %v6208
        %v6210 = vshrl.u32 %v6061, 16
        %v6212 = vrot.slane %v6210, 4
        %v6213 = vor.u32 %v6212, %v6208
        %v6214 = vrot.slane %v6213, 4
        %v6216 = vshll.u32 %v6088, 16
        %v6218 = vrot.slane %v6216, 5
        %v6219 = vsel %vm1475, %v6214, %v6218
        %v6221 = vshrl.u32 %v6062, 16
        %v6223 = vrot.slane %v6221, 4
        %v6224 = vshll.u32 %v6062, 16
        %v6226 = vrot.slane %v6224, 5
        %v6227 = vor.u32 %v6223, %v6226
        %v6228 = vrot.slane %v6227, 4
        %v6230 = vshll.u32 %v6063, 16
        %v6232 = vrot.slane %v6230, 5
        %v6233 = vsel %vm1475, %v6228, %v6232
        %v6234 = vshrl.u32 %v6063, 16
        %v6236 = vrot.slane %v6234, 4
        %v6237 = vor.u32 %v6236, %v6232
        %v6238 = vrot.slane %v6237, 4
        %v6240 = vshll.u32 %v6089, 16
        %v6242 = vrot.slane %v6240, 5
        %v6243 = vsel %vm1475, %v6238, %v6242
        %v6245 = vshrl.u32 %v6064, 16
        %v6247 = vrot.slane %v6245, 4
        %v6248 = vshll.u32 %v6064, 16
        %v6250 = vrot.slane %v6248, 5
        %v6251 = vor.u32 %v6247, %v6250
        %v6252 = vrot.slane %v6251, 4
        %v6254 = vshll.u32 %v6065, 16
        %v6256 = vrot.slane %v6254, 5
        %v6257 = vsel %vm1475, %v6252, %v6256
        %v6258 = vshrl.u32 %v6065, 16
        %v6260 = vrot.slane %v6258, 4
        %v6261 = vor.u32 %v6260, %v6256
        %v6262 = vrot.slane %v6261, 4
        %v6264 = vshll.u32 %v6090, 16
        %v6266 = vrot.slane %v6264, 5
        %v6267 = vsel %vm1475, %v6262, %v6266
        %v6269 = vshrl.u32 %v6066, 16
        %v6271 = vrot.slane %v6269, 4
        %v6272 = vshll.u32 %v6066, 16
        %v6274 = vrot.slane %v6272, 5
        %v6275 = vor.u32 %v6271, %v6274
        %v6276 = vrot.slane %v6275, 4
        %v6278 = vshll.u32 %v6067, 16
        %v6280 = vrot.slane %v6278, 5
        %v6281 = vsel %vm1475, %v6276, %v6280
        %v6282 = vshrl.u32 %v6067, 16
        %v6284 = vrot.slane %v6282, 4
        %v6285 = vor.u32 %v6284, %v6280
        %v6286 = vrot.slane %v6285, 4
        %v6288 = vshll.u32 %v6091, 16
        %v6290 = vrot.slane %v6288, 5
        %v6291 = vsel %vm1475, %v6286, %v6290
        %v6293 = vshrl.u32 %v6068, 16
        %v6295 = vrot.slane %v6293, 4
        %v6296 = vshll.u32 %v6068, 16
        %v6298 = vrot.slane %v6296, 5
        %v6299 = vor.u32 %v6295, %v6298
        %v6300 = vrot.slane %v6299, 4
        %v6302 = vshll.u32 %v6069, 16
        %v6304 = vrot.slane %v6302, 5
        %v6305 = vsel %vm1475, %v6300, %v6304
        %v6306 = vshrl.u32 %v6069, 16
        %v6308 = vrot.slane %v6306, 4
        %v6309 = vor.u32 %v6308, %v6304
        %v6310 = vrot.slane %v6309, 4
        %v6312 = vshll.u32 %v6092, 16
        %v6314 = vrot.slane %v6312, 5
        %v6315 = vsel %vm1475, %v6310, %v6314
        %v6317 = vshrl.u32 %v6070, 16
        %v6319 = vrot.slane %v6317, 4
        %v6320 = vshll.u32 %v6070, 16
        %v6322 = vrot.slane %v6320, 5
        %v6323 = vor.u32 %v6319, %v6322
        %v6324 = vrot.slane %v6323, 4
        %v6326 = vshll.u32 %v6071, 16
        %v6328 = vrot.slane %v6326, 5
        %v6329 = vsel %vm1475, %v6324, %v6328
        %v6330 = vshrl.u32 %v6071, 16
        %v6332 = vrot.slane %v6330, 4
        %v6333 = vor.u32 %v6332, %v6328
        %v6334 = vrot.slane %v6333, 4
        %v6336 = vshll.u32 %v6093, 16
        %v6338 = vrot.slane %v6336, 5
        %v6339 = vsel %vm1475, %v6334, %v6338
        %v6341 = vshrl.u32 %v6072, 16
        %v6343 = vrot.slane %v6341, 4
        %v6344 = vshll.u32 %v6072, 16
        %v6346 = vrot.slane %v6344, 5
        %v6347 = vor.u32 %v6343, %v6346
        %v6348 = vrot.slane %v6347, 4
        %v6350 = vshll.u32 %v6073, 16
        %v6352 = vrot.slane %v6350, 5
        %v6353 = vsel %vm1475, %v6348, %v6352
        %v6354 = vshrl.u32 %v6073, 16
        %v6356 = vrot.slane %v6354, 4
        %v6357 = vor.u32 %v6356, %v6352
        %v6358 = vrot.slane %v6357, 4
        %v6360 = vshll.u32 %v6094, 16
        %v6362 = vrot.slane %v6360, 5
        %v6363 = vsel %vm1475, %v6358, %v6362
        %v6365 = vshrl.u32 %v6074, 16
        %v6367 = vrot.slane %v6365, 4
        %v6368 = vshll.u32 %v6074, 16
        %v6370 = vrot.slane %v6368, 5
        %v6371 = vor.u32 %v6367, %v6370
        %v6372 = vrot.slane %v6371, 4
        %v6374 = vshll.u32 %v6075, 16
        %v6376 = vrot.slane %v6374, 5
        %v6377 = vsel %vm1475, %v6372, %v6376
        %v6378 = vshrl.u32 %v6075, 16
        %v6380 = vrot.slane %v6378, 4
        %v6381 = vor.u32 %v6380, %v6376
        %v6382 = vrot.slane %v6381, 4
        %v6384 = vshll.u32 %v6095, 16
        %v6386 = vrot.slane %v6384, 5
        %v6387 = vsel %vm1475, %v6382, %v6386
        %v6389 = vshrl.u32 %v6076, 16
        %v6391 = vrot.slane %v6389, 4
        %v6392 = vshll.u32 %v6076, 16
        %v6394 = vrot.slane %v6392, 5
        %v6395 = vor.u32 %v6391, %v6394
        %v6396 = vrot.slane %v6395, 4
        %v6398 = vshll.u32 %v6077, 16
        %v6400 = vrot.slane %v6398, 5
        %v6401 = vsel %vm1475, %v6396, %v6400
        %v6402 = vshrl.u32 %v6077, 16
        %v6404 = vrot.slane %v6402, 4
        %v6405 = vor.u32 %v6404, %v6400
        %v6406 = vrot.slane %v6405, 4
        %v6408 = vshll.u32 %v6096, 16
        %v6410 = vrot.slane %v6408, 5
        %v6411 = vsel %vm1475, %v6406, %v6410
        %v6413 = vshrl.u32 %v6078, 16
        %v6415 = vrot.slane %v6413, 4
        %v6416 = vshll.u32 %v6078, 16
        %v6418 = vrot.slane %v6416, 5
        %v6419 = vor.u32 %v6415, %v6418
        %v6420 = vrot.slane %v6419, 4
        %v6422 = vshll.u32 %v6079, 16
        %v6424 = vrot.slane %v6422, 5
        %v6425 = vsel %vm1475, %v6420, %v6424
        %v6426 = vshrl.u32 %v6079, 16
        %v6428 = vrot.slane %v6426, 4
        %v6429 = vor.u32 %v6428, %v6424
        %v6430 = vrot.slane %v6429, 4
        %v6432 = vshll.u32 %v6097, 16
        %v6434 = vrot.slane %v6432, 5
        %v6435 = vsel %vm1475, %v6430, %v6434
        %v6437 = vshrl.u32 %v6080, 16
        %v6439 = vrot.slane %v6437, 4
        %v6440 = vshll.u32 %v6080, 16
        %v6442 = vrot.slane %v6440, 5
        %v6443 = vor.u32 %v6439, %v6442
        %v6444 = vrot.slane %v6443, 4
        %v6446 = vshll.u32 %v6081, 16
        %v6448 = vrot.slane %v6446, 5
        %v6449 = vsel %vm1475, %v6444, %v6448
        %v6450 = vshrl.u32 %v6081, 16
        %v6452 = vrot.slane %v6450, 4
        %v6453 = vor.u32 %v6452, %v6448
        %v6454 = vrot.slane %v6453, 4
        %v6456 = vshll.u32 %v6098, 16
        %v6458 = vrot.slane %v6456, 5
        %v6459 = vsel %vm1475, %v6454, %v6458
        %v6461 = vshrl.u32 %v6082, 16
        %v6463 = vrot.slane %v6461, 4
        %v6464 = vshll.u32 %v6082, 16
        %v6466 = vrot.slane %v6464, 5
        %v6467 = vor.u32 %v6463, %v6466
        %v6468 = vrot.slane %v6467, 4
        %v6470 = vshll.u32 %v6083, 16
        %v6472 = vrot.slane %v6470, 5
        %v6473 = vsel %vm1475, %v6468, %v6472
        %v6474 = vshrl.u32 %v6083, 16
        %v6476 = vrot.slane %v6474, 4
        %v6477 = vor.u32 %v6476, %v6472
        %v6478 = vrot.slane %v6477, 4
        %v6480 = vshll.u32 %v6099, 16
        %v6482 = vrot.slane %v6480, 5
        %v6483 = vsel %vm1475, %v6478, %v6482
        %v6484 = vld [vmem:[#allocation2] sm:$0xe]
        %v6485 = vld [vmem:[#allocation2 + $0xc] sm:$0xe]
        %v6486 = vld [vmem:[#allocation2 + $0x18] sm:$0xe]
        %v6487 = vld [vmem:[#allocation2 + $0x24] sm:$0xe]
        %v6488 = vld [vmem:[#allocation2 + $0x30] sm:$0xe]
        %v6489 = vld [vmem:[#allocation2 + $0x3c] sm:$0xe]
        %v6490 = vld [vmem:[#allocation2 + $0x48] sm:$0xe]
        %v6491 = vld [vmem:[#allocation2 + $0x54] sm:$0xe]
        %v6492 = vld [vmem:[#allocation2 + $0x60] sm:$0xe]
        %v6493 = vld [vmem:[#allocation2 + $0x6c] sm:$0xe]
        %v6494 = vld [vmem:[#allocation2 + $0x78] sm:$0xe]
        %v6495 = vld [vmem:[#allocation2 + $0x84] sm:$0xe]
        %v6496 = vld [vmem:[#allocation2 + $0x90] sm:$0xe]
        %v6497 = vld [vmem:[#allocation2 + $0x9c] sm:$0xe]
        %v6498 = vld [vmem:[#allocation2 + $0xa8] sm:$0xe]
        %v6499 = vld [vmem:[#allocation2 + $0xb4] sm:$0xe]
        %v6548 = vrot.slane %v6484, 5
        %v6549 = vrot.slane %v6548, 4
        %v6550 = vrot.slane %v6053, 5
        %v6551 = vsel %vm1926, %v6549, %v6550
        %v6552 = vrot.slane %v6550, 4
        %v6553 = vrot.slane %v6084, 5
        %v6554 = vsel %vm1926, %v6552, %v6553
        %v6555 = vrot.slane %v6485, 5
        %v6556 = vrot.slane %v6555, 4
        %v6557 = vrot.slane %v6055, 5
        %v6558 = vsel %vm1926, %v6556, %v6557
        %v6559 = vrot.slane %v6557, 4
        %v6560 = vrot.slane %v6085, 5
        %v6561 = vsel %vm1926, %v6559, %v6560
        %v6562 = vrot.slane %v6486, 5
        %v6563 = vrot.slane %v6562, 4
        %v6564 = vrot.slane %v6057, 5
        %v6565 = vsel %vm1926, %v6563, %v6564
        %v6566 = vrot.slane %v6564, 4
        %v6567 = vrot.slane %v6086, 5
        %v6568 = vsel %vm1926, %v6566, %v6567
        %v6569 = vrot.slane %v6487, 5
        %v6570 = vrot.slane %v6569, 4
        %v6571 = vrot.slane %v6059, 5
        %v6572 = vsel %vm1926, %v6570, %v6571
        %v6573 = vrot.slane %v6571, 4
        %v6574 = vrot.slane %v6087, 5
        %v6575 = vsel %vm1926, %v6573, %v6574
        %v6576 = vrot.slane %v6488, 5
        %v6577 = vrot.slane %v6576, 4
        %v6578 = vrot.slane %v6061, 5
        %v6579 = vsel %vm1926, %v6577, %v6578
        %v6580 = vrot.slane %v6578, 4
        %v6581 = vrot.slane %v6088, 5
        %v6582 = vsel %vm1926, %v6580, %v6581
        %v6583 = vrot.slane %v6489, 5
        %v6584 = vrot.slane %v6583, 4
        %v6585 = vrot.slane %v6063, 5
        %v6586 = vsel %vm1926, %v6584, %v6585
        %v6587 = vrot.slane %v6585, 4
        %v6588 = vrot.slane %v6089, 5
        %v6589 = vsel %vm1926, %v6587, %v6588
        %v6590 = vrot.slane %v6490, 5
        %v6591 = vrot.slane %v6590, 4
        %v6592 = vrot.slane %v6065, 5
        %v6593 = vsel %vm1926, %v6591, %v6592
        %v6594 = vrot.slane %v6592, 4
        %v6595 = vrot.slane %v6090, 5
        %v6596 = vsel %vm1926, %v6594, %v6595
        %v6597 = vrot.slane %v6491, 5
        %v6598 = vrot.slane %v6597, 4
        %v6599 = vrot.slane %v6067, 5
        %v6600 = vsel %vm1926, %v6598, %v6599
        %v6601 = vrot.slane %v6599, 4
        %v6602 = vrot.slane %v6091, 5
        %v6603 = vsel %vm1926, %v6601, %v6602
        %v6604 = vrot.slane %v6492, 5
        %v6605 = vrot.slane %v6604, 4
        %v6606 = vrot.slane %v6069, 5
        %v6607 = vsel %vm1926, %v6605, %v6606
        %v6608 = vrot.slane %v6606, 4
        %v6609 = vrot.slane %v6092, 5
        %v6610 = vsel %vm1926, %v6608, %v6609
        %v6611 = vrot.slane %v6493, 5
        %v6612 = vrot.slane %v6611, 4
        %v6613 = vrot.slane %v6071, 5
        %v6614 = vsel %vm1926, %v6612, %v6613
        %v6615 = vrot.slane %v6613, 4
        %v6616 = vrot.slane %v6093, 5
        %v6617 = vsel %vm1926, %v6615, %v6616
        %v6618 = vrot.slane %v6494, 5
        %v6619 = vrot.slane %v6618, 4
        %v6620 = vrot.slane %v6073, 5
        %v6621 = vsel %vm1926, %v6619, %v6620
        %v6622 = vrot.slane %v6620, 4
        %v6623 = vrot.slane %v6094, 5
        %v6624 = vsel %vm1926, %v6622, %v6623
        %v6625 = vrot.slane %v6495, 5
        %v6626 = vrot.slane %v6625, 4
        %v6627 = vrot.slane %v6075, 5
        %v6628 = vsel %vm1926, %v6626, %v6627
        %v6629 = vrot.slane %v6627, 4
        %v6630 = vrot.slane %v6095, 5
        %v6631 = vsel %vm1926, %v6629, %v6630
        %v6632 = vrot.slane %v6496, 5
        %v6633 = vrot.slane %v6632, 4
        %v6634 = vrot.slane %v6077, 5
        %v6635 = vsel %vm1926, %v6633, %v6634
        %v6636 = vrot.slane %v6634, 4
        %v6637 = vrot.slane %v6096, 5
        %v6638 = vsel %vm1926, %v6636, %v6637
        %v6639 = vrot.slane %v6497, 5
        %v6640 = vrot.slane %v6639, 4
        %v6641 = vrot.slane %v6079, 5
        %v6642 = vsel %vm1926, %v6640, %v6641
        %v6643 = vrot.slane %v6641, 4
        %v6644 = vrot.slane %v6097, 5
        %v6645 = vsel %vm1926, %v6643, %v6644
        %v6646 = vrot.slane %v6498, 5
        %v6647 = vrot.slane %v6646, 4
        %v6648 = vrot.slane %v6081, 5
        %v6649 = vsel %vm1926, %v6647, %v6648
        %v6650 = vrot.slane %v6648, 4
        %v6651 = vrot.slane %v6098, 5
        %v6652 = vsel %vm1926, %v6650, %v6651
        %v6653 = vrot.slane %v6499, 5
        %v6654 = vrot.slane %v6653, 4
        %v6655 = vrot.slane %v6083, 5
        %v6656 = vsel %vm1926, %v6654, %v6655
        %v6657 = vrot.slane %v6655, 4
        %v6658 = vrot.slane %v6099, 5
        %v6659 = vsel %vm1926, %v6657, %v6658
        %v6676 = vunpack.c.l.b16 %v6052
        %v6677 = vunpack.c.l.b16 %v6053
        %v6678 = vunpack.c.l.b16 %v6054
        %v6679 = vunpack.c.l.b16 %v6055
        %v6680 = vunpack.c.l.b16 %v6056
        %v6681 = vunpack.c.l.b16 %v6057
        %v6682 = vunpack.c.l.b16 %v6058
        %v6683 = vunpack.c.l.b16 %v6059
        %v6684 = vunpack.c.l.b16 %v6060
        %v6685 = vunpack.c.l.b16 %v6061
        %v6686 = vunpack.c.l.b16 %v6062
        %v6687 = vunpack.c.l.b16 %v6063
        %v6688 = vunpack.c.l.b16 %v6064
        %v6689 = vunpack.c.l.b16 %v6065
        %v6690 = vunpack.c.l.b16 %v6066
        %v6691 = vunpack.c.l.b16 %v6067
        %v6692 = vunpack.c.l.b16 %v6068
        %v6693 = vunpack.c.l.b16 %v6069
        %v6694 = vunpack.c.l.b16 %v6070
        %v6695 = vunpack.c.l.b16 %v6071
        %v6696 = vunpack.c.l.b16 %v6072
        %v6697 = vunpack.c.l.b16 %v6073
        %v6698 = vunpack.c.l.b16 %v6074
        %v6699 = vunpack.c.l.b16 %v6075
        %v6700 = vunpack.c.l.b16 %v6076
        %v6701 = vunpack.c.l.b16 %v6077
        %v6702 = vunpack.c.l.b16 %v6078
        %v6703 = vunpack.c.l.b16 %v6079
        %v6704 = vunpack.c.l.b16 %v6080
        %v6705 = vunpack.c.l.b16 %v6081
        %v6706 = vunpack.c.l.b16 %v6082
        %v6707 = vunpack.c.l.b16 %v6083
        %v6708 = vpack.c.b16 %v6677, %v6676
        %v6709 = vpack.c.b16 %v6679, %v6678
        %v6710 = vpack.c.b16 %v6681, %v6680
        %v6711 = vpack.c.b16 %v6683, %v6682
        %v6712 = vpack.c.b16 %v6685, %v6684
        %v6713 = vpack.c.b16 %v6687, %v6686
        %v6714 = vpack.c.b16 %v6689, %v6688
        %v6715 = vpack.c.b16 %v6691, %v6690
        %v6716 = vpack.c.b16 %v6693, %v6692
        %v6717 = vpack.c.b16 %v6695, %v6694
        %v6718 = vpack.c.b16 %v6697, %v6696
        %v6719 = vpack.c.b16 %v6699, %v6698
        %v6720 = vpack.c.b16 %v6701, %v6700
        %v6721 = vpack.c.b16 %v6703, %v6702
        %v6722 = vpack.c.b16 %v6705, %v6704
        %v6723 = vpack.c.b16 %v6707, %v6706
        %v6740 = vunpack.c.l.b16 %v6113
        %v6741 = vunpack.c.l.b16 %v6123
        %v6742 = vunpack.c.l.b16 %v6137
        %v6743 = vunpack.c.l.b16 %v6147
        %v6744 = vunpack.c.l.b16 %v6161
        %v6745 = vunpack.c.l.b16 %v6171
        %v6746 = vunpack.c.l.b16 %v6185
        %v6747 = vunpack.c.l.b16 %v6195
        %v6748 = vunpack.c.l.b16 %v6209
        %v6749 = vunpack.c.l.b16 %v6219
        %v6750 = vunpack.c.l.b16 %v6233
        %v6751 = vunpack.c.l.b16 %v6243
        %v6752 = vunpack.c.l.b16 %v6257
        %v6753 = vunpack.c.l.b16 %v6267
        %v6754 = vunpack.c.l.b16 %v6281
        %v6755 = vunpack.c.l.b16 %v6291
        %v6756 = vunpack.c.l.b16 %v6305
        %v6757 = vunpack.c.l.b16 %v6315
        %v6758 = vunpack.c.l.b16 %v6329
        %v6759 = vunpack.c.l.b16 %v6339
        %v6760 = vunpack.c.l.b16 %v6353
        %v6761 = vunpack.c.l.b16 %v6363
        %v6762 = vunpack.c.l.b16 %v6377
        %v6763 = vunpack.c.l.b16 %v6387
        %v6764 = vunpack.c.l.b16 %v6401
        %v6765 = vunpack.c.l.b16 %v6411
        %v6766 = vunpack.c.l.b16 %v6425
        %v6767 = vunpack.c.l.b16 %v6435
        %v6768 = vunpack.c.l.b16 %v6449
        %v6769 = vunpack.c.l.b16 %v6459
        %v6770 = vunpack.c.l.b16 %v6473
        %v6771 = vunpack.c.l.b16 %v6483
        %v6772 = vpack.c.b16 %v6741, %v6740
        %v6773 = vpack.c.b16 %v6743, %v6742
        %v6774 = vpack.c.b16 %v6745, %v6744
        %v6775 = vpack.c.b16 %v6747, %v6746
        %v6776 = vpack.c.b16 %v6749, %v6748
        %v6777 = vpack.c.b16 %v6751, %v6750
        %v6778 = vpack.c.b16 %v6753, %v6752
        %v6779 = vpack.c.b16 %v6755, %v6754
        %v6780 = vpack.c.b16 %v6757, %v6756
        %v6781 = vpack.c.b16 %v6759, %v6758
        %v6782 = vpack.c.b16 %v6761, %v6760
        %v6783 = vpack.c.b16 %v6763, %v6762
        %v6784 = vpack.c.b16 %v6765, %v6764
        %v6785 = vpack.c.b16 %v6767, %v6766
        %v6786 = vpack.c.b16 %v6769, %v6768
        %v6787 = vpack.c.b16 %v6771, %v6770
        %v6804 = vunpack.c.l.b16 %v6551
        %v6805 = vunpack.c.l.b16 %v6554
        %v6806 = vunpack.c.l.b16 %v6558
        %v6807 = vunpack.c.l.b16 %v6561
        %v6808 = vunpack.c.l.b16 %v6565
        %v6809 = vunpack.c.l.b16 %v6568
        %v6810 = vunpack.c.l.b16 %v6572
        %v6811 = vunpack.c.l.b16 %v6575
        %v6812 = vunpack.c.l.b16 %v6579
        %v6813 = vunpack.c.l.b16 %v6582
        %v6814 = vunpack.c.l.b16 %v6586
        %v6815 = vunpack.c.l.b16 %v6589
        %v6816 = vunpack.c.l.b16 %v6593
        %v6817 = vunpack.c.l.b16 %v6596
        %v6818 = vunpack.c.l.b16 %v6600
        %v6819 = vunpack.c.l.b16 %v6603
        %v6820 = vunpack.c.l.b16 %v6607
        %v6821 = vunpack.c.l.b16 %v6610
        %v6822 = vunpack.c.l.b16 %v6614
        %v6823 = vunpack.c.l.b16 %v6617
        %v6824 = vunpack.c.l.b16 %v6621
        %v6825 = vunpack.c.l.b16 %v6624
        %v6826 = vunpack.c.l.b16 %v6628
        %v6827 = vunpack.c.l.b16 %v6631
        %v6828 = vunpack.c.l.b16 %v6635
        %v6829 = vunpack.c.l.b16 %v6638
        %v6830 = vunpack.c.l.b16 %v6642
        %v6831 = vunpack.c.l.b16 %v6645
        %v6832 = vunpack.c.l.b16 %v6649
        %v6833 = vunpack.c.l.b16 %v6652
        %v6834 = vunpack.c.l.b16 %v6656
        %v6835 = vunpack.c.l.b16 %v6659
        %v6836 = vpack.c.b16 %v6805, %v6804
        %v6837 = vpack.c.b16 %v6807, %v6806
        %v6838 = vpack.c.b16 %v6809, %v6808
        %v6839 = vpack.c.b16 %v6811, %v6810
        %v6840 = vpack.c.b16 %v6813, %v6812
        %v6841 = vpack.c.b16 %v6815, %v6814
        %v6842 = vpack.c.b16 %v6817, %v6816
        %v6843 = vpack.c.b16 %v6819, %v6818
        %v6844 = vpack.c.b16 %v6821, %v6820
        %v6845 = vpack.c.b16 %v6823, %v6822
        %v6846 = vpack.c.b16 %v6825, %v6824
        %v6847 = vpack.c.b16 %v6827, %v6826
        %v6848 = vpack.c.b16 %v6829, %v6828
        %v6849 = vpack.c.b16 %v6831, %v6830
        %v6850 = vpack.c.b16 %v6833, %v6832
        %v6851 = vpack.c.b16 %v6835, %v6834
        %v6868 = vld [vmem:[#allocation9] sm:$0xf]
        %v6869 = vld [vmem:[#allocation9 + $0x4] sm:$0xf]
        %v6870 = vld [vmem:[#allocation9 + $0x8] sm:$0xf]
        %v6871 = vld [vmem:[#allocation9 + $0xc] sm:$0xf]
        %v6872 = vld [vmem:[#allocation9 + $0x10] sm:$0xf]
        %v6873 = vld [vmem:[#allocation9 + $0x14] sm:$0xf]
        %v6874 = vld [vmem:[#allocation9 + $0x18] sm:$0xf]
        %v6875 = vld [vmem:[#allocation9 + $0x1c] sm:$0xf]
        %v6876 = vld [vmem:[#allocation9 + $0x20] sm:$0xf]
        %v6877 = vld [vmem:[#allocation9 + $0x24] sm:$0xf]
        %v6878 = vld [vmem:[#allocation9 + $0x28] sm:$0xf]
        %v6879 = vld [vmem:[#allocation9 + $0x2c] sm:$0xf]
        %v6880 = vld [vmem:[#allocation9 + $0x30] sm:$0xf]
        %v6881 = vld [vmem:[#allocation9 + $0x34] sm:$0xf]
        %v6882 = vld [vmem:[#allocation9 + $0x38] sm:$0xf]
        %v6883 = vld [vmem:[#allocation9 + $0x3c] sm:$0xf]
        %v6884 = vld [vmem:[#allocation9 + $0x40] sm:$0xf]
        %v6885 = vld [vmem:[#allocation9 + $0x44] sm:$0xf]
        %v6886 = vld [vmem:[#allocation9 + $0x48] sm:$0xf]
        %v6887 = vld [vmem:[#allocation9 + $0x4c] sm:$0xf]
        %v6888 = vld [vmem:[#allocation9 + $0x50] sm:$0xf]
        %v6889 = vld [vmem:[#allocation9 + $0x54] sm:$0xf]
        %v6890 = vld [vmem:[#allocation9 + $0x58] sm:$0xf]
        %v6891 = vld [vmem:[#allocation9 + $0x5c] sm:$0xf]
        %v6892 = vld [vmem:[#allocation9 + $0x60] sm:$0xf]
        %v6893 = vld [vmem:[#allocation9 + $0x64] sm:$0xf]
        %v6894 = vld [vmem:[#allocation9 + $0x68] sm:$0xf]
        %v6895 = vld [vmem:[#allocation9 + $0x6c] sm:$0xf]
        %v6896 = vld [vmem:[#allocation9 + $0x70] sm:$0xf]
        %v6897 = vld [vmem:[#allocation9 + $0x74] sm:$0xf]
        %v6898 = vld [vmem:[#allocation9 + $0x78] sm:$0xf]
        %v6899 = vld [vmem:[#allocation9 + $0x7c] sm:$0xf]
        %v6900 = vld [vmem:[#allocation9 + $0x80] sm:$0xf]
        %v6901 = vld [vmem:[#allocation9 + $0x84] sm:$0xf]
        %v6902 = vld [vmem:[#allocation9 + $0x88] sm:$0xf]
        %v6903 = vld [vmem:[#allocation9 + $0x8c] sm:$0xf]
        %v6904 = vld [vmem:[#allocation9 + $0x90] sm:$0xf]
        %v6905 = vld [vmem:[#allocation9 + $0x94] sm:$0xf]
        %v6906 = vld [vmem:[#allocation9 + $0x98] sm:$0xf]
        %v6907 = vld [vmem:[#allocation9 + $0x9c] sm:$0xf]
        %v6908 = vld [vmem:[#allocation9 + $0xa0] sm:$0xf]
        %v6909 = vld [vmem:[#allocation9 + $0xa4] sm:$0xf]
        %v6910 = vld [vmem:[#allocation9 + $0xa8] sm:$0xf]
        %v6911 = vld [vmem:[#allocation9 + $0xac] sm:$0xf]
        %v6912 = vld [vmem:[#allocation9 + $0xb0] sm:$0xf]
        %v6913 = vld [vmem:[#allocation9 + $0xb4] sm:$0xf]
        %v6914 = vld [vmem:[#allocation9 + $0xb8] sm:$0xf]
        %v6915 = vld [vmem:[#allocation9 + $0xbc] sm:$0xf]
        %v6916 = vld [vmem:[%s1310] sm:$0xf]
        %v6917 = vld [vmem:[%s1310 + $0x4] sm:$0xf]
        %v6918 = vld [vmem:[%s1310 + $0xc] sm:$0xf]
        %v6919 = vld [vmem:[%s1310 + $0x10] sm:$0xf]
        %v6920 = vld [vmem:[%s1310 + $0x18] sm:$0xf]
        %v6921 = vld [vmem:[%s1310 + $0x1c] sm:$0xf]
        %v6922 = vld [vmem:[%s1310 + $0x24] sm:$0xf]
        %v6923 = vld [vmem:[%s1310 + $0x28] sm:$0xf]
        %v6924 = vld [vmem:[%s1310 + $0x30] sm:$0xf]
        %v6925 = vld [vmem:[%s1310 + $0x34] sm:$0xf]
        %v6926 = vld [vmem:[%s1310 + $0x3c] sm:$0xf]
        %v6927 = vld [vmem:[%s1310 + $0x40] sm:$0xf]
        %v6928 = vld [vmem:[%s1310 + $0x48] sm:$0xf]
        %v6929 = vld [vmem:[%s1310 + $0x4c] sm:$0xf]
        %v6930 = vld [vmem:[%s1310 + $0x54] sm:$0xf]
        %v6931 = vld [vmem:[%s1310 + $0x58] sm:$0xf]
        %v6932 = vld [vmem:[%s1310 + $0x60] sm:$0xf]
        %v6933 = vld [vmem:[%s1310 + $0x64] sm:$0xf]
        %v6934 = vld [vmem:[%s1310 + $0x6c] sm:$0xf]
        %v6935 = vld [vmem:[%s1310 + $0x70] sm:$0xf]
        %v6936 = vld [vmem:[%s1310 + $0x78] sm:$0xf]
        %v6937 = vld [vmem:[%s1310 + $0x7c] sm:$0xf]
        %v6938 = vld [vmem:[%s1310 + $0x84] sm:$0xf]
        %v6939 = vld [vmem:[%s1310 + $0x88] sm:$0xf]
        %v6940 = vld [vmem:[%s1310 + $0x90] sm:$0xf]
        %v6941 = vld [vmem:[%s1310 + $0x94] sm:$0xf]
        %v6942 = vld [vmem:[%s1310 + $0x9c] sm:$0xf]
        %v6943 = vld [vmem:[%s1310 + $0xa0] sm:$0xf]
        %v6944 = vld [vmem:[%s1310 + $0xa8] sm:$0xf]
        %v6945 = vld [vmem:[%s1310 + $0xac] sm:$0xf]
        %v6946 = vld [vmem:[%s1310 + $0xb4] sm:$0xf]
        %v6947 = vld [vmem:[%s1310 + $0xb8] sm:$0xf]
        %v6948 = vld [vmem:[%s1310 + $0x8] sm:$0x1]
        %v6949 = vld [vmem:[%s1310 + $0x14] sm:$0x1]
        %v6950 = vld [vmem:[%s1310 + $0x20] sm:$0x1]
        %v6951 = vld [vmem:[%s1310 + $0x2c] sm:$0x1]
        %v6952 = vld [vmem:[%s1310 + $0x38] sm:$0x1]
        %v6953 = vld [vmem:[%s1310 + $0x44] sm:$0x1]
        %v6954 = vld [vmem:[%s1310 + $0x50] sm:$0x1]
        %v6955 = vld [vmem:[%s1310 + $0x5c] sm:$0x1]
        %v6956 = vld [vmem:[%s1310 + $0x68] sm:$0x1]
        %v6957 = vld [vmem:[%s1310 + $0x74] sm:$0x1]
        %v6958 = vld [vmem:[%s1310 + $0x80] sm:$0x1]
        %v6959 = vld [vmem:[%s1310 + $0x8c] sm:$0x1]
        %v6960 = vld [vmem:[%s1310 + $0x98] sm:$0x1]
        %v6961 = vld [vmem:[%s1310 + $0xa4] sm:$0x1]
        %v6962 = vld [vmem:[%s1310 + $0xb0] sm:$0x1]
        %v6963 = vld [vmem:[%s1310 + $0xbc] sm:$0x1]
        %v6965 = vshrl.u32 %v6916, 16
        %v6967 = vrot.slane %v6965, 4
        %v6968 = vshll.u32 %v6916, 16
        %v6970 = vrot.slane %v6968, 5
        %v6971 = vor.u32 %v6967, %v6970
        %v6972 = vrot.slane %v6971, 4
        %v6974 = vshll.u32 %v6917, 16
        %v6976 = vrot.slane %v6974, 5
        %v6977 = vsel %vm1475, %v6972, %v6976
        %v6978 = vshrl.u32 %v6917, 16
        %v6980 = vrot.slane %v6978, 4
        %v6981 = vor.u32 %v6980, %v6976
        %v6982 = vrot.slane %v6981, 4
        %v6984 = vshll.u32 %v6948, 16
        %v6986 = vrot.slane %v6984, 5
        %v6987 = vsel %vm1475, %v6982, %v6986
        %v6989 = vshrl.u32 %v6918, 16
        %v6991 = vrot.slane %v6989, 4
        %v6992 = vshll.u32 %v6918, 16
        %v6994 = vrot.slane %v6992, 5
        %v6995 = vor.u32 %v6991, %v6994
        %v6996 = vrot.slane %v6995, 4
        %v6998 = vshll.u32 %v6919, 16
        %v7000 = vrot.slane %v6998, 5
        %v7001 = vsel %vm1475, %v6996, %v7000
        %v7002 = vshrl.u32 %v6919, 16
        %v7004 = vrot.slane %v7002, 4
        %v7005 = vor.u32 %v7004, %v7000
        %v7006 = vrot.slane %v7005, 4
        %v7008 = vshll.u32 %v6949, 16
        %v7010 = vrot.slane %v7008, 5
        %v7011 = vsel %vm1475, %v7006, %v7010
        %v7013 = vshrl.u32 %v6920, 16
        %v7015 = vrot.slane %v7013, 4
        %v7016 = vshll.u32 %v6920, 16
        %v7018 = vrot.slane %v7016, 5
        %v7019 = vor.u32 %v7015, %v7018
        %v7020 = vrot.slane %v7019, 4
        %v7022 = vshll.u32 %v6921, 16
        %v7024 = vrot.slane %v7022, 5
        %v7025 = vsel %vm1475, %v7020, %v7024
        %v7026 = vshrl.u32 %v6921, 16
        %v7028 = vrot.slane %v7026, 4
        %v7029 = vor.u32 %v7028, %v7024
        %v7030 = vrot.slane %v7029, 4
        %v7032 = vshll.u32 %v6950, 16
        %v7034 = vrot.slane %v7032, 5
        %v7035 = vsel %vm1475, %v7030, %v7034
        %v7037 = vshrl.u32 %v6922, 16
        %v7039 = vrot.slane %v7037, 4
        %v7040 = vshll.u32 %v6922, 16
        %v7042 = vrot.slane %v7040, 5
        %v7043 = vor.u32 %v7039, %v7042
        %v7044 = vrot.slane %v7043, 4
        %v7046 = vshll.u32 %v6923, 16
        %v7048 = vrot.slane %v7046, 5
        %v7049 = vsel %vm1475, %v7044, %v7048
        %v7050 = vshrl.u32 %v6923, 16
        %v7052 = vrot.slane %v7050, 4
        %v7053 = vor.u32 %v7052, %v7048
        %v7054 = vrot.slane %v7053, 4
        %v7056 = vshll.u32 %v6951, 16
        %v7058 = vrot.slane %v7056, 5
        %v7059 = vsel %vm1475, %v7054, %v7058
        %v7061 = vshrl.u32 %v6924, 16
        %v7063 = vrot.slane %v7061, 4
        %v7064 = vshll.u32 %v6924, 16
        %v7066 = vrot.slane %v7064, 5
        %v7067 = vor.u32 %v7063, %v7066
        %v7068 = vrot.slane %v7067, 4
        %v7070 = vshll.u32 %v6925, 16
        %v7072 = vrot.slane %v7070, 5
        %v7073 = vsel %vm1475, %v7068, %v7072
        %v7074 = vshrl.u32 %v6925, 16
        %v7076 = vrot.slane %v7074, 4
        %v7077 = vor.u32 %v7076, %v7072
        %v7078 = vrot.slane %v7077, 4
        %v7080 = vshll.u32 %v6952, 16
        %v7082 = vrot.slane %v7080, 5
        %v7083 = vsel %vm1475, %v7078, %v7082
        %v7085 = vshrl.u32 %v6926, 16
        %v7087 = vrot.slane %v7085, 4
        %v7088 = vshll.u32 %v6926, 16
        %v7090 = vrot.slane %v7088, 5
        %v7091 = vor.u32 %v7087, %v7090
        %v7092 = vrot.slane %v7091, 4
        %v7094 = vshll.u32 %v6927, 16
        %v7096 = vrot.slane %v7094, 5
        %v7097 = vsel %vm1475, %v7092, %v7096
        %v7098 = vshrl.u32 %v6927, 16
        %v7100 = vrot.slane %v7098, 4
        %v7101 = vor.u32 %v7100, %v7096
        %v7102 = vrot.slane %v7101, 4
        %v7104 = vshll.u32 %v6953, 16
        %v7106 = vrot.slane %v7104, 5
        %v7107 = vsel %vm1475, %v7102, %v7106
        %v7109 = vshrl.u32 %v6928, 16
        %v7111 = vrot.slane %v7109, 4
        %v7112 = vshll.u32 %v6928, 16
        %v7114 = vrot.slane %v7112, 5
        %v7115 = vor.u32 %v7111, %v7114
        %v7116 = vrot.slane %v7115, 4
        %v7118 = vshll.u32 %v6929, 16
        %v7120 = vrot.slane %v7118, 5
        %v7121 = vsel %vm1475, %v7116, %v7120
        %v7122 = vshrl.u32 %v6929, 16
        %v7124 = vrot.slane %v7122, 4
        %v7125 = vor.u32 %v7124, %v7120
        %v7126 = vrot.slane %v7125, 4
        %v7128 = vshll.u32 %v6954, 16
        %v7130 = vrot.slane %v7128, 5
        %v7131 = vsel %vm1475, %v7126, %v7130
        %v7133 = vshrl.u32 %v6930, 16
        %v7135 = vrot.slane %v7133, 4
        %v7136 = vshll.u32 %v6930, 16
        %v7138 = vrot.slane %v7136, 5
        %v7139 = vor.u32 %v7135, %v7138
        %v7140 = vrot.slane %v7139, 4
        %v7142 = vshll.u32 %v6931, 16
        %v7144 = vrot.slane %v7142, 5
        %v7145 = vsel %vm1475, %v7140, %v7144
        %v7146 = vshrl.u32 %v6931, 16
        %v7148 = vrot.slane %v7146, 4
        %v7149 = vor.u32 %v7148, %v7144
        %v7150 = vrot.slane %v7149, 4
        %v7152 = vshll.u32 %v6955, 16
        %v7154 = vrot.slane %v7152, 5
        %v7155 = vsel %vm1475, %v7150, %v7154
        %v7157 = vshrl.u32 %v6932, 16
        %v7159 = vrot.slane %v7157, 4
        %v7160 = vshll.u32 %v6932, 16
        %v7162 = vrot.slane %v7160, 5
        %v7163 = vor.u32 %v7159, %v7162
        %v7164 = vrot.slane %v7163, 4
        %v7166 = vshll.u32 %v6933, 16
        %v7168 = vrot.slane %v7166, 5
        %v7169 = vsel %vm1475, %v7164, %v7168
        %v7170 = vshrl.u32 %v6933, 16
        %v7172 = vrot.slane %v7170, 4
        %v7173 = vor.u32 %v7172, %v7168
        %v7174 = vrot.slane %v7173, 4
        %v7176 = vshll.u32 %v6956, 16
        %v7178 = vrot.slane %v7176, 5
        %v7179 = vsel %vm1475, %v7174, %v7178
        %v7181 = vshrl.u32 %v6934, 16
        %v7183 = vrot.slane %v7181, 4
        %v7184 = vshll.u32 %v6934, 16
        %v7186 = vrot.slane %v7184, 5
        %v7187 = vor.u32 %v7183, %v7186
        %v7188 = vrot.slane %v7187, 4
        %v7190 = vshll.u32 %v6935, 16
        %v7192 = vrot.slane %v7190, 5
        %v7193 = vsel %vm1475, %v7188, %v7192
        %v7194 = vshrl.u32 %v6935, 16
        %v7196 = vrot.slane %v7194, 4
        %v7197 = vor.u32 %v7196, %v7192
        %v7198 = vrot.slane %v7197, 4
        %v7200 = vshll.u32 %v6957, 16
        %v7202 = vrot.slane %v7200, 5
        %v7203 = vsel %vm1475, %v7198, %v7202
        %v7205 = vshrl.u32 %v6936, 16
        %v7207 = vrot.slane %v7205, 4
        %v7208 = vshll.u32 %v6936, 16
        %v7210 = vrot.slane %v7208, 5
        %v7211 = vor.u32 %v7207, %v7210
        %v7212 = vrot.slane %v7211, 4
        %v7214 = vshll.u32 %v6937, 16
        %v7216 = vrot.slane %v7214, 5
        %v7217 = vsel %vm1475, %v7212, %v7216
        %v7218 = vshrl.u32 %v6937, 16
        %v7220 = vrot.slane %v7218, 4
        %v7221 = vor.u32 %v7220, %v7216
        %v7222 = vrot.slane %v7221, 4
        %v7224 = vshll.u32 %v6958, 16
        %v7226 = vrot.slane %v7224, 5
        %v7227 = vsel %vm1475, %v7222, %v7226
        %v7229 = vshrl.u32 %v6938, 16
        %v7231 = vrot.slane %v7229, 4
        %v7232 = vshll.u32 %v6938, 16
        %v7234 = vrot.slane %v7232, 5
        %v7235 = vor.u32 %v7231, %v7234
        %v7236 = vrot.slane %v7235, 4
        %v7238 = vshll.u32 %v6939, 16
        %v7240 = vrot.slane %v7238, 5
        %v7241 = vsel %vm1475, %v7236, %v7240
        %v7242 = vshrl.u32 %v6939, 16
        %v7244 = vrot.slane %v7242, 4
        %v7245 = vor.u32 %v7244, %v7240
        %v7246 = vrot.slane %v7245, 4
        %v7248 = vshll.u32 %v6959, 16
        %v7250 = vrot.slane %v7248, 5
        %v7251 = vsel %vm1475, %v7246, %v7250
        %v7253 = vshrl.u32 %v6940, 16
        %v7255 = vrot.slane %v7253, 4
        %v7256 = vshll.u32 %v6940, 16
        %v7258 = vrot.slane %v7256, 5
        %v7259 = vor.u32 %v7255, %v7258
        %v7260 = vrot.slane %v7259, 4
        %v7262 = vshll.u32 %v6941, 16
        %v7264 = vrot.slane %v7262, 5
        %v7265 = vsel %vm1475, %v7260, %v7264
        %v7266 = vshrl.u32 %v6941, 16
        %v7268 = vrot.slane %v7266, 4
        %v7269 = vor.u32 %v7268, %v7264
        %v7270 = vrot.slane %v7269, 4
        %v7272 = vshll.u32 %v6960, 16
        %v7274 = vrot.slane %v7272, 5
        %v7275 = vsel %vm1475, %v7270, %v7274
        %v7277 = vshrl.u32 %v6942, 16
        %v7279 = vrot.slane %v7277, 4
        %v7280 = vshll.u32 %v6942, 16
        %v7282 = vrot.slane %v7280, 5
        %v7283 = vor.u32 %v7279, %v7282
        %v7284 = vrot.slane %v7283, 4
        %v7286 = vshll.u32 %v6943, 16
        %v7288 = vrot.slane %v7286, 5
        %v7289 = vsel %vm1475, %v7284, %v7288
        %v7290 = vshrl.u32 %v6943, 16
        %v7292 = vrot.slane %v7290, 4
        %v7293 = vor.u32 %v7292, %v7288
        %v7294 = vrot.slane %v7293, 4
        %v7296 = vshll.u32 %v6961, 16
        %v7298 = vrot.slane %v7296, 5
        %v7299 = vsel %vm1475, %v7294, %v7298
        %v7301 = vshrl.u32 %v6944, 16
        %v7303 = vrot.slane %v7301, 4
        %v7304 = vshll.u32 %v6944, 16
        %v7306 = vrot.slane %v7304, 5
        %v7307 = vor.u32 %v7303, %v7306
        %v7308 = vrot.slane %v7307, 4
        %v7310 = vshll.u32 %v6945, 16
        %v7312 = vrot.slane %v7310, 5
        %v7313 = vsel %vm1475, %v7308, %v7312
        %v7314 = vshrl.u32 %v6945, 16
        %v7316 = vrot.slane %v7314, 4
        %v7317 = vor.u32 %v7316, %v7312
        %v7318 = vrot.slane %v7317, 4
        %v7320 = vshll.u32 %v6962, 16
        %v7322 = vrot.slane %v7320, 5
        %v7323 = vsel %vm1475, %v7318, %v7322
        %v7325 = vshrl.u32 %v6946, 16
        %v7327 = vrot.slane %v7325, 4
        %v7328 = vshll.u32 %v6946, 16
        %v7330 = vrot.slane %v7328, 5
        %v7331 = vor.u32 %v7327, %v7330
        %v7332 = vrot.slane %v7331, 4
        %v7334 = vshll.u32 %v6947, 16
        %v7336 = vrot.slane %v7334, 5
        %v7337 = vsel %vm1475, %v7332, %v7336
        %v7338 = vshrl.u32 %v6947, 16
        %v7340 = vrot.slane %v7338, 4
        %v7341 = vor.u32 %v7340, %v7336
        %v7342 = vrot.slane %v7341, 4
        %v7344 = vshll.u32 %v6963, 16
        %v7346 = vrot.slane %v7344, 5
        %v7347 = vsel %vm1475, %v7342, %v7346
        %v7348 = vld [vmem:[%s1310] sm:$0xe]
        %v7349 = vld [vmem:[%s1310 + $0xc] sm:$0xe]
        %v7350 = vld [vmem:[%s1310 + $0x18] sm:$0xe]
        %v7351 = vld [vmem:[%s1310 + $0x24] sm:$0xe]
        %v7352 = vld [vmem:[%s1310 + $0x30] sm:$0xe]
        %v7353 = vld [vmem:[%s1310 + $0x3c] sm:$0xe]
        %v7354 = vld [vmem:[%s1310 + $0x48] sm:$0xe]
        %v7355 = vld [vmem:[%s1310 + $0x54] sm:$0xe]
        %v7356 = vld [vmem:[%s1310 + $0x60] sm:$0xe]
        %v7357 = vld [vmem:[%s1310 + $0x6c] sm:$0xe]
        %v7358 = vld [vmem:[%s1310 + $0x78] sm:$0xe]
        %v7359 = vld [vmem:[%s1310 + $0x84] sm:$0xe]
        %v7360 = vld [vmem:[%s1310 + $0x90] sm:$0xe]
        %v7361 = vld [vmem:[%s1310 + $0x9c] sm:$0xe]
        %v7362 = vld [vmem:[%s1310 + $0xa8] sm:$0xe]
        %v7363 = vld [vmem:[%s1310 + $0xb4] sm:$0xe]
        %v7412 = vrot.slane %v7348, 5
        %v7413 = vrot.slane %v7412, 4
        %v7414 = vrot.slane %v6917, 5
        %v7415 = vsel %vm1926, %v7413, %v7414
        %v7416 = vrot.slane %v7414, 4
        %v7417 = vrot.slane %v6948, 5
        %v7418 = vsel %vm1926, %v7416, %v7417
        %v7419 = vrot.slane %v7349, 5
        %v7420 = vrot.slane %v7419, 4
        %v7421 = vrot.slane %v6919, 5
        %v7422 = vsel %vm1926, %v7420, %v7421
        %v7423 = vrot.slane %v7421, 4
        %v7424 = vrot.slane %v6949, 5
        %v7425 = vsel %vm1926, %v7423, %v7424
        %v7426 = vrot.slane %v7350, 5
        %v7427 = vrot.slane %v7426, 4
        %v7428 = vrot.slane %v6921, 5
        %v7429 = vsel %vm1926, %v7427, %v7428
        %v7430 = vrot.slane %v7428, 4
        %v7431 = vrot.slane %v6950, 5
        %v7432 = vsel %vm1926, %v7430, %v7431
        %v7433 = vrot.slane %v7351, 5
        %v7434 = vrot.slane %v7433, 4
        %v7435 = vrot.slane %v6923, 5
        %v7436 = vsel %vm1926, %v7434, %v7435
        %v7437 = vrot.slane %v7435, 4
        %v7438 = vrot.slane %v6951, 5
        %v7439 = vsel %vm1926, %v7437, %v7438
        %v7440 = vrot.slane %v7352, 5
        %v7441 = vrot.slane %v7440, 4
        %v7442 = vrot.slane %v6925, 5
        %v7443 = vsel %vm1926, %v7441, %v7442
        %v7444 = vrot.slane %v7442, 4
        %v7445 = vrot.slane %v6952, 5
        %v7446 = vsel %vm1926, %v7444, %v7445
        %v7447 = vrot.slane %v7353, 5
        %v7448 = vrot.slane %v7447, 4
        %v7449 = vrot.slane %v6927, 5
        %v7450 = vsel %vm1926, %v7448, %v7449
        %v7451 = vrot.slane %v7449, 4
        %v7452 = vrot.slane %v6953, 5
        %v7453 = vsel %vm1926, %v7451, %v7452
        %v7454 = vrot.slane %v7354, 5
        %v7455 = vrot.slane %v7454, 4
        %v7456 = vrot.slane %v6929, 5
        %v7457 = vsel %vm1926, %v7455, %v7456
        %v7458 = vrot.slane %v7456, 4
        %v7459 = vrot.slane %v6954, 5
        %v7460 = vsel %vm1926, %v7458, %v7459
        %v7461 = vrot.slane %v7355, 5
        %v7462 = vrot.slane %v7461, 4
        %v7463 = vrot.slane %v6931, 5
        %v7464 = vsel %vm1926, %v7462, %v7463
        %v7465 = vrot.slane %v7463, 4
        %v7466 = vrot.slane %v6955, 5
        %v7467 = vsel %vm1926, %v7465, %v7466
        %v7468 = vrot.slane %v7356, 5
        %v7469 = vrot.slane %v7468, 4
        %v7470 = vrot.slane %v6933, 5
        %v7471 = vsel %vm1926, %v7469, %v7470
        %v7472 = vrot.slane %v7470, 4
        %v7473 = vrot.slane %v6956, 5
        %v7474 = vsel %vm1926, %v7472, %v7473
        %v7475 = vrot.slane %v7357, 5
        %v7476 = vrot.slane %v7475, 4
        %v7477 = vrot.slane %v6935, 5
        %v7478 = vsel %vm1926, %v7476, %v7477
        %v7479 = vrot.slane %v7477, 4
        %v7480 = vrot.slane %v6957, 5
        %v7481 = vsel %vm1926, %v7479, %v7480
        %v7482 = vrot.slane %v7358, 5
        %v7483 = vrot.slane %v7482, 4
        %v7484 = vrot.slane %v6937, 5
        %v7485 = vsel %vm1926, %v7483, %v7484
        %v7486 = vrot.slane %v7484, 4
        %v7487 = vrot.slane %v6958, 5
        %v7488 = vsel %vm1926, %v7486, %v7487
        %v7489 = vrot.slane %v7359, 5
        %v7490 = vrot.slane %v7489, 4
        %v7491 = vrot.slane %v6939, 5
        %v7492 = vsel %vm1926, %v7490, %v7491
        %v7493 = vrot.slane %v7491, 4
        %v7494 = vrot.slane %v6959, 5
        %v7495 = vsel %vm1926, %v7493, %v7494
        %v7496 = vrot.slane %v7360, 5
        %v7497 = vrot.slane %v7496, 4
        %v7498 = vrot.slane %v6941, 5
        %v7499 = vsel %vm1926, %v7497, %v7498
        %v7500 = vrot.slane %v7498, 4
        %v7501 = vrot.slane %v6960, 5
        %v7502 = vsel %vm1926, %v7500, %v7501
        %v7503 = vrot.slane %v7361, 5
        %v7504 = vrot.slane %v7503, 4
        %v7505 = vrot.slane %v6943, 5
        %v7506 = vsel %vm1926, %v7504, %v7505
        %v7507 = vrot.slane %v7505, 4
        %v7508 = vrot.slane %v6961, 5
        %v7509 = vsel %vm1926, %v7507, %v7508
        %v7510 = vrot.slane %v7362, 5
        %v7511 = vrot.slane %v7510, 4
        %v7512 = vrot.slane %v6945, 5
        %v7513 = vsel %vm1926, %v7511, %v7512
        %v7514 = vrot.slane %v7512, 4
        %v7515 = vrot.slane %v6962, 5
        %v7516 = vsel %vm1926, %v7514, %v7515
        %v7517 = vrot.slane %v7363, 5
        %v7518 = vrot.slane %v7517, 4
        %v7519 = vrot.slane %v6947, 5
        %v7520 = vsel %vm1926, %v7518, %v7519
        %v7521 = vrot.slane %v7519, 4
        %v7522 = vrot.slane %v6963, 5
        %v7523 = vsel %vm1926, %v7521, %v7522
        %v7540 = vunpack.c.l.b16 %v6916
        %v7541 = vunpack.c.l.b16 %v6917
        %v7542 = vunpack.c.l.b16 %v6918
        %v7543 = vunpack.c.l.b16 %v6919
        %v7544 = vunpack.c.l.b16 %v6920
        %v7545 = vunpack.c.l.b16 %v6921
        %v7546 = vunpack.c.l.b16 %v6922
        %v7547 = vunpack.c.l.b16 %v6923
        %v7548 = vunpack.c.l.b16 %v6924
        %v7549 = vunpack.c.l.b16 %v6925
        %v7550 = vunpack.c.l.b16 %v6926
        %v7551 = vunpack.c.l.b16 %v6927
        %v7552 = vunpack.c.l.b16 %v6928
        %v7553 = vunpack.c.l.b16 %v6929
        %v7554 = vunpack.c.l.b16 %v6930
        %v7555 = vunpack.c.l.b16 %v6931
        %v7556 = vunpack.c.l.b16 %v6932
        %v7557 = vunpack.c.l.b16 %v6933
        %v7558 = vunpack.c.l.b16 %v6934
        %v7559 = vunpack.c.l.b16 %v6935
        %v7560 = vunpack.c.l.b16 %v6936
        %v7561 = vunpack.c.l.b16 %v6937
        %v7562 = vunpack.c.l.b16 %v6938
        %v7563 = vunpack.c.l.b16 %v6939
        %v7564 = vunpack.c.l.b16 %v6940
        %v7565 = vunpack.c.l.b16 %v6941
        %v7566 = vunpack.c.l.b16 %v6942
        %v7567 = vunpack.c.l.b16 %v6943
        %v7568 = vunpack.c.l.b16 %v6944
        %v7569 = vunpack.c.l.b16 %v6945
        %v7570 = vunpack.c.l.b16 %v6946
        %v7571 = vunpack.c.l.b16 %v6947
        %v7572 = vpack.c.b16 %v7541, %v7540
        %v7573 = vpack.c.b16 %v7543, %v7542
        %v7574 = vpack.c.b16 %v7545, %v7544
        %v7575 = vpack.c.b16 %v7547, %v7546
        %v7576 = vpack.c.b16 %v7549, %v7548
        %v7577 = vpack.c.b16 %v7551, %v7550
        %v7578 = vpack.c.b16 %v7553, %v7552
        %v7579 = vpack.c.b16 %v7555, %v7554
        %v7580 = vpack.c.b16 %v7557, %v7556
        %v7581 = vpack.c.b16 %v7559, %v7558
        %v7582 = vpack.c.b16 %v7561, %v7560
        %v7583 = vpack.c.b16 %v7563, %v7562
        %v7584 = vpack.c.b16 %v7565, %v7564
        %v7585 = vpack.c.b16 %v7567, %v7566
        %v7586 = vpack.c.b16 %v7569, %v7568
        %v7587 = vpack.c.b16 %v7571, %v7570
        %v7604 = vunpack.c.l.b16 %v6977
        %v7605 = vunpack.c.l.b16 %v6987
        %v7606 = vunpack.c.l.b16 %v7001
        %v7607 = vunpack.c.l.b16 %v7011
        %v7608 = vunpack.c.l.b16 %v7025
        %v7609 = vunpack.c.l.b16 %v7035
        %v7610 = vunpack.c.l.b16 %v7049
        %v7611 = vunpack.c.l.b16 %v7059
        %v7612 = vunpack.c.l.b16 %v7073
        %v7613 = vunpack.c.l.b16 %v7083
        %v7614 = vunpack.c.l.b16 %v7097
        %v7615 = vunpack.c.l.b16 %v7107
        %v7616 = vunpack.c.l.b16 %v7121
        %v7617 = vunpack.c.l.b16 %v7131
        %v7618 = vunpack.c.l.b16 %v7145
        %v7619 = vunpack.c.l.b16 %v7155
        %v7620 = vunpack.c.l.b16 %v7169
        %v7621 = vunpack.c.l.b16 %v7179
        %v7622 = vunpack.c.l.b16 %v7193
        %v7623 = vunpack.c.l.b16 %v7203
        %v7624 = vunpack.c.l.b16 %v7217
        %v7625 = vunpack.c.l.b16 %v7227
        %v7626 = vunpack.c.l.b16 %v7241
        %v7627 = vunpack.c.l.b16 %v7251
        %v7628 = vunpack.c.l.b16 %v7265
        %v7629 = vunpack.c.l.b16 %v7275
        %v7630 = vunpack.c.l.b16 %v7289
        %v7631 = vunpack.c.l.b16 %v7299
        %v7632 = vunpack.c.l.b16 %v7313
        %v7633 = vunpack.c.l.b16 %v7323
        %v7634 = vunpack.c.l.b16 %v7337
        %v7635 = vunpack.c.l.b16 %v7347
        %v7636 = vpack.c.b16 %v7605, %v7604
        %v7637 = vpack.c.b16 %v7607, %v7606
        %v7638 = vpack.c.b16 %v7609, %v7608
        %v7639 = vpack.c.b16 %v7611, %v7610
        %v7640 = vpack.c.b16 %v7613, %v7612
        %v7641 = vpack.c.b16 %v7615, %v7614
        %v7642 = vpack.c.b16 %v7617, %v7616
        %v7643 = vpack.c.b16 %v7619, %v7618
        %v7644 = vpack.c.b16 %v7621, %v7620
        %v7645 = vpack.c.b16 %v7623, %v7622
        %v7646 = vpack.c.b16 %v7625, %v7624
        %v7647 = vpack.c.b16 %v7627, %v7626
        %v7648 = vpack.c.b16 %v7629, %v7628
        %v7649 = vpack.c.b16 %v7631, %v7630
        %v7650 = vpack.c.b16 %v7633, %v7632
        %v7651 = vpack.c.b16 %v7635, %v7634
        %v7668 = vunpack.c.l.b16 %v7415
        %v7669 = vunpack.c.l.b16 %v7418
        %v7670 = vunpack.c.l.b16 %v7422
        %v7671 = vunpack.c.l.b16 %v7425
        %v7672 = vunpack.c.l.b16 %v7429
        %v7673 = vunpack.c.l.b16 %v7432
        %v7674 = vunpack.c.l.b16 %v7436
        %v7675 = vunpack.c.l.b16 %v7439
        %v7676 = vunpack.c.l.b16 %v7443
        %v7677 = vunpack.c.l.b16 %v7446
        %v7678 = vunpack.c.l.b16 %v7450
        %v7679 = vunpack.c.l.b16 %v7453
        %v7680 = vunpack.c.l.b16 %v7457
        %v7681 = vunpack.c.l.b16 %v7460
        %v7682 = vunpack.c.l.b16 %v7464
        %v7683 = vunpack.c.l.b16 %v7467
        %v7684 = vunpack.c.l.b16 %v7471
        %v7685 = vunpack.c.l.b16 %v7474
        %v7686 = vunpack.c.l.b16 %v7478
        %v7687 = vunpack.c.l.b16 %v7481
        %v7688 = vunpack.c.l.b16 %v7485
        %v7689 = vunpack.c.l.b16 %v7488
        %v7690 = vunpack.c.l.b16 %v7492
        %v7691 = vunpack.c.l.b16 %v7495
        %v7692 = vunpack.c.l.b16 %v7499
        %v7693 = vunpack.c.l.b16 %v7502
        %v7694 = vunpack.c.l.b16 %v7506
        %v7695 = vunpack.c.l.b16 %v7509
        %v7696 = vunpack.c.l.b16 %v7513
        %v7697 = vunpack.c.l.b16 %v7516
        %v7698 = vunpack.c.l.b16 %v7520
        %v7699 = vunpack.c.l.b16 %v7523
        %v7700 = vpack.c.b16 %v7669, %v7668
        %v7701 = vpack.c.b16 %v7671, %v7670
        %v7702 = vpack.c.b16 %v7673, %v7672
        %v7703 = vpack.c.b16 %v7675, %v7674
        %v7704 = vpack.c.b16 %v7677, %v7676
        %v7705 = vpack.c.b16 %v7679, %v7678
        %v7706 = vpack.c.b16 %v7681, %v7680
        %v7707 = vpack.c.b16 %v7683, %v7682
        %v7708 = vpack.c.b16 %v7685, %v7684
        %v7709 = vpack.c.b16 %v7687, %v7686
        %v7710 = vpack.c.b16 %v7689, %v7688
        %v7711 = vpack.c.b16 %v7691, %v7690
        %v7712 = vpack.c.b16 %v7693, %v7692
        %v7713 = vpack.c.b16 %v7695, %v7694
        %v7714 = vpack.c.b16 %v7697, %v7696
        %v7715 = vpack.c.b16 %v7699, %v7698
        %v7732 = vld [vmem:[#allocation9 + $0xc0] sm:$0xf]
        %v7733 = vld [vmem:[#allocation9 + $0xc4] sm:$0xf]
        %v7734 = vld [vmem:[#allocation9 + $0xc8] sm:$0xf]
        %v7735 = vld [vmem:[#allocation9 + $0xcc] sm:$0xf]
        %v7736 = vld [vmem:[#allocation9 + $0xd0] sm:$0xf]
        %v7737 = vld [vmem:[#allocation9 + $0xd4] sm:$0xf]
        %v7738 = vld [vmem:[#allocation9 + $0xd8] sm:$0xf]
        %v7739 = vld [vmem:[#allocation9 + $0xdc] sm:$0xf]
        %v7740 = vld [vmem:[#allocation9 + $0xe0] sm:$0xf]
        %v7741 = vld [vmem:[#allocation9 + $0xe4] sm:$0xf]
        %v7742 = vld [vmem:[#allocation9 + $0xe8] sm:$0xf]
        %v7743 = vld [vmem:[#allocation9 + $0xec] sm:$0xf]
        %v7744 = vld [vmem:[#allocation9 + $0xf0] sm:$0xf]
        %v7745 = vld [vmem:[#allocation9 + $0xf4] sm:$0xf]
        %v7746 = vld [vmem:[#allocation9 + $0xf8] sm:$0xf]
        %v7747 = vld [vmem:[#allocation9 + $0xfc] sm:$0xf]
        %v7748 = vld [vmem:[#allocation9 + $0x100] sm:$0xf]
        %v7749 = vld [vmem:[#allocation9 + $0x104] sm:$0xf]
        %v7750 = vld [vmem:[#allocation9 + $0x108] sm:$0xf]
        %v7751 = vld [vmem:[#allocation9 + $0x10c] sm:$0xf]
        %v7752 = vld [vmem:[#allocation9 + $0x110] sm:$0xf]
        %v7753 = vld [vmem:[#allocation9 + $0x114] sm:$0xf]
        %v7754 = vld [vmem:[#allocation9 + $0x118] sm:$0xf]
        %v7755 = vld [vmem:[#allocation9 + $0x11c] sm:$0xf]
        %v7756 = vld [vmem:[#allocation9 + $0x120] sm:$0xf]
        %v7757 = vld [vmem:[#allocation9 + $0x124] sm:$0xf]
        %v7758 = vld [vmem:[#allocation9 + $0x128] sm:$0xf]
        %v7759 = vld [vmem:[#allocation9 + $0x12c] sm:$0xf]
        %v7760 = vld [vmem:[#allocation9 + $0x130] sm:$0xf]
        %v7761 = vld [vmem:[#allocation9 + $0x134] sm:$0xf]
        %v7762 = vld [vmem:[#allocation9 + $0x138] sm:$0xf]
        %v7763 = vld [vmem:[#allocation9 + $0x13c] sm:$0xf]
        %v7764 = vld [vmem:[#allocation9 + $0x140] sm:$0xf]
        %v7765 = vld [vmem:[#allocation9 + $0x144] sm:$0xf]
        %v7766 = vld [vmem:[#allocation9 + $0x148] sm:$0xf]
        %v7767 = vld [vmem:[#allocation9 + $0x14c] sm:$0xf]
        %v7768 = vld [vmem:[#allocation9 + $0x150] sm:$0xf]
        %v7769 = vld [vmem:[#allocation9 + $0x154] sm:$0xf]
        %v7770 = vld [vmem:[#allocation9 + $0x158] sm:$0xf]
        %v7771 = vld [vmem:[#allocation9 + $0x15c] sm:$0xf]
        %v7772 = vld [vmem:[#allocation9 + $0x160] sm:$0xf]
        %v7773 = vld [vmem:[#allocation9 + $0x164] sm:$0xf]
        %v7774 = vld [vmem:[#allocation9 + $0x168] sm:$0xf]
        %v7775 = vld [vmem:[#allocation9 + $0x16c] sm:$0xf]
        %v7776 = vld [vmem:[#allocation9 + $0x170] sm:$0xf]
        %v7777 = vld [vmem:[#allocation9 + $0x174] sm:$0xf]
        %v7778 = vld [vmem:[#allocation9 + $0x178] sm:$0xf]
        %v7779 = vld [vmem:[#allocation9 + $0x17c] sm:$0xf]
        %v7828 = vunpack.c.l.b16 %v7732
        %v7829 = vunpack.c.l.b16 %v7733
        %v7830 = vunpack.c.l.b16 %v7734
        %v7831 = vunpack.c.l.b16 %v7735
        %v7832 = vunpack.c.l.b16 %v7736
        %v7833 = vunpack.c.l.b16 %v7737
        %v7834 = vunpack.c.l.b16 %v7738
        %v7835 = vunpack.c.l.b16 %v7739
        %v7836 = vunpack.c.l.b16 %v7740
        %v7837 = vunpack.c.l.b16 %v7741
        %v7838 = vunpack.c.l.b16 %v7742
        %v7839 = vunpack.c.l.b16 %v7743
        %v7840 = vunpack.c.l.b16 %v7744
        %v7841 = vunpack.c.l.b16 %v7745
        %v7842 = vunpack.c.l.b16 %v7746
        %v7843 = vunpack.c.l.b16 %v7747
        %v7844 = vunpack.c.l.b16 %v7748
        %v7845 = vunpack.c.l.b16 %v7749
        %v7846 = vunpack.c.l.b16 %v7750
        %v7847 = vunpack.c.l.b16 %v7751
        %v7848 = vunpack.c.l.b16 %v7752
        %v7849 = vunpack.c.l.b16 %v7753
        %v7850 = vunpack.c.l.b16 %v7754
        %v7851 = vunpack.c.l.b16 %v7755
        %v7852 = vunpack.c.l.b16 %v7756
        %v7853 = vunpack.c.l.b16 %v7757
        %v7854 = vunpack.c.l.b16 %v7758
        %v7855 = vunpack.c.l.b16 %v7759
        %v7856 = vunpack.c.l.b16 %v7760
        %v7857 = vunpack.c.l.b16 %v7761
        %v7858 = vunpack.c.l.b16 %v7762
        %v7859 = vunpack.c.l.b16 %v7763
        %v7860 = vunpack.c.l.b16 %v7764
        %v7861 = vunpack.c.l.b16 %v7765
        %v7862 = vunpack.c.l.b16 %v7766
        %v7863 = vunpack.c.l.b16 %v7767
        %v7864 = vunpack.c.l.b16 %v7768
        %v7865 = vunpack.c.l.b16 %v7769
        %v7866 = vunpack.c.l.b16 %v7770
        %v7867 = vunpack.c.l.b16 %v7771
        %v7868 = vunpack.c.l.b16 %v7772
        %v7869 = vunpack.c.l.b16 %v7773
        %v7870 = vunpack.c.l.b16 %v7774
        %v7871 = vunpack.c.l.b16 %v7775
        %v7872 = vunpack.c.l.b16 %v7776
        %v7873 = vunpack.c.l.b16 %v7777
        %v7874 = vunpack.c.l.b16 %v7778
        %v7875 = vunpack.c.l.b16 %v7779
        %v7876 = vpack.c.b16 %v7829, %v7828
        %v7877 = vpack.c.b16 %v7831, %v7830
        %v7878 = vpack.c.b16 %v7833, %v7832
        %v7879 = vpack.c.b16 %v7835, %v7834
        %v7880 = vpack.c.b16 %v7837, %v7836
        %v7881 = vpack.c.b16 %v7839, %v7838
        %v7882 = vpack.c.b16 %v7841, %v7840
        %v7883 = vpack.c.b16 %v7843, %v7842
        %v7884 = vpack.c.b16 %v7845, %v7844
        %v7885 = vpack.c.b16 %v7847, %v7846
        %v7886 = vpack.c.b16 %v7849, %v7848
        %v7887 = vpack.c.b16 %v7851, %v7850
        %v7888 = vpack.c.b16 %v7853, %v7852
        %v7889 = vpack.c.b16 %v7855, %v7854
        %v7890 = vpack.c.b16 %v7857, %v7856
        %v7891 = vpack.c.b16 %v7859, %v7858
        %v7892 = vpack.c.b16 %v7861, %v7860
        %v7893 = vpack.c.b16 %v7863, %v7862
        %v7894 = vpack.c.b16 %v7865, %v7864
        %v7895 = vpack.c.b16 %v7867, %v7866
        %v7896 = vpack.c.b16 %v7869, %v7868
        %v7897 = vpack.c.b16 %v7871, %v7870
        %v7898 = vpack.c.b16 %v7873, %v7872
        %v7899 = vpack.c.b16 %v7875, %v7874
        %7924 = vmatprep.subr.bf16.mxu0 0
        %7925 = vmatpush1.bf16.msra.mxu0 %v7876
        %7926 = vmatprep.subr.bf16.mxu0 0
        %7927 = vmatpush1.bf16.msra.mxu0 %v7877
        %7928 = vmatprep.subr.bf16.mxu0 0
        %7929 = vmatpush1.bf16.msra.mxu0 %v7878
        %7930 = vmatprep.subr.bf16.mxu0 0
        %7931 = vmatpush1.bf16.msra.mxu0 %v7879
        %7932 = vmatprep.subr.bf16.mxu0 0
        %7933 = vmatpush1.bf16.msra.mxu0 %v7880
        %7934 = vmatprep.subr.bf16.mxu0 0
        %7935 = vmatpush1.bf16.msra.mxu0 %v7881
        %7936 = vmatprep.subr.bf16.mxu0 0
        %7937 = vmatpush1.bf16.msra.mxu0 %v7882
        %7938 = vmatprep.subr.bf16.mxu0 0
        %7939 = vmatpush1.bf16.msra.mxu0 %v7883
        %7940 = vmatprep.subr.bf16.mxu0 0
        %7941 = vmatpush1.bf16.msra.mxu0 %v7884
        %7942 = vmatprep.subr.bf16.mxu0 0
        %7943 = vmatpush1.bf16.msra.mxu0 %v7885
        %7944 = vmatprep.subr.bf16.mxu0 0
        %7945 = vmatpush1.bf16.msra.mxu0 %v7886
        %7946 = vmatprep.subr.bf16.mxu0 0
        %7947 = vmatpush1.bf16.msra.mxu0 %v7887
        %7948 = vmatprep.subr.bf16.mxu0 0
        %7949 = vmatpush1.bf16.msra.mxu0 %v7888
        %7950 = vmatprep.subr.bf16.mxu0 0
        %7951 = vmatpush1.bf16.msra.mxu0 %v7889
        %7952 = vmatprep.subr.bf16.mxu0 0
        %7953 = vmatpush1.bf16.msra.mxu0 %v7890
        %7954 = vmatprep.subr.bf16.mxu0 0
        %7955 = vmatpush1.bf16.msra.mxu0 %v7891
        %7956 = vmatprep.mubr.bf16.mxu0 %v7636
        %7957 = vmatmul.mubr.bf16.gmra.mrb[0].mxu0 %v7572
        %v7958 = vpop.f32.mrb[0].mxu0
        %v7959 = vadd.f32 0.0, %v7958
        %v7960 = vpop.f32.mrb[0].mxu0
        %v7961 = vpop.f32.mrb[0].mxu0
        %v7962 = vadd.f32 0.0, %v7961
        %v7963 = vpop.f32.mrb[0].mxu0
        %7964 = vmatprep.mubr.bf16.mxu0 %v7637
        %7965 = vmatmul.mubr.bf16.gmra.mrb[0].mxu0 %v7573
        %v7966 = vpop.f32.mrb[0].mxu0
        %v7967 = vadd.f32 0.0, %v7966
        %v7968 = vpop.f32.mrb[0].mxu0
        %v7969 = vpop.f32.mrb[0].mxu0
        %v7970 = vadd.f32 0.0, %v7969
        %v7971 = vpop.f32.mrb[0].mxu0
        %7972 = vmatprep.mubr.bf16.mxu0 %v7638
        %7973 = vmatmul.mubr.bf16.gmra.mrb[0].mxu0 %v7574
        %v7974 = vpop.f32.mrb[0].mxu0
        %v7975 = vadd.f32 0.0, %v7974
        %v7976 = vpop.f32.mrb[0].mxu0
        %v7977 = vpop.f32.mrb[0].mxu0
        %v7978 = vadd.f32 0.0, %v7977
        %v7979 = vpop.f32.mrb[0].mxu0
        %7980 = vmatprep.mubr.bf16.mxu0 %v7639
        %7981 = vmatmul.mubr.bf16.gmra.mrb[0].mxu0 %v7575
        %v7982 = vpop.f32.mrb[0].mxu0
        %v7983 = vadd.f32 0.0, %v7982
        %v7984 = vpop.f32.mrb[0].mxu0
        %v7985 = vpop.f32.mrb[0].mxu0
        %v7986 = vadd.f32 0.0, %v7985
        %v7987 = vpop.f32.mrb[0].mxu0
        %7988 = vmatprep.mubr.bf16.mxu0 %v7640
        %7989 = vmatmul.mubr.bf16.gmra.mrb[0].mxu0 %v7576
        %v7990 = vpop.f32.mrb[0].mxu0
        %v7991 = vadd.f32 0.0, %v7990
        %v7992 = vpop.f32.mrb[0].mxu0
        %v7993 = vpop.f32.mrb[0].mxu0
        %v7994 = vadd.f32 0.0, %v7993
        %v7995 = vpop.f32.mrb[0].mxu0
        %7996 = vmatprep.mubr.bf16.mxu0 %v7641
        %7997 = vmatmul.mubr.bf16.gmra.mrb[0].mxu0 %v7577
        %v7998 = vpop.f32.mrb[0].mxu0
        %v7999 = vadd.f32 0.0, %v7998
        %v8000 = vpop.f32.mrb[0].mxu0
        %v8001 = vpop.f32.mrb[0].mxu0
        %v8002 = vadd.f32 0.0, %v8001
        %v8003 = vpop.f32.mrb[0].mxu0
        %8004 = vmatprep.mubr.bf16.mxu0 %v7642
        %8005 = vmatmul.mubr.bf16.gmra.mrb[0].mxu0 %v7578
        %v8006 = vpop.f32.mrb[0].mxu0
        %v8007 = vadd.f32 0.0, %v8006
        %v8008 = vpop.f32.mrb[0].mxu0
        %v8009 = vpop.f32.mrb[0].mxu0
        %v8010 = vadd.f32 0.0, %v8009
        %v8011 = vpop.f32.mrb[0].mxu0
        %8012 = vmatprep.mubr.bf16.mxu0 %v7643
        %8013 = vmatmul.mubr.bf16.gmra.mrb[0].mxu0 %v7579
        %v8014 = vpop.f32.mrb[0].mxu0
        %v8015 = vadd.f32 0.0, %v8014
        %v8016 = vpop.f32.mrb[0].mxu0
        %v8017 = vpop.f32.mrb[0].mxu0
        %v8018 = vadd.f32 0.0, %v8017
        %v8019 = vpop.f32.mrb[0].mxu0
        %8020 = vmatprep.mubr.bf16.mxu0 %v7644
        %8021 = vmatmul.mubr.bf16.gmra.mrb[0].mxu0 %v7580
        %v8022 = vpop.f32.mrb[0].mxu0
        %v8023 = vadd.f32 0.0, %v8022
        %v8024 = vpop.f32.mrb[0].mxu0
        %v8025 = vpop.f32.mrb[0].mxu0
        %v8026 = vadd.f32 0.0, %v8025
        %v8027 = vpop.f32.mrb[0].mxu0
        %8028 = vmatprep.mubr.bf16.mxu0 %v7645
        %8029 = vmatmul.mubr.bf16.gmra.mrb[0].mxu0 %v7581
        %v8030 = vpop.f32.mrb[0].mxu0
        %v8031 = vadd.f32 0.0, %v8030
        %v8032 = vpop.f32.mrb[0].mxu0
        %v8033 = vpop.f32.mrb[0].mxu0
        %v8034 = vadd.f32 0.0, %v8033
        %v8035 = vpop.f32.mrb[0].mxu0
        %8036 = vmatprep.mubr.bf16.mxu0 %v7646
        %8037 = vmatmul.mubr.bf16.gmra.mrb[0].mxu0 %v7582
        %v8038 = vpop.f32.mrb[0].mxu0
        %v8039 = vadd.f32 0.0, %v8038
        %v8040 = vpop.f32.mrb[0].mxu0
        %v8041 = vpop.f32.mrb[0].mxu0
        %v8042 = vadd.f32 0.0, %v8041
        %v8043 = vpop.f32.mrb[0].mxu0
        %8044 = vmatprep.mubr.bf16.mxu0 %v7647
        %8045 = vmatmul.mubr.bf16.gmra.mrb[0].mxu0 %v7583
        %v8046 = vpop.f32.mrb[0].mxu0
        %v8047 = vadd.f32 0.0, %v8046
        %v8048 = vpop.f32.mrb[0].mxu0
        %v8049 = vpop.f32.mrb[0].mxu0
        %v8050 = vadd.f32 0.0, %v8049
        %v8051 = vpop.f32.mrb[0].mxu0
        %8052 = vmatprep.mubr.bf16.mxu0 %v7648
        %8053 = vmatmul.mubr.bf16.gmra.mrb[0].mxu0 %v7584
        %v8054 = vpop.f32.mrb[0].mxu0
        %v8055 = vadd.f32 0.0, %v8054
        %v8056 = vpop.f32.mrb[0].mxu0
        %v8057 = vpop.f32.mrb[0].mxu0
        %v8058 = vadd.f32 0.0, %v8057
        %v8059 = vpop.f32.mrb[0].mxu0
        %8060 = vmatprep.mubr.bf16.mxu0 %v7649
        %8061 = vmatmul.mubr.bf16.gmra.mrb[0].mxu0 %v7585
        %v8062 = vpop.f32.mrb[0].mxu0
        %v8063 = vadd.f32 0.0, %v8062
        %v8064 = vpop.f32.mrb[0].mxu0
        %v8065 = vpop.f32.mrb[0].mxu0
        %v8066 = vadd.f32 0.0, %v8065
        %v8067 = vpop.f32.mrb[0].mxu0
        %8068 = vmatprep.mubr.bf16.mxu0 %v7650
        %8069 = vmatmul.mubr.bf16.gmra.mrb[0].mxu0 %v7586
        %v8070 = vpop.f32.mrb[0].mxu0
        %v8071 = vadd.f32 0.0, %v8070
        %v8072 = vpop.f32.mrb[0].mxu0
        %v8073 = vpop.f32.mrb[0].mxu0
        %v8074 = vadd.f32 0.0, %v8073
        %v8075 = vpop.f32.mrb[0].mxu0
        %8076 = vmatprep.mubr.bf16.mxu0 %v7651
        %8077 = vmatmul.mubr.bf16.gmra.mrb[0].mxu0 %v7587
        %v8078 = vpop.f32.mrb[0].mxu0
        %v8079 = vadd.f32 0.0, %v8078
        %v8080 = vpop.f32.mrb[0].mxu0
        %v8081 = vpop.f32.mrb[0].mxu0
        %v8082 = vadd.f32 0.0, %v8081
        %v8083 = vpop.f32.mrb[0].mxu0
        %8084 = vdwg.mxu0
        %8085 = vmatprep.subr.bf16.mxu0 0
        %8086 = vmatpush1.bf16.msra.mxu0 %v7892
        %8087 = vmatprep.subr.bf16.mxu0 0
        %8088 = vmatpush1.bf16.msra.mxu0 %v7893
        %8089 = vmatprep.subr.bf16.mxu0 0
        %8090 = vmatpush1.bf16.msra.mxu0 %v7894
        %8091 = vmatprep.subr.bf16.mxu0 0
        %8092 = vmatpush1.bf16.msra.mxu0 %v7895
        %8093 = vmatprep.subr.bf16.mxu0 0
        %8094 = vmatpush1.bf16.msra.mxu0 %v7896
        %8095 = vmatprep.subr.bf16.mxu0 0
        %8096 = vmatpush1.bf16.msra.mxu0 %v7897
        %8097 = vmatprep.subr.bf16.mxu0 0
        %8098 = vmatpush1.bf16.msra.mxu0 %v7898
        %8099 = vmatprep.subr.bf16.mxu0 0
        %8100 = vmatpush1.bf16.msra.mxu0 %v7899
        %8101 = vmatprep.subr.bf16.mxu0 0
        %8102 = vmatpush1.bf16.msra.mxu0 0
        %8103 = vmatprep.subr.bf16.mxu0 0
        %8104 = vmatpush1.bf16.msra.mxu0 0
        %8105 = vmatprep.subr.bf16.mxu0 0
        %8106 = vmatpush1.bf16.msra.mxu0 0
        %8107 = vmatprep.subr.bf16.mxu0 0
        %8108 = vmatpush1.bf16.msra.mxu0 0
        %8109 = vmatprep.subr.bf16.mxu0 0
        %8110 = vmatpush1.bf16.msra.mxu0 0
        %8111 = vmatprep.subr.bf16.mxu0 0
        %8112 = vmatpush1.bf16.msra.mxu0 0
        %8113 = vmatprep.subr.bf16.mxu0 0
        %8114 = vmatpush1.bf16.msra.mxu0 0
        %8115 = vmatprep.subr.bf16.mxu0 0
        %8116 = vmatpush1.bf16.msra.mxu0 0
        %8117 = vmatprep.mubr.bf16.mxu0 0
        %8118 = vmatmul.mubr.bf16.gmra.mrb[0].mxu0 %v7700
        %v8119 = vpop.f32.mrb[0].mxu0
        %v8120 = vadd.f32 %v7959, %v8119
        %v8121 = vpop.f32.mrb[0].mxu0
        %v8122 = vpop.f32.mrb[0].mxu0
        %v8123 = vadd.f32 %v7962, %v8122
        %v8124 = vpop.f32.mrb[0].mxu0
        %8125 = vmatprep.mubr.bf16.mxu0 0
        %8126 = vmatmul.mubr.bf16.gmra.mrb[0].mxu0 %v7701
        %v8127 = vpop.f32.mrb[0].mxu0
        %v8128 = vadd.f32 %v7967, %v8127
        %v8129 = vpop.f32.mrb[0].mxu0
        %v8130 = vpop.f32.mrb[0].mxu0
        %v8131 = vadd.f32 %v7970, %v8130
        %v8132 = vpop.f32.mrb[0].mxu0
        %8133 = vmatprep.mubr.bf16.mxu0 0
        %8134 = vmatmul.mubr.bf16.gmra.mrb[0].mxu0 %v7702
        %v8135 = vpop.f32.mrb[0].mxu0
        %v8136 = vadd.f32 %v7975, %v8135
        %v8137 = vpop.f32.mrb[0].mxu0
        %v8138 = vpop.f32.mrb[0].mxu0
        %v8139 = vadd.f32 %v7978, %v8138
        %v8140 = vpop.f32.mrb[0].mxu0
        %8141 = vmatprep.mubr.bf16.mxu0 0
        %8142 = vmatmul.mubr.bf16.gmra.mrb[0].mxu0 %v7703
        %v8143 = vpop.f32.mrb[0].mxu0
        %v8144 = vadd.f32 %v7983, %v8143
        %v8145 = vpop.f32.mrb[0].mxu0
        %v8146 = vpop.f32.mrb[0].mxu0
        %v8147 = vadd.f32 %v7986, %v8146
        %v8148 = vpop.f32.mrb[0].mxu0
        %8149 = vmatprep.mubr.bf16.mxu0 0
        %8150 = vmatmul.mubr.bf16.gmra.mrb[0].mxu0 %v7704
        %v8151 = vpop.f32.mrb[0].mxu0
        %v8152 = vadd.f32 %v7991, %v8151
        %v8153 = vpop.f32.mrb[0].mxu0
        %v8154 = vpop.f32.mrb[0].mxu0
        %v8155 = vadd.f32 %v7994, %v8154
        %v8156 = vpop.f32.mrb[0].mxu0
        %8157 = vmatprep.mubr.bf16.mxu0 0
        %8158 = vmatmul.mubr.bf16.gmra.mrb[0].mxu0 %v7705
        %v8159 = vpop.f32.mrb[0].mxu0
        %v8160 = vadd.f32 %v7999, %v8159
        %v8161 = vpop.f32.mrb[0].mxu0
        %v8162 = vpop.f32.mrb[0].mxu0
        %v8163 = vadd.f32 %v8002, %v8162
        %v8164 = vpop.f32.mrb[0].mxu0
        %8165 = vmatprep.mubr.bf16.mxu0 0
        %8166 = vmatmul.mubr.bf16.gmra.mrb[0].mxu0 %v7706
        %v8167 = vpop.f32.mrb[0].mxu0
        %v8168 = vadd.f32 %v8007, %v8167
        %v8169 = vpop.f32.mrb[0].mxu0
        %v8170 = vpop.f32.mrb[0].mxu0
        %v8171 = vadd.f32 %v8010, %v8170
        %v8172 = vpop.f32.mrb[0].mxu0
        %8173 = vmatprep.mubr.bf16.mxu0 0
        %8174 = vmatmul.mubr.bf16.gmra.mrb[0].mxu0 %v7707
        %v8175 = vpop.f32.mrb[0].mxu0
        %v8176 = vadd.f32 %v8015, %v8175
        %v8177 = vpop.f32.mrb[0].mxu0
        %v8178 = vpop.f32.mrb[0].mxu0
        %v8179 = vadd.f32 %v8018, %v8178
        %v8180 = vpop.f32.mrb[0].mxu0
        %8181 = vmatprep.mubr.bf16.mxu0 0
        %8182 = vmatmul.mubr.bf16.gmra.mrb[0].mxu0 %v7708
        %v8183 = vpop.f32.mrb[0].mxu0
        %v8184 = vadd.f32 %v8023, %v8183
        %v8185 = vpop.f32.mrb[0].mxu0
        %v8186 = vpop.f32.mrb[0].mxu0
        %v8187 = vadd.f32 %v8026, %v8186
        %v8188 = vpop.f32.mrb[0].mxu0
        %8189 = vmatprep.mubr.bf16.mxu0 0
        %8190 = vmatmul.mubr.bf16.gmra.mrb[0].mxu0 %v7709
        %v8191 = vpop.f32.mrb[0].mxu0
        %v8192 = vadd.f32 %v8031, %v8191
        %v8193 = vpop.f32.mrb[0].mxu0
        %v8194 = vpop.f32.mrb[0].mxu0
        %v8195 = vadd.f32 %v8034, %v8194
        %v8196 = vpop.f32.mrb[0].mxu0
        %8197 = vmatprep.mubr.bf16.mxu0 0
        %8198 = vmatmul.mubr.bf16.gmra.mrb[0].mxu0 %v7710
        %v8199 = vpop.f32.mrb[0].mxu0
        %v8200 = vadd.f32 %v8039, %v8199
        %v8201 = vpop.f32.mrb[0].mxu0
        %v8202 = vpop.f32.mrb[0].mxu0
        %v8203 = vadd.f32 %v8042, %v8202
        %v8204 = vpop.f32.mrb[0].mxu0
        %8205 = vmatprep.mubr.bf16.mxu0 0
        %8206 = vmatmul.mubr.bf16.gmra.mrb[0].mxu0 %v7711
        %v8207 = vpop.f32.mrb[0].mxu0
        %v8208 = vadd.f32 %v8047, %v8207
        %v8209 = vpop.f32.mrb[0].mxu0
        %v8210 = vpop.f32.mrb[0].mxu0
        %v8211 = vadd.f32 %v8050, %v8210
        %v8212 = vpop.f32.mrb[0].mxu0
        %8213 = vmatprep.mubr.bf16.mxu0 0
        %8214 = vmatmul.mubr.bf16.gmra.mrb[0].mxu0 %v7712
        %v8215 = vpop.f32.mrb[0].mxu0
        %v8216 = vadd.f32 %v8055, %v8215
        %v8217 = vpop.f32.mrb[0].mxu0
        %v8218 = vpop.f32.mrb[0].mxu0
        %v8219 = vadd.f32 %v8058, %v8218
        %v8220 = vpop.f32.mrb[0].mxu0
        %8221 = vmatprep.mubr.bf16.mxu0 0
        %8222 = vmatmul.mubr.bf16.gmra.mrb[0].mxu0 %v7713
        %v8223 = vpop.f32.mrb[0].mxu0
        %v8224 = vadd.f32 %v8063, %v8223
        %v8225 = vpop.f32.mrb[0].mxu0
        %v8226 = vpop.f32.mrb[0].mxu0
        %v8227 = vadd.f32 %v8066, %v8226
        %v8228 = vpop.f32.mrb[0].mxu0
        %8229 = vmatprep.mubr.bf16.mxu0 0
        %8230 = vmatmul.mubr.bf16.gmra.mrb[0].mxu0 %v7714
        %v8231 = vpop.f32.mrb[0].mxu0
        %v8232 = vadd.f32 %v8071, %v8231
        %v8233 = vpop.f32.mrb[0].mxu0
        %v8234 = vpop.f32.mrb[0].mxu0
        %v8235 = vadd.f32 %v8074, %v8234
        %v8236 = vpop.f32.mrb[0].mxu0
        %8237 = vmatprep.mubr.bf16.mxu0 0
        %8238 = vmatmul.mubr.bf16.gmra.mrb[0].mxu0 %v7715
        %v8239 = vpop.f32.mrb[0].mxu0
        %v8240 = vadd.f32 %v8079, %v8239
        %v8241 = vpop.f32.mrb[0].mxu0
        %v8242 = vpop.f32.mrb[0].mxu0
        %v8243 = vadd.f32 %v8082, %v8242
        %v8244 = vpop.f32.mrb[0].mxu0
        %8245 = vdwg.mxu0
        %v8294 = vunpack.c.l.b16 %v6868
        %v8295 = vunpack.c.l.b16 %v6869
        %v8296 = vunpack.c.l.b16 %v6870
        %v8297 = vunpack.c.l.b16 %v6871
        %v8298 = vunpack.c.l.b16 %v6872
        %v8299 = vunpack.c.l.b16 %v6873
        %v8300 = vunpack.c.l.b16 %v6874
        %v8301 = vunpack.c.l.b16 %v6875
        %v8302 = vunpack.c.l.b16 %v6876
        %v8303 = vunpack.c.l.b16 %v6877
        %v8304 = vunpack.c.l.b16 %v6878
        %v8305 = vunpack.c.l.b16 %v6879
        %v8306 = vunpack.c.l.b16 %v6880
        %v8307 = vunpack.c.l.b16 %v6881
        %v8308 = vunpack.c.l.b16 %v6882
        %v8309 = vunpack.c.l.b16 %v6883
        %v8310 = vunpack.c.l.b16 %v6884
        %v8311 = vunpack.c.l.b16 %v6885
        %v8312 = vunpack.c.l.b16 %v6886
        %v8313 = vunpack.c.l.b16 %v6887
        %v8314 = vunpack.c.l.b16 %v6888
        %v8315 = vunpack.c.l.b16 %v6889
        %v8316 = vunpack.c.l.b16 %v6890
        %v8317 = vunpack.c.l.b16 %v6891
        %v8318 = vunpack.c.l.b16 %v6892
        %v8319 = vunpack.c.l.b16 %v6893
        %v8320 = vunpack.c.l.b16 %v6894
        %v8321 = vunpack.c.l.b16 %v6895
        %v8322 = vunpack.c.l.b16 %v6896
        %v8323 = vunpack.c.l.b16 %v6897
        %v8324 = vunpack.c.l.b16 %v6898
        %v8325 = vunpack.c.l.b16 %v6899
        %v8326 = vunpack.c.l.b16 %v6900
        %v8327 = vunpack.c.l.b16 %v6901
        %v8328 = vunpack.c.l.b16 %v6902
        %v8329 = vunpack.c.l.b16 %v6903
        %v8330 = vunpack.c.l.b16 %v6904
        %v8331 = vunpack.c.l.b16 %v6905
        %v8332 = vunpack.c.l.b16 %v6906
        %v8333 = vunpack.c.l.b16 %v6907
        %v8334 = vunpack.c.l.b16 %v6908
        %v8335 = vunpack.c.l.b16 %v6909
        %v8336 = vunpack.c.l.b16 %v6910
        %v8337 = vunpack.c.l.b16 %v6911
        %v8338 = vunpack.c.l.b16 %v6912
        %v8339 = vunpack.c.l.b16 %v6913
        %v8340 = vunpack.c.l.b16 %v6914
        %v8341 = vunpack.c.l.b16 %v6915
        %v8342 = vpack.c.b16 %v8295, %v8294
        %v8343 = vpack.c.b16 %v8297, %v8296
        %v8344 = vpack.c.b16 %v8299, %v8298
        %v8345 = vpack.c.b16 %v8301, %v8300
        %v8346 = vpack.c.b16 %v8303, %v8302
        %v8347 = vpack.c.b16 %v8305, %v8304
        %v8348 = vpack.c.b16 %v8307, %v8306
        %v8349 = vpack.c.b16 %v8309, %v8308
        %v8350 = vpack.c.b16 %v8311, %v8310
        %v8351 = vpack.c.b16 %v8313, %v8312
        %v8352 = vpack.c.b16 %v8315, %v8314
        %v8353 = vpack.c.b16 %v8317, %v8316
        %v8354 = vpack.c.b16 %v8319, %v8318
        %v8355 = vpack.c.b16 %v8321, %v8320
        %v8356 = vpack.c.b16 %v8323, %v8322
        %v8357 = vpack.c.b16 %v8325, %v8324
        %v8358 = vpack.c.b16 %v8327, %v8326
        %v8359 = vpack.c.b16 %v8329, %v8328
        %v8360 = vpack.c.b16 %v8331, %v8330
        %v8361 = vpack.c.b16 %v8333, %v8332
        %v8362 = vpack.c.b16 %v8335, %v8334
        %v8363 = vpack.c.b16 %v8337, %v8336
        %v8364 = vpack.c.b16 %v8339, %v8338
        %v8365 = vpack.c.b16 %v8341, %v8340
        %8390 = vmatprep.subr.bf16.mxu0 0
        %8391 = vmatpush1.bf16.msra.mxu0 %v8342
        %8392 = vmatprep.subr.bf16.mxu0 0
        %8393 = vmatpush1.bf16.msra.mxu0 %v8343
        %8394 = vmatprep.subr.bf16.mxu0 0
        %8395 = vmatpush1.bf16.msra.mxu0 %v8344
        %8396 = vmatprep.subr.bf16.mxu0 0
        %8397 = vmatpush1.bf16.msra.mxu0 %v8345
        %8398 = vmatprep.subr.bf16.mxu0 0
        %8399 = vmatpush1.bf16.msra.mxu0 %v8346
        %8400 = vmatprep.subr.bf16.mxu0 0
        %8401 = vmatpush1.bf16.msra.mxu0 %v8347
        %8402 = vmatprep.subr.bf16.mxu0 0
        %8403 = vmatpush1.bf16.msra.mxu0 %v8348
        %8404 = vmatprep.subr.bf16.mxu0 0
        %8405 = vmatpush1.bf16.msra.mxu0 %v8349
        %8406 = vmatprep.subr.bf16.mxu0 0
        %8407 = vmatpush1.bf16.msra.mxu0 %v8350
        %8408 = vmatprep.subr.bf16.mxu0 0
        %8409 = vmatpush1.bf16.msra.mxu0 %v8351
        %8410 = vmatprep.subr.bf16.mxu0 0
        %8411 = vmatpush1.bf16.msra.mxu0 %v8352
        %8412 = vmatprep.subr.bf16.mxu0 0
        %8413 = vmatpush1.bf16.msra.mxu0 %v8353
        %8414 = vmatprep.subr.bf16.mxu0 0
        %8415 = vmatpush1.bf16.msra.mxu0 %v8354
        %8416 = vmatprep.subr.bf16.mxu0 0
        %8417 = vmatpush1.bf16.msra.mxu0 %v8355
        %8418 = vmatprep.subr.bf16.mxu0 0
        %8419 = vmatpush1.bf16.msra.mxu0 %v8356
        %8420 = vmatprep.subr.bf16.mxu0 0
        %8421 = vmatpush1.bf16.msra.mxu0 %v8357
        %8422 = vmatprep.mubr.bf16.mxu0 %v6772
        %8423 = vmatmul.mubr.bf16.gmra.mrb[0].mxu0 %v6708
        %v8424 = vpop.f32.mrb[0].mxu0
        %v8425 = vadd.f32 %v8120, %v8424
        %v8426 = vpop.f32.mrb[0].mxu0
        %v8427 = vpop.f32.mrb[0].mxu0
        %v8428 = vadd.f32 %v8123, %v8427
        %v8429 = vpop.f32.mrb[0].mxu0
        %8430 = vmatprep.mubr.bf16.mxu0 %v6773
        %8431 = vmatmul.mubr.bf16.gmra.mrb[0].mxu0 %v6709
        %v8432 = vpop.f32.mrb[0].mxu0
        %v8433 = vadd.f32 %v8128, %v8432
        %v8434 = vpop.f32.mrb[0].mxu0
        %v8435 = vpop.f32.mrb[0].mxu0
        %v8436 = vadd.f32 %v8131, %v8435
        %v8437 = vpop.f32.mrb[0].mxu0
        %8438 = vmatprep.mubr.bf16.mxu0 %v6774
        %8439 = vmatmul.mubr.bf16.gmra.mrb[0].mxu0 %v6710
        %v8440 = vpop.f32.mrb[0].mxu0
        %v8441 = vadd.f32 %v8136, %v8440
        %v8442 = vpop.f32.mrb[0].mxu0
        %v8443 = vpop.f32.mrb[0].mxu0
        %v8444 = vadd.f32 %v8139, %v8443
        %v8445 = vpop.f32.mrb[0].mxu0
        %8446 = vmatprep.mubr.bf16.mxu0 %v6775
        %8447 = vmatmul.mubr.bf16.gmra.mrb[0].mxu0 %v6711
        %v8448 = vpop.f32.mrb[0].mxu0
        %v8449 = vadd.f32 %v8144, %v8448
        %v8450 = vpop.f32.mrb[0].mxu0
        %v8451 = vpop.f32.mrb[0].mxu0
        %v8452 = vadd.f32 %v8147, %v8451
        %v8453 = vpop.f32.mrb[0].mxu0
        %8454 = vmatprep.mubr.bf16.mxu0 %v6776
        %8455 = vmatmul.mubr.bf16.gmra.mrb[0].mxu0 %v6712
        %v8456 = vpop.f32.mrb[0].mxu0
        %v8457 = vadd.f32 %v8152, %v8456
        %v8458 = vpop.f32.mrb[0].mxu0
        %v8459 = vpop.f32.mrb[0].mxu0
        %v8460 = vadd.f32 %v8155, %v8459
        %v8461 = vpop.f32.mrb[0].mxu0
        %8462 = vmatprep.mubr.bf16.mxu0 %v6777
        %8463 = vmatmul.mubr.bf16.gmra.mrb[0].mxu0 %v6713
        %v8464 = vpop.f32.mrb[0].mxu0
        %v8465 = vadd.f32 %v8160, %v8464
        %v8466 = vpop.f32.mrb[0].mxu0
        %v8467 = vpop.f32.mrb[0].mxu0
        %v8468 = vadd.f32 %v8163, %v8467
        %v8469 = vpop.f32.mrb[0].mxu0
        %8470 = vmatprep.mubr.bf16.mxu0 %v6778
        %8471 = vmatmul.mubr.bf16.gmra.mrb[0].mxu0 %v6714
        %v8472 = vpop.f32.mrb[0].mxu0
        %v8473 = vadd.f32 %v8168, %v8472
        %v8474 = vpop.f32.mrb[0].mxu0
        %v8475 = vpop.f32.mrb[0].mxu0
        %v8476 = vadd.f32 %v8171, %v8475
        %v8477 = vpop.f32.mrb[0].mxu0
        %8478 = vmatprep.mubr.bf16.mxu0 %v6779
        %8479 = vmatmul.mubr.bf16.gmra.mrb[0].mxu0 %v6715
        %v8480 = vpop.f32.mrb[0].mxu0
        %v8481 = vadd.f32 %v8176, %v8480
        %v8482 = vpop.f32.mrb[0].mxu0
        %v8483 = vpop.f32.mrb[0].mxu0
        %v8484 = vadd.f32 %v8179, %v8483
        %v8485 = vpop.f32.mrb[0].mxu0
        %8486 = vmatprep.mubr.bf16.mxu0 %v6780
        %8487 = vmatmul.mubr.bf16.gmra.mrb[0].mxu0 %v6716
        %v8488 = vpop.f32.mrb[0].mxu0
        %v8489 = vadd.f32 %v8184, %v8488
        %v8490 = vpop.f32.mrb[0].mxu0
        %v8491 = vpop.f32.mrb[0].mxu0
        %v8492 = vadd.f32 %v8187, %v8491
        %v8493 = vpop.f32.mrb[0].mxu0
        %8494 = vmatprep.mubr.bf16.mxu0 %v6781
        %8495 = vmatmul.mubr.bf16.gmra.mrb[0].mxu0 %v6717
        %v8496 = vpop.f32.mrb[0].mxu0
        %v8497 = vadd.f32 %v8192, %v8496
        %v8498 = vpop.f32.mrb[0].mxu0
        %v8499 = vpop.f32.mrb[0].mxu0
        %v8500 = vadd.f32 %v8195, %v8499
        %v8501 = vpop.f32.mrb[0].mxu0
        %8502 = vmatprep.mubr.bf16.mxu0 %v6782
        %8503 = vmatmul.mubr.bf16.gmra.mrb[0].mxu0 %v6718
        %v8504 = vpop.f32.mrb[0].mxu0
        %v8505 = vadd.f32 %v8200, %v8504
        %v8506 = vpop.f32.mrb[0].mxu0
        %v8507 = vpop.f32.mrb[0].mxu0
        %v8508 = vadd.f32 %v8203, %v8507
        %v8509 = vpop.f32.mrb[0].mxu0
        %8510 = vmatprep.mubr.bf16.mxu0 %v6783
        %8511 = vmatmul.mubr.bf16.gmra.mrb[0].mxu0 %v6719
        %v8512 = vpop.f32.mrb[0].mxu0
        %v8513 = vadd.f32 %v8208, %v8512
        %v8514 = vpop.f32.mrb[0].mxu0
        %v8515 = vpop.f32.mrb[0].mxu0
        %v8516 = vadd.f32 %v8211, %v8515
        %v8517 = vpop.f32.mrb[0].mxu0
        %8518 = vmatprep.mubr.bf16.mxu0 %v6784
        %8519 = vmatmul.mubr.bf16.gmra.mrb[0].mxu0 %v6720
        %v8520 = vpop.f32.mrb[0].mxu0
        %v8521 = vadd.f32 %v8216, %v8520
        %v8522 = vpop.f32.mrb[0].mxu0
        %v8523 = vpop.f32.mrb[0].mxu0
        %v8524 = vadd.f32 %v8219, %v8523
        %v8525 = vpop.f32.mrb[0].mxu0
        %8526 = vmatprep.mubr.bf16.mxu0 %v6785
        %8527 = vmatmul.mubr.bf16.gmra.mrb[0].mxu0 %v6721
        %v8528 = vpop.f32.mrb[0].mxu0
        %v8529 = vadd.f32 %v8224, %v8528
        %v8530 = vpop.f32.mrb[0].mxu0
        %v8531 = vpop.f32.mrb[0].mxu0
        %v8532 = vadd.f32 %v8227, %v8531
        %v8533 = vpop.f32.mrb[0].mxu0
        %8534 = vmatprep.mubr.bf16.mxu0 %v6786
        %8535 = vmatmul.mubr.bf16.gmra.mrb[0].mxu0 %v6722
        %v8536 = vpop.f32.mrb[0].mxu0
        %v8537 = vadd.f32 %v8232, %v8536
        %v8538 = vpop.f32.mrb[0].mxu0
        %v8539 = vpop.f32.mrb[0].mxu0
        %v8540 = vadd.f32 %v8235, %v8539
        %v8541 = vpop.f32.mrb[0].mxu0
        %8542 = vmatprep.mubr.bf16.mxu0 %v6787
        %8543 = vmatmul.mubr.bf16.gmra.mrb[0].mxu0 %v6723
        %v8544 = vpop.f32.mrb[0].mxu0
        %v8545 = vadd.f32 %v8240, %v8544
        %v8546 = vpop.f32.mrb[0].mxu0
        %v8547 = vpop.f32.mrb[0].mxu0
        %v8548 = vadd.f32 %v8243, %v8547
        %v8549 = vpop.f32.mrb[0].mxu0
        %8550 = vdwg.mxu0
        %8551 = vmatprep.subr.bf16.mxu0 0
        %8552 = vmatpush1.bf16.msra.mxu0 %v8358
        %8553 = vmatprep.subr.bf16.mxu0 0
        %8554 = vmatpush1.bf16.msra.mxu0 %v8359
        %8555 = vmatprep.subr.bf16.mxu0 0
        %8556 = vmatpush1.bf16.msra.mxu0 %v8360
        %8557 = vmatprep.subr.bf16.mxu0 0
        %8558 = vmatpush1.bf16.msra.mxu0 %v8361
        %8559 = vmatprep.subr.bf16.mxu0 0
        %8560 = vmatpush1.bf16.msra.mxu0 %v8362
        %8561 = vmatprep.subr.bf16.mxu0 0
        %8562 = vmatpush1.bf16.msra.mxu0 %v8363
        %8563 = vmatprep.subr.bf16.mxu0 0
        %8564 = vmatpush1.bf16.msra.mxu0 %v8364
        %8565 = vmatprep.subr.bf16.mxu0 0
        %8566 = vmatpush1.bf16.msra.mxu0 %v8365
        %8567 = vmatprep.subr.bf16.mxu0 0
        %8568 = vmatpush1.bf16.msra.mxu0 0
        %8569 = vmatprep.subr.bf16.mxu0 0
        %8570 = vmatpush1.bf16.msra.mxu0 0
        %8571 = vmatprep.subr.bf16.mxu0 0
        %8572 = vmatpush1.bf16.msra.mxu0 0
        %8573 = vmatprep.subr.bf16.mxu0 0
        %8574 = vmatpush1.bf16.msra.mxu0 0
        %8575 = vmatprep.subr.bf16.mxu0 0
        %8576 = vmatpush1.bf16.msra.mxu0 0
        %8577 = vmatprep.subr.bf16.mxu0 0
        %8578 = vmatpush1.bf16.msra.mxu0 0
        %8579 = vmatprep.subr.bf16.mxu0 0
        %8580 = vmatpush1.bf16.msra.mxu0 0
        %8581 = vmatprep.subr.bf16.mxu0 0
        %8582 = vmatpush1.bf16.msra.mxu0 0
        %8583 = vmatprep.mubr.bf16.mxu0 0
        %8584 = vmatmul.mubr.bf16.gmra.mrb[0].mxu0 %v6836
        %v8585 = vpop.f32.mrb[0].mxu0
        %v8586 = vadd.f32 %v8425, %v8585
        %v8587 = vpop.f32.mrb[0].mxu0
        %v8588 = vpop.f32.mrb[0].mxu0
        %v8589 = vadd.f32 %v8428, %v8588
        %v8590 = vpop.f32.mrb[0].mxu0
        %8591 = vmatprep.mubr.bf16.mxu0 0
        %8592 = vmatmul.mubr.bf16.gmra.mrb[0].mxu0 %v6837
        %v8593 = vpop.f32.mrb[0].mxu0
        %v8594 = vadd.f32 %v8433, %v8593
        %v8595 = vpop.f32.mrb[0].mxu0
        %v8596 = vpop.f32.mrb[0].mxu0
        %v8597 = vadd.f32 %v8436, %v8596
        %v8598 = vpop.f32.mrb[0].mxu0
        %8599 = vmatprep.mubr.bf16.mxu0 0
        %8600 = vmatmul.mubr.bf16.gmra.mrb[0].mxu0 %v6838
        %v8601 = vpop.f32.mrb[0].mxu0
        %v8602 = vadd.f32 %v8441, %v8601
        %v8603 = vpop.f32.mrb[0].mxu0
        %v8604 = vpop.f32.mrb[0].mxu0
        %v8605 = vadd.f32 %v8444, %v8604
        %v8606 = vpop.f32.mrb[0].mxu0
        %8607 = vmatprep.mubr.bf16.mxu0 0
        %8608 = vmatmul.mubr.bf16.gmra.mrb[0].mxu0 %v6839
        %v8609 = vpop.f32.mrb[0].mxu0
        %v8610 = vadd.f32 %v8449, %v8609
        %v8611 = vpop.f32.mrb[0].mxu0
        %v8612 = vpop.f32.mrb[0].mxu0
        %v8613 = vadd.f32 %v8452, %v8612
        %v8614 = vpop.f32.mrb[0].mxu0
        %8615 = vmatprep.mubr.bf16.mxu0 0
        %8616 = vmatmul.mubr.bf16.gmra.mrb[0].mxu0 %v6840
        %v8617 = vpop.f32.mrb[0].mxu0
        %v8618 = vadd.f32 %v8457, %v8617
        %v8619 = vpop.f32.mrb[0].mxu0
        %v8620 = vpop.f32.mrb[0].mxu0
        %v8621 = vadd.f32 %v8460, %v8620
        %v8622 = vpop.f32.mrb[0].mxu0
        %8623 = vmatprep.mubr.bf16.mxu0 0
        %8624 = vmatmul.mubr.bf16.gmra.mrb[0].mxu0 %v6841
        %v8625 = vpop.f32.mrb[0].mxu0
        %v8626 = vadd.f32 %v8465, %v8625
        %v8627 = vpop.f32.mrb[0].mxu0
        %v8628 = vpop.f32.mrb[0].mxu0
        %v8629 = vadd.f32 %v8468, %v8628
        %v8630 = vpop.f32.mrb[0].mxu0
        %8631 = vmatprep.mubr.bf16.mxu0 0
        %8632 = vmatmul.mubr.bf16.gmra.mrb[0].mxu0 %v6842
        %v8633 = vpop.f32.mrb[0].mxu0
        %v8634 = vadd.f32 %v8473, %v8633
        %v8635 = vpop.f32.mrb[0].mxu0
        %v8636 = vpop.f32.mrb[0].mxu0
        %v8637 = vadd.f32 %v8476, %v8636
        %v8638 = vpop.f32.mrb[0].mxu0
        %8639 = vmatprep.mubr.bf16.mxu0 0
        %8640 = vmatmul.mubr.bf16.gmra.mrb[0].mxu0 %v6843
        %v8641 = vpop.f32.mrb[0].mxu0
        %v8642 = vadd.f32 %v8481, %v8641
        %v8643 = vpop.f32.mrb[0].mxu0
        %v8644 = vpop.f32.mrb[0].mxu0
        %v8645 = vadd.f32 %v8484, %v8644
        %v8646 = vpop.f32.mrb[0].mxu0
        %8647 = vmatprep.mubr.bf16.mxu0 0
        %8648 = vmatmul.mubr.bf16.gmra.mrb[0].mxu0 %v6844
        %v8649 = vpop.f32.mrb[0].mxu0
        %v8650 = vadd.f32 %v8489, %v8649
        %v8651 = vpop.f32.mrb[0].mxu0
        %v8652 = vpop.f32.mrb[0].mxu0
        %v8653 = vadd.f32 %v8492, %v8652
        %v8654 = vpop.f32.mrb[0].mxu0
        %8655 = vmatprep.mubr.bf16.mxu0 0
        %8656 = vmatmul.mubr.bf16.gmra.mrb[0].mxu0 %v6845
        %v8657 = vpop.f32.mrb[0].mxu0
        %v8658 = vadd.f32 %v8497, %v8657
        %v8659 = vpop.f32.mrb[0].mxu0
        %v8660 = vpop.f32.mrb[0].mxu0
        %v8661 = vadd.f32 %v8500, %v8660
        %v8662 = vpop.f32.mrb[0].mxu0
        %8663 = vmatprep.mubr.bf16.mxu0 0
        %8664 = vmatmul.mubr.bf16.gmra.mrb[0].mxu0 %v6846
        %v8665 = vpop.f32.mrb[0].mxu0
        %v8666 = vadd.f32 %v8505, %v8665
        %v8667 = vpop.f32.mrb[0].mxu0
        %v8668 = vpop.f32.mrb[0].mxu0
        %v8669 = vadd.f32 %v8508, %v8668
        %v8670 = vpop.f32.mrb[0].mxu0
        %8671 = vmatprep.mubr.bf16.mxu0 0
        %8672 = vmatmul.mubr.bf16.gmra.mrb[0].mxu0 %v6847
        %v8673 = vpop.f32.mrb[0].mxu0
        %v8674 = vadd.f32 %v8513, %v8673
        %v8675 = vpop.f32.mrb[0].mxu0
        %v8676 = vpop.f32.mrb[0].mxu0
        %v8677 = vadd.f32 %v8516, %v8676
        %v8678 = vpop.f32.mrb[0].mxu0
        %8679 = vmatprep.mubr.bf16.mxu0 0
        %8680 = vmatmul.mubr.bf16.gmra.mrb[0].mxu0 %v6848
        %v8681 = vpop.f32.mrb[0].mxu0
        %v8682 = vadd.f32 %v8521, %v8681
        %v8683 = vpop.f32.mrb[0].mxu0
        %v8684 = vpop.f32.mrb[0].mxu0
        %v8685 = vadd.f32 %v8524, %v8684
        %v8686 = vpop.f32.mrb[0].mxu0
        %8687 = vmatprep.mubr.bf16.mxu0 0
        %8688 = vmatmul.mubr.bf16.gmra.mrb[0].mxu0 %v6849
        %v8689 = vpop.f32.mrb[0].mxu0
        %v8690 = vadd.f32 %v8529, %v8689
        %v8691 = vpop.f32.mrb[0].mxu0
        %v8692 = vpop.f32.mrb[0].mxu0
        %v8693 = vadd.f32 %v8532, %v8692
        %v8694 = vpop.f32.mrb[0].mxu0
        %8695 = vmatprep.mubr.bf16.mxu0 0
        %8696 = vmatmul.mubr.bf16.gmra.mrb[0].mxu0 %v6850
        %v8697 = vpop.f32.mrb[0].mxu0
        %v8698 = vadd.f32 %v8537, %v8697
        %v8699 = vpop.f32.mrb[0].mxu0
        %v8700 = vpop.f32.mrb[0].mxu0
        %v8701 = vadd.f32 %v8540, %v8700
        %v8702 = vpop.f32.mrb[0].mxu0
        %8703 = vmatprep.mubr.bf16.mxu0 0
        %8704 = vmatmul.mubr.bf16.gmra.mrb[0].mxu0 %v6851
        %v8705 = vpop.f32.mrb[0].mxu0
        %v8706 = vadd.f32 %v8545, %v8705
        %v8707 = vpop.f32.mrb[0].mxu0
        %v8708 = vpop.f32.mrb[0].mxu0
        %v8709 = vadd.f32 %v8548, %v8708
        %v8710 = vpop.f32.mrb[0].mxu0
        %8711 = vdwg.mxu0
        %v8712 = vld [vmem:[%s4091] sm:$0xf]
        %v8713 = vld [vmem:[%s4091 + $0x4] sm:$0xf]
        %v8714 = vld [vmem:[%s4091 + $0xc] sm:$0xf]
        %v8715 = vld [vmem:[%s4091 + $0x10] sm:$0xf]
        %v8716 = vld [vmem:[%s4091 + $0x18] sm:$0xf]
        %v8717 = vld [vmem:[%s4091 + $0x1c] sm:$0xf]
        %v8718 = vld [vmem:[%s4091 + $0x24] sm:$0xf]
        %v8719 = vld [vmem:[%s4091 + $0x28] sm:$0xf]
        %v8720 = vld [vmem:[%s4091 + $0x30] sm:$0xf]
        %v8721 = vld [vmem:[%s4091 + $0x34] sm:$0xf]
        %v8722 = vld [vmem:[%s4091 + $0x3c] sm:$0xf]
        %v8723 = vld [vmem:[%s4091 + $0x40] sm:$0xf]
        %v8724 = vld [vmem:[%s4091 + $0x48] sm:$0xf]
        %v8725 = vld [vmem:[%s4091 + $0x4c] sm:$0xf]
        %v8726 = vld [vmem:[%s4091 + $0x54] sm:$0xf]
        %v8727 = vld [vmem:[%s4091 + $0x58] sm:$0xf]
        %v8728 = vld [vmem:[%s4091 + $0x60] sm:$0xf]
        %v8729 = vld [vmem:[%s4091 + $0x64] sm:$0xf]
        %v8730 = vld [vmem:[%s4091 + $0x6c] sm:$0xf]
        %v8731 = vld [vmem:[%s4091 + $0x70] sm:$0xf]
        %v8732 = vld [vmem:[%s4091 + $0x78] sm:$0xf]
        %v8733 = vld [vmem:[%s4091 + $0x7c] sm:$0xf]
        %v8734 = vld [vmem:[%s4091 + $0x84] sm:$0xf]
        %v8735 = vld [vmem:[%s4091 + $0x88] sm:$0xf]
        %v8736 = vld [vmem:[%s4091 + $0x90] sm:$0xf]
        %v8737 = vld [vmem:[%s4091 + $0x94] sm:$0xf]
        %v8738 = vld [vmem:[%s4091 + $0x9c] sm:$0xf]
        %v8739 = vld [vmem:[%s4091 + $0xa0] sm:$0xf]
        %v8740 = vld [vmem:[%s4091 + $0xa8] sm:$0xf]
        %v8741 = vld [vmem:[%s4091 + $0xac] sm:$0xf]
        %v8742 = vld [vmem:[%s4091 + $0xb4] sm:$0xf]
        %v8743 = vld [vmem:[%s4091 + $0xb8] sm:$0xf]
        %v8744 = vld [vmem:[%s4091 + $0x8] sm:$0x1]
        %v8745 = vld [vmem:[%s4091 + $0x14] sm:$0x1]
        %v8746 = vld [vmem:[%s4091 + $0x20] sm:$0x1]
        %v8747 = vld [vmem:[%s4091 + $0x2c] sm:$0x1]
        %v8748 = vld [vmem:[%s4091 + $0x38] sm:$0x1]
        %v8749 = vld [vmem:[%s4091 + $0x44] sm:$0x1]
        %v8750 = vld [vmem:[%s4091 + $0x50] sm:$0x1]
        %v8751 = vld [vmem:[%s4091 + $0x5c] sm:$0x1]
        %v8752 = vld [vmem:[%s4091 + $0x68] sm:$0x1]
        %v8753 = vld [vmem:[%s4091 + $0x74] sm:$0x1]
        %v8754 = vld [vmem:[%s4091 + $0x80] sm:$0x1]
        %v8755 = vld [vmem:[%s4091 + $0x8c] sm:$0x1]
        %v8756 = vld [vmem:[%s4091 + $0x98] sm:$0x1]
        %v8757 = vld [vmem:[%s4091 + $0xa4] sm:$0x1]
        %v8758 = vld [vmem:[%s4091 + $0xb0] sm:$0x1]
        %v8759 = vld [vmem:[%s4091 + $0xbc] sm:$0x1]
        %v8761 = vshrl.u32 %v8712, 16
        %v8763 = vrot.slane %v8761, 4
        %v8764 = vshll.u32 %v8712, 16
        %v8766 = vrot.slane %v8764, 5
        %v8767 = vor.u32 %v8763, %v8766
        %v8768 = vrot.slane %v8767, 4
        %v8770 = vshll.u32 %v8713, 16
        %v8772 = vrot.slane %v8770, 5
        %v8773 = vsel %vm1475, %v8768, %v8772
        %v8774 = vshrl.u32 %v8713, 16
        %v8776 = vrot.slane %v8774, 4
        %v8777 = vor.u32 %v8776, %v8772
        %v8778 = vrot.slane %v8777, 4
        %v8780 = vshll.u32 %v8744, 16
        %v8782 = vrot.slane %v8780, 5
        %v8783 = vsel %vm1475, %v8778, %v8782
        %v8785 = vshrl.u32 %v8714, 16
        %v8787 = vrot.slane %v8785, 4
        %v8788 = vshll.u32 %v8714, 16
        %v8790 = vrot.slane %v8788, 5
        %v8791 = vor.u32 %v8787, %v8790
        %v8792 = vrot.slane %v8791, 4
        %v8794 = vshll.u32 %v8715, 16
        %v8796 = vrot.slane %v8794, 5
        %v8797 = vsel %vm1475, %v8792, %v8796
        %v8798 = vshrl.u32 %v8715, 16
        %v8800 = vrot.slane %v8798, 4
        %v8801 = vor.u32 %v8800, %v8796
        %v8802 = vrot.slane %v8801, 4
        %v8804 = vshll.u32 %v8745, 16
        %v8806 = vrot.slane %v8804, 5
        %v8807 = vsel %vm1475, %v8802, %v8806
        %v8809 = vshrl.u32 %v8716, 16
        %v8811 = vrot.slane %v8809, 4
        %v8812 = vshll.u32 %v8716, 16
        %v8814 = vrot.slane %v8812, 5
        %v8815 = vor.u32 %v8811, %v8814
        %v8816 = vrot.slane %v8815, 4
        %v8818 = vshll.u32 %v8717, 16
        %v8820 = vrot.slane %v8818, 5
        %v8821 = vsel %vm1475, %v8816, %v8820
        %v8822 = vshrl.u32 %v8717, 16
        %v8824 = vrot.slane %v8822, 4
        %v8825 = vor.u32 %v8824, %v8820
        %v8826 = vrot.slane %v8825, 4
        %v8828 = vshll.u32 %v8746, 16
        %v8830 = vrot.slane %v8828, 5
        %v8831 = vsel %vm1475, %v8826, %v8830
        %v8833 = vshrl.u32 %v8718, 16
        %v8835 = vrot.slane %v8833, 4
        %v8836 = vshll.u32 %v8718, 16
        %v8838 = vrot.slane %v8836, 5
        %v8839 = vor.u32 %v8835, %v8838
        %v8840 = vrot.slane %v8839, 4
        %v8842 = vshll.u32 %v8719, 16
        %v8844 = vrot.slane %v8842, 5
        %v8845 = vsel %vm1475, %v8840, %v8844
        %v8846 = vshrl.u32 %v8719, 16
        %v8848 = vrot.slane %v8846, 4
        %v8849 = vor.u32 %v8848, %v8844
        %v8850 = vrot.slane %v8849, 4
        %v8852 = vshll.u32 %v8747, 16
        %v8854 = vrot.slane %v8852, 5
        %v8855 = vsel %vm1475, %v8850, %v8854
        %v8857 = vshrl.u32 %v8720, 16
        %v8859 = vrot.slane %v8857, 4
        %v8860 = vshll.u32 %v8720, 16
        %v8862 = vrot.slane %v8860, 5
        %v8863 = vor.u32 %v8859, %v8862
        %v8864 = vrot.slane %v8863, 4
        %v8866 = vshll.u32 %v8721, 16
        %v8868 = vrot.slane %v8866, 5
        %v8869 = vsel %vm1475, %v8864, %v8868
        %v8870 = vshrl.u32 %v8721, 16
        %v8872 = vrot.slane %v8870, 4
        %v8873 = vor.u32 %v8872, %v8868
        %v8874 = vrot.slane %v8873, 4
        %v8876 = vshll.u32 %v8748, 16
        %v8878 = vrot.slane %v8876, 5
        %v8879 = vsel %vm1475, %v8874, %v8878
        %v8881 = vshrl.u32 %v8722, 16
        %v8883 = vrot.slane %v8881, 4
        %v8884 = vshll.u32 %v8722, 16
        %v8886 = vrot.slane %v8884, 5
        %v8887 = vor.u32 %v8883, %v8886
        %v8888 = vrot.slane %v8887, 4
        %v8890 = vshll.u32 %v8723, 16
        %v8892 = vrot.slane %v8890, 5
        %v8893 = vsel %vm1475, %v8888, %v8892
        %v8894 = vshrl.u32 %v8723, 16
        %v8896 = vrot.slane %v8894, 4
        %v8897 = vor.u32 %v8896, %v8892
        %v8898 = vrot.slane %v8897, 4
        %v8900 = vshll.u32 %v8749, 16
        %v8902 = vrot.slane %v8900, 5
        %v8903 = vsel %vm1475, %v8898, %v8902
        %v8905 = vshrl.u32 %v8724, 16
        %v8907 = vrot.slane %v8905, 4
        %v8908 = vshll.u32 %v8724, 16
        %v8910 = vrot.slane %v8908, 5
        %v8911 = vor.u32 %v8907, %v8910
        %v8912 = vrot.slane %v8911, 4
        %v8914 = vshll.u32 %v8725, 16
        %v8916 = vrot.slane %v8914, 5
        %v8917 = vsel %vm1475, %v8912, %v8916
        %v8918 = vshrl.u32 %v8725, 16
        %v8920 = vrot.slane %v8918, 4
        %v8921 = vor.u32 %v8920, %v8916
        %v8922 = vrot.slane %v8921, 4
        %v8924 = vshll.u32 %v8750, 16
        %v8926 = vrot.slane %v8924, 5
        %v8927 = vsel %vm1475, %v8922, %v8926
        %v8929 = vshrl.u32 %v8726, 16
        %v8931 = vrot.slane %v8929, 4
        %v8932 = vshll.u32 %v8726, 16
        %v8934 = vrot.slane %v8932, 5
        %v8935 = vor.u32 %v8931, %v8934
        %v8936 = vrot.slane %v8935, 4
        %v8938 = vshll.u32 %v8727, 16
        %v8940 = vrot.slane %v8938, 5
        %v8941 = vsel %vm1475, %v8936, %v8940
        %v8942 = vshrl.u32 %v8727, 16
        %v8944 = vrot.slane %v8942, 4
        %v8945 = vor.u32 %v8944, %v8940
        %v8946 = vrot.slane %v8945, 4
        %v8948 = vshll.u32 %v8751, 16
        %v8950 = vrot.slane %v8948, 5
        %v8951 = vsel %vm1475, %v8946, %v8950
        %v8953 = vshrl.u32 %v8728, 16
        %v8955 = vrot.slane %v8953, 4
        %v8956 = vshll.u32 %v8728, 16
        %v8958 = vrot.slane %v8956, 5
        %v8959 = vor.u32 %v8955, %v8958
        %v8960 = vrot.slane %v8959, 4
        %v8962 = vshll.u32 %v8729, 16
        %v8964 = vrot.slane %v8962, 5
        %v8965 = vsel %vm1475, %v8960, %v8964
        %v8966 = vshrl.u32 %v8729, 16
        %v8968 = vrot.slane %v8966, 4
        %v8969 = vor.u32 %v8968, %v8964
        %v8970 = vrot.slane %v8969, 4
        %v8972 = vshll.u32 %v8752, 16
        %v8974 = vrot.slane %v8972, 5
        %v8975 = vsel %vm1475, %v8970, %v8974
        %v8977 = vshrl.u32 %v8730, 16
        %v8979 = vrot.slane %v8977, 4
        %v8980 = vshll.u32 %v8730, 16
        %v8982 = vrot.slane %v8980, 5
        %v8983 = vor.u32 %v8979, %v8982
        %v8984 = vrot.slane %v8983, 4
        %v8986 = vshll.u32 %v8731, 16
        %v8988 = vrot.slane %v8986, 5
        %v8989 = vsel %vm1475, %v8984, %v8988
        %v8990 = vshrl.u32 %v8731, 16
        %v8992 = vrot.slane %v8990, 4
        %v8993 = vor.u32 %v8992, %v8988
        %v8994 = vrot.slane %v8993, 4
        %v8996 = vshll.u32 %v8753, 16
        %v8998 = vrot.slane %v8996, 5
        %v8999 = vsel %vm1475, %v8994, %v8998
        %v9001 = vshrl.u32 %v8732, 16
        %v9003 = vrot.slane %v9001, 4
        %v9004 = vshll.u32 %v8732, 16
        %v9006 = vrot.slane %v9004, 5
        %v9007 = vor.u32 %v9003, %v9006
        %v9008 = vrot.slane %v9007, 4
        %v9010 = vshll.u32 %v8733, 16
        %v9012 = vrot.slane %v9010, 5
        %v9013 = vsel %vm1475, %v9008, %v9012
        %v9014 = vshrl.u32 %v8733, 16
        %v9016 = vrot.slane %v9014, 4
        %v9017 = vor.u32 %v9016, %v9012
        %v9018 = vrot.slane %v9017, 4
        %v9020 = vshll.u32 %v8754, 16
        %v9022 = vrot.slane %v9020, 5
        %v9023 = vsel %vm1475, %v9018, %v9022
        %v9025 = vshrl.u32 %v8734, 16
        %v9027 = vrot.slane %v9025, 4
        %v9028 = vshll.u32 %v8734, 16
        %v9030 = vrot.slane %v9028, 5
        %v9031 = vor.u32 %v9027, %v9030
        %v9032 = vrot.slane %v9031, 4
        %v9034 = vshll.u32 %v8735, 16
        %v9036 = vrot.slane %v9034, 5
        %v9037 = vsel %vm1475, %v9032, %v9036
        %v9038 = vshrl.u32 %v8735, 16
        %v9040 = vrot.slane %v9038, 4
        %v9041 = vor.u32 %v9040, %v9036
        %v9042 = vrot.slane %v9041, 4
        %v9044 = vshll.u32 %v8755, 16
        %v9046 = vrot.slane %v9044, 5
        %v9047 = vsel %vm1475, %v9042, %v9046
        %v9049 = vshrl.u32 %v8736, 16
        %v9051 = vrot.slane %v9049, 4
        %v9052 = vshll.u32 %v8736, 16
        %v9054 = vrot.slane %v9052, 5
        %v9055 = vor.u32 %v9051, %v9054
        %v9056 = vrot.slane %v9055, 4
        %v9058 = vshll.u32 %v8737, 16
        %v9060 = vrot.slane %v9058, 5
        %v9061 = vsel %vm1475, %v9056, %v9060
        %v9062 = vshrl.u32 %v8737, 16
        %v9064 = vrot.slane %v9062, 4
        %v9065 = vor.u32 %v9064, %v9060
        %v9066 = vrot.slane %v9065, 4
        %v9068 = vshll.u32 %v8756, 16
        %v9070 = vrot.slane %v9068, 5
        %v9071 = vsel %vm1475, %v9066, %v9070
        %v9073 = vshrl.u32 %v8738, 16
        %v9075 = vrot.slane %v9073, 4
        %v9076 = vshll.u32 %v8738, 16
        %v9078 = vrot.slane %v9076, 5
        %v9079 = vor.u32 %v9075, %v9078
        %v9080 = vrot.slane %v9079, 4
        %v9082 = vshll.u32 %v8739, 16
        %v9084 = vrot.slane %v9082, 5
        %v9085 = vsel %vm1475, %v9080, %v9084
        %v9086 = vshrl.u32 %v8739, 16
        %v9088 = vrot.slane %v9086, 4
        %v9089 = vor.u32 %v9088, %v9084
        %v9090 = vrot.slane %v9089, 4
        %v9092 = vshll.u32 %v8757, 16
        %v9094 = vrot.slane %v9092, 5
        %v9095 = vsel %vm1475, %v9090, %v9094
        %v9097 = vshrl.u32 %v8740, 16
        %v9099 = vrot.slane %v9097, 4
        %v9100 = vshll.u32 %v8740, 16
        %v9102 = vrot.slane %v9100, 5
        %v9103 = vor.u32 %v9099, %v9102
        %v9104 = vrot.slane %v9103, 4
        %v9106 = vshll.u32 %v8741, 16
        %v9108 = vrot.slane %v9106, 5
        %v9109 = vsel %vm1475, %v9104, %v9108
        %v9110 = vshrl.u32 %v8741, 16
        %v9112 = vrot.slane %v9110, 4
        %v9113 = vor.u32 %v9112, %v9108
        %v9114 = vrot.slane %v9113, 4
        %v9116 = vshll.u32 %v8758, 16
        %v9118 = vrot.slane %v9116, 5
        %v9119 = vsel %vm1475, %v9114, %v9118
        %v9121 = vshrl.u32 %v8742, 16
        %v9123 = vrot.slane %v9121, 4
        %v9124 = vshll.u32 %v8742, 16
        %v9126 = vrot.slane %v9124, 5
        %v9127 = vor.u32 %v9123, %v9126
        %v9128 = vrot.slane %v9127, 4
        %v9130 = vshll.u32 %v8743, 16
        %v9132 = vrot.slane %v9130, 5
        %v9133 = vsel %vm1475, %v9128, %v9132
        %v9134 = vshrl.u32 %v8743, 16
        %v9136 = vrot.slane %v9134, 4
        %v9137 = vor.u32 %v9136, %v9132
        %v9138 = vrot.slane %v9137, 4
        %v9140 = vshll.u32 %v8759, 16
        %v9142 = vrot.slane %v9140, 5
        %v9143 = vsel %vm1475, %v9138, %v9142
        %v9144 = vld [vmem:[%s4091] sm:$0xe]
        %v9145 = vld [vmem:[%s4091 + $0xc] sm:$0xe]
        %v9146 = vld [vmem:[%s4091 + $0x18] sm:$0xe]
        %v9147 = vld [vmem:[%s4091 + $0x24] sm:$0xe]
        %v9148 = vld [vmem:[%s4091 + $0x30] sm:$0xe]
        %v9149 = vld [vmem:[%s4091 + $0x3c] sm:$0xe]
        %v9150 = vld [vmem:[%s4091 + $0x48] sm:$0xe]
        %v9151 = vld [vmem:[%s4091 + $0x54] sm:$0xe]
        %v9152 = vld [vmem:[%s4091 + $0x60] sm:$0xe]
        %v9153 = vld [vmem:[%s4091 + $0x6c] sm:$0xe]
        %v9154 = vld [vmem:[%s4091 + $0x78] sm:$0xe]
        %v9155 = vld [vmem:[%s4091 + $0x84] sm:$0xe]
        %v9156 = vld [vmem:[%s4091 + $0x90] sm:$0xe]
        %v9157 = vld [vmem:[%s4091 + $0x9c] sm:$0xe]
        %v9158 = vld [vmem:[%s4091 + $0xa8] sm:$0xe]
        %v9159 = vld [vmem:[%s4091 + $0xb4] sm:$0xe]
        %v9208 = vrot.slane %v9144, 5
        %v9209 = vrot.slane %v9208, 4
        %v9210 = vrot.slane %v8713, 5
        %v9211 = vsel %vm1926, %v9209, %v9210
        %v9212 = vrot.slane %v9210, 4
        %v9213 = vrot.slane %v8744, 5
        %v9214 = vsel %vm1926, %v9212, %v9213
        %v9215 = vrot.slane %v9145, 5
        %v9216 = vrot.slane %v9215, 4
        %v9217 = vrot.slane %v8715, 5
        %v9218 = vsel %vm1926, %v9216, %v9217
        %v9219 = vrot.slane %v9217, 4
        %v9220 = vrot.slane %v8745, 5
        %v9221 = vsel %vm1926, %v9219, %v9220
        %v9222 = vrot.slane %v9146, 5
        %v9223 = vrot.slane %v9222, 4
        %v9224 = vrot.slane %v8717, 5
        %v9225 = vsel %vm1926, %v9223, %v9224
        %v9226 = vrot.slane %v9224, 4
        %v9227 = vrot.slane %v8746, 5
        %v9228 = vsel %vm1926, %v9226, %v9227
        %v9229 = vrot.slane %v9147, 5
        %v9230 = vrot.slane %v9229, 4
        %v9231 = vrot.slane %v8719, 5
        %v9232 = vsel %vm1926, %v9230, %v9231
        %v9233 = vrot.slane %v9231, 4
        %v9234 = vrot.slane %v8747, 5
        %v9235 = vsel %vm1926, %v9233, %v9234
        %v9236 = vrot.slane %v9148, 5
        %v9237 = vrot.slane %v9236, 4
        %v9238 = vrot.slane %v8721, 5
        %v9239 = vsel %vm1926, %v9237, %v9238
        %v9240 = vrot.slane %v9238, 4
        %v9241 = vrot.slane %v8748, 5
        %v9242 = vsel %vm1926, %v9240, %v9241
        %v9243 = vrot.slane %v9149, 5
        %v9244 = vrot.slane %v9243, 4
        %v9245 = vrot.slane %v8723, 5
        %v9246 = vsel %vm1926, %v9244, %v9245
        %v9247 = vrot.slane %v9245, 4
        %v9248 = vrot.slane %v8749, 5
        %v9249 = vsel %vm1926, %v9247, %v9248
        %v9250 = vrot.slane %v9150, 5
        %v9251 = vrot.slane %v9250, 4
        %v9252 = vrot.slane %v8725, 5
        %v9253 = vsel %vm1926, %v9251, %v9252
        %v9254 = vrot.slane %v9252, 4
        %v9255 = vrot.slane %v8750, 5
        %v9256 = vsel %vm1926, %v9254, %v9255
        %v9257 = vrot.slane %v9151, 5
        %v9258 = vrot.slane %v9257, 4
        %v9259 = vrot.slane %v8727, 5
        %v9260 = vsel %vm1926, %v9258, %v9259
        %v9261 = vrot.slane %v9259, 4
        %v9262 = vrot.slane %v8751, 5
        %v9263 = vsel %vm1926, %v9261, %v9262
        %v9264 = vrot.slane %v9152, 5
        %v9265 = vrot.slane %v9264, 4
        %v9266 = vrot.slane %v8729, 5
        %v9267 = vsel %vm1926, %v9265, %v9266
        %v9268 = vrot.slane %v9266, 4
        %v9269 = vrot.slane %v8752, 5
        %v9270 = vsel %vm1926, %v9268, %v9269
        %v9271 = vrot.slane %v9153, 5
        %v9272 = vrot.slane %v9271, 4
        %v9273 = vrot.slane %v8731, 5
        %v9274 = vsel %vm1926, %v9272, %v9273
        %v9275 = vrot.slane %v9273, 4
        %v9276 = vrot.slane %v8753, 5
        %v9277 = vsel %vm1926, %v9275, %v9276
        %v9278 = vrot.slane %v9154, 5
        %v9279 = vrot.slane %v9278, 4
        %v9280 = vrot.slane %v8733, 5
        %v9281 = vsel %vm1926, %v9279, %v9280
        %v9282 = vrot.slane %v9280, 4
        %v9283 = vrot.slane %v8754, 5
        %v9284 = vsel %vm1926, %v9282, %v9283
        %v9285 = vrot.slane %v9155, 5
        %v9286 = vrot.slane %v9285, 4
        %v9287 = vrot.slane %v8735, 5
        %v9288 = vsel %vm1926, %v9286, %v9287
        %v9289 = vrot.slane %v9287, 4
        %v9290 = vrot.slane %v8755, 5
        %v9291 = vsel %vm1926, %v9289, %v9290
        %v9292 = vrot.slane %v9156, 5
        %v9293 = vrot.slane %v9292, 4
        %v9294 = vrot.slane %v8737, 5
        %v9295 = vsel %vm1926, %v9293, %v9294
        %v9296 = vrot.slane %v9294, 4
        %v9297 = vrot.slane %v8756, 5
        %v9298 = vsel %vm1926, %v9296, %v9297
        %v9299 = vrot.slane %v9157, 5
        %v9300 = vrot.slane %v9299, 4
        %v9301 = vrot.slane %v8739, 5
        %v9302 = vsel %vm1926, %v9300, %v9301
        %v9303 = vrot.slane %v9301, 4
        %v9304 = vrot.slane %v8757, 5
        %v9305 = vsel %vm1926, %v9303, %v9304
        %v9306 = vrot.slane %v9158, 5
        %v9307 = vrot.slane %v9306, 4
        %v9308 = vrot.slane %v8741, 5
        %v9309 = vsel %vm1926, %v9307, %v9308
        %v9310 = vrot.slane %v9308, 4
        %v9311 = vrot.slane %v8758, 5
        %v9312 = vsel %vm1926, %v9310, %v9311
        %v9313 = vrot.slane %v9159, 5
        %v9314 = vrot.slane %v9313, 4
        %v9315 = vrot.slane %v8743, 5
        %v9316 = vsel %vm1926, %v9314, %v9315
        %v9317 = vrot.slane %v9315, 4
        %v9318 = vrot.slane %v8759, 5
        %v9319 = vsel %vm1926, %v9317, %v9318
        %v9336 = vunpack.c.l.b16 %v8712
        %v9337 = vunpack.c.l.b16 %v8713
        %v9338 = vunpack.c.l.b16 %v8714
        %v9339 = vunpack.c.l.b16 %v8715
        %v9340 = vunpack.c.l.b16 %v8716
        %v9341 = vunpack.c.l.b16 %v8717
        %v9342 = vunpack.c.l.b16 %v8718
        %v9343 = vunpack.c.l.b16 %v8719
        %v9344 = vunpack.c.l.b16 %v8720
        %v9345 = vunpack.c.l.b16 %v8721
        %v9346 = vunpack.c.l.b16 %v8722
        %v9347 = vunpack.c.l.b16 %v8723
        %v9348 = vunpack.c.l.b16 %v8724
        %v9349 = vunpack.c.l.b16 %v8725
        %v9350 = vunpack.c.l.b16 %v8726
        %v9351 = vunpack.c.l.b16 %v8727
        %v9352 = vunpack.c.l.b16 %v8728
        %v9353 = vunpack.c.l.b16 %v8729
        %v9354 = vunpack.c.l.b16 %v8730
        %v9355 = vunpack.c.l.b16 %v8731
        %v9356 = vunpack.c.l.b16 %v8732
        %v9357 = vunpack.c.l.b16 %v8733
        %v9358 = vunpack.c.l.b16 %v8734
        %v9359 = vunpack.c.l.b16 %v8735
        %v9360 = vunpack.c.l.b16 %v8736
        %v9361 = vunpack.c.l.b16 %v8737
        %v9362 = vunpack.c.l.b16 %v8738
        %v9363 = vunpack.c.l.b16 %v8739
        %v9364 = vunpack.c.l.b16 %v8740
        %v9365 = vunpack.c.l.b16 %v8741
        %v9366 = vunpack.c.l.b16 %v8742
        %v9367 = vunpack.c.l.b16 %v8743
        %v9368 = vpack.c.b16 %v9337, %v9336
        %v9369 = vpack.c.b16 %v9339, %v9338
        %v9370 = vpack.c.b16 %v9341, %v9340
        %v9371 = vpack.c.b16 %v9343, %v9342
        %v9372 = vpack.c.b16 %v9345, %v9344
        %v9373 = vpack.c.b16 %v9347, %v9346
        %v9374 = vpack.c.b16 %v9349, %v9348
        %v9375 = vpack.c.b16 %v9351, %v9350
        %v9376 = vpack.c.b16 %v9353, %v9352
        %v9377 = vpack.c.b16 %v9355, %v9354
        %v9378 = vpack.c.b16 %v9357, %v9356
        %v9379 = vpack.c.b16 %v9359, %v9358
        %v9380 = vpack.c.b16 %v9361, %v9360
        %v9381 = vpack.c.b16 %v9363, %v9362
        %v9382 = vpack.c.b16 %v9365, %v9364
        %v9383 = vpack.c.b16 %v9367, %v9366
        %v9400 = vunpack.c.l.b16 %v8773
        %v9401 = vunpack.c.l.b16 %v8783
        %v9402 = vunpack.c.l.b16 %v8797
        %v9403 = vunpack.c.l.b16 %v8807
        %v9404 = vunpack.c.l.b16 %v8821
        %v9405 = vunpack.c.l.b16 %v8831
        %v9406 = vunpack.c.l.b16 %v8845
        %v9407 = vunpack.c.l.b16 %v8855
        %v9408 = vunpack.c.l.b16 %v8869
        %v9409 = vunpack.c.l.b16 %v8879
        %v9410 = vunpack.c.l.b16 %v8893
        %v9411 = vunpack.c.l.b16 %v8903
        %v9412 = vunpack.c.l.b16 %v8917
        %v9413 = vunpack.c.l.b16 %v8927
        %v9414 = vunpack.c.l.b16 %v8941
        %v9415 = vunpack.c.l.b16 %v8951
        %v9416 = vunpack.c.l.b16 %v8965
        %v9417 = vunpack.c.l.b16 %v8975
        %v9418 = vunpack.c.l.b16 %v8989
        %v9419 = vunpack.c.l.b16 %v8999
        %v9420 = vunpack.c.l.b16 %v9013
        %v9421 = vunpack.c.l.b16 %v9023
        %v9422 = vunpack.c.l.b16 %v9037
        %v9423 = vunpack.c.l.b16 %v9047
        %v9424 = vunpack.c.l.b16 %v9061
        %v9425 = vunpack.c.l.b16 %v9071
        %v9426 = vunpack.c.l.b16 %v9085
        %v9427 = vunpack.c.l.b16 %v9095
        %v9428 = vunpack.c.l.b16 %v9109
        %v9429 = vunpack.c.l.b16 %v9119
        %v9430 = vunpack.c.l.b16 %v9133
        %v9431 = vunpack.c.l.b16 %v9143
        %v9432 = vpack.c.b16 %v9401, %v9400
        %v9433 = vpack.c.b16 %v9403, %v9402
        %v9434 = vpack.c.b16 %v9405, %v9404
        %v9435 = vpack.c.b16 %v9407, %v9406
        %v9436 = vpack.c.b16 %v9409, %v9408
        %v9437 = vpack.c.b16 %v9411, %v9410
        %v9438 = vpack.c.b16 %v9413, %v9412
        %v9439 = vpack.c.b16 %v9415, %v9414
        %v9440 = vpack.c.b16 %v9417, %v9416
        %v9441 = vpack.c.b16 %v9419, %v9418
        %v9442 = vpack.c.b16 %v9421, %v9420
        %v9443 = vpack.c.b16 %v9423, %v9422
        %v9444 = vpack.c.b16 %v9425, %v9424
        %v9445 = vpack.c.b16 %v9427, %v9426
        %v9446 = vpack.c.b16 %v9429, %v9428
        %v9447 = vpack.c.b16 %v9431, %v9430
        %v9464 = vunpack.c.l.b16 %v9211
        %v9465 = vunpack.c.l.b16 %v9214
        %v9466 = vunpack.c.l.b16 %v9218
        %v9467 = vunpack.c.l.b16 %v9221
        %v9468 = vunpack.c.l.b16 %v9225
        %v9469 = vunpack.c.l.b16 %v9228
        %v9470 = vunpack.c.l.b16 %v9232
        %v9471 = vunpack.c.l.b16 %v9235
        %v9472 = vunpack.c.l.b16 %v9239
        %v9473 = vunpack.c.l.b16 %v9242
        %v9474 = vunpack.c.l.b16 %v9246
        %v9475 = vunpack.c.l.b16 %v9249
        %v9476 = vunpack.c.l.b16 %v9253
        %v9477 = vunpack.c.l.b16 %v9256
        %v9478 = vunpack.c.l.b16 %v9260
        %v9479 = vunpack.c.l.b16 %v9263
        %v9480 = vunpack.c.l.b16 %v9267
        %v9481 = vunpack.c.l.b16 %v9270
        %v9482 = vunpack.c.l.b16 %v9274
        %v9483 = vunpack.c.l.b16 %v9277
        %v9484 = vunpack.c.l.b16 %v9281
        %v9485 = vunpack.c.l.b16 %v9284
        %v9486 = vunpack.c.l.b16 %v9288
        %v9487 = vunpack.c.l.b16 %v9291
        %v9488 = vunpack.c.l.b16 %v9295
        %v9489 = vunpack.c.l.b16 %v9298
        %v9490 = vunpack.c.l.b16 %v9302
        %v9491 = vunpack.c.l.b16 %v9305
        %v9492 = vunpack.c.l.b16 %v9309
        %v9493 = vunpack.c.l.b16 %v9312
        %v9494 = vunpack.c.l.b16 %v9316
        %v9495 = vunpack.c.l.b16 %v9319
        %v9496 = vpack.c.b16 %v9465, %v9464
        %v9497 = vpack.c.b16 %v9467, %v9466
        %v9498 = vpack.c.b16 %v9469, %v9468
        %v9499 = vpack.c.b16 %v9471, %v9470
        %v9500 = vpack.c.b16 %v9473, %v9472
        %v9501 = vpack.c.b16 %v9475, %v9474
        %v9502 = vpack.c.b16 %v9477, %v9476
        %v9503 = vpack.c.b16 %v9479, %v9478
        %v9504 = vpack.c.b16 %v9481, %v9480
        %v9505 = vpack.c.b16 %v9483, %v9482
        %v9506 = vpack.c.b16 %v9485, %v9484
        %v9507 = vpack.c.b16 %v9487, %v9486
        %v9508 = vpack.c.b16 %v9489, %v9488
        %v9509 = vpack.c.b16 %v9491, %v9490
        %v9510 = vpack.c.b16 %v9493, %v9492
        %v9511 = vpack.c.b16 %v9495, %v9494
        %v9528 = vld [vmem:[#allocation9 + $0x180] sm:$0xf]
        %v9529 = vld [vmem:[#allocation9 + $0x184] sm:$0xf]
        %v9530 = vld [vmem:[#allocation9 + $0x188] sm:$0xf]
        %v9531 = vld [vmem:[#allocation9 + $0x18c] sm:$0xf]
        %v9532 = vld [vmem:[#allocation9 + $0x190] sm:$0xf]
        %v9533 = vld [vmem:[#allocation9 + $0x194] sm:$0xf]
        %v9534 = vld [vmem:[#allocation9 + $0x198] sm:$0xf]
        %v9535 = vld [vmem:[#allocation9 + $0x19c] sm:$0xf]
        %v9536 = vld [vmem:[#allocation9 + $0x1a0] sm:$0xf]
        %v9537 = vld [vmem:[#allocation9 + $0x1a4] sm:$0xf]
        %v9538 = vld [vmem:[#allocation9 + $0x1a8] sm:$0xf]
        %v9539 = vld [vmem:[#allocation9 + $0x1ac] sm:$0xf]
        %v9540 = vld [vmem:[#allocation9 + $0x1b0] sm:$0xf]
        %v9541 = vld [vmem:[#allocation9 + $0x1b4] sm:$0xf]
        %v9542 = vld [vmem:[#allocation9 + $0x1b8] sm:$0xf]
        %v9543 = vld [vmem:[#allocation9 + $0x1bc] sm:$0xf]
        %v9544 = vld [vmem:[#allocation9 + $0x1c0] sm:$0xf]
        %v9545 = vld [vmem:[#allocation9 + $0x1c4] sm:$0xf]
        %v9546 = vld [vmem:[#allocation9 + $0x1c8] sm:$0xf]
        %v9547 = vld [vmem:[#allocation9 + $0x1cc] sm:$0xf]
        %v9548 = vld [vmem:[#allocation9 + $0x1d0] sm:$0xf]
        %v9549 = vld [vmem:[#allocation9 + $0x1d4] sm:$0xf]
        %v9550 = vld [vmem:[#allocation9 + $0x1d8] sm:$0xf]
        %v9551 = vld [vmem:[#allocation9 + $0x1dc] sm:$0xf]
        %v9552 = vld [vmem:[#allocation9 + $0x1e0] sm:$0xf]
        %v9553 = vld [vmem:[#allocation9 + $0x1e4] sm:$0xf]
        %v9554 = vld [vmem:[#allocation9 + $0x1e8] sm:$0xf]
        %v9555 = vld [vmem:[#allocation9 + $0x1ec] sm:$0xf]
        %v9556 = vld [vmem:[#allocation9 + $0x1f0] sm:$0xf]
        %v9557 = vld [vmem:[#allocation9 + $0x1f4] sm:$0xf]
        %v9558 = vld [vmem:[#allocation9 + $0x1f8] sm:$0xf]
        %v9559 = vld [vmem:[#allocation9 + $0x1fc] sm:$0xf]
        %v9560 = vld [vmem:[#allocation9 + $0x200] sm:$0xf]
        %v9561 = vld [vmem:[#allocation9 + $0x204] sm:$0xf]
        %v9562 = vld [vmem:[#allocation9 + $0x208] sm:$0xf]
        %v9563 = vld [vmem:[#allocation9 + $0x20c] sm:$0xf]
        %v9564 = vld [vmem:[#allocation9 + $0x210] sm:$0xf]
        %v9565 = vld [vmem:[#allocation9 + $0x214] sm:$0xf]
        %v9566 = vld [vmem:[#allocation9 + $0x218] sm:$0xf]
        %v9567 = vld [vmem:[#allocation9 + $0x21c] sm:$0xf]
        %v9568 = vld [vmem:[#allocation9 + $0x220] sm:$0xf]
        %v9569 = vld [vmem:[#allocation9 + $0x224] sm:$0xf]
        %v9570 = vld [vmem:[#allocation9 + $0x228] sm:$0xf]
        %v9571 = vld [vmem:[#allocation9 + $0x22c] sm:$0xf]
        %v9572 = vld [vmem:[#allocation9 + $0x230] sm:$0xf]
        %v9573 = vld [vmem:[#allocation9 + $0x234] sm:$0xf]
        %v9574 = vld [vmem:[#allocation9 + $0x238] sm:$0xf]
        %v9575 = vld [vmem:[#allocation9 + $0x23c] sm:$0xf]
        %v9624 = vunpack.c.l.b16 %v9528
        %v9625 = vunpack.c.l.b16 %v9529
        %v9626 = vunpack.c.l.b16 %v9530
        %v9627 = vunpack.c.l.b16 %v9531
        %v9628 = vunpack.c.l.b16 %v9532
        %v9629 = vunpack.c.l.b16 %v9533
        %v9630 = vunpack.c.l.b16 %v9534
        %v9631 = vunpack.c.l.b16 %v9535
        %v9632 = vunpack.c.l.b16 %v9536
        %v9633 = vunpack.c.l.b16 %v9537
        %v9634 = vunpack.c.l.b16 %v9538
        %v9635 = vunpack.c.l.b16 %v9539
        %v9636 = vunpack.c.l.b16 %v9540
        %v9637 = vunpack.c.l.b16 %v9541
        %v9638 = vunpack.c.l.b16 %v9542
        %v9639 = vunpack.c.l.b16 %v9543
        %v9640 = vunpack.c.l.b16 %v9544
        %v9641 = vunpack.c.l.b16 %v9545
        %v9642 = vunpack.c.l.b16 %v9546
        %v9643 = vunpack.c.l.b16 %v9547
        %v9644 = vunpack.c.l.b16 %v9548
        %v9645 = vunpack.c.l.b16 %v9549
        %v9646 = vunpack.c.l.b16 %v9550
        %v9647 = vunpack.c.l.b16 %v9551
        %v9648 = vunpack.c.l.b16 %v9552
        %v9649 = vunpack.c.l.b16 %v9553
        %v9650 = vunpack.c.l.b16 %v9554
        %v9651 = vunpack.c.l.b16 %v9555
        %v9652 = vunpack.c.l.b16 %v9556
        %v9653 = vunpack.c.l.b16 %v9557
        %v9654 = vunpack.c.l.b16 %v9558
        %v9655 = vunpack.c.l.b16 %v9559
        %v9656 = vunpack.c.l.b16 %v9560
        %v9657 = vunpack.c.l.b16 %v9561
        %v9658 = vunpack.c.l.b16 %v9562
        %v9659 = vunpack.c.l.b16 %v9563
        %v9660 = vunpack.c.l.b16 %v9564
        %v9661 = vunpack.c.l.b16 %v9565
        %v9662 = vunpack.c.l.b16 %v9566
        %v9663 = vunpack.c.l.b16 %v9567
        %v9664 = vunpack.c.l.b16 %v9568
        %v9665 = vunpack.c.l.b16 %v9569
        %v9666 = vunpack.c.l.b16 %v9570
        %v9667 = vunpack.c.l.b16 %v9571
        %v9668 = vunpack.c.l.b16 %v9572
        %v9669 = vunpack.c.l.b16 %v9573
        %v9670 = vunpack.c.l.b16 %v9574
        %v9671 = vunpack.c.l.b16 %v9575
        %v9672 = vpack.c.b16 %v9625, %v9624
        %v9673 = vpack.c.b16 %v9627, %v9626
        %v9674 = vpack.c.b16 %v9629, %v9628
        %v9675 = vpack.c.b16 %v9631, %v9630
        %v9676 = vpack.c.b16 %v9633, %v9632
        %v9677 = vpack.c.b16 %v9635, %v9634
        %v9678 = vpack.c.b16 %v9637, %v9636
        %v9679 = vpack.c.b16 %v9639, %v9638
        %v9680 = vpack.c.b16 %v9641, %v9640
        %v9681 = vpack.c.b16 %v9643, %v9642
        %v9682 = vpack.c.b16 %v9645, %v9644
        %v9683 = vpack.c.b16 %v9647, %v9646
        %v9684 = vpack.c.b16 %v9649, %v9648
        %v9685 = vpack.c.b16 %v9651, %v9650
        %v9686 = vpack.c.b16 %v9653, %v9652
        %v9687 = vpack.c.b16 %v9655, %v9654
        %v9688 = vpack.c.b16 %v9657, %v9656
        %v9689 = vpack.c.b16 %v9659, %v9658
        %v9690 = vpack.c.b16 %v9661, %v9660
        %v9691 = vpack.c.b16 %v9663, %v9662
        %v9692 = vpack.c.b16 %v9665, %v9664
        %v9693 = vpack.c.b16 %v9667, %v9666
        %v9694 = vpack.c.b16 %v9669, %v9668
        %v9695 = vpack.c.b16 %v9671, %v9670
        %9720 = vmatprep.subr.bf16.mxu0 0
        %9721 = vmatpush1.bf16.msra.mxu0 %v9672
        %9722 = vmatprep.subr.bf16.mxu0 0
        %9723 = vmatpush1.bf16.msra.mxu0 %v9673
        %9724 = vmatprep.subr.bf16.mxu0 0
        %9725 = vmatpush1.bf16.msra.mxu0 %v9674
        %9726 = vmatprep.subr.bf16.mxu0 0
        %9727 = vmatpush1.bf16.msra.mxu0 %v9675
        %9728 = vmatprep.subr.bf16.mxu0 0
        %9729 = vmatpush1.bf16.msra.mxu0 %v9676
        %9730 = vmatprep.subr.bf16.mxu0 0
        %9731 = vmatpush1.bf16.msra.mxu0 %v9677
        %9732 = vmatprep.subr.bf16.mxu0 0
        %9733 = vmatpush1.bf16.msra.mxu0 %v9678
        %9734 = vmatprep.subr.bf16.mxu0 0
        %9735 = vmatpush1.bf16.msra.mxu0 %v9679
        %9736 = vmatprep.subr.bf16.mxu0 0
        %9737 = vmatpush1.bf16.msra.mxu0 %v9680
        %9738 = vmatprep.subr.bf16.mxu0 0
        %9739 = vmatpush1.bf16.msra.mxu0 %v9681
        %9740 = vmatprep.subr.bf16.mxu0 0
        %9741 = vmatpush1.bf16.msra.mxu0 %v9682
        %9742 = vmatprep.subr.bf16.mxu0 0
        %9743 = vmatpush1.bf16.msra.mxu0 %v9683
        %9744 = vmatprep.subr.bf16.mxu0 0
        %9745 = vmatpush1.bf16.msra.mxu0 %v9684
        %9746 = vmatprep.subr.bf16.mxu0 0
        %9747 = vmatpush1.bf16.msra.mxu0 %v9685
        %9748 = vmatprep.subr.bf16.mxu0 0
        %9749 = vmatpush1.bf16.msra.mxu0 %v9686
        %9750 = vmatprep.subr.bf16.mxu0 0
        %9751 = vmatpush1.bf16.msra.mxu0 %v9687
        %9752 = vmatprep.mubr.bf16.mxu0 %v9432
        %9753 = vmatmul.mubr.bf16.gmra.mrb[0].mxu0 %v9368
        %v9754 = vpop.f32.mrb[0].mxu0
        %v9755 = vadd.f32 0.0, %v9754
        %v9756 = vpop.f32.mrb[0].mxu0
        %v9757 = vpop.f32.mrb[0].mxu0
        %v9758 = vadd.f32 0.0, %v9757
        %v9759 = vpop.f32.mrb[0].mxu0
        %9760 = vmatprep.mubr.bf16.mxu0 %v9433
        %9761 = vmatmul.mubr.bf16.gmra.mrb[0].mxu0 %v9369
        %v9762 = vpop.f32.mrb[0].mxu0
        %v9763 = vadd.f32 0.0, %v9762
        %v9764 = vpop.f32.mrb[0].mxu0
        %v9765 = vpop.f32.mrb[0].mxu0
        %v9766 = vadd.f32 0.0, %v9765
        %v9767 = vpop.f32.mrb[0].mxu0
        %9768 = vmatprep.mubr.bf16.mxu0 %v9434
        %9769 = vmatmul.mubr.bf16.gmra.mrb[0].mxu0 %v9370
        %v9770 = vpop.f32.mrb[0].mxu0
        %v9771 = vadd.f32 0.0, %v9770
        %v9772 = vpop.f32.mrb[0].mxu0
        %v9773 = vpop.f32.mrb[0].mxu0
        %v9774 = vadd.f32 0.0, %v9773
        %v9775 = vpop.f32.mrb[0].mxu0
        %9776 = vmatprep.mubr.bf16.mxu0 %v9435
        %9777 = vmatmul.mubr.bf16.gmra.mrb[0].mxu0 %v9371
        %v9778 = vpop.f32.mrb[0].mxu0
        %v9779 = vadd.f32 0.0, %v9778
        %v9780 = vpop.f32.mrb[0].mxu0
        %v9781 = vpop.f32.mrb[0].mxu0
        %v9782 = vadd.f32 0.0, %v9781
        %v9783 = vpop.f32.mrb[0].mxu0
        %9784 = vmatprep.mubr.bf16.mxu0 %v9436
        %9785 = vmatmul.mubr.bf16.gmra.mrb[0].mxu0 %v9372
        %v9786 = vpop.f32.mrb[0].mxu0
        %v9787 = vadd.f32 0.0, %v9786
        %v9788 = vpop.f32.mrb[0].mxu0
        %v9789 = vpop.f32.mrb[0].mxu0
        %v9790 = vadd.f32 0.0, %v9789
        %v9791 = vpop.f32.mrb[0].mxu0
        %9792 = vmatprep.mubr.bf16.mxu0 %v9437
        %9793 = vmatmul.mubr.bf16.gmra.mrb[0].mxu0 %v9373
        %v9794 = vpop.f32.mrb[0].mxu0
        %v9795 = vadd.f32 0.0, %v9794
        %v9796 = vpop.f32.mrb[0].mxu0
        %v9797 = vpop.f32.mrb[0].mxu0
        %v9798 = vadd.f32 0.0, %v9797
        %v9799 = vpop.f32.mrb[0].mxu0
        %9800 = vmatprep.mubr.bf16.mxu0 %v9438
        %9801 = vmatmul.mubr.bf16.gmra.mrb[0].mxu0 %v9374
        %v9802 = vpop.f32.mrb[0].mxu0
        %v9803 = vadd.f32 0.0, %v9802
        %v9804 = vpop.f32.mrb[0].mxu0
        %v9805 = vpop.f32.mrb[0].mxu0
        %v9806 = vadd.f32 0.0, %v9805
        %v9807 = vpop.f32.mrb[0].mxu0
        %9808 = vmatprep.mubr.bf16.mxu0 %v9439
        %9809 = vmatmul.mubr.bf16.gmra.mrb[0].mxu0 %v9375
        %v9810 = vpop.f32.mrb[0].mxu0
        %v9811 = vadd.f32 0.0, %v9810
        %v9812 = vpop.f32.mrb[0].mxu0
        %v9813 = vpop.f32.mrb[0].mxu0
        %v9814 = vadd.f32 0.0, %v9813
        %v9815 = vpop.f32.mrb[0].mxu0
        %9816 = vmatprep.mubr.bf16.mxu0 %v9440
        %9817 = vmatmul.mubr.bf16.gmra.mrb[0].mxu0 %v9376
        %v9818 = vpop.f32.mrb[0].mxu0
        %v9819 = vadd.f32 0.0, %v9818
        %v9820 = vpop.f32.mrb[0].mxu0
        %v9821 = vpop.f32.mrb[0].mxu0
        %v9822 = vadd.f32 0.0, %v9821
        %v9823 = vpop.f32.mrb[0].mxu0
        %9824 = vmatprep.mubr.bf16.mxu0 %v9441
        %9825 = vmatmul.mubr.bf16.gmra.mrb[0].mxu0 %v9377
        %v9826 = vpop.f32.mrb[0].mxu0
        %v9827 = vadd.f32 0.0, %v9826
        %v9828 = vpop.f32.mrb[0].mxu0
        %v9829 = vpop.f32.mrb[0].mxu0
        %v9830 = vadd.f32 0.0, %v9829
        %v9831 = vpop.f32.mrb[0].mxu0
        %9832 = vmatprep.mubr.bf16.mxu0 %v9442
        %9833 = vmatmul.mubr.bf16.gmra.mrb[0].mxu0 %v9378
        %v9834 = vpop.f32.mrb[0].mxu0
        %v9835 = vadd.f32 0.0, %v9834
        %v9836 = vpop.f32.mrb[0].mxu0
        %v9837 = vpop.f32.mrb[0].mxu0
        %v9838 = vadd.f32 0.0, %v9837
        %v9839 = vpop.f32.mrb[0].mxu0
        %9840 = vmatprep.mubr.bf16.mxu0 %v9443
        %9841 = vmatmul.mubr.bf16.gmra.mrb[0].mxu0 %v9379
        %v9842 = vpop.f32.mrb[0].mxu0
        %v9843 = vadd.f32 0.0, %v9842
        %v9844 = vpop.f32.mrb[0].mxu0
        %v9845 = vpop.f32.mrb[0].mxu0
        %v9846 = vadd.f32 0.0, %v9845
        %v9847 = vpop.f32.mrb[0].mxu0
        %9848 = vmatprep.mubr.bf16.mxu0 %v9444
        %9849 = vmatmul.mubr.bf16.gmra.mrb[0].mxu0 %v9380
        %v9850 = vpop.f32.mrb[0].mxu0
        %v9851 = vadd.f32 0.0, %v9850
        %v9852 = vpop.f32.mrb[0].mxu0
        %v9853 = vpop.f32.mrb[0].mxu0
        %v9854 = vadd.f32 0.0, %v9853
        %v9855 = vpop.f32.mrb[0].mxu0
        %9856 = vmatprep.mubr.bf16.mxu0 %v9445
        %9857 = vmatmul.mubr.bf16.gmra.mrb[0].mxu0 %v9381
        %v9858 = vpop.f32.mrb[0].mxu0
        %v9859 = vadd.f32 0.0, %v9858
        %v9860 = vpop.f32.mrb[0].mxu0
        %v9861 = vpop.f32.mrb[0].mxu0
        %v9862 = vadd.f32 0.0, %v9861
        %v9863 = vpop.f32.mrb[0].mxu0
        %9864 = vmatprep.mubr.bf16.mxu0 %v9446
        %9865 = vmatmul.mubr.bf16.gmra.mrb[0].mxu0 %v9382
        %v9866 = vpop.f32.mrb[0].mxu0
        %v9867 = vadd.f32 0.0, %v9866
        %v9868 = vpop.f32.mrb[0].mxu0
        %v9869 = vpop.f32.mrb[0].mxu0
        %v9870 = vadd.f32 0.0, %v9869
        %v9871 = vpop.f32.mrb[0].mxu0
        %9872 = vmatprep.mubr.bf16.mxu0 %v9447
        %9873 = vmatmul.mubr.bf16.gmra.mrb[0].mxu0 %v9383
        %v9874 = vpop.f32.mrb[0].mxu0
        %v9875 = vadd.f32 0.0, %v9874
        %v9876 = vpop.f32.mrb[0].mxu0
        %v9877 = vpop.f32.mrb[0].mxu0
        %v9878 = vadd.f32 0.0, %v9877
        %v9879 = vpop.f32.mrb[0].mxu0
        %9880 = vdwg.mxu0
        %9881 = vmatprep.subr.bf16.mxu0 0
        %9882 = vmatpush1.bf16.msra.mxu0 %v9688
        %9883 = vmatprep.subr.bf16.mxu0 0
        %9884 = vmatpush1.bf16.msra.mxu0 %v9689
        %9885 = vmatprep.subr.bf16.mxu0 0
        %9886 = vmatpush1.bf16.msra.mxu0 %v9690
        %9887 = vmatprep.subr.bf16.mxu0 0
        %9888 = vmatpush1.bf16.msra.mxu0 %v9691
        %9889 = vmatprep.subr.bf16.mxu0 0
        %9890 = vmatpush1.bf16.msra.mxu0 %v9692
        %9891 = vmatprep.subr.bf16.mxu0 0
        %9892 = vmatpush1.bf16.msra.mxu0 %v9693
        %9893 = vmatprep.subr.bf16.mxu0 0
        %9894 = vmatpush1.bf16.msra.mxu0 %v9694
        %9895 = vmatprep.subr.bf16.mxu0 0
        %9896 = vmatpush1.bf16.msra.mxu0 %v9695
        %9897 = vmatprep.subr.bf16.mxu0 0
        %9898 = vmatpush1.bf16.msra.mxu0 0
        %9899 = vmatprep.subr.bf16.mxu0 0
        %9900 = vmatpush1.bf16.msra.mxu0 0
        %9901 = vmatprep.subr.bf16.mxu0 0
        %9902 = vmatpush1.bf16.msra.mxu0 0
        %9903 = vmatprep.subr.bf16.mxu0 0
        %9904 = vmatpush1.bf16.msra.mxu0 0
        %9905 = vmatprep.subr.bf16.mxu0 0
        %9906 = vmatpush1.bf16.msra.mxu0 0
        %9907 = vmatprep.subr.bf16.mxu0 0
        %9908 = vmatpush1.bf16.msra.mxu0 0
        %9909 = vmatprep.subr.bf16.mxu0 0
        %9910 = vmatpush1.bf16.msra.mxu0 0
        %9911 = vmatprep.subr.bf16.mxu0 0
        %9912 = vmatpush1.bf16.msra.mxu0 0
        %9913 = vmatprep.mubr.bf16.mxu0 0
        %9914 = vmatmul.mubr.bf16.gmra.mrb[0].mxu0 %v9496
        %v9915 = vpop.f32.mrb[0].mxu0
        %v9916 = vadd.f32 %v9755, %v9915
        %v9917 = vpop.f32.mrb[0].mxu0
        %v9918 = vpop.f32.mrb[0].mxu0
        %v9919 = vadd.f32 %v9758, %v9918
        %v9920 = vpop.f32.mrb[0].mxu0
        %9921 = vmatprep.mubr.bf16.mxu0 0
        %9922 = vmatmul.mubr.bf16.gmra.mrb[0].mxu0 %v9497
        %v9923 = vpop.f32.mrb[0].mxu0
        %v9924 = vadd.f32 %v9763, %v9923
        %v9925 = vpop.f32.mrb[0].mxu0
        %v9926 = vpop.f32.mrb[0].mxu0
        %v9927 = vadd.f32 %v9766, %v9926
        %v9928 = vpop.f32.mrb[0].mxu0
        %9929 = vmatprep.mubr.bf16.mxu0 0
        %9930 = vmatmul.mubr.bf16.gmra.mrb[0].mxu0 %v9498
        %v9931 = vpop.f32.mrb[0].mxu0
        %v9932 = vadd.f32 %v9771, %v9931
        %v9933 = vpop.f32.mrb[0].mxu0
        %v9934 = vpop.f32.mrb[0].mxu0
        %v9935 = vadd.f32 %v9774, %v9934
        %v9936 = vpop.f32.mrb[0].mxu0
        %9937 = vmatprep.mubr.bf16.mxu0 0
        %9938 = vmatmul.mubr.bf16.gmra.mrb[0].mxu0 %v9499
        %v9939 = vpop.f32.mrb[0].mxu0
        %v9940 = vadd.f32 %v9779, %v9939
        %v9941 = vpop.f32.mrb[0].mxu0
        %v9942 = vpop.f32.mrb[0].mxu0
        %v9943 = vadd.f32 %v9782, %v9942
        %v9944 = vpop.f32.mrb[0].mxu0
        %9945 = vmatprep.mubr.bf16.mxu0 0
        %9946 = vmatmul.mubr.bf16.gmra.mrb[0].mxu0 %v9500
        %v9947 = vpop.f32.mrb[0].mxu0
        %v9948 = vadd.f32 %v9787, %v9947
        %v9949 = vpop.f32.mrb[0].mxu0
        %v9950 = vpop.f32.mrb[0].mxu0
        %v9951 = vadd.f32 %v9790, %v9950
        %v9952 = vpop.f32.mrb[0].mxu0
        %9953 = vmatprep.mubr.bf16.mxu0 0
        %9954 = vmatmul.mubr.bf16.gmra.mrb[0].mxu0 %v9501
        %v9955 = vpop.f32.mrb[0].mxu0
        %v9956 = vadd.f32 %v9795, %v9955
        %v9957 = vpop.f32.mrb[0].mxu0
        %v9958 = vpop.f32.mrb[0].mxu0
        %v9959 = vadd.f32 %v9798, %v9958
        %v9960 = vpop.f32.mrb[0].mxu0
        %9961 = vmatprep.mubr.bf16.mxu0 0
        %9962 = vmatmul.mubr.bf16.gmra.mrb[0].mxu0 %v9502
        %v9963 = vpop.f32.mrb[0].mxu0
        %v9964 = vadd.f32 %v9803, %v9963
        %v9965 = vpop.f32.mrb[0].mxu0
        %v9966 = vpop.f32.mrb[0].mxu0
        %v9967 = vadd.f32 %v9806, %v9966
        %v9968 = vpop.f32.mrb[0].mxu0
        %9969 = vmatprep.mubr.bf16.mxu0 0
        %9970 = vmatmul.mubr.bf16.gmra.mrb[0].mxu0 %v9503
        %v9971 = vpop.f32.mrb[0].mxu0
        %v9972 = vadd.f32 %v9811, %v9971
        %v9973 = vpop.f32.mrb[0].mxu0
        %v9974 = vpop.f32.mrb[0].mxu0
        %v9975 = vadd.f32 %v9814, %v9974
        %v9976 = vpop.f32.mrb[0].mxu0
        %9977 = vmatprep.mubr.bf16.mxu0 0
        %9978 = vmatmul.mubr.bf16.gmra.mrb[0].mxu0 %v9504
        %v9979 = vpop.f32.mrb[0].mxu0
        %v9980 = vadd.f32 %v9819, %v9979
        %v9981 = vpop.f32.mrb[0].mxu0
        %v9982 = vpop.f32.mrb[0].mxu0
        %v9983 = vadd.f32 %v9822, %v9982
        %v9984 = vpop.f32.mrb[0].mxu0
        %9985 = vmatprep.mubr.bf16.mxu0 0
        %9986 = vmatmul.mubr.bf16.gmra.mrb[0].mxu0 %v9505
        %v9987 = vpop.f32.mrb[0].mxu0
        %v9988 = vadd.f32 %v9827, %v9987
        %v9989 = vpop.f32.mrb[0].mxu0
        %v9990 = vpop.f32.mrb[0].mxu0
        %v9991 = vadd.f32 %v9830, %v9990
        %v9992 = vpop.f32.mrb[0].mxu0
        %9993 = vmatprep.mubr.bf16.mxu0 0
        %9994 = vmatmul.mubr.bf16.gmra.mrb[0].mxu0 %v9506
        %v9995 = vpop.f32.mrb[0].mxu0
        %v9996 = vadd.f32 %v9835, %v9995
        %v9997 = vpop.f32.mrb[0].mxu0
        %v9998 = vpop.f32.mrb[0].mxu0
        %v9999 = vadd.f32 %v9838, %v9998
        %v10000 = vpop.f32.mrb[0].mxu0
        %10001 = vmatprep.mubr.bf16.mxu0 0
        %10002 = vmatmul.mubr.bf16.gmra.mrb[0].mxu0 %v9507
        %v10003 = vpop.f32.mrb[0].mxu0
        %v10004 = vadd.f32 %v9843, %v10003
        %v10005 = vpop.f32.mrb[0].mxu0
        %v10006 = vpop.f32.mrb[0].mxu0
        %v10007 = vadd.f32 %v9846, %v10006
        %v10008 = vpop.f32.mrb[0].mxu0
        %10009 = vmatprep.mubr.bf16.mxu0 0
        %10010 = vmatmul.mubr.bf16.gmra.mrb[0].mxu0 %v9508
        %v10011 = vpop.f32.mrb[0].mxu0
        %v10012 = vadd.f32 %v9851, %v10011
        %v10013 = vpop.f32.mrb[0].mxu0
        %v10014 = vpop.f32.mrb[0].mxu0
        %v10015 = vadd.f32 %v9854, %v10014
        %v10016 = vpop.f32.mrb[0].mxu0
        %10017 = vmatprep.mubr.bf16.mxu0 0
        %10018 = vmatmul.mubr.bf16.gmra.mrb[0].mxu0 %v9509
        %v10019 = vpop.f32.mrb[0].mxu0
        %v10020 = vadd.f32 %v9859, %v10019
        %v10021 = vpop.f32.mrb[0].mxu0
        %v10022 = vpop.f32.mrb[0].mxu0
        %v10023 = vadd.f32 %v9862, %v10022
        %v10024 = vpop.f32.mrb[0].mxu0
        %10025 = vmatprep.mubr.bf16.mxu0 0
        %10026 = vmatmul.mubr.bf16.gmra.mrb[0].mxu0 %v9510
        %v10027 = vpop.f32.mrb[0].mxu0
        %v10028 = vadd.f32 %v9867, %v10027
        %v10029 = vpop.f32.mrb[0].mxu0
        %v10030 = vpop.f32.mrb[0].mxu0
        %v10031 = vadd.f32 %v9870, %v10030
        %v10032 = vpop.f32.mrb[0].mxu0
        %10033 = vmatprep.mubr.bf16.mxu0 0
        %10034 = vmatmul.mubr.bf16.gmra.mrb[0].mxu0 %v9511
        %v10035 = vpop.f32.mrb[0].mxu0
        %v10036 = vadd.f32 %v9875, %v10035
        %v10037 = vpop.f32.mrb[0].mxu0
        %v10038 = vpop.f32.mrb[0].mxu0
        %v10039 = vadd.f32 %v9878, %v10038
        %v10040 = vpop.f32.mrb[0].mxu0
        %10041 = vdwg.mxu0
        %v10042 = vadd.f32 %v8586, %v9916
        %v10043 = vadd.f32 %v8589, %v9919
        %v10044 = vadd.f32 %v8594, %v9924
        %v10045 = vadd.f32 %v8597, %v9927
        %v10046 = vadd.f32 %v8602, %v9932
        %v10047 = vadd.f32 %v8605, %v9935
        %v10048 = vadd.f32 %v8610, %v9940
        %v10049 = vadd.f32 %v8613, %v9943
        %v10050 = vadd.f32 %v8618, %v9948
        %v10051 = vadd.f32 %v8621, %v9951
        %v10052 = vadd.f32 %v8626, %v9956
        %v10053 = vadd.f32 %v8629, %v9959
        %v10054 = vadd.f32 %v8634, %v9964
        %v10055 = vadd.f32 %v8637, %v9967
        %v10056 = vadd.f32 %v8642, %v9972
        %v10057 = vadd.f32 %v8645, %v9975
        %v10058 = vadd.f32 %v8650, %v9980
        %v10059 = vadd.f32 %v8653, %v9983
        %v10060 = vadd.f32 %v8658, %v9988
        %v10061 = vadd.f32 %v8661, %v9991
        %v10062 = vadd.f32 %v8666, %v9996
        %v10063 = vadd.f32 %v8669, %v9999
        %v10064 = vadd.f32 %v8674, %v10004
        %v10065 = vadd.f32 %v8677, %v10007
        %v10066 = vadd.f32 %v8682, %v10012
        %v10067 = vadd.f32 %v8685, %v10015
        %v10068 = vadd.f32 %v8690, %v10020
        %v10069 = vadd.f32 %v8693, %v10023
        %v10070 = vadd.f32 %v8698, %v10028
        %v10071 = vadd.f32 %v8701, %v10031
        %v10072 = vadd.f32 %v8706, %v10036
        %v10073 = vadd.f32 %v8709, %v10039
        %v10075 = vlaneseq
        %v10076 = vshrl.u32 %v10075, 7
        %v10077 = vsub.s32 0, %v10076
        %v10078 = vrot.slane %v5540, %v10077
        %v10080 = vadd.f32 %v10042, %v10078
        %v10081 = vadd.f32 %v10043, %v10078
        %v10082 = vadd.f32 %v10044, %v10078
        %v10083 = vadd.f32 %v10045, %v10078
        %v10084 = vadd.f32 %v10046, %v10078
        %v10085 = vadd.f32 %v10047, %v10078
        %v10086 = vadd.f32 %v10048, %v10078
        %v10087 = vadd.f32 %v10049, %v10078
        %v10088 = vadd.f32 %v10050, %v10078
        %v10089 = vadd.f32 %v10051, %v10078
        %v10090 = vadd.f32 %v10052, %v10078
        %v10091 = vadd.f32 %v10053, %v10078
        %v10092 = vadd.f32 %v10054, %v10078
        %v10093 = vadd.f32 %v10055, %v10078
        %v10094 = vadd.f32 %v10056, %v10078
        %v10095 = vadd.f32 %v10057, %v10078
        %v10096 = vadd.f32 %v10058, %v10078
        %v10097 = vadd.f32 %v10059, %v10078
        %v10098 = vadd.f32 %v10060, %v10078
        %v10099 = vadd.f32 %v10061, %v10078
        %v10100 = vadd.f32 %v10062, %v10078
        %v10101 = vadd.f32 %v10063, %v10078
        %v10102 = vadd.f32 %v10064, %v10078
        %v10103 = vadd.f32 %v10065, %v10078
        %v10104 = vadd.f32 %v10066, %v10078
        %v10105 = vadd.f32 %v10067, %v10078
        %v10106 = vadd.f32 %v10068, %v10078
        %v10107 = vadd.f32 %v10069, %v10078
        %v10108 = vadd.f32 %v10070, %v10078
        %v10109 = vadd.f32 %v10071, %v10078
        %v10110 = vadd.f32 %v10072, %v10078
        %v10111 = vadd.f32 %v10073, %v10078
        %v10112 = vmax.f32 %v10080, 0.0
        %v10113 = vmax.f32 %v10081, 0.0
        %v10114 = vmax.f32 %v10082, 0.0
        %v10115 = vmax.f32 %v10083, 0.0
        %v10116 = vmax.f32 %v10084, 0.0
        %v10117 = vmax.f32 %v10085, 0.0
        %v10118 = vmax.f32 %v10086, 0.0
        %v10119 = vmax.f32 %v10087, 0.0
        %v10120 = vmax.f32 %v10088, 0.0
        %v10121 = vmax.f32 %v10089, 0.0
        %v10122 = vmax.f32 %v10090, 0.0
        %v10123 = vmax.f32 %v10091, 0.0
        %v10124 = vmax.f32 %v10092, 0.0
        %v10125 = vmax.f32 %v10093, 0.0
        %v10126 = vmax.f32 %v10094, 0.0
        %v10127 = vmax.f32 %v10095, 0.0
        %v10128 = vmax.f32 %v10096, 0.0
        %v10129 = vmax.f32 %v10097, 0.0
        %v10130 = vmax.f32 %v10098, 0.0
        %v10131 = vmax.f32 %v10099, 0.0
        %v10132 = vmax.f32 %v10100, 0.0
        %v10133 = vmax.f32 %v10101, 0.0
        %v10134 = vmax.f32 %v10102, 0.0
        %v10135 = vmax.f32 %v10103, 0.0
        %v10136 = vmax.f32 %v10104, 0.0
        %v10137 = vmax.f32 %v10105, 0.0
        %v10138 = vmax.f32 %v10106, 0.0
        %v10139 = vmax.f32 %v10107, 0.0
        %v10140 = vmax.f32 %v10108, 0.0
        %v10141 = vmax.f32 %v10109, 0.0
        %v10142 = vmax.f32 %v10110, 0.0
        %v10143 = vmax.f32 %v10111, 0.0
        %v10144 = vunpack.c.l.bf16 %v379
        %v10145 = vunpack.c.l.bf16 %v380
        %v10146 = vunpack.c.l.bf16 %v381
        %v10147 = vunpack.c.l.bf16 %v382
        %v10148 = vunpack.c.l.bf16 %v383
        %v10149 = vunpack.c.l.bf16 %v384
        %v10150 = vunpack.c.l.bf16 %v385
        %v10151 = vunpack.c.l.bf16 %v386
        %v10152 = vunpack.c.l.bf16 %v387
        %v10153 = vunpack.c.l.bf16 %v388
        %v10154 = vunpack.c.l.bf16 %v389
        %v10155 = vunpack.c.l.bf16 %v390
        %v10156 = vunpack.c.l.bf16 %v391
        %v10157 = vunpack.c.l.bf16 %v392
        %v10158 = vunpack.c.l.bf16 %v393
        %v10159 = vunpack.c.l.bf16 %v394
        %v10160 = vunpack.c.l.bf16 %v395
        %v10161 = vunpack.c.l.bf16 %v396
        %v10162 = vunpack.c.l.bf16 %v397
        %v10163 = vunpack.c.l.bf16 %v398
        %v10164 = vunpack.c.l.bf16 %v399
        %v10165 = vunpack.c.l.bf16 %v400
        %v10166 = vunpack.c.l.bf16 %v401
        %v10167 = vunpack.c.l.bf16 %v402
        %v10168 = vunpack.c.l.bf16 %v403
        %v10169 = vunpack.c.l.bf16 %v404
        %v10170 = vunpack.c.l.bf16 %v405
        %v10171 = vunpack.c.l.bf16 %v406
        %v10172 = vunpack.c.l.bf16 %v407
        %v10173 = vunpack.c.l.bf16 %v408
        %v10174 = vunpack.c.l.bf16 %v409
        %v10175 = vunpack.c.l.bf16 %v410
        %v10176 = vlaneseq
        %v10177 = vand.u32 %v10176, 127
        %vm10178 = vcmp.eq.s32.totalorder %v10177, 126
        %vm10179 = vcmp.eq.s32.totalorder %v10177, 127
        %10181 = vset.pattern.permute.xlu0 63
        %10182 = vperm.xlu0 %10181, %v10144
        %v10183 = vpop.permute.xlu0 %10182
        %10186 = vset.pattern.permute.xlu0 63
        %10187 = vperm.xlu0 %10186, %v10145
        %v10188 = vpop.permute.xlu0 %10187
        %10191 = vset.pattern.permute.xlu0 63
        %10192 = vperm.xlu0 %10191, %v10146
        %v10193 = vpop.permute.xlu0 %10192
        %10196 = vset.pattern.permute.xlu0 63
        %10197 = vperm.xlu0 %10196, %v10147
        %v10198 = vpop.permute.xlu0 %10197
        %10201 = vset.pattern.permute.xlu0 63
        %10202 = vperm.xlu0 %10201, %v10148
        %v10203 = vpop.permute.xlu0 %10202
        %10206 = vset.pattern.permute.xlu0 63
        %10207 = vperm.xlu0 %10206, %v10149
        %v10208 = vpop.permute.xlu0 %10207
        %10211 = vset.pattern.permute.xlu0 63
        %10212 = vperm.xlu0 %10211, %v10150
        %v10213 = vpop.permute.xlu0 %10212
        %10216 = vset.pattern.permute.xlu0 63
        %10217 = vperm.xlu0 %10216, %v10151
        %v10218 = vpop.permute.xlu0 %10217
        %10221 = vset.pattern.permute.xlu0 63
        %10222 = vperm.xlu0 %10221, %v10152
        %v10223 = vpop.permute.xlu0 %10222
        %10226 = vset.pattern.permute.xlu0 63
        %10227 = vperm.xlu0 %10226, %v10153
        %v10228 = vpop.permute.xlu0 %10227
        %10231 = vset.pattern.permute.xlu0 63
        %10232 = vperm.xlu0 %10231, %v10154
        %v10233 = vpop.permute.xlu0 %10232
        %10236 = vset.pattern.permute.xlu0 63
        %10237 = vperm.xlu0 %10236, %v10155
        %v10238 = vpop.permute.xlu0 %10237
        %10241 = vset.pattern.permute.xlu0 63
        %10242 = vperm.xlu0 %10241, %v10156
        %v10243 = vpop.permute.xlu0 %10242
        %10246 = vset.pattern.permute.xlu0 63
        %10247 = vperm.xlu0 %10246, %v10157
        %v10248 = vpop.permute.xlu0 %10247
        %10251 = vset.pattern.permute.xlu0 63
        %10252 = vperm.xlu0 %10251, %v10158
        %v10253 = vpop.permute.xlu0 %10252
        %10256 = vset.pattern.permute.xlu0 63
        %10257 = vperm.xlu0 %10256, %v10159
        %v10258 = vpop.permute.xlu0 %10257
        %10261 = vset.pattern.permute.xlu0 63
        %10262 = vperm.xlu0 %10261, %v10160
        %v10263 = vpop.permute.xlu0 %10262
        %10266 = vset.pattern.permute.xlu0 63
        %10267 = vperm.xlu0 %10266, %v10161
        %v10268 = vpop.permute.xlu0 %10267
        %10271 = vset.pattern.permute.xlu0 63
        %10272 = vperm.xlu0 %10271, %v10162
        %v10273 = vpop.permute.xlu0 %10272
        %10276 = vset.pattern.permute.xlu0 63
        %10277 = vperm.xlu0 %10276, %v10163
        %v10278 = vpop.permute.xlu0 %10277
        %10281 = vset.pattern.permute.xlu0 63
        %10282 = vperm.xlu0 %10281, %v10164
        %v10283 = vpop.permute.xlu0 %10282
        %10286 = vset.pattern.permute.xlu0 63
        %10287 = vperm.xlu0 %10286, %v10165
        %v10288 = vpop.permute.xlu0 %10287
        %10291 = vset.pattern.permute.xlu0 63
        %10292 = vperm.xlu0 %10291, %v10166
        %v10293 = vpop.permute.xlu0 %10292
        %10296 = vset.pattern.permute.xlu0 63
        %10297 = vperm.xlu0 %10296, %v10167
        %v10298 = vpop.permute.xlu0 %10297
        %10301 = vset.pattern.permute.xlu0 63
        %10302 = vperm.xlu0 %10301, %v10168
        %v10303 = vpop.permute.xlu0 %10302
        %10306 = vset.pattern.permute.xlu0 63
        %10307 = vperm.xlu0 %10306, %v10169
        %v10308 = vpop.permute.xlu0 %10307
        %10311 = vset.pattern.permute.xlu0 63
        %10312 = vperm.xlu0 %10311, %v10170
        %v10313 = vpop.permute.xlu0 %10312
        %10316 = vset.pattern.permute.xlu0 63
        %10317 = vperm.xlu0 %10316, %v10171
        %v10318 = vpop.permute.xlu0 %10317
        %10321 = vset.pattern.permute.xlu0 63
        %10322 = vperm.xlu0 %10321, %v10172
        %v10323 = vpop.permute.xlu0 %10322
        %10326 = vset.pattern.permute.xlu0 63
        %10327 = vperm.xlu0 %10326, %v10173
        %v10328 = vpop.permute.xlu0 %10327
        %10331 = vset.pattern.permute.xlu0 63
        %10332 = vperm.xlu0 %10331, %v10174
        %v10333 = vpop.permute.xlu0 %10332
        %10336 = vset.pattern.permute.xlu0 63
        %10337 = vperm.xlu0 %10336, %v10175
        %v10338 = vpop.permute.xlu0 %10337
        %v10340 = vsel %vm10179, %v10183, 0.0
        %v10341 = vsel %vm10179, %v10188, 0.0
        %v10342 = vsel %vm10179, %v10193, 0.0
        %v10343 = vsel %vm10179, %v10198, 0.0
        %v10344 = vsel %vm10179, %v10203, 0.0
        %v10345 = vsel %vm10179, %v10208, 0.0
        %v10346 = vsel %vm10179, %v10213, 0.0
        %v10347 = vsel %vm10179, %v10218, 0.0
        %v10348 = vsel %vm10179, %v10223, 0.0
        %v10349 = vsel %vm10179, %v10228, 0.0
        %v10350 = vsel %vm10179, %v10233, 0.0
        %v10351 = vsel %vm10179, %v10238, 0.0
        %v10352 = vsel %vm10179, %v10243, 0.0
        %v10353 = vsel %vm10179, %v10248, 0.0
        %v10354 = vsel %vm10179, %v10253, 0.0
        %v10355 = vsel %vm10179, %v10258, 0.0
        %v10356 = vsel %vm10179, %v10263, 0.0
        %v10357 = vsel %vm10179, %v10268, 0.0
        %v10358 = vsel %vm10179, %v10273, 0.0
        %v10359 = vsel %vm10179, %v10278, 0.0
        %v10360 = vsel %vm10179, %v10283, 0.0
        %v10361 = vsel %vm10179, %v10288, 0.0
        %v10362 = vsel %vm10179, %v10293, 0.0
        %v10363 = vsel %vm10179, %v10298, 0.0
        %v10364 = vsel %vm10179, %v10303, 0.0
        %v10365 = vsel %vm10179, %v10308, 0.0
        %v10366 = vsel %vm10179, %v10313, 0.0
        %v10367 = vsel %vm10179, %v10318, 0.0
        %v10368 = vsel %vm10179, %v10323, 0.0
        %v10369 = vsel %vm10179, %v10328, 0.0
        %v10370 = vsel %vm10179, %v10333, 0.0
        %v10371 = vsel %vm10179, %v10338, 0.0
        %10372 = vset.pattern.permute.xlu0 62
        %10373 = vperm.xlu0 %10372, %v10144
        %v10374 = vpop.permute.xlu0 %10373
        %10376 = vset.pattern.permute.xlu0 62
        %10377 = vperm.xlu0 %10376, %v10145
        %v10378 = vpop.permute.xlu0 %10377
        %10380 = vset.pattern.permute.xlu0 62
        %10381 = vperm.xlu0 %10380, %v10146
        %v10382 = vpop.permute.xlu0 %10381
        %10384 = vset.pattern.permute.xlu0 62
        %10385 = vperm.xlu0 %10384, %v10147
        %v10386 = vpop.permute.xlu0 %10385
        %10388 = vset.pattern.permute.xlu0 62
        %10389 = vperm.xlu0 %10388, %v10148
        %v10390 = vpop.permute.xlu0 %10389
        %10392 = vset.pattern.permute.xlu0 62
        %10393 = vperm.xlu0 %10392, %v10149
        %v10394 = vpop.permute.xlu0 %10393
        %10396 = vset.pattern.permute.xlu0 62
        %10397 = vperm.xlu0 %10396, %v10150
        %v10398 = vpop.permute.xlu0 %10397
        %10400 = vset.pattern.permute.xlu0 62
        %10401 = vperm.xlu0 %10400, %v10151
        %v10402 = vpop.permute.xlu0 %10401
        %10404 = vset.pattern.permute.xlu0 62
        %10405 = vperm.xlu0 %10404, %v10152
        %v10406 = vpop.permute.xlu0 %10405
        %10408 = vset.pattern.permute.xlu0 62
        %10409 = vperm.xlu0 %10408, %v10153
        %v10410 = vpop.permute.xlu0 %10409
        %10412 = vset.pattern.permute.xlu0 62
        %10413 = vperm.xlu0 %10412, %v10154
        %v10414 = vpop.permute.xlu0 %10413
        %10416 = vset.pattern.permute.xlu0 62
        %10417 = vperm.xlu0 %10416, %v10155
        %v10418 = vpop.permute.xlu0 %10417
        %10420 = vset.pattern.permute.xlu0 62
        %10421 = vperm.xlu0 %10420, %v10156
        %v10422 = vpop.permute.xlu0 %10421
        %10424 = vset.pattern.permute.xlu0 62
        %10425 = vperm.xlu0 %10424, %v10157
        %v10426 = vpop.permute.xlu0 %10425
        %10428 = vset.pattern.permute.xlu0 62
        %10429 = vperm.xlu0 %10428, %v10158
        %v10430 = vpop.permute.xlu0 %10429
        %10432 = vset.pattern.permute.xlu0 62
        %10433 = vperm.xlu0 %10432, %v10159
        %v10434 = vpop.permute.xlu0 %10433
        %10436 = vset.pattern.permute.xlu0 62
        %10437 = vperm.xlu0 %10436, %v10160
        %v10438 = vpop.permute.xlu0 %10437
        %10440 = vset.pattern.permute.xlu0 62
        %10441 = vperm.xlu0 %10440, %v10161
        %v10442 = vpop.permute.xlu0 %10441
        %10444 = vset.pattern.permute.xlu0 62
        %10445 = vperm.xlu0 %10444, %v10162
        %v10446 = vpop.permute.xlu0 %10445
        %10448 = vset.pattern.permute.xlu0 62
        %10449 = vperm.xlu0 %10448, %v10163
        %v10450 = vpop.permute.xlu0 %10449
        %10452 = vset.pattern.permute.xlu0 62
        %10453 = vperm.xlu0 %10452, %v10164
        %v10454 = vpop.permute.xlu0 %10453
        %10456 = vset.pattern.permute.xlu0 62
        %10457 = vperm.xlu0 %10456, %v10165
        %v10458 = vpop.permute.xlu0 %10457
        %10460 = vset.pattern.permute.xlu0 62
        %10461 = vperm.xlu0 %10460, %v10166
        %v10462 = vpop.permute.xlu0 %10461
        %10464 = vset.pattern.permute.xlu0 62
        %10465 = vperm.xlu0 %10464, %v10167
        %v10466 = vpop.permute.xlu0 %10465
        %10468 = vset.pattern.permute.xlu0 62
        %10469 = vperm.xlu0 %10468, %v10168
        %v10470 = vpop.permute.xlu0 %10469
        %10472 = vset.pattern.permute.xlu0 62
        %10473 = vperm.xlu0 %10472, %v10169
        %v10474 = vpop.permute.xlu0 %10473
        %10476 = vset.pattern.permute.xlu0 62
        %10477 = vperm.xlu0 %10476, %v10170
        %v10478 = vpop.permute.xlu0 %10477
        %10480 = vset.pattern.permute.xlu0 62
        %10481 = vperm.xlu0 %10480, %v10171
        %v10482 = vpop.permute.xlu0 %10481
        %10484 = vset.pattern.permute.xlu0 62
        %10485 = vperm.xlu0 %10484, %v10172
        %v10486 = vpop.permute.xlu0 %10485
        %10488 = vset.pattern.permute.xlu0 62
        %10489 = vperm.xlu0 %10488, %v10173
        %v10490 = vpop.permute.xlu0 %10489
        %10492 = vset.pattern.permute.xlu0 62
        %10493 = vperm.xlu0 %10492, %v10174
        %v10494 = vpop.permute.xlu0 %10493
        %10496 = vset.pattern.permute.xlu0 62
        %10497 = vperm.xlu0 %10496, %v10175
        %v10498 = vpop.permute.xlu0 %10497
        %v10500 = vsel %vm10178, %v10374, %v10340
        %v10501 = vsel %vm10178, %v10378, %v10341
        %v10502 = vsel %vm10178, %v10382, %v10342
        %v10503 = vsel %vm10178, %v10386, %v10343
        %v10504 = vsel %vm10178, %v10390, %v10344
        %v10505 = vsel %vm10178, %v10394, %v10345
        %v10506 = vsel %vm10178, %v10398, %v10346
        %v10507 = vsel %vm10178, %v10402, %v10347
        %v10508 = vsel %vm10178, %v10406, %v10348
        %v10509 = vsel %vm10178, %v10410, %v10349
        %v10510 = vsel %vm10178, %v10414, %v10350
        %v10511 = vsel %vm10178, %v10418, %v10351
        %v10512 = vsel %vm10178, %v10422, %v10352
        %v10513 = vsel %vm10178, %v10426, %v10353
        %v10514 = vsel %vm10178, %v10430, %v10354
        %v10515 = vsel %vm10178, %v10434, %v10355
        %v10516 = vsel %vm10178, %v10438, %v10356
        %v10517 = vsel %vm10178, %v10442, %v10357
        %v10518 = vsel %vm10178, %v10446, %v10358
        %v10519 = vsel %vm10178, %v10450, %v10359
        %v10520 = vsel %vm10178, %v10454, %v10360
        %v10521 = vsel %vm10178, %v10458, %v10361
        %v10522 = vsel %vm10178, %v10462, %v10362
        %v10523 = vsel %vm10178, %v10466, %v10363
        %v10524 = vsel %vm10178, %v10470, %v10364
        %v10525 = vsel %vm10178, %v10474, %v10365
        %v10526 = vsel %vm10178, %v10478, %v10366
        %v10527 = vsel %vm10178, %v10482, %v10367
        %v10528 = vsel %vm10178, %v10486, %v10368
        %v10529 = vsel %vm10178, %v10490, %v10369
        %v10530 = vsel %vm10178, %v10494, %v10370
        %v10531 = vsel %vm10178, %v10498, %v10371
        %v10532 = vadd.f32 %v10112, %v10500
        %v10533 = vadd.f32 %v10113, %v10501
        %v10534 = vadd.f32 %v10114, %v10502
        %v10535 = vadd.f32 %v10115, %v10503
        %v10536 = vadd.f32 %v10116, %v10504
        %v10537 = vadd.f32 %v10117, %v10505
        %v10538 = vadd.f32 %v10118, %v10506
        %v10539 = vadd.f32 %v10119, %v10507
        %v10540 = vadd.f32 %v10120, %v10508
        %v10541 = vadd.f32 %v10121, %v10509
        %v10542 = vadd.f32 %v10122, %v10510
        %v10543 = vadd.f32 %v10123, %v10511
        %v10544 = vadd.f32 %v10124, %v10512
        %v10545 = vadd.f32 %v10125, %v10513
        %v10546 = vadd.f32 %v10126, %v10514
        %v10547 = vadd.f32 %v10127, %v10515
        %v10548 = vadd.f32 %v10128, %v10516
        %v10549 = vadd.f32 %v10129, %v10517
        %v10550 = vadd.f32 %v10130, %v10518
        %v10551 = vadd.f32 %v10131, %v10519
        %v10552 = vadd.f32 %v10132, %v10520
        %v10553 = vadd.f32 %v10133, %v10521
        %v10554 = vadd.f32 %v10134, %v10522
        %v10555 = vadd.f32 %v10135, %v10523
        %v10556 = vadd.f32 %v10136, %v10524
        %v10557 = vadd.f32 %v10137, %v10525
        %v10558 = vadd.f32 %v10138, %v10526
        %v10559 = vadd.f32 %v10139, %v10527
        %v10560 = vadd.f32 %v10140, %v10528
        %v10561 = vadd.f32 %v10141, %v10529
        %v10562 = vadd.f32 %v10142, %v10530
        %v10563 = vadd.f32 %v10143, %v10531
        %10564 = vst [vmem:[%s377] sm:$0xff] %v10532
        %10565 = vst [vmem:[%s377 + $0x8] sm:$0xff] %v10533
        %10566 = vst [vmem:[%s377 + $0x10] sm:$0xff] %v10534
        %10567 = vst [vmem:[%s377 + $0x18] sm:$0xff] %v10535
        %10568 = vst [vmem:[%s377 + $0x20] sm:$0xff] %v10536
        %10569 = vst [vmem:[%s377 + $0x28] sm:$0xff] %v10537
        %10570 = vst [vmem:[%s377 + $0x30] sm:$0xff] %v10538
        %10571 = vst [vmem:[%s377 + $0x38] sm:$0xff] %v10539
        %10572 = vst [vmem:[%s377 + $0x40] sm:$0xff] %v10540
        %10573 = vst [vmem:[%s377 + $0x48] sm:$0xff] %v10541
        %10574 = vst [vmem:[%s377 + $0x50] sm:$0xff] %v10542
        %10575 = vst [vmem:[%s377 + $0x58] sm:$0xff] %v10543
        %10576 = vst [vmem:[%s377 + $0x60] sm:$0xff] %v10544
        %10577 = vst [vmem:[%s377 + $0x68] sm:$0xff] %v10545
        %10578 = vst [vmem:[%s377 + $0x70] sm:$0xff] %v10546
        %10579 = vst [vmem:[%s377 + $0x78] sm:$0xff] %v10547
        %10580 = vst [vmem:[%s377 + $0x80] sm:$0xff] %v10548
        %10581 = vst [vmem:[%s377 + $0x88] sm:$0xff] %v10549
        %10582 = vst [vmem:[%s377 + $0x90] sm:$0xff] %v10550
        %10583 = vst [vmem:[%s377 + $0x98] sm:$0xff] %v10551
        %10584 = vst [vmem:[%s377 + $0xa0] sm:$0xff] %v10552
        %10585 = vst [vmem:[%s377 + $0xa8] sm:$0xff] %v10553
        %10586 = vst [vmem:[%s377 + $0xb0] sm:$0xff] %v10554
        %10587 = vst [vmem:[%s377 + $0xb8] sm:$0xff] %v10555
        %10588 = vst [vmem:[%s377 + $0xc0] sm:$0xff] %v10556
        %10589 = vst [vmem:[%s377 + $0xc8] sm:$0xff] %v10557
        %10590 = vst [vmem:[%s377 + $0xd0] sm:$0xff] %v10558
        %10591 = vst [vmem:[%s377 + $0xd8] sm:$0xff] %v10559
        %10592 = vst [vmem:[%s377 + $0xe0] sm:$0xff] %v10560
        %10593 = vst [vmem:[%s377 + $0xe8] sm:$0xff] %v10561
        %10594 = vst [vmem:[%s377 + $0xf0] sm:$0xff] %v10562
        %10595 = vst [vmem:[%s377 + $0xf8] sm:$0xff] %v10563
        %s10596 = sand.u32 %s187, 1
        %s10597 = scalar_lea.sflag [#allocation5], %s10596
        %s10598 = sand.u32 %s187, 1
        %s10599 = smul.addr %s10598, 256
        %s10600 = scalar_lea.vmem [#allocation15], %s10599
        // Predicated region
        $region77: #{tpu_custom_call.1} parent=47 // pred_check
          %p10601 = pneg %p197
        $region78: #{tpu_custom_call.1} parent=47 // pred_check_branch
          %10603 = sbr.rel (%p10601) target = $region80
        $region79: #{tpu_custom_call.1} parent=47 // pred_region
          %s10605 = ssub.s32 4096, 4096
          %10606 = vsyncadd %s10597, %s10605
          %s10607 = smul.addr %s27, 32
          %s10608 = smul.addr %s10607, 128
          %s10609 = scalar_lea.hbm %s7, %s10608
          %s10610 = sshll.u32 %s10600, 4
          %s10611 = int_to_ptr.vmem [resolvable:$true] %s10610
          %10616 = dma.vmem_to_hbm [thread:$0]  %s10611, 4096, %s10609, %s10597, 128, 128, 8
        $region80: #{tpu_custom_call.1} parent=47 // pred_fallthru
          _
      $region48: #{tpu_custom_call.1} parent=5 // pred_fallthru
        _
      %p10617 = scmp.le.s32.totalorder 2, %s22
      // Predicated region
      $region81: #{tpu_custom_call.1} parent=5 // pred_check
        %p10618 = pneg %p10617
      $region82: #{tpu_custom_call.1} parent=5 // pred_check_branch
        %10620 = sbr.rel (%p10618) target = $region84
      $region83: #{tpu_custom_call.1} parent=5 // pred_region
        %s10621 = ssub.s32 %s22, 2
        // Predicated region
        $region85: #{tpu_custom_call.1} parent=83 // pred_check
          %p10622 = pneg %p203
        $region86: #{tpu_custom_call.1} parent=83 // pred_check_branch
          %10624 = sbr.rel (%p10622) target = $region88
        $region87: #{tpu_custom_call.1} parent=83 // pred_region
          %s10625 = sand.u32 %s188, 1
          %s10626 = scalar_lea.sflag [#allocation5], %s10625
          %s10627 = sand.u32 %s188, 1
          %s10628 = smul.addr %s10627, 256
          %s10629 = scalar_lea.vmem [#allocation15], %s10628
          %10630 = dma.done %s10626, 4096
        $region88: #{tpu_custom_call.1} parent=83 // pred_fallthru
          _
      $region84: #{tpu_custom_call.1} parent=5 // pred_fallthru
        _
    $region6: #{tpu_custom_call.1} parent=1 // loop_footer
      %s26 = sadd.s32 1, %s22
    $region7: #{tpu_custom_call.1} parent=1 // loop_footer_branch
      %21 = sbr.rel target = $region3
    $region8: #{tpu_custom_call.1} parent=1 // loop_exit
      _
    %10631 = vsyncpa [#allocation4], 1
    %s10632 = scalar_lea.sflag [#allocation4], 1
    %10633 = vsyncpa %s10632, 1
    %10634 = vsyncpa [#allocation7], 1
    %10635 = vsyncpa [#allocation10], 1
    %10636 = vsyncpa [#allocation13], 1
    %10637 = vsyncpa [#allocation5], 1
    %s10638 = scalar_lea.sflag [#allocation5], 1
    %10639 = vsyncpa %s10638, 1

</llo_original>
